<compile_context>
chip_gen: v7x
topology: tpu7x:2x2x1
jax: 0.10.0
libtpu: 0.0.40
codegen_flags: <defaults>
</compile_context>

<pallas_src>
import functools

import jax
import jax.numpy as jnp
from jax.experimental import pallas as pl
from jax.experimental.pallas import tpu as pltpu

BN_EPS = 1e-5
EXPANSION = 4  # Bottleneck_Baseline.expansion


# ----------------------------------------------------------------------------
# Small helpers
# ----------------------------------------------------------------------------
def _round_up(v, m):
    return ((v + m - 1) // m) * m


def _pick_tm(M, Kp, tn, has_res, tm_target=512, budget_bytes=14 << 20):
    """Largest tm (multiple of 8, <= tm_target) whose double-buffered bf16
    footprint (x, w, out, residual, bias) fits the VMEM budget."""
    tm = min(tm_target, _round_up(max(M, 8), 8))

    def footprint(t):
        b = 2  # bf16 bytes
        f = 2 * t * Kp * b            # x tile, double buffered
        f += 2 * Kp * tn * b          # weight tile
        f += 2 * t * tn * b           # output tile
        f += 2 * tn * 4               # bias row (f32)
        if has_res:
            f += 2 * t * tn * b       # residual tile
        return f

    while tm > 8 and footprint(tm) > budget_bytes:
        tm -= 8
    return max(tm, 8)


# ----------------------------------------------------------------------------
# Pallas kernels
# ----------------------------------------------------------------------------
def _mm_bias_kernel(x_ref, w_ref, b_ref, o_ref, *, relu):
    acc = jnp.dot(x_ref[...], w_ref[...], preferred_element_type=jnp.float32)
    y = acc + b_ref[...]
    if relu:
        y = jnp.maximum(y, 0.0)
    o_ref[...] = y.astype(o_ref.dtype)


def _mm_bias_res_kernel(x_ref, w_ref, b_ref, r_ref, o_ref, *, relu):
    acc = jnp.dot(x_ref[...], w_ref[...], preferred_element_type=jnp.float32)
    y = acc + b_ref[...] + r_ref[...].astype(jnp.float32)
    if relu:
        y = jnp.maximum(y, 0.0)
    o_ref[...] = y.astype(o_ref.dtype)


def _maxpool_kernel(x_ref, o_ref):
    # x_ref: [k*k, tm, C] -> max over window positions (leading axis, VPU max).
    o_ref[...] = jnp.max(x_ref[...], axis=0)


def _avgpool_kernel(x_ref, o_ref):
    # x_ref: [N, H*W, Ct] -> f32 mean over spatial positions.
    o_ref[...] = jnp.mean(x_ref[...].astype(jnp.float32), axis=1)


# ----------------------------------------------------------------------------
# Fused matmul + bias (+ residual) (+ ReLU)
# ----------------------------------------------------------------------------
def fused_matmul_bias(x_mat, w_mat, bias, residual=None, relu=True,
                      out_dtype=jnp.bfloat16, tm_target=512):
    """out = maybe_relu(x_mat @ w_mat + bias (+ residual)); bf16 MXU, f32 acc."""
    M, K = x_mat.shape
    Kw, N = w_mat.shape
    assert K == Kw, (K, Kw)

    Kp = _round_up(K, 128)
    Np = _round_up(N, 128)
    tn = 256 if Np % 256 == 0 else 128
    has_res = residual is not None
    tm = _pick_tm(M, Kp, tn, has_res, tm_target=tm_target)
    Mp = _round_up(M, tm)

    xk = jnp.pad(x_mat.astype(jnp.bfloat16), ((0, Mp - M), (0, Kp - K)))
    wk = jnp.pad(w_mat.astype(jnp.bfloat16), ((0, Kp - K), (0, Np - N)))
    b2 = jnp.pad(bias.astype(jnp.float32).reshape(1, N), ((0, 0), (0, Np - N)))

    in_specs = [
        pl.BlockSpec((tm, Kp), lambda i, j: (i, 0)),
        pl.BlockSpec((Kp, tn), lambda i, j: (0, j)),
        pl.BlockSpec((1, tn), lambda i, j: (0, j)),
    ]
    args = [xk, wk, b2]

    if has_res:
        rk = jnp.pad(residual.astype(jnp.bfloat16), ((0, Mp - M), (0, Np - N)))
        in_specs.append(pl.BlockSpec((tm, tn), lambda i, j: (i, j)))
        args.append(rk)
        kernel = functools.partial(_mm_bias_res_kernel, relu=relu)
    else:
        kernel = functools.partial(_mm_bias_kernel, relu=relu)

    out = pl.pallas_call(
        kernel,
        out_shape=jax.ShapeDtypeStruct((Mp, Np), out_dtype),
        grid=(Mp // tm, Np // tn),
        in_specs=in_specs,
        out_specs=pl.BlockSpec((tm, tn), lambda i, j: (i, j)),
        compiler_params=pltpu.CompilerParams(
            dimension_semantics=("parallel", "parallel")),
    )(*args)
    return out[:M, :N]


# ----------------------------------------------------------------------------
# Convolution / pooling wrappers (plain-JAX glue around the Pallas kernels)
# ----------------------------------------------------------------------------
def _window_slices(x, kh, kw, stride, pad, pad_value):
    """x: [N,H,W,C] -> list of kh*kw shifted slices, each [N,Ho,Wo,C]."""
    N, H, W, C = x.shape
    xp = jnp.pad(x, ((0, 0), (pad, pad), (pad, pad), (0, 0)),
                 constant_values=pad_value)
    Ho = (H + 2 * pad - kh) // stride + 1
    Wo = (W + 2 * pad - kw) // stride + 1
    cols = [xp[:, dy:dy + stride * Ho:stride, dx:dx + stride * Wo:stride, :]
            for dy in range(kh) for dx in range(kw)]
    return cols, Ho, Wo


def conv2d_bn(x, fp, kh, kw, stride, padding, relu=True, residual=None):
    """Conv2d(bias=False)+BN folded (+residual) (+ReLU). x: NHWC bf16."""
    K, cout = fp["w_mat"].shape
    cin = K // (kh * kw)
    Nb = x.shape[0]

    if kh == 1 and kw == 1 and padding == 0:
        # 1x1 conv: no im2col -- strided NHWC subsample, straight to matmul.
        xs = x[:, ::stride, ::stride, :] if stride > 1 else x
        Ho, Wo = xs.shape[1], xs.shape[2]
        x_mat = xs.reshape(Nb * Ho * Wo, cin)
    else:
        cols, Ho, Wo = _window_slices(x, kh, kw, stride, padding, 0.0)
        patches = jnp.stack(cols, axis=3)                 # [N,Ho,Wo,kk,C]
        x_mat = patches.reshape(Nb * Ho * Wo, kh * kw * cin)

    r_mat = None
    if residual is not None:
        r_mat = residual.reshape(Nb * Ho * Wo, cout)

    out = fused_matmul_bias(x_mat, fp["w_mat"], fp["bias"],
                            residual=r_mat, relu=relu)
    return out.reshape(Nb, Ho, Wo, cout)


def maxpool2d(x, k=3, stride=2, pad=1):
    """MaxPool2d(kernel_size=3, stride=2, padding=1). x: NHWC bf16."""
    N, H, W, C = x.shape
    cols, Ho, Wo = _window_slices(x, k, k, stride, pad, float("-inf"))
    M = N * Ho * Wo
    stacked = jnp.stack(cols, axis=0).reshape(k * k, M, C)   # kk leading, no transpose

    tm = min(512, _round_up(M, 8))
    Mp = _round_up(M, tm)
    if Mp != M:
        stacked = jnp.pad(stacked, ((0, 0), (0, Mp - M), (0, 0)))

    out = pl.pallas_call(
        _maxpool_kernel,
        out_shape=jax.ShapeDtypeStruct((Mp, C), x.dtype),
        grid=(Mp // tm,),
        in_specs=[pl.BlockSpec((k * k, tm, C), lambda i: (0, i, 0))],
        out_specs=pl.BlockSpec((tm, C), lambda i: (i, 0)),
        compiler_params=pltpu.CompilerParams(dimension_semantics=("parallel",)),
    )(stacked)
    return out[:M].reshape(N, Ho, Wo, C)


def global_avgpool(x):
    """AdaptiveAvgPool2d(1) + flatten. x: NHWC -> [N, C] f32, tiled over C."""
    N, H, W, C = x.shape
    xr = x.reshape(N, H * W, C)
    tc = 256 if C % 256 == 0 else (128 if C % 128 == 0 else C)
    return pl.pallas_call(
        _avgpool_kernel,
        out_shape=jax.ShapeDtypeStruct((N, C), jnp.float32),
        grid=(C // tc,),
        in_specs=[pl.BlockSpec((N, H * W, tc), lambda j: (0, 0, j))],
        out_specs=pl.BlockSpec((N, tc), lambda j: (0, j)),
        compiler_params=pltpu.CompilerParams(dimension_semantics=("parallel",)),
    )(xr)


# ----------------------------------------------------------------------------
# Parameter construction (deterministic, mirrors ResNet_Baseline.__init__)
# ----------------------------------------------------------------------------
def _init_conv(key, cout, cin, kh, kw):
    fan_out = cout * kh * kw               # kaiming_normal_, mode='fan_out', relu
    std = (2.0 / fan_out) ** 0.5
    return jax.random.normal(key, (cout, cin, kh, kw), jnp.float32) * std


def _conv_bn_params(key, cout, cin, kh, kw):
    return dict(
        w=_init_conv(key, cout, cin, kh, kw),
        gamma=jnp.ones((cout,), jnp.float32),
        beta=jnp.zeros((cout,), jnp.float32),
        mean=jnp.zeros((cout,), jnp.float32),
        var=jnp.ones((cout,), jnp.float32),
    )


def make_resnet_params(key, layers):
    keys = iter(jax.random.split(key, 256))
    params = {"stem": _conv_bn_params(next(keys), 64, 3, 7, 7)}
    inplanes = 64

    def make_layer(planes, blocks, stride):
        nonlocal inplanes
        layer = []
        for b in range(blocks):
            blk = {
                "conv1": _conv_bn_params(next(keys), planes, inplanes, 1, 1),
                "conv2": _conv_bn_params(next(keys), planes, planes, 3, 3),
                "conv3": _conv_bn_params(next(keys), planes * EXPANSION, planes, 1, 1),
            }
            if b == 0 and (stride != 1 or inplanes != planes * EXPANSION):
                blk["downsample"] = _conv_bn_params(
                    next(keys), planes * EXPANSION, inplanes, 1, 1)
            layer.append(blk)
            inplanes = planes * EXPANSION
        return layer

    params["layer1"] = make_layer(64, layers[0], 1)
    params["layer2"] = make_layer(128, layers[1], 2)
    params["layer3"] = make_layer(256, layers[2], 2)
    return params


def fold_conv_bn(p):
    """Fold BN into the conv weight columns; emit bf16 [kh*kw*Cin, Cout] + f32 bias."""
    w = p["w"]                               # PyTorch layout [Cout, Cin, kh, kw]
    cout, cin, kh, kw = w.shape
    scale = p["gamma"] / jnp.sqrt(p["var"] + BN_EPS)
    bias = p["beta"] - p["mean"] * scale
    w_mat = jnp.transpose(w, (2, 3, 1, 0)).reshape(kh * kw * cin, cout)
    w_mat = (w_mat * scale[None, :]).astype(jnp.bfloat16)
    return dict(w_mat=w_mat, bias=bias.astype(jnp.float32))


def fold_resnet_params(raw):
    folded = {"stem": fold_conv_bn(raw["stem"])}
    for name in ("layer1", "layer2", "layer3"):
        folded[name] = [{k: fold_conv_bn(v) for k, v in blk.items()}
                        for blk in raw[name]]
    return folded


# ----------------------------------------------------------------------------
# Forward pass (ResNet_Baseline.forward with Bottleneck_Baseline blocks)
# ----------------------------------------------------------------------------
def bottleneck_forward(x, blk, stride):
    out = conv2d_bn(x, blk["conv1"], 1, 1, stride=1, padding=0, relu=True)
    out = conv2d_bn(out, blk["conv2"], 3, 3, stride=stride, padding=1, relu=True)
    if "downsample" in blk:
        residual = conv2d_bn(x, blk["downsample"], 1, 1, stride=stride,
                             padding=0, relu=False)
    else:
        residual = x
    # out = relu(bn3(conv3(out)) + residual)  -- fused into one Pallas call
    out = conv2d_bn(out, blk["conv3"], 1, 1, stride=1, padding=0,
                    relu=True, residual=residual)
    return out


def resnet_forward(params, x_nchw):
    x = jnp.transpose(x_nchw, (0, 2, 3, 1)).astype(jnp.bfloat16)  # NCHW -> NHWC bf16
    x = conv2d_bn(x, params["stem"], 7, 7, stride=2, padding=3, relu=True)
    x = maxpool2d(x, k=3, stride=2, pad=1)
    for name, stride in (("layer1", 1), ("layer2", 2), ("layer3", 2)):
        for b, blk in enumerate(params[name]):
            x = bottleneck_forward(x, blk, stride if b == 0 else 1)
    feats = global_avgpool(x)                 # avgpool + view(N, -1), f32
    return feats


# ----------------------------------------------------------------------------
if __name__ == "__main__":
    key = jax.random.PRNGKey(0)
    pkey, xkey = jax.random.split(key)

    layers = (1, 1, 1)   # small config of ResNet_Baseline(Bottleneck_Baseline, layers)
    raw_params = make_resnet_params(pkey, layers)
    params = fold_resnet_params(raw_params)   # BN folded into weights once, up front

    x = jax.random.normal(xkey, (2, 3, 32, 32), jnp.float32)  # NCHW, like PyTorch

    fwd = jax.jit(resnet_forward)
    feats = fwd(params, x)
    feats = jax.block_until_ready(feats)

    assert feats.shape == (2, 256 * EXPANSION), feats.shape   # (N, 1024)
    assert feats.dtype == jnp.float32
    assert bool(jnp.all(jnp.isfinite(feats)))
    print("KERNEL_OK")
</pallas_src>

<mosaic_0001>
module attributes {stable_mosaic.version = 11 : i64} {
  func.func @_mm_bias_kernel(%arg0: i32, %arg1: i32, %arg2: memref<512x256xbf16, #tpu.memory_space<vmem>>, %arg3: memref<256x128xbf16, #tpu.memory_space<vmem>>, %arg4: memref<1x128xf32, #tpu.memory_space<vmem>>, %arg5: memref<512x128xbf16, #tpu.memory_space<vmem>>) attributes {dimension_semantics = [#tpu.dimension_semantics<parallel>, #tpu.dimension_semantics<parallel>], iteration_bounds = array<i64: 1, 1>, scalar_prefetch = 0 : i64, scratch_operands = 0 : i64, tpu.core_type = #tpu.core_type<tc>, window_params = [{transform_indices = @transform_0, window_bounds = array<i64: 512, 256>}, {transform_indices = @transform_1, window_bounds = array<i64: 256, 128>}, {transform_indices = @transform_2, window_bounds = array<i64: 1, 128>}, {transform_indices = @transform_3, window_bounds = array<i64: 512, 128>}]} {
    %c0 = arith.constant 0 : index
    %c0_0 = arith.constant 0 : index
    %0 = vector.load %arg2[%c0, %c0_0] : memref<512x256xbf16, #tpu.memory_space<vmem>>, vector<512x256xbf16>
    %c0_1 = arith.constant 0 : index
    %c0_2 = arith.constant 0 : index
    %1 = vector.load %arg3[%c0_1, %c0_2] : memref<256x128xbf16, #tpu.memory_space<vmem>>, vector<256x128xbf16>
    %cst = arith.constant dense<0.000000e+00> : vector<512x128xf32>
    %2 = tpu.matmul %0, %1, %cst {dimension_numbers = #tpu.dot_dimension_numbers<[1], [0], [0], [1], [0, 0, 1, 1], [], []>} : vector<512x256xbf16>, vector<256x128xbf16>, vector<512x128xf32> -> vector<512x128xf32>
    %c0_3 = arith.constant 0 : index
    %c0_4 = arith.constant 0 : index
    %3 = vector.load %arg4[%c0_3, %c0_4] : memref<1x128xf32, #tpu.memory_space<vmem>>, vector<1x128xf32>
    %4 = vector.broadcast %3 : vector<1x128xf32> to vector<512x128xf32>
    %5 = arith.addf %2, %4 : vector<512x128xf32>
    %cst_5 = arith.constant 0.000000e+00 : f32
    %6 = vector.broadcast %cst_5 : f32 to vector<512x128xf32>
    %7 = arith.maximumf %5, %6 : vector<512x128xf32>
    %8 = arith.truncf %7 : vector<512x128xf32> to vector<512x128xbf16>
    %c0_6 = arith.constant 0 : index
    %c0_7 = arith.constant 0 : index
    %9 = vector.load %arg5[%c0_6, %c0_7] : memref<512x128xbf16, #tpu.memory_space<vmem>>, vector<512x128xbf16>
    tpu.vector_store %arg5[%c0_6, %c0_7], %8 {strides = array<i32>} : memref<512x128xbf16, #tpu.memory_space<vmem>>, vector<512x128xbf16>,
    return
  }
  func.func @transform_0(%arg0: i32, %arg1: i32) -> (i32, i32) {
    %c0_i32 = arith.constant 0 : i32
    %c0_i32_0 = arith.constant 0 : i32
    return %arg0, %c0_i32 : i32, i32
  }
  func.func @transform_1(%arg0: i32, %arg1: i32) -> (i32, i32) {
    %c0_i32 = arith.constant 0 : i32
    %c0_i32_0 = arith.constant 0 : i32
    return %c0_i32, %arg1 : i32, i32
  }
  func.func @transform_2(%arg0: i32, %arg1: i32) -> (i32, i32) {
    %c0_i32 = arith.constant 0 : i32
    %c0_i32_0 = arith.constant 0 : i32
    return %c0_i32, %arg1 : i32, i32
  }
  func.func @transform_3(%arg0: i32, %arg1: i32) -> (i32, i32) {
    %c0_i32 = arith.constant 0 : i32
    return %arg0, %arg1 : i32, i32
  }
}

module attributes {stable_mosaic.version = 11 : i64} {
  func.func @_maxpool_kernel(%arg0: i32, %arg1: memref<9x128x64xbf16, #tpu.memory_space<vmem>>, %arg2: memref<128x64xbf16, #tpu.memory_space<vmem>>) attributes {dimension_semantics = [#tpu.dimension_semantics<parallel>], iteration_bounds = array<i64: 1>, scalar_prefetch = 0 : i64, scratch_operands = 0 : i64, tpu.core_type = #tpu.core_type<tc>, window_params = [{transform_indices = @transform_0, window_bounds = array<i64: 9, 128, 64>}, {transform_indices = @transform_1, window_bounds = array<i64: 128, 64>}]} {
    %c0 = arith.constant 0 : index
    %c0_0 = arith.constant 0 : index
    %c0_1 = arith.constant 0 : index
    %0 = vector.load %arg1[%c0, %c0_0, %c0_1] : memref<9x128x64xbf16, #tpu.memory_space<vmem>>, vector<9x128x64xbf16>
    %cst = arith.constant dense<0xFF80> : vector<128x64xbf16>
    %1 = vector.multi_reduction <maximumf>, %0, %cst [0] : vector<9x128x64xbf16> to vector<128x64xbf16>
    %c0_2 = arith.constant 0 : index
    %c0_3 = arith.constant 0 : index
    %2 = vector.load %arg2[%c0_2, %c0_3] : memref<128x64xbf16, #tpu.memory_space<vmem>>, vector<128x64xbf16>
    tpu.vector_store %arg2[%c0_2, %c0_3], %1 {strides = array<i32>} : memref<128x64xbf16, #tpu.memory_space<vmem>>, vector<128x64xbf16>,
    return
  }
  func.func @transform_0(%arg0: i32) -> (i32, i32, i32) {
    %c0_i32 = arith.constant 0 : i32
    %c0_i32_0 = arith.constant 0 : i32
    %c0_i32_1 = arith.constant 0 : i32
    return %c0_i32, %arg0, %c0_i32_0 : i32, i32, i32
  }
  func.func @transform_1(%arg0: i32) -> (i32, i32) {
    %c0_i32 = arith.constant 0 : i32
    %c0_i32_0 = arith.constant 0 : i32
    return %arg0, %c0_i32 : i32, i32
  }
}

module attributes {stable_mosaic.version = 11 : i64} {
  func.func @_mm_bias_kernel(%arg0: i32, %arg1: i32, %arg2: memref<128x128xbf16, #tpu.memory_space<vmem>>, %arg3: memref<128x128xbf16, #tpu.memory_space<vmem>>, %arg4: memref<1x128xf32, #tpu.memory_space<vmem>>, %arg5: memref<128x128xbf16, #tpu.memory_space<vmem>>) attributes {dimension_semantics = [#tpu.dimension_semantics<parallel>, #tpu.dimension_semantics<parallel>], iteration_bounds = array<i64: 1, 1>, scalar_prefetch = 0 : i64, scratch_operands = 0 : i64, tpu.core_type = #tpu.core_type<tc>, window_params = [{transform_indices = @transform_0, window_bounds = array<i64: 128, 128>}, {transform_indices = @transform_1, window_bounds = array<i64: 128, 128>}, {transform_indices = @transform_2, window_bounds = array<i64: 1, 128>}, {transform_indices = @transform_3, window_bounds = array<i64: 128, 128>}]} {
    %c0 = arith.constant 0 : index
    %c0_0 = arith.constant 0 : index
    %0 = vector.load %arg2[%c0, %c0_0] : memref<128x128xbf16, #tpu.memory_space<vmem>>, vector<128x128xbf16>
    %c0_1 = arith.constant 0 : index
    %c0_2 = arith.constant 0 : index
    %1 = vector.load %arg3[%c0_1, %c0_2] : memref<128x128xbf16, #tpu.memory_space<vmem>>, vector<128x128xbf16>
    %cst = arith.constant dense<0.000000e+00> : vector<128x128xf32>
    %2 = tpu.matmul %0, %1, %cst {dimension_numbers = #tpu.dot_dimension_numbers<[1], [0], [0], [1], [0, 0, 1, 1], [], []>} : vector<128x128xbf16>, vector<128x128xbf16>, vector<128x128xf32> -> vector<128x128xf32>
    %c0_3 = arith.constant 0 : index
    %c0_4 = arith.constant 0 : index
    %3 = vector.load %arg4[%c0_3, %c0_4] : memref<1x128xf32, #tpu.memory_space<vmem>>, vector<1x128xf32>
    %4 = vector.broadcast %3 : vector<1x128xf32> to vector<128x128xf32>
    %5 = arith.addf %2, %4 : vector<128x128xf32>
    %cst_5 = arith.constant 0.000000e+00 : f32
    %6 = vector.broadcast %cst_5 : f32 to vector<128x128xf32>
    %7 = arith.maximumf %5, %6 : vector<128x128xf32>
    %8 = arith.truncf %7 : vector<128x128xf32> to vector<128x128xbf16>
    %c0_6 = arith.constant 0 : index
    %c0_7 = arith.constant 0 : index
    %9 = vector.load %arg5[%c0_6, %c0_7] : memref<128x128xbf16, #tpu.memory_space<vmem>>, vector<128x128xbf16>
    tpu.vector_store %arg5[%c0_6, %c0_7], %8 {strides = array<i32>} : memref<128x128xbf16, #tpu.memory_space<vmem>>, vector<128x128xbf16>,
    return
  }
  func.func @transform_0(%arg0: i32, %arg1: i32) -> (i32, i32) {
    %c0_i32 = arith.constant 0 : i32
    %c0_i32_0 = arith.constant 0 : i32
    return %arg0, %c0_i32 : i32, i32
  }
  func.func @transform_1(%arg0: i32, %arg1: i32) -> (i32, i32) {
    %c0_i32 = arith.constant 0 : i32
    %c0_i32_0 = arith.constant 0 : i32
    return %c0_i32, %arg1 : i32, i32
  }
  func.func @transform_2(%arg0: i32, %arg1: i32) -> (i32, i32) {
    %c0_i32 = arith.constant 0 : i32
    %c0_i32_0 = arith.constant 0 : i32
    return %c0_i32, %arg1 : i32, i32
  }
  func.func @transform_3(%arg0: i32, %arg1: i32) -> (i32, i32) {
    %c0_i32 = arith.constant 0 : i32
    return %arg0, %arg1 : i32, i32
  }
}

module attributes {stable_mosaic.version = 11 : i64} {
  func.func @_mm_bias_kernel(%arg0: i32, %arg1: i32, %arg2: memref<128x640xbf16, #tpu.memory_space<vmem>>, %arg3: memref<640x128xbf16, #tpu.memory_space<vmem>>, %arg4: memref<1x128xf32, #tpu.memory_space<vmem>>, %arg5: memref<128x128xbf16, #tpu.memory_space<vmem>>) attributes {dimension_semantics = [#tpu.dimension_semantics<parallel>, #tpu.dimension_semantics<parallel>], iteration_bounds = array<i64: 1, 1>, scalar_prefetch = 0 : i64, scratch_operands = 0 : i64, tpu.core_type = #tpu.core_type<tc>, window_params = [{transform_indices = @transform_0, window_bounds = array<i64: 128, 640>}, {transform_indices = @transform_1, window_bounds = array<i64: 640, 128>}, {transform_indices = @transform_2, window_bounds = array<i64: 1, 128>}, {transform_indices = @transform_3, window_bounds = array<i64: 128, 128>}]} {
    %c0 = arith.constant 0 : index
    %c0_0 = arith.constant 0 : index
    %0 = vector.load %arg2[%c0, %c0_0] : memref<128x640xbf16, #tpu.memory_space<vmem>>, vector<128x640xbf16>
    %c0_1 = arith.constant 0 : index
    %c0_2 = arith.constant 0 : index
    %1 = vector.load %arg3[%c0_1, %c0_2] : memref<640x128xbf16, #tpu.memory_space<vmem>>, vector<640x128xbf16>
    %cst = arith.constant dense<0.000000e+00> : vector<128x128xf32>
    %2 = tpu.matmul %0, %1, %cst {dimension_numbers = #tpu.dot_dimension_numbers<[1], [0], [0], [1], [0, 0, 1, 1], [], []>} : vector<128x640xbf16>, vector<640x128xbf16>, vector<128x128xf32> -> vector<128x128xf32>
    %c0_3 = arith.constant 0 : index
    %c0_4 = arith.constant 0 : index
    %3 = vector.load %arg4[%c0_3, %c0_4] : memref<1x128xf32, #tpu.memory_space<vmem>>, vector<1x128xf32>
    %4 = vector.broadcast %3 : vector<1x128xf32> to vector<128x128xf32>
    %5 = arith.addf %2, %4 : vector<128x128xf32>
    %cst_5 = arith.constant 0.000000e+00 : f32
    %6 = vector.broadcast %cst_5 : f32 to vector<128x128xf32>
    %7 = arith.maximumf %5, %6 : vector<128x128xf32>
    %8 = arith.truncf %7 : vector<128x128xf32> to vector<128x128xbf16>
    %c0_6 = arith.constant 0 : index
    %c0_7 = arith.constant 0 : index
    %9 = vector.load %arg5[%c0_6, %c0_7] : memref<128x128xbf16, #tpu.memory_space<vmem>>, vector<128x128xbf16>
    tpu.vector_store %arg5[%c0_6, %c0_7], %8 {strides = array<i32>} : memref<128x128xbf16, #tpu.memory_space<vmem>>, vector<128x128xbf16>,
    return
  }
  func.func @transform_0(%arg0: i32, %arg1: i32) -> (i32, i32) {
    %c0_i32 = arith.constant 0 : i32
    %c0_i32_0 = arith.constant 0 : i32
    return %arg0, %c0_i32 : i32, i32
  }
  func.func @transform_1(%arg0: i32, %arg1: i32) -> (i32, i32) {
    %c0_i32 = arith.constant 0 : i32
    %c0_i32_0 = arith.constant 0 : i32
    return %c0_i32, %arg1 : i32, i32
  }
  func.func @transform_2(%arg0: i32, %arg1: i32) -> (i32, i32) {
    %c0_i32 = arith.constant 0 : i32
    %c0_i32_0 = arith.constant 0 : i32
    return %c0_i32, %arg1 : i32, i32
  }
  func.func @transform_3(%arg0: i32, %arg1: i32) -> (i32, i32) {
    %c0_i32 = arith.constant 0 : i32
    return %arg0, %arg1 : i32, i32
  }
}

module attributes {stable_mosaic.version = 11 : i64} {
  func.func @_mm_bias_kernel(%arg0: i32, %arg1: i32, %arg2: memref<128x128xbf16, #tpu.memory_space<vmem>>, %arg3: memref<128x256xbf16, #tpu.memory_space<vmem>>, %arg4: memref<1x256xf32, #tpu.memory_space<vmem>>, %arg5: memref<128x256xbf16, #tpu.memory_space<vmem>>) attributes {dimension_semantics = [#tpu.dimension_semantics<parallel>, #tpu.dimension_semantics<parallel>], iteration_bounds = array<i64: 1, 1>, scalar_prefetch = 0 : i64, scratch_operands = 0 : i64, tpu.core_type = #tpu.core_type<tc>, window_params = [{transform_indices = @transform_0, window_bounds = array<i64: 128, 128>}, {transform_indices = @transform_1, window_bounds = array<i64: 128, 256>}, {transform_indices = @transform_2, window_bounds = array<i64: 1, 256>}, {transform_indices = @transform_3, window_bounds = array<i64: 128, 256>}]} {
    %c0 = arith.constant 0 : index
    %c0_0 = arith.constant 0 : index
    %0 = vector.load %arg2[%c0, %c0_0] : memref<128x128xbf16, #tpu.memory_space<vmem>>, vector<128x128xbf16>
    %c0_1 = arith.constant 0 : index
    %c0_2 = arith.constant 0 : index
    %1 = vector.load %arg3[%c0_1, %c0_2] : memref<128x256xbf16, #tpu.memory_space<vmem>>, vector<128x256xbf16>
    %cst = arith.constant dense<0.000000e+00> : vector<128x256xf32>
    %2 = tpu.matmul %0, %1, %cst {dimension_numbers = #tpu.dot_dimension_numbers<[1], [0], [0], [1], [0, 0, 1, 1], [], []>} : vector<128x128xbf16>, vector<128x256xbf16>, vector<128x256xf32> -> vector<128x256xf32>
    %c0_3 = arith.constant 0 : index
    %c0_4 = arith.constant 0 : index
    %3 = vector.load %arg4[%c0_3, %c0_4] : memref<1x256xf32, #tpu.memory_space<vmem>>, vector<1x256xf32>
    %4 = vector.broadcast %3 : vector<1x256xf32> to vector<128x256xf32>
    %5 = arith.addf %2, %4 : vector<128x256xf32>
    %6 = arith.truncf %5 : vector<128x256xf32> to vector<128x256xbf16>
    %c0_5 = arith.constant 0 : index
    %c0_6 = arith.constant 0 : index
    %7 = vector.load %arg5[%c0_5, %c0_6] : memref<128x256xbf16, #tpu.memory_space<vmem>>, vector<128x256xbf16>
    tpu.vector_store %arg5[%c0_5, %c0_6], %6 {strides = array<i32>} : memref<128x256xbf16, #tpu.memory_space<vmem>>, vector<128x256xbf16>,
    return
  }
  func.func @transform_0(%arg0: i32, %arg1: i32) -> (i32, i32) {
    %c0_i32 = arith.constant 0 : i32
    %c0_i32_0 = arith.constant 0 : i32
    return %arg0, %c0_i32 : i32, i32
  }
  func.func @transform_1(%arg0: i32, %arg1: i32) -> (i32, i32) {
    %c0_i32 = arith.constant 0 : i32
    %c0_i32_0 = arith.constant 0 : i32
    return %c0_i32, %arg1 : i32, i32
  }
  func.func @transform_2(%arg0: i32, %arg1: i32) -> (i32, i32) {
    %c0_i32 = arith.constant 0 : i32
    %c0_i32_0 = arith.constant 0 : i32
    return %c0_i32, %arg1 : i32, i32
  }
  func.func @transform_3(%arg0: i32, %arg1: i32) -> (i32, i32) {
    %c0_i32 = arith.constant 0 : i32
    return %arg0, %arg1 : i32, i32
  }
}

module attributes {stable_mosaic.version = 11 : i64} {
  func.func @_mm_bias_res_kernel(%arg0: i32, %arg1: i32, %arg2: memref<128x128xbf16, #tpu.memory_space<vmem>>, %arg3: memref<128x256xbf16, #tpu.memory_space<vmem>>, %arg4: memref<1x256xf32, #tpu.memory_space<vmem>>, %arg5: memref<128x256xbf16, #tpu.memory_space<vmem>>, %arg6: memref<128x256xbf16, #tpu.memory_space<vmem>>) attributes {dimension_semantics = [#tpu.dimension_semantics<parallel>, #tpu.dimension_semantics<parallel>], iteration_bounds = array<i64: 1, 1>, scalar_prefetch = 0 : i64, scratch_operands = 0 : i64, tpu.core_type = #tpu.core_type<tc>, window_params = [{transform_indices = @transform_0, window_bounds = array<i64: 128, 128>}, {transform_indices = @transform_1, window_bounds = array<i64: 128, 256>}, {transform_indices = @transform_2, window_bounds = array<i64: 1, 256>}, {transform_indices = @transform_3, window_bounds = array<i64: 128, 256>}, {transform_indices = @transform_4, window_bounds = array<i64: 128, 256>}]} {
    %c0 = arith.constant 0 : index
    %c0_0 = arith.constant 0 : index
    %0 = vector.load %arg2[%c0, %c0_0] : memref<128x128xbf16, #tpu.memory_space<vmem>>, vector<128x128xbf16>
    %c0_1 = arith.constant 0 : index
    %c0_2 = arith.constant 0 : index
    %1 = vector.load %arg3[%c0_1, %c0_2] : memref<128x256xbf16, #tpu.memory_space<vmem>>, vector<128x256xbf16>
    %cst = arith.constant dense<0.000000e+00> : vector<128x256xf32>
    %2 = tpu.matmul %0, %1, %cst {dimension_numbers = #tpu.dot_dimension_numbers<[1], [0], [0], [1], [0, 0, 1, 1], [], []>} : vector<128x128xbf16>, vector<128x256xbf16>, vector<128x256xf32> -> vector<128x256xf32>
    %c0_3 = arith.constant 0 : index
    %c0_4 = arith.constant 0 : index
    %3 = vector.load %arg4[%c0_3, %c0_4] : memref<1x256xf32, #tpu.memory_space<vmem>>, vector<1x256xf32>
    %4 = vector.broadcast %3 : vector<1x256xf32> to vector<128x256xf32>
    %5 = arith.addf %2, %4 : vector<128x256xf32>
    %c0_5 = arith.constant 0 : index
    %c0_6 = arith.constant 0 : index
    %6 = vector.load %arg5[%c0_5, %c0_6] : memref<128x256xbf16, #tpu.memory_space<vmem>>, vector<128x256xbf16>
    %7 = arith.extf %6 : vector<128x256xbf16> to vector<128x256xf32>
    %8 = arith.addf %5, %7 : vector<128x256xf32>
    %cst_7 = arith.constant 0.000000e+00 : f32
    %9 = vector.broadcast %cst_7 : f32 to vector<128x256xf32>
    %10 = arith.maximumf %8, %9 : vector<128x256xf32>
    %11 = arith.truncf %10 : vector<128x256xf32> to vector<128x256xbf16>
    %c0_8 = arith.constant 0 : index
    %c0_9 = arith.constant 0 : index
    %12 = vector.load %arg6[%c0_8, %c0_9] : memref<128x256xbf16, #tpu.memory_space<vmem>>, vector<128x256xbf16>
    tpu.vector_store %arg6[%c0_8, %c0_9], %11 {strides = array<i32>} : memref<128x256xbf16, #tpu.memory_space<vmem>>, vector<128x256xbf16>,
    return
  }
  func.func @transform_0(%arg0: i32, %arg1: i32) -> (i32, i32) {
    %c0_i32 = arith.constant 0 : i32
    %c0_i32_0 = arith.constant 0 : i32
    return %arg0, %c0_i32 : i32, i32
  }
  func.func @transform_1(%arg0: i32, %arg1: i32) -> (i32, i32) {
    %c0_i32 = arith.constant 0 : i32
    %c0_i32_0 = arith.constant 0 : i32
    return %c0_i32, %arg1 : i32, i32
  }
  func.func @transform_2(%arg0: i32, %arg1: i32) -> (i32, i32) {
    %c0_i32 = arith.constant 0 : i32
    %c0_i32_0 = arith.constant 0 : i32
    return %c0_i32, %arg1 : i32, i32
  }
  func.func @transform_3(%arg0: i32, %arg1: i32) -> (i32, i32) {
    %c0_i32 = arith.constant 0 : i32
    return %arg0, %arg1 : i32, i32
  }
  func.func @transform_4(%arg0: i32, %arg1: i32) -> (i32, i32) {
    %c0_i32 = arith.constant 0 : i32
    return %arg0, %arg1 : i32, i32
  }
}

module attributes {stable_mosaic.version = 11 : i64} {
  func.func @_mm_bias_kernel(%arg0: i32, %arg1: i32, %arg2: memref<128x256xbf16, #tpu.memory_space<vmem>>, %arg3: memref<256x128xbf16, #tpu.memory_space<vmem>>, %arg4: memref<1x128xf32, #tpu.memory_space<vmem>>, %arg5: memref<128x128xbf16, #tpu.memory_space<vmem>>) attributes {dimension_semantics = [#tpu.dimension_semantics<parallel>, #tpu.dimension_semantics<parallel>], iteration_bounds = array<i64: 1, 1>, scalar_prefetch = 0 : i64, scratch_operands = 0 : i64, tpu.core_type = #tpu.core_type<tc>, window_params = [{transform_indices = @transform_0, window_bounds = array<i64: 128, 256>}, {transform_indices = @transform_1, window_bounds = array<i64: 256, 128>}, {transform_indices = @transform_2, window_bounds = array<i64: 1, 128>}, {transform_indices = @transform_3, window_bounds = array<i64: 128, 128>}]} {
    %c0 = arith.constant 0 : index
    %c0_0 = arith.constant 0 : index
    %0 = vector.load %arg2[%c0, %c0_0] : memref<128x256xbf16, #tpu.memory_space<vmem>>, vector<128x256xbf16>
    %c0_1 = arith.constant 0 : index
    %c0_2 = arith.constant 0 : index
    %1 = vector.load %arg3[%c0_1, %c0_2] : memref<256x128xbf16, #tpu.memory_space<vmem>>, vector<256x128xbf16>
    %cst = arith.constant dense<0.000000e+00> : vector<128x128xf32>
    %2 = tpu.matmul %0, %1, %cst {dimension_numbers = #tpu.dot_dimension_numbers<[1], [0], [0], [1], [0, 0, 1, 1], [], []>} : vector<128x256xbf16>, vector<256x128xbf16>, vector<128x128xf32> -> vector<128x128xf32>
    %c0_3 = arith.constant 0 : index
    %c0_4 = arith.constant 0 : index
    %3 = vector.load %arg4[%c0_3, %c0_4] : memref<1x128xf32, #tpu.memory_space<vmem>>, vector<1x128xf32>
    %4 = vector.broadcast %3 : vector<1x128xf32> to vector<128x128xf32>
    %5 = arith.addf %2, %4 : vector<128x128xf32>
    %cst_5 = arith.constant 0.000000e+00 : f32
    %6 = vector.broadcast %cst_5 : f32 to vector<128x128xf32>
    %7 = arith.maximumf %5, %6 : vector<128x128xf32>
    %8 = arith.truncf %7 : vector<128x128xf32> to vector<128x128xbf16>
    %c0_6 = arith.constant 0 : index
    %c0_7 = arith.constant 0 : index
    %9 = vector.load %arg5[%c0_6, %c0_7] : memref<128x128xbf16, #tpu.memory_space<vmem>>, vector<128x128xbf16>
    tpu.vector_store %arg5[%c0_6, %c0_7], %8 {strides = array<i32>} : memref<128x128xbf16, #tpu.memory_space<vmem>>, vector<128x128xbf16>,
    return
  }
  func.func @transform_0(%arg0: i32, %arg1: i32) -> (i32, i32) {
    %c0_i32 = arith.constant 0 : i32
    %c0_i32_0 = arith.constant 0 : i32
    return %arg0, %c0_i32 : i32, i32
  }
  func.func @transform_1(%arg0: i32, %arg1: i32) -> (i32, i32) {
    %c0_i32 = arith.constant 0 : i32
    %c0_i32_0 = arith.constant 0 : i32
    return %c0_i32, %arg1 : i32, i32
  }
  func.func @transform_2(%arg0: i32, %arg1: i32) -> (i32, i32) {
    %c0_i32 = arith.constant 0 : i32
    %c0_i32_0 = arith.constant 0 : i32
    return %c0_i32, %arg1 : i32, i32
  }
  func.func @transform_3(%arg0: i32, %arg1: i32) -> (i32, i32) {
    %c0_i32 = arith.constant 0 : i32
    return %arg0, %arg1 : i32, i32
  }
}

module attributes {stable_mosaic.version = 11 : i64} {
  func.func @_mm_bias_kernel(%arg0: i32, %arg1: i32, %arg2: memref<32x1152xbf16, #tpu.memory_space<vmem>>, %arg3: memref<1152x128xbf16, #tpu.memory_space<vmem>>, %arg4: memref<1x128xf32, #tpu.memory_space<vmem>>, %arg5: memref<32x128xbf16, #tpu.memory_space<vmem>>) attributes {dimension_semantics = [#tpu.dimension_semantics<parallel>, #tpu.dimension_semantics<parallel>], iteration_bounds = array<i64: 1, 1>, scalar_prefetch = 0 : i64, scratch_operands = 0 : i64, tpu.core_type = #tpu.core_type<tc>, window_params = [{transform_indices = @transform_0, window_bounds = array<i64: 32, 1152>}, {transform_indices = @transform_1, window_bounds = array<i64: 1152, 128>}, {transform_indices = @transform_2, window_bounds = array<i64: 1, 128>}, {transform_indices = @transform_3, window_bounds = array<i64: 32, 128>}]} {
    %c0 = arith.constant 0 : index
    %c0_0 = arith.constant 0 : index
    %0 = vector.load %arg2[%c0, %c0_0] : memref<32x1152xbf16, #tpu.memory_space<vmem>>, vector<32x1152xbf16>
    %c0_1 = arith.constant 0 : index
    %c0_2 = arith.constant 0 : index
    %1 = vector.load %arg3[%c0_1, %c0_2] : memref<1152x128xbf16, #tpu.memory_space<vmem>>, vector<1152x128xbf16>
    %cst = arith.constant dense<0.000000e+00> : vector<32x128xf32>
    %2 = tpu.matmul %0, %1, %cst {dimension_numbers = #tpu.dot_dimension_numbers<[1], [0], [0], [1], [0, 0, 1, 1], [], []>} : vector<32x1152xbf16>, vector<1152x128xbf16>, vector<32x128xf32> -> vector<32x128xf32>
    %c0_3 = arith.constant 0 : index
    %c0_4 = arith.constant 0 : index
    %3 = vector.load %arg4[%c0_3, %c0_4] : memref<1x128xf32, #tpu.memory_space<vmem>>, vector<1x128xf32>
    %4 = vector.broadcast %3 : vector<1x128xf32> to vector<32x128xf32>
    %5 = arith.addf %2, %4 : vector<32x128xf32>
    %cst_5 = arith.constant 0.000000e+00 : f32
    %6 = vector.broadcast %cst_5 : f32 to vector<32x128xf32>
    %7 = arith.maximumf %5, %6 : vector<32x128xf32>
    %8 = arith.truncf %7 : vector<32x128xf32> to vector<32x128xbf16>
    %c0_6 = arith.constant 0 : index
    %c0_7 = arith.constant 0 : index
    %9 = vector.load %arg5[%c0_6, %c0_7] : memref<32x128xbf16, #tpu.memory_space<vmem>>, vector<32x128xbf16>
    tpu.vector_store %arg5[%c0_6, %c0_7], %8 {strides = array<i32>} : memref<32x128xbf16, #tpu.memory_space<vmem>>, vector<32x128xbf16>,
    return
  }
  func.func @transform_0(%arg0: i32, %arg1: i32) -> (i32, i32) {
    %c0_i32 = arith.constant 0 : i32
    %c0_i32_0 = arith.constant 0 : i32
    return %arg0, %c0_i32 : i32, i32
  }
  func.func @transform_1(%arg0: i32, %arg1: i32) -> (i32, i32) {
    %c0_i32 = arith.constant 0 : i32
    %c0_i32_0 = arith.constant 0 : i32
    return %c0_i32, %arg1 : i32, i32
  }
  func.func @transform_2(%arg0: i32, %arg1: i32) -> (i32, i32) {
    %c0_i32 = arith.constant 0 : i32
    %c0_i32_0 = arith.constant 0 : i32
    return %c0_i32, %arg1 : i32, i32
  }
  func.func @transform_3(%arg0: i32, %arg1: i32) -> (i32, i32) {
    %c0_i32 = arith.constant 0 : i32
    return %arg0, %arg1 : i32, i32
  }
}

module attributes {stable_mosaic.version = 11 : i64} {
  func.func @_mm_bias_kernel(%arg0: i32, %arg1: i32, %arg2: memref<32x256xbf16, #tpu.memory_space<vmem>>, %arg3: memref<256x256xbf16, #tpu.memory_space<vmem>>, %arg4: memref<1x256xf32, #tpu.memory_space<vmem>>, %arg5: memref<32x256xbf16, #tpu.memory_space<vmem>>) attributes {dimension_semantics = [#tpu.dimension_semantics<parallel>, #tpu.dimension_semantics<parallel>], iteration_bounds = array<i64: 1, 2>, scalar_prefetch = 0 : i64, scratch_operands = 0 : i64, tpu.core_type = #tpu.core_type<tc>, window_params = [{transform_indices = @transform_0, window_bounds = array<i64: 32, 256>}, {transform_indices = @transform_1, window_bounds = array<i64: 256, 256>}, {transform_indices = @transform_2, window_bounds = array<i64: 1, 256>}, {transform_indices = @transform_3, window_bounds = array<i64: 32, 256>}]} {
    %c0 = arith.constant 0 : index
    %c0_0 = arith.constant 0 : index
    %0 = vector.load %arg2[%c0, %c0_0] : memref<32x256xbf16, #tpu.memory_space<vmem>>, vector<32x256xbf16>
    %c0_1 = arith.constant 0 : index
    %c0_2 = arith.constant 0 : index
    %1 = vector.load %arg3[%c0_1, %c0_2] : memref<256x256xbf16, #tpu.memory_space<vmem>>, vector<256x256xbf16>
    %cst = arith.constant dense<0.000000e+00> : vector<32x256xf32>
    %2 = tpu.matmul %0, %1, %cst {dimension_numbers = #tpu.dot_dimension_numbers<[1], [0], [0], [1], [0, 0, 1, 1], [], []>} : vector<32x256xbf16>, vector<256x256xbf16>, vector<32x256xf32> -> vector<32x256xf32>
    %c0_3 = arith.constant 0 : index
    %c0_4 = arith.constant 0 : index
    %3 = vector.load %arg4[%c0_3, %c0_4] : memref<1x256xf32, #tpu.memory_space<vmem>>, vector<1x256xf32>
    %4 = vector.broadcast %3 : vector<1x256xf32> to vector<32x256xf32>
    %5 = arith.addf %2, %4 : vector<32x256xf32>
    %6 = arith.truncf %5 : vector<32x256xf32> to vector<32x256xbf16>
    %c0_5 = arith.constant 0 : index
    %c0_6 = arith.constant 0 : index
    %7 = vector.load %arg5[%c0_5, %c0_6] : memref<32x256xbf16, #tpu.memory_space<vmem>>, vector<32x256xbf16>
    tpu.vector_store %arg5[%c0_5, %c0_6], %6 {strides = array<i32>} : memref<32x256xbf16, #tpu.memory_space<vmem>>, vector<32x256xbf16>,
    return
  }
  func.func @transform_0(%arg0: i32, %arg1: i32) -> (i32, i32) {
    %c0_i32 = arith.constant 0 : i32
    %c0_i32_0 = arith.constant 0 : i32
    return %arg0, %c0_i32 : i32, i32
  }
  func.func @transform_1(%arg0: i32, %arg1: i32) -> (i32, i32) {
    %c0_i32 = arith.constant 0 : i32
    %c0_i32_0 = arith.constant 0 : i32
    return %c0_i32, %arg1 : i32, i32
  }
  func.func @transform_2(%arg0: i32, %arg1: i32) -> (i32, i32) {
    %c0_i32 = arith.constant 0 : i32
    %c0_i32_0 = arith.constant 0 : i32
    return %c0_i32, %arg1 : i32, i32
  }
  func.func @transform_3(%arg0: i32, %arg1: i32) -> (i32, i32) {
    %c0_i32 = arith.constant 0 : i32
    return %arg0, %arg1 : i32, i32
  }
}

module attributes {stable_mosaic.version = 11 : i64} {
  func.func @_mm_bias_res_kernel(%arg0: i32, %arg1: i32, %arg2: memref<32x128xbf16, #tpu.memory_space<vmem>>, %arg3: memref<128x256xbf16, #tpu.memory_space<vmem>>, %arg4: memref<1x256xf32, #tpu.memory_space<vmem>>, %arg5: memref<32x256xbf16, #tpu.memory_space<vmem>>, %arg6: memref<32x256xbf16, #tpu.memory_space<vmem>>) attributes {dimension_semantics = [#tpu.dimension_semantics<parallel>, #tpu.dimension_semantics<parallel>], iteration_bounds = array<i64: 1, 2>, scalar_prefetch = 0 : i64, scratch_operands = 0 : i64, tpu.core_type = #tpu.core_type<tc>, window_params = [{transform_indices = @transform_0, window_bounds = array<i64: 32, 128>}, {transform_indices = @transform_1, window_bounds = array<i64: 128, 256>}, {transform_indices = @transform_2, window_bounds = array<i64: 1, 256>}, {transform_indices = @transform_3, window_bounds = array<i64: 32, 256>}, {transform_indices = @transform_4, window_bounds = array<i64: 32, 256>}]} {
    %c0 = arith.constant 0 : index
    %c0_0 = arith.constant 0 : index
    %0 = vector.load %arg2[%c0, %c0_0] : memref<32x128xbf16, #tpu.memory_space<vmem>>, vector<32x128xbf16>
    %c0_1 = arith.constant 0 : index
    %c0_2 = arith.constant 0 : index
    %1 = vector.load %arg3[%c0_1, %c0_2] : memref<128x256xbf16, #tpu.memory_space<vmem>>, vector<128x256xbf16>
    %cst = arith.constant dense<0.000000e+00> : vector<32x256xf32>
    %2 = tpu.matmul %0, %1, %cst {dimension_numbers = #tpu.dot_dimension_numbers<[1], [0], [0], [1], [0, 0, 1, 1], [], []>} : vector<32x128xbf16>, vector<128x256xbf16>, vector<32x256xf32> -> vector<32x256xf32>
    %c0_3 = arith.constant 0 : index
    %c0_4 = arith.constant 0 : index
    %3 = vector.load %arg4[%c0_3, %c0_4] : memref<1x256xf32, #tpu.memory_space<vmem>>, vector<1x256xf32>
    %4 = vector.broadcast %3 : vector<1x256xf32> to vector<32x256xf32>
    %5 = arith.addf %2, %4 : vector<32x256xf32>
    %c0_5 = arith.constant 0 : index
    %c0_6 = arith.constant 0 : index
    %6 = vector.load %arg5[%c0_5, %c0_6] : memref<32x256xbf16, #tpu.memory_space<vmem>>, vector<32x256xbf16>
    %7 = arith.extf %6 : vector<32x256xbf16> to vector<32x256xf32>
    %8 = arith.addf %5, %7 : vector<32x256xf32>
    %cst_7 = arith.constant 0.000000e+00 : f32
    %9 = vector.broadcast %cst_7 : f32 to vector<32x256xf32>
    %10 = arith.maximumf %8, %9 : vector<32x256xf32>
    %11 = arith.truncf %10 : vector<32x256xf32> to vector<32x256xbf16>
    %c0_8 = arith.constant 0 : index
    %c0_9 = arith.constant 0 : index
    %12 = vector.load %arg6[%c0_8, %c0_9] : memref<32x256xbf16, #tpu.memory_space<vmem>>, vector<32x256xbf16>
    tpu.vector_store %arg6[%c0_8, %c0_9], %11 {strides = array<i32>} : memref<32x256xbf16, #tpu.memory_space<vmem>>, vector<32x256xbf16>,
    return
  }
  func.func @transform_0(%arg0: i32, %arg1: i32) -> (i32, i32) {
    %c0_i32 = arith.constant 0 : i32
    %c0_i32_0 = arith.constant 0 : i32
    return %arg0, %c0_i32 : i32, i32
  }
  func.func @transform_1(%arg0: i32, %arg1: i32) -> (i32, i32) {
    %c0_i32 = arith.constant 0 : i32
    %c0_i32_0 = arith.constant 0 : i32
    return %c0_i32, %arg1 : i32, i32
  }
  func.func @transform_2(%arg0: i32, %arg1: i32) -> (i32, i32) {
    %c0_i32 = arith.constant 0 : i32
    %c0_i32_0 = arith.constant 0 : i32
    return %c0_i32, %arg1 : i32, i32
  }
  func.func @transform_3(%arg0: i32, %arg1: i32) -> (i32, i32) {
    %c0_i32 = arith.constant 0 : i32
    return %arg0, %arg1 : i32, i32
  }
  func.func @transform_4(%arg0: i32, %arg1: i32) -> (i32, i32) {
    %c0_i32 = arith.constant 0 : i32
    return %arg0, %arg1 : i32, i32
  }
}

module attributes {stable_mosaic.version = 11 : i64} {
  func.func @_mm_bias_kernel(%arg0: i32, %arg1: i32, %arg2: memref<32x512xbf16, #tpu.memory_space<vmem>>, %arg3: memref<512x256xbf16, #tpu.memory_space<vmem>>, %arg4: memref<1x256xf32, #tpu.memory_space<vmem>>, %arg5: memref<32x256xbf16, #tpu.memory_space<vmem>>) attributes {dimension_semantics = [#tpu.dimension_semantics<parallel>, #tpu.dimension_semantics<parallel>], iteration_bounds = array<i64: 1, 1>, scalar_prefetch = 0 : i64, scratch_operands = 0 : i64, tpu.core_type = #tpu.core_type<tc>, window_params = [{transform_indices = @transform_0, window_bounds = array<i64: 32, 512>}, {transform_indices = @transform_1, window_bounds = array<i64: 512, 256>}, {transform_indices = @transform_2, window_bounds = array<i64: 1, 256>}, {transform_indices = @transform_3, window_bounds = array<i64: 32, 256>}]} {
    %c0 = arith.constant 0 : index
    %c0_0 = arith.constant 0 : index
    %0 = vector.load %arg2[%c0, %c0_0] : memref<32x512xbf16, #tpu.memory_space<vmem>>, vector<32x512xbf16>
    %c0_1 = arith.constant 0 : index
    %c0_2 = arith.constant 0 : index
    %1 = vector.load %arg3[%c0_1, %c0_2] : memref<512x256xbf16, #tpu.memory_space<vmem>>, vector<512x256xbf16>
    %cst = arith.constant dense<0.000000e+00> : vector<32x256xf32>
    %2 = tpu.matmul %0, %1, %cst {dimension_numbers = #tpu.dot_dimension_numbers<[1], [0], [0], [1], [0, 0, 1, 1], [], []>} : vector<32x512xbf16>, vector<512x256xbf16>, vector<32x256xf32> -> vector<32x256xf32>
    %c0_3 = arith.constant 0 : index
    %c0_4 = arith.constant 0 : index
    %3 = vector.load %arg4[%c0_3, %c0_4] : memref<1x256xf32, #tpu.memory_space<vmem>>, vector<1x256xf32>
    %4 = vector.broadcast %3 : vector<1x256xf32> to vector<32x256xf32>
    %5 = arith.addf %2, %4 : vector<32x256xf32>
    %cst_5 = arith.constant 0.000000e+00 : f32
    %6 = vector.broadcast %cst_5 : f32 to vector<32x256xf32>
    %7 = arith.maximumf %5, %6 : vector<32x256xf32>
    %8 = arith.truncf %7 : vector<32x256xf32> to vector<32x256xbf16>
    %c0_6 = arith.constant 0 : index
    %c0_7 = arith.constant 0 : index
    %9 = vector.load %arg5[%c0_6, %c0_7] : memref<32x256xbf16, #tpu.memory_space<vmem>>, vector<32x256xbf16>
    tpu.vector_store %arg5[%c0_6, %c0_7], %8 {strides = array<i32>} : memref<32x256xbf16, #tpu.memory_space<vmem>>, vector<32x256xbf16>,
    return
  }
  func.func @transform_0(%arg0: i32, %arg1: i32) -> (i32, i32) {
    %c0_i32 = arith.constant 0 : i32
    %c0_i32_0 = arith.constant 0 : i32
    return %arg0, %c0_i32 : i32, i32
  }
  func.func @transform_1(%arg0: i32, %arg1: i32) -> (i32, i32) {
    %c0_i32 = arith.constant 0 : i32
    %c0_i32_0 = arith.constant 0 : i32
    return %c0_i32, %arg1 : i32, i32
  }
  func.func @transform_2(%arg0: i32, %arg1: i32) -> (i32, i32) {
    %c0_i32 = arith.constant 0 : i32
    %c0_i32_0 = arith.constant 0 : i32
    return %c0_i32, %arg1 : i32, i32
  }
  func.func @transform_3(%arg0: i32, %arg1: i32) -> (i32, i32) {
    %c0_i32 = arith.constant 0 : i32
    return %arg0, %arg1 : i32, i32
  }
}

module attributes {stable_mosaic.version = 11 : i64} {
  func.func @_mm_bias_kernel(%arg0: i32, %arg1: i32, %arg2: memref<8x512xbf16, #tpu.memory_space<vmem>>, %arg3: memref<512x256xbf16, #tpu.memory_space<vmem>>, %arg4: memref<1x256xf32, #tpu.memory_space<vmem>>, %arg5: memref<8x256xbf16, #tpu.memory_space<vmem>>) attributes {dimension_semantics = [#tpu.dimension_semantics<parallel>, #tpu.dimension_semantics<parallel>], iteration_bounds = array<i64: 1, 4>, scalar_prefetch = 0 : i64, scratch_operands = 0 : i64, tpu.core_type = #tpu.core_type<tc>, window_params = [{transform_indices = @transform_0, window_bounds = array<i64: 8, 512>}, {transform_indices = @transform_1, window_bounds = array<i64: 512, 256>}, {transform_indices = @transform_2, window_bounds = array<i64: 1, 256>}, {transform_indices = @transform_3, window_bounds = array<i64: 8, 256>}]} {
    %c0 = arith.constant 0 : index
    %c0_0 = arith.constant 0 : index
    %0 = vector.load %arg2[%c0, %c0_0] : memref<8x512xbf16, #tpu.memory_space<vmem>>, vector<8x512xbf16>
    %c0_1 = arith.constant 0 : index
    %c0_2 = arith.constant 0 : index
    %1 = vector.load %arg3[%c0_1, %c0_2] : memref<512x256xbf16, #tpu.memory_space<vmem>>, vector<512x256xbf16>
    %cst = arith.constant dense<0.000000e+00> : vector<8x256xf32>
    %2 = tpu.matmul %0, %1, %cst {dimension_numbers = #tpu.dot_dimension_numbers<[1], [0], [0], [1], [0, 0, 1, 1], [], []>} : vector<8x512xbf16>, vector<512x256xbf16>, vector<8x256xf32> -> vector<8x256xf32>
    %c0_3 = arith.constant 0 : index
    %c0_4 = arith.constant 0 : index
    %3 = vector.load %arg4[%c0_3, %c0_4] : memref<1x256xf32, #tpu.memory_space<vmem>>, vector<1x256xf32>
    %4 = vector.broadcast %3 : vector<1x256xf32> to vector<8x256xf32>
    %5 = arith.addf %2, %4 : vector<8x256xf32>
    %6 = arith.truncf %5 : vector<8x256xf32> to vector<8x256xbf16>
    %c0_5 = arith.constant 0 : index
    %c0_6 = arith.constant 0 : index
    %7 = vector.load %arg5[%c0_5, %c0_6] : memref<8x256xbf16, #tpu.memory_space<vmem>>, vector<8x256xbf16>
    tpu.vector_store %arg5[%c0_5, %c0_6], %6 {strides = array<i32>} : memref<8x256xbf16, #tpu.memory_space<vmem>>, vector<8x256xbf16>,
    return
  }
  func.func @transform_0(%arg0: i32, %arg1: i32) -> (i32, i32) {
    %c0_i32 = arith.constant 0 : i32
    %c0_i32_0 = arith.constant 0 : i32
    return %arg0, %c0_i32 : i32, i32
  }
  func.func @transform_1(%arg0: i32, %arg1: i32) -> (i32, i32) {
    %c0_i32 = arith.constant 0 : i32
    %c0_i32_0 = arith.constant 0 : i32
    return %c0_i32, %arg1 : i32, i32
  }
  func.func @transform_2(%arg0: i32, %arg1: i32) -> (i32, i32) {
    %c0_i32 = arith.constant 0 : i32
    %c0_i32_0 = arith.constant 0 : i32
    return %c0_i32, %arg1 : i32, i32
  }
  func.func @transform_3(%arg0: i32, %arg1: i32) -> (i32, i32) {
    %c0_i32 = arith.constant 0 : i32
    return %arg0, %arg1 : i32, i32
  }
}

module attributes {stable_mosaic.version = 11 : i64} {
  func.func @_mm_bias_kernel(%arg0: i32, %arg1: i32, %arg2: memref<8x2304xbf16, #tpu.memory_space<vmem>>, %arg3: memref<2304x256xbf16, #tpu.memory_space<vmem>>, %arg4: memref<1x256xf32, #tpu.memory_space<vmem>>, %arg5: memref<8x256xbf16, #tpu.memory_space<vmem>>) attributes {dimension_semantics = [#tpu.dimension_semantics<parallel>, #tpu.dimension_semantics<parallel>], iteration_bounds = array<i64: 1, 1>, scalar_prefetch = 0 : i64, scratch_operands = 0 : i64, tpu.core_type = #tpu.core_type<tc>, window_params = [{transform_indices = @transform_0, window_bounds = array<i64: 8, 2304>}, {transform_indices = @transform_1, window_bounds = array<i64: 2304, 256>}, {transform_indices = @transform_2, window_bounds = array<i64: 1, 256>}, {transform_indices = @transform_3, window_bounds = array<i64: 8, 256>}]} {
    %c0 = arith.constant 0 : index
    %c0_0 = arith.constant 0 : index
    %0 = vector.load %arg2[%c0, %c0_0] : memref<8x2304xbf16, #tpu.memory_space<vmem>>, vector<8x2304xbf16>
    %c0_1 = arith.constant 0 : index
    %c0_2 = arith.constant 0 : index
    %1 = vector.load %arg3[%c0_1, %c0_2] : memref<2304x256xbf16, #tpu.memory_space<vmem>>, vector<2304x256xbf16>
    %cst = arith.constant dense<0.000000e+00> : vector<8x256xf32>
    %2 = tpu.matmul %0, %1, %cst {dimension_numbers = #tpu.dot_dimension_numbers<[1], [0], [0], [1], [0, 0, 1, 1], [], []>} : vector<8x2304xbf16>, vector<2304x256xbf16>, vector<8x256xf32> -> vector<8x256xf32>
    %c0_3 = arith.constant 0 : index
    %c0_4 = arith.constant 0 : index
    %3 = vector.load %arg4[%c0_3, %c0_4] : memref<1x256xf32, #tpu.memory_space<vmem>>, vector<1x256xf32>
    %4 = vector.broadcast %3 : vector<1x256xf32> to vector<8x256xf32>
    %5 = arith.addf %2, %4 : vector<8x256xf32>
    %cst_5 = arith.constant 0.000000e+00 : f32
    %6 = vector.broadcast %cst_5 : f32 to vector<8x256xf32>
    %7 = arith.maximumf %5, %6 : vector<8x256xf32>
    %8 = arith.truncf %7 : vector<8x256xf32> to vector<8x256xbf16>
    %c0_6 = arith.constant 0 : index
    %c0_7 = arith.constant 0 : index
    %9 = vector.load %arg5[%c0_6, %c0_7] : memref<8x256xbf16, #tpu.memory_space<vmem>>, vector<8x256xbf16>
    tpu.vector_store %arg5[%c0_6, %c0_7], %8 {strides = array<i32>} : memref<8x256xbf16, #tpu.memory_space<vmem>>, vector<8x256xbf16>,
    return
  }
  func.func @transform_0(%arg0: i32, %arg1: i32) -> (i32, i32) {
    %c0_i32 = arith.constant 0 : i32
    %c0_i32_0 = arith.constant 0 : i32
    return %arg0, %c0_i32 : i32, i32
  }
  func.func @transform_1(%arg0: i32, %arg1: i32) -> (i32, i32) {
    %c0_i32 = arith.constant 0 : i32
    %c0_i32_0 = arith.constant 0 : i32
    return %c0_i32, %arg1 : i32, i32
  }
  func.func @transform_2(%arg0: i32, %arg1: i32) -> (i32, i32) {
    %c0_i32 = arith.constant 0 : i32
    %c0_i32_0 = arith.constant 0 : i32
    return %c0_i32, %arg1 : i32, i32
  }
  func.func @transform_3(%arg0: i32, %arg1: i32) -> (i32, i32) {
    %c0_i32 = arith.constant 0 : i32
    return %arg0, %arg1 : i32, i32
  }
}

module attributes {stable_mosaic.version = 11 : i64} {
  func.func @_mm_bias_res_kernel(%arg0: i32, %arg1: i32, %arg2: memref<8x256xbf16, #tpu.memory_space<vmem>>, %arg3: memref<256x256xbf16, #tpu.memory_space<vmem>>, %arg4: memref<1x256xf32, #tpu.memory_space<vmem>>, %arg5: memref<8x256xbf16, #tpu.memory_space<vmem>>, %arg6: memref<8x256xbf16, #tpu.memory_space<vmem>>) attributes {dimension_semantics = [#tpu.dimension_semantics<parallel>, #tpu.dimension_semantics<parallel>], iteration_bounds = array<i64: 1, 4>, scalar_prefetch = 0 : i64, scratch_operands = 0 : i64, tpu.core_type = #tpu.core_type<tc>, window_params = [{transform_indices = @transform_0, window_bounds = array<i64: 8, 256>}, {transform_indices = @transform_1, window_bounds = array<i64: 256, 256>}, {transform_indices = @transform_2, window_bounds = array<i64: 1, 256>}, {transform_indices = @transform_3, window_bounds = array<i64: 8, 256>}, {transform_indices = @transform_4, window_bounds = array<i64: 8, 256>}]} {
    %c0 = arith.constant 0 : index
    %c0_0 = arith.constant 0 : index
    %0 = vector.load %arg2[%c0, %c0_0] : memref<8x256xbf16, #tpu.memory_space<vmem>>, vector<8x256xbf16>
    %c0_1 = arith.constant 0 : index
    %c0_2 = arith.constant 0 : index
    %1 = vector.load %arg3[%c0_1, %c0_2] : memref<256x256xbf16, #tpu.memory_space<vmem>>, vector<256x256xbf16>
    %cst = arith.constant dense<0.000000e+00> : vector<8x256xf32>
    %2 = tpu.matmul %0, %1, %cst {dimension_numbers = #tpu.dot_dimension_numbers<[1], [0], [0], [1], [0, 0, 1, 1], [], []>} : vector<8x256xbf16>, vector<256x256xbf16>, vector<8x256xf32> -> vector<8x256xf32>
    %c0_3 = arith.constant 0 : index
    %c0_4 = arith.constant 0 : index
    %3 = vector.load %arg4[%c0_3, %c0_4] : memref<1x256xf32, #tpu.memory_space<vmem>>, vector<1x256xf32>
    %4 = vector.broadcast %3 : vector<1x256xf32> to vector<8x256xf32>
    %5 = arith.addf %2, %4 : vector<8x256xf32>
    %c0_5 = arith.constant 0 : index
    %c0_6 = arith.constant 0 : index
    %6 = vector.load %arg5[%c0_5, %c0_6] : memref<8x256xbf16, #tpu.memory_space<vmem>>, vector<8x256xbf16>
    %7 = arith.extf %6 : vector<8x256xbf16> to vector<8x256xf32>
    %8 = arith.addf %5, %7 : vector<8x256xf32>
    %cst_7 = arith.constant 0.000000e+00 : f32
    %9 = vector.broadcast %cst_7 : f32 to vector<8x256xf32>
    %10 = arith.maximumf %8, %9 : vector<8x256xf32>
    %11 = arith.truncf %10 : vector<8x256xf32> to vector<8x256xbf16>
    %c0_8 = arith.constant 0 : index
    %c0_9 = arith.constant 0 : index
    %12 = vector.load %arg6[%c0_8, %c0_9] : memref<8x256xbf16, #tpu.memory_space<vmem>>, vector<8x256xbf16>
    tpu.vector_store %arg6[%c0_8, %c0_9], %11 {strides = array<i32>} : memref<8x256xbf16, #tpu.memory_space<vmem>>, vector<8x256xbf16>,
    return
  }
  func.func @transform_0(%arg0: i32, %arg1: i32) -> (i32, i32) {
    %c0_i32 = arith.constant 0 : i32
    %c0_i32_0 = arith.constant 0 : i32
    return %arg0, %c0_i32 : i32, i32
  }
  func.func @transform_1(%arg0: i32, %arg1: i32) -> (i32, i32) {
    %c0_i32 = arith.constant 0 : i32
    %c0_i32_0 = arith.constant 0 : i32
    return %c0_i32, %arg1 : i32, i32
  }
  func.func @transform_2(%arg0: i32, %arg1: i32) -> (i32, i32) {
    %c0_i32 = arith.constant 0 : i32
    %c0_i32_0 = arith.constant 0 : i32
    return %c0_i32, %arg1 : i32, i32
  }
  func.func @transform_3(%arg0: i32, %arg1: i32) -> (i32, i32) {
    %c0_i32 = arith.constant 0 : i32
    return %arg0, %arg1 : i32, i32
  }
  func.func @transform_4(%arg0: i32, %arg1: i32) -> (i32, i32) {
    %c0_i32 = arith.constant 0 : i32
    return %arg0, %arg1 : i32, i32
  }
}

module attributes {stable_mosaic.version = 11 : i64} {
  func.func @_avgpool_kernel(%arg0: i32, %arg1: memref<2x4x256xbf16, #tpu.memory_space<vmem>>, %arg2: memref<2x256xf32, #tpu.memory_space<vmem>>) attributes {dimension_semantics = [#tpu.dimension_semantics<parallel>], iteration_bounds = array<i64: 4>, scalar_prefetch = 0 : i64, scratch_operands = 0 : i64, tpu.core_type = #tpu.core_type<tc>, window_params = [{transform_indices = @transform_0, window_bounds = array<i64: 2, 4, 256>}, {transform_indices = @transform_1, window_bounds = array<i64: 2, 256>}]} {
    %c0 = arith.constant 0 : index
    %c0_0 = arith.constant 0 : index
    %c0_1 = arith.constant 0 : index
    %0 = vector.load %arg1[%c0, %c0_0, %c0_1] : memref<2x4x256xbf16, #tpu.memory_space<vmem>>, vector<2x4x256xbf16>
    %1 = arith.extf %0 : vector<2x4x256xbf16> to vector<2x4x256xf32>
    %cst = arith.constant dense<0.000000e+00> : vector<2x256xf32>
    %2 = vector.multi_reduction <add>, %1, %cst [1] : vector<2x4x256xf32> to vector<2x256xf32>
    %cst_2 = arith.constant 4.000000e+00 : f32
    %3 = vector.broadcast %cst_2 : f32 to vector<2x256xf32>
    %4 = arith.divf %2, %3 : vector<2x256xf32>
    %c0_3 = arith.constant 0 : index
    %c0_4 = arith.constant 0 : index
    %5 = vector.load %arg2[%c0_3, %c0_4] : memref<2x256xf32, #tpu.memory_space<vmem>>, vector<2x256xf32>
    tpu.vector_store %arg2[%c0_3, %c0_4], %4 {strides = array<i32>} : memref<2x256xf32, #tpu.memory_space<vmem>>, vector<2x256xf32>,
    return
  }
  func.func @transform_0(%arg0: i32) -> (i32, i32, i32) {
    %c0_i32 = arith.constant 0 : i32
    %c0_i32_0 = arith.constant 0 : i32
    %c0_i32_1 = arith.constant 0 : i32
    return %c0_i32, %c0_i32_0, %arg0 : i32, i32, i32
  }
  func.func @transform_1(%arg0: i32) -> (i32, i32) {
    %c0_i32 = arith.constant 0 : i32
    %c0_i32_0 = arith.constant 0 : i32
    return %c0_i32, %arg0 : i32, i32
  }
}

</mosaic_0001>

<llo_original>
// kernel: resnet_forward.15
$region0: #{resnet_forward.15}
  #allocation0 [shape = 'u32[]', space=smem, size = 0x4, offset = 0x4, fixed_abs, tag = 'smem constant byte address 0x4 - core index']
  #allocation1 [shape = 'u32[144,128]{1,0:T(1,128)}', space=vmem, size = 0x12000, scoped, tag = 'internal scratch']
  %s0 = inlined_call_operand.vmem [shape: bf16[512,256], index: 0, kind: input, shape index: {}]
  %s1 = inlined_call_operand.vmem [shape: bf16[256,128], index: 1, kind: input, shape index: {}]
  %s2 = inlined_call_operand.vmem [shape: f32[1,128], index: 2, kind: input, shape index: {}]
  %s3 = inlined_call_operand.vmem [shape: bf16[512,128], index: 3, kind: output, shape index: {}]
  %s4 = sld [smem:[#allocation0]]
  $region22: #{resnet_forward.15} parent=0
    _
  %s6 = ssub.s32 1, %s4
  %s7 = scalar_select 0, %s6, %s4
  // Predicated region
  $region2: #{resnet_forward.15} parent=0 // pred_check
    _
  $region3: #{resnet_forward.15} parent=0 // pred_check_branch
    %9 = sbr.rel (0) target = $region5
  $region4: #{resnet_forward.15} parent=0 // pred_region
    _
  $region5: #{resnet_forward.15} parent=0 // pred_fallthru
    _
  // Predicated region
  $region6: #{resnet_forward.15} parent=0 // pred_check
    _
  $region7: #{resnet_forward.15} parent=0 // pred_check_branch
    %11 = sbr.rel (0) target = $region9
  $region8: #{resnet_forward.15} parent=0 // pred_region
    _
  $region9: #{resnet_forward.15} parent=0 // pred_fallthru
    _
  // Predicated region
  $region10: #{resnet_forward.15} parent=0 // pred_check
    _
  $region11: #{resnet_forward.15} parent=0 // pred_check_branch
    %13 = sbr.rel (0) target = $region13
  $region12: #{resnet_forward.15} parent=0 // pred_region
    _
  $region13: #{resnet_forward.15} parent=0 // pred_fallthru
    _
  %v15 = vld [vmem:[%s0] sm:$0xff]
  %v16 = vld [vmem:[%s0 + $0x8] sm:$0xff]
  %v17 = vld [vmem:[%s0 + $0x10] sm:$0xff]
  %v18 = vld [vmem:[%s0 + $0x18] sm:$0xff]
  %v19 = vld [vmem:[%s0 + $0x20] sm:$0xff]
  %v20 = vld [vmem:[%s0 + $0x28] sm:$0xff]
  %v21 = vld [vmem:[%s0 + $0x30] sm:$0xff]
  %v22 = vld [vmem:[%s0 + $0x38] sm:$0xff]
  %v23 = vld [vmem:[%s0 + $0x40] sm:$0xff]
  %v24 = vld [vmem:[%s0 + $0x48] sm:$0xff]
  %v25 = vld [vmem:[%s0 + $0x50] sm:$0xff]
  %v26 = vld [vmem:[%s0 + $0x58] sm:$0xff]
  %v27 = vld [vmem:[%s0 + $0x60] sm:$0xff]
  %v28 = vld [vmem:[%s0 + $0x68] sm:$0xff]
  %v29 = vld [vmem:[%s0 + $0x70] sm:$0xff]
  %v30 = vld [vmem:[%s0 + $0x78] sm:$0xff]
  %v31 = vld [vmem:[%s0 + $0x80] sm:$0xff]
  %v32 = vld [vmem:[%s0 + $0x88] sm:$0xff]
  %v33 = vld [vmem:[%s0 + $0x90] sm:$0xff]
  %v34 = vld [vmem:[%s0 + $0x98] sm:$0xff]
  %v35 = vld [vmem:[%s0 + $0xa0] sm:$0xff]
  %v36 = vld [vmem:[%s0 + $0xa8] sm:$0xff]
  %v37 = vld [vmem:[%s0 + $0xb0] sm:$0xff]
  %v38 = vld [vmem:[%s0 + $0xb8] sm:$0xff]
  %v39 = vld [vmem:[%s0 + $0xc0] sm:$0xff]
  %v40 = vld [vmem:[%s0 + $0xc8] sm:$0xff]
  %v41 = vld [vmem:[%s0 + $0xd0] sm:$0xff]
  %v42 = vld [vmem:[%s0 + $0xd8] sm:$0xff]
  %v43 = vld [vmem:[%s0 + $0xe0] sm:$0xff]
  %v44 = vld [vmem:[%s0 + $0xe8] sm:$0xff]
  %v45 = vld [vmem:[%s0 + $0xf0] sm:$0xff]
  %v46 = vld [vmem:[%s0 + $0xf8] sm:$0xff]
  %v47 = vld [vmem:[%s0 + $0x100] sm:$0xff]
  %v48 = vld [vmem:[%s0 + $0x108] sm:$0xff]
  %v49 = vld [vmem:[%s0 + $0x110] sm:$0xff]
  %v50 = vld [vmem:[%s0 + $0x118] sm:$0xff]
  %v51 = vld [vmem:[%s0 + $0x120] sm:$0xff]
  %v52 = vld [vmem:[%s0 + $0x128] sm:$0xff]
  %v53 = vld [vmem:[%s0 + $0x130] sm:$0xff]
  %v54 = vld [vmem:[%s0 + $0x138] sm:$0xff]
  %v55 = vld [vmem:[%s0 + $0x140] sm:$0xff]
  %v56 = vld [vmem:[%s0 + $0x148] sm:$0xff]
  %v57 = vld [vmem:[%s0 + $0x150] sm:$0xff]
  %v58 = vld [vmem:[%s0 + $0x158] sm:$0xff]
  %v59 = vld [vmem:[%s0 + $0x160] sm:$0xff]
  %v60 = vld [vmem:[%s0 + $0x168] sm:$0xff]
  %v61 = vld [vmem:[%s0 + $0x170] sm:$0xff]
  %v62 = vld [vmem:[%s0 + $0x178] sm:$0xff]
  %v63 = vld [vmem:[%s0 + $0x180] sm:$0xff]
  %v64 = vld [vmem:[%s0 + $0x188] sm:$0xff]
  %v65 = vld [vmem:[%s0 + $0x190] sm:$0xff]
  %v66 = vld [vmem:[%s0 + $0x198] sm:$0xff]
  %v67 = vld [vmem:[%s0 + $0x1a0] sm:$0xff]
  %v68 = vld [vmem:[%s0 + $0x1a8] sm:$0xff]
  %v69 = vld [vmem:[%s0 + $0x1b0] sm:$0xff]
  %v70 = vld [vmem:[%s0 + $0x1b8] sm:$0xff]
  %v71 = vld [vmem:[%s0 + $0x1c0] sm:$0xff]
  %v72 = vld [vmem:[%s0 + $0x1c8] sm:$0xff]
  %v73 = vld [vmem:[%s0 + $0x1d0] sm:$0xff]
  %v74 = vld [vmem:[%s0 + $0x1d8] sm:$0xff]
  %v75 = vld [vmem:[%s0 + $0x1e0] sm:$0xff]
  %v76 = vld [vmem:[%s0 + $0x1e8] sm:$0xff]
  %v77 = vld [vmem:[%s0 + $0x1f0] sm:$0xff]
  %v78 = vld [vmem:[%s0 + $0x1f8] sm:$0xff]
  %v79 = vld [vmem:[%s1] sm:$0xf]
  %v80 = vld [vmem:[%s1 + $0x4] sm:$0xf]
  %v81 = vld [vmem:[%s1 + $0x8] sm:$0xf]
  %v82 = vld [vmem:[%s1 + $0xc] sm:$0xf]
  %v83 = vld [vmem:[%s1 + $0x10] sm:$0xf]
  %v84 = vld [vmem:[%s1 + $0x14] sm:$0xf]
  %v85 = vld [vmem:[%s1 + $0x18] sm:$0xf]
  %v86 = vld [vmem:[%s1 + $0x1c] sm:$0xf]
  %v87 = vld [vmem:[%s1 + $0x20] sm:$0xf]
  %v88 = vld [vmem:[%s1 + $0x24] sm:$0xf]
  %v89 = vld [vmem:[%s1 + $0x28] sm:$0xf]
  %v90 = vld [vmem:[%s1 + $0x2c] sm:$0xf]
  %v91 = vld [vmem:[%s1 + $0x30] sm:$0xf]
  %v92 = vld [vmem:[%s1 + $0x34] sm:$0xf]
  %v93 = vld [vmem:[%s1 + $0x38] sm:$0xf]
  %v94 = vld [vmem:[%s1 + $0x3c] sm:$0xf]
  %v95 = vld [vmem:[%s1 + $0x40] sm:$0xf]
  %v96 = vld [vmem:[%s1 + $0x44] sm:$0xf]
  %v97 = vld [vmem:[%s1 + $0x48] sm:$0xf]
  %v98 = vld [vmem:[%s1 + $0x4c] sm:$0xf]
  %v99 = vld [vmem:[%s1 + $0x50] sm:$0xf]
  %v100 = vld [vmem:[%s1 + $0x54] sm:$0xf]
  %v101 = vld [vmem:[%s1 + $0x58] sm:$0xf]
  %v102 = vld [vmem:[%s1 + $0x5c] sm:$0xf]
  %v103 = vld [vmem:[%s1 + $0x60] sm:$0xf]
  %v104 = vld [vmem:[%s1 + $0x64] sm:$0xf]
  %v105 = vld [vmem:[%s1 + $0x68] sm:$0xf]
  %v106 = vld [vmem:[%s1 + $0x6c] sm:$0xf]
  %v107 = vld [vmem:[%s1 + $0x70] sm:$0xf]
  %v108 = vld [vmem:[%s1 + $0x74] sm:$0xf]
  %v109 = vld [vmem:[%s1 + $0x78] sm:$0xf]
  %v110 = vld [vmem:[%s1 + $0x7c] sm:$0xf]
  %v111 = vld [vmem:[%s2] sm:$0x1]
  %v113 = vlaneseq
  %v114 = vshrl.u32 %v113, 7
  %v115 = vsub.s32 0, %v114
  %v116 = vrot.slane %v111, %v115
  %v182 = vunpack.c.l.b16 %v15
  %v183 = vunpack.c.h.b16 %v15
  %v184 = vunpack.c.l.b16 %v16
  %v185 = vunpack.c.h.b16 %v16
  %v186 = vunpack.c.l.b16 %v17
  %v187 = vunpack.c.h.b16 %v17
  %v188 = vunpack.c.l.b16 %v18
  %v189 = vunpack.c.h.b16 %v18
  %v190 = vunpack.c.l.b16 %v19
  %v191 = vunpack.c.h.b16 %v19
  %v192 = vunpack.c.l.b16 %v20
  %v193 = vunpack.c.h.b16 %v20
  %v194 = vunpack.c.l.b16 %v21
  %v195 = vunpack.c.h.b16 %v21
  %v196 = vunpack.c.l.b16 %v22
  %v197 = vunpack.c.h.b16 %v22
  %v198 = vunpack.c.l.b16 %v23
  %v199 = vunpack.c.h.b16 %v23
  %v200 = vunpack.c.l.b16 %v24
  %v201 = vunpack.c.h.b16 %v24
  %v202 = vunpack.c.l.b16 %v25
  %v203 = vunpack.c.h.b16 %v25
  %v204 = vunpack.c.l.b16 %v26
  %v205 = vunpack.c.h.b16 %v26
  %v206 = vunpack.c.l.b16 %v27
  %v207 = vunpack.c.h.b16 %v27
  %v208 = vunpack.c.l.b16 %v28
  %v209 = vunpack.c.h.b16 %v28
  %v210 = vunpack.c.l.b16 %v29
  %v211 = vunpack.c.h.b16 %v29
  %v212 = vunpack.c.l.b16 %v30
  %v213 = vunpack.c.h.b16 %v30
  %v214 = vunpack.c.l.b16 %v31
  %v215 = vunpack.c.h.b16 %v31
  %v216 = vunpack.c.l.b16 %v32
  %v217 = vunpack.c.h.b16 %v32
  %v218 = vunpack.c.l.b16 %v33
  %v219 = vunpack.c.h.b16 %v33
  %v220 = vunpack.c.l.b16 %v34
  %v221 = vunpack.c.h.b16 %v34
  %v222 = vunpack.c.l.b16 %v35
  %v223 = vunpack.c.h.b16 %v35
  %v224 = vunpack.c.l.b16 %v36
  %v225 = vunpack.c.h.b16 %v36
  %v226 = vunpack.c.l.b16 %v37
  %v227 = vunpack.c.h.b16 %v37
  %v228 = vunpack.c.l.b16 %v38
  %v229 = vunpack.c.h.b16 %v38
  %v230 = vunpack.c.l.b16 %v39
  %v231 = vunpack.c.h.b16 %v39
  %v232 = vunpack.c.l.b16 %v40
  %v233 = vunpack.c.h.b16 %v40
  %v234 = vunpack.c.l.b16 %v41
  %v235 = vunpack.c.h.b16 %v41
  %v236 = vunpack.c.l.b16 %v42
  %v237 = vunpack.c.h.b16 %v42
  %v238 = vunpack.c.l.b16 %v43
  %v239 = vunpack.c.h.b16 %v43
  %v240 = vunpack.c.l.b16 %v44
  %v241 = vunpack.c.h.b16 %v44
  %v242 = vunpack.c.l.b16 %v45
  %v243 = vunpack.c.h.b16 %v45
  %v244 = vunpack.c.l.b16 %v46
  %v245 = vunpack.c.h.b16 %v46
  %v246 = vunpack.c.l.b16 %v47
  %v247 = vunpack.c.h.b16 %v47
  %v248 = vunpack.c.l.b16 %v48
  %v249 = vunpack.c.h.b16 %v48
  %v250 = vunpack.c.l.b16 %v49
  %v251 = vunpack.c.h.b16 %v49
  %v252 = vunpack.c.l.b16 %v50
  %v253 = vunpack.c.h.b16 %v50
  %v254 = vunpack.c.l.b16 %v51
  %v255 = vunpack.c.h.b16 %v51
  %v256 = vunpack.c.l.b16 %v52
  %v257 = vunpack.c.h.b16 %v52
  %v258 = vunpack.c.l.b16 %v53
  %v259 = vunpack.c.h.b16 %v53
  %v260 = vunpack.c.l.b16 %v54
  %v261 = vunpack.c.h.b16 %v54
  %v262 = vunpack.c.l.b16 %v55
  %v263 = vunpack.c.h.b16 %v55
  %v264 = vunpack.c.l.b16 %v56
  %v265 = vunpack.c.h.b16 %v56
  %v266 = vunpack.c.l.b16 %v57
  %v267 = vunpack.c.h.b16 %v57
  %v268 = vunpack.c.l.b16 %v58
  %v269 = vunpack.c.h.b16 %v58
  %v270 = vunpack.c.l.b16 %v59
  %v271 = vunpack.c.h.b16 %v59
  %v272 = vunpack.c.l.b16 %v60
  %v273 = vunpack.c.h.b16 %v60
  %v274 = vunpack.c.l.b16 %v61
  %v275 = vunpack.c.h.b16 %v61
  %v276 = vunpack.c.l.b16 %v62
  %v277 = vunpack.c.h.b16 %v62
  %v278 = vunpack.c.l.b16 %v63
  %v279 = vunpack.c.h.b16 %v63
  %v280 = vunpack.c.l.b16 %v64
  %v281 = vunpack.c.h.b16 %v64
  %v282 = vunpack.c.l.b16 %v65
  %v283 = vunpack.c.h.b16 %v65
  %v284 = vunpack.c.l.b16 %v66
  %v285 = vunpack.c.h.b16 %v66
  %v286 = vunpack.c.l.b16 %v67
  %v287 = vunpack.c.h.b16 %v67
  %v288 = vunpack.c.l.b16 %v68
  %v289 = vunpack.c.h.b16 %v68
  %v290 = vunpack.c.l.b16 %v69
  %v291 = vunpack.c.h.b16 %v69
  %v292 = vunpack.c.l.b16 %v70
  %v293 = vunpack.c.h.b16 %v70
  %v294 = vunpack.c.l.b16 %v71
  %v295 = vunpack.c.h.b16 %v71
  %v296 = vunpack.c.l.b16 %v72
  %v297 = vunpack.c.h.b16 %v72
  %v298 = vunpack.c.l.b16 %v73
  %v299 = vunpack.c.h.b16 %v73
  %v300 = vunpack.c.l.b16 %v74
  %v301 = vunpack.c.h.b16 %v74
  %v302 = vunpack.c.l.b16 %v75
  %v303 = vunpack.c.h.b16 %v75
  %v304 = vunpack.c.l.b16 %v76
  %v305 = vunpack.c.h.b16 %v76
  %v306 = vunpack.c.l.b16 %v77
  %v307 = vunpack.c.h.b16 %v77
  %v308 = vunpack.c.l.b16 %v78
  %v309 = vunpack.c.h.b16 %v78
  %v310 = vpack.c.b16 %v184, %v182
  %v311 = vpack.c.b16 %v185, %v183
  %v312 = vpack.c.b16 %v188, %v186
  %v313 = vpack.c.b16 %v189, %v187
  %v314 = vpack.c.b16 %v192, %v190
  %v315 = vpack.c.b16 %v193, %v191
  %v316 = vpack.c.b16 %v196, %v194
  %v317 = vpack.c.b16 %v197, %v195
  %v318 = vpack.c.b16 %v200, %v198
  %v319 = vpack.c.b16 %v201, %v199
  %v320 = vpack.c.b16 %v204, %v202
  %v321 = vpack.c.b16 %v205, %v203
  %v322 = vpack.c.b16 %v208, %v206
  %v323 = vpack.c.b16 %v209, %v207
  %v324 = vpack.c.b16 %v212, %v210
  %v325 = vpack.c.b16 %v213, %v211
  %v326 = vpack.c.b16 %v216, %v214
  %v327 = vpack.c.b16 %v217, %v215
  %v328 = vpack.c.b16 %v220, %v218
  %v329 = vpack.c.b16 %v221, %v219
  %v330 = vpack.c.b16 %v224, %v222
  %v331 = vpack.c.b16 %v225, %v223
  %v332 = vpack.c.b16 %v228, %v226
  %v333 = vpack.c.b16 %v229, %v227
  %v334 = vpack.c.b16 %v232, %v230
  %v335 = vpack.c.b16 %v233, %v231
  %v336 = vpack.c.b16 %v236, %v234
  %v337 = vpack.c.b16 %v237, %v235
  %v338 = vpack.c.b16 %v240, %v238
  %v339 = vpack.c.b16 %v241, %v239
  %v340 = vpack.c.b16 %v244, %v242
  %v341 = vpack.c.b16 %v245, %v243
  %v342 = vpack.c.b16 %v248, %v246
  %v343 = vpack.c.b16 %v249, %v247
  %v344 = vpack.c.b16 %v252, %v250
  %v345 = vpack.c.b16 %v253, %v251
  %v346 = vpack.c.b16 %v256, %v254
  %v347 = vpack.c.b16 %v257, %v255
  %v348 = vpack.c.b16 %v260, %v258
  %v349 = vpack.c.b16 %v261, %v259
  %v350 = vpack.c.b16 %v264, %v262
  %v351 = vpack.c.b16 %v265, %v263
  %v352 = vpack.c.b16 %v268, %v266
  %v353 = vpack.c.b16 %v269, %v267
  %v354 = vpack.c.b16 %v272, %v270
  %v355 = vpack.c.b16 %v273, %v271
  %v356 = vpack.c.b16 %v276, %v274
  %v357 = vpack.c.b16 %v277, %v275
  %v358 = vpack.c.b16 %v280, %v278
  %v359 = vpack.c.b16 %v281, %v279
  %v360 = vpack.c.b16 %v284, %v282
  %v361 = vpack.c.b16 %v285, %v283
  %v362 = vpack.c.b16 %v288, %v286
  %v363 = vpack.c.b16 %v289, %v287
  %v364 = vpack.c.b16 %v292, %v290
  %v365 = vpack.c.b16 %v293, %v291
  %v366 = vpack.c.b16 %v296, %v294
  %v367 = vpack.c.b16 %v297, %v295
  %v368 = vpack.c.b16 %v300, %v298
  %v369 = vpack.c.b16 %v301, %v299
  %v370 = vpack.c.b16 %v304, %v302
  %v371 = vpack.c.b16 %v305, %v303
  %v372 = vpack.c.b16 %v308, %v306
  %v373 = vpack.c.b16 %v309, %v307
  %v470 = vunpack.c.l.b16 %v79
  %v471 = vunpack.c.l.b16 %v80
  %v472 = vunpack.c.l.b16 %v81
  %v473 = vunpack.c.l.b16 %v82
  %v474 = vunpack.c.l.b16 %v83
  %v475 = vunpack.c.l.b16 %v84
  %v476 = vunpack.c.l.b16 %v85
  %v477 = vunpack.c.l.b16 %v86
  %v478 = vunpack.c.l.b16 %v87
  %v479 = vunpack.c.l.b16 %v88
  %v480 = vunpack.c.l.b16 %v89
  %v481 = vunpack.c.l.b16 %v90
  %v482 = vunpack.c.l.b16 %v91
  %v483 = vunpack.c.l.b16 %v92
  %v484 = vunpack.c.l.b16 %v93
  %v485 = vunpack.c.l.b16 %v94
  %v486 = vunpack.c.l.b16 %v95
  %v487 = vunpack.c.l.b16 %v96
  %v488 = vunpack.c.l.b16 %v97
  %v489 = vunpack.c.l.b16 %v98
  %v490 = vunpack.c.l.b16 %v99
  %v491 = vunpack.c.l.b16 %v100
  %v492 = vunpack.c.l.b16 %v101
  %v493 = vunpack.c.l.b16 %v102
  %v494 = vunpack.c.l.b16 %v103
  %v495 = vunpack.c.l.b16 %v104
  %v496 = vunpack.c.l.b16 %v105
  %v497 = vunpack.c.l.b16 %v106
  %v498 = vunpack.c.l.b16 %v107
  %v499 = vunpack.c.l.b16 %v108
  %v500 = vunpack.c.l.b16 %v109
  %v501 = vunpack.c.l.b16 %v110
  %v502 = vpack.c.b16 %v471, %v470
  %v503 = vpack.c.b16 %v473, %v472
  %v504 = vpack.c.b16 %v475, %v474
  %v505 = vpack.c.b16 %v477, %v476
  %v506 = vpack.c.b16 %v479, %v478
  %v507 = vpack.c.b16 %v481, %v480
  %v508 = vpack.c.b16 %v483, %v482
  %v509 = vpack.c.b16 %v485, %v484
  %v510 = vpack.c.b16 %v487, %v486
  %v511 = vpack.c.b16 %v489, %v488
  %v512 = vpack.c.b16 %v491, %v490
  %v513 = vpack.c.b16 %v493, %v492
  %v514 = vpack.c.b16 %v495, %v494
  %v515 = vpack.c.b16 %v497, %v496
  %v516 = vpack.c.b16 %v499, %v498
  %v517 = vpack.c.b16 %v501, %v500
  %534 = vmatprep.subr.bf16.mxu0 0
  %535 = vmatpush1.bf16.msra.mxu0 %v502
  %536 = vmatprep.subr.bf16.mxu0 0
  %537 = vmatpush1.bf16.msra.mxu0 %v503
  %538 = vmatprep.subr.bf16.mxu0 0
  %539 = vmatpush1.bf16.msra.mxu0 %v504
  %540 = vmatprep.subr.bf16.mxu0 0
  %541 = vmatpush1.bf16.msra.mxu0 %v505
  %542 = vmatprep.subr.bf16.mxu0 0
  %543 = vmatpush1.bf16.msra.mxu0 %v506
  %544 = vmatprep.subr.bf16.mxu0 0
  %545 = vmatpush1.bf16.msra.mxu0 %v507
  %546 = vmatprep.subr.bf16.mxu0 0
  %547 = vmatpush1.bf16.msra.mxu0 %v508
  %548 = vmatprep.subr.bf16.mxu0 0
  %549 = vmatpush1.bf16.msra.mxu0 %v509
  %550 = vmatprep.subr.bf16.mxu0 0
  %551 = vmatpush1.bf16.msra.mxu0 %v510
  %552 = vmatprep.subr.bf16.mxu0 0
  %553 = vmatpush1.bf16.msra.mxu0 %v511
  %554 = vmatprep.subr.bf16.mxu0 0
  %555 = vmatpush1.bf16.msra.mxu0 %v512
  %556 = vmatprep.subr.bf16.mxu0 0
  %557 = vmatpush1.bf16.msra.mxu0 %v513
  %558 = vmatprep.subr.bf16.mxu0 0
  %559 = vmatpush1.bf16.msra.mxu0 %v514
  %560 = vmatprep.subr.bf16.mxu0 0
  %561 = vmatpush1.bf16.msra.mxu0 %v515
  %562 = vmatprep.subr.bf16.mxu0 0
  %563 = vmatpush1.bf16.msra.mxu0 %v516
  %564 = vmatprep.subr.bf16.mxu0 0
  %565 = vmatpush1.bf16.msra.mxu0 %v517
  %566 = vmatprep.mubr.bf16.mxu0 %v311
  %567 = vmatmul.mubr.bf16.gmra.mrb[0].mxu0 %v310
  %v568 = vpop.f32.mrb[0].mxu0
  %v569 = vadd.f32 %v116, %v568
  %v570 = vpop.f32.mrb[0].mxu0
  %v571 = vpop.f32.mrb[0].mxu0
  %v572 = vadd.f32 %v116, %v571
  %v573 = vpop.f32.mrb[0].mxu0
  %574 = vmatprep.mubr.bf16.mxu0 %v313
  %575 = vmatmul.mubr.bf16.gmra.mrb[0].mxu0 %v312
  %v576 = vpop.f32.mrb[0].mxu0
  %v577 = vadd.f32 %v116, %v576
  %v578 = vpop.f32.mrb[0].mxu0
  %v579 = vpop.f32.mrb[0].mxu0
  %v580 = vadd.f32 %v116, %v579
  %v581 = vpop.f32.mrb[0].mxu0
  %582 = vmatprep.mubr.bf16.mxu0 %v315
  %583 = vmatmul.mubr.bf16.gmra.mrb[0].mxu0 %v314
  %v584 = vpop.f32.mrb[0].mxu0
  %v585 = vadd.f32 %v116, %v584
  %v586 = vpop.f32.mrb[0].mxu0
  %v587 = vpop.f32.mrb[0].mxu0
  %v588 = vadd.f32 %v116, %v587
  %v589 = vpop.f32.mrb[0].mxu0
  %590 = vmatprep.mubr.bf16.mxu0 %v317
  %591 = vmatmul.mubr.bf16.gmra.mrb[0].mxu0 %v316
  %v592 = vpop.f32.mrb[0].mxu0
  %v593 = vadd.f32 %v116, %v592
  %v594 = vpop.f32.mrb[0].mxu0
  %v595 = vpop.f32.mrb[0].mxu0
  %v596 = vadd.f32 %v116, %v595
  %v597 = vpop.f32.mrb[0].mxu0
  %598 = vmatprep.mubr.bf16.mxu0 %v319
  %599 = vmatmul.mubr.bf16.gmra.mrb[0].mxu0 %v318
  %v600 = vpop.f32.mrb[0].mxu0
  %v601 = vadd.f32 %v116, %v600
  %v602 = vpop.f32.mrb[0].mxu0
  %v603 = vpop.f32.mrb[0].mxu0
  %v604 = vadd.f32 %v116, %v603
  %v605 = vpop.f32.mrb[0].mxu0
  %606 = vmatprep.mubr.bf16.mxu0 %v321
  %607 = vmatmul.mubr.bf16.gmra.mrb[0].mxu0 %v320
  %v608 = vpop.f32.mrb[0].mxu0
  %v609 = vadd.f32 %v116, %v608
  %v610 = vpop.f32.mrb[0].mxu0
  %v611 = vpop.f32.mrb[0].mxu0
  %v612 = vadd.f32 %v116, %v611
  %v613 = vpop.f32.mrb[0].mxu0
  %614 = vmatprep.mubr.bf16.mxu0 %v323
  %615 = vmatmul.mubr.bf16.gmra.mrb[0].mxu0 %v322
  %v616 = vpop.f32.mrb[0].mxu0
  %v617 = vadd.f32 %v116, %v616
  %v618 = vpop.f32.mrb[0].mxu0
  %v619 = vpop.f32.mrb[0].mxu0
  %v620 = vadd.f32 %v116, %v619
  %v621 = vpop.f32.mrb[0].mxu0
  %622 = vmatprep.mubr.bf16.mxu0 %v325
  %623 = vmatmul.mubr.bf16.gmra.mrb[0].mxu0 %v324
  %v624 = vpop.f32.mrb[0].mxu0
  %v625 = vadd.f32 %v116, %v624
  %v626 = vpop.f32.mrb[0].mxu0
  %v627 = vpop.f32.mrb[0].mxu0
  %v628 = vadd.f32 %v116, %v627
  %v629 = vpop.f32.mrb[0].mxu0
  %630 = vmatprep.mubr.bf16.mxu0 %v327
  %631 = vmatmul.mubr.bf16.gmra.mrb[0].mxu0 %v326
  %v632 = vpop.f32.mrb[0].mxu0
  %v633 = vadd.f32 %v116, %v632
  %v634 = vpop.f32.mrb[0].mxu0
  %v635 = vpop.f32.mrb[0].mxu0
  %v636 = vadd.f32 %v116, %v635
  %v637 = vpop.f32.mrb[0].mxu0
  %638 = vmatprep.mubr.bf16.mxu0 %v329
  %639 = vmatmul.mubr.bf16.gmra.mrb[0].mxu0 %v328
  %v640 = vpop.f32.mrb[0].mxu0
  %v641 = vadd.f32 %v116, %v640
  %v642 = vpop.f32.mrb[0].mxu0
  %v643 = vpop.f32.mrb[0].mxu0
  %v644 = vadd.f32 %v116, %v643
  %v645 = vpop.f32.mrb[0].mxu0
  %646 = vmatprep.mubr.bf16.mxu0 %v331
  %647 = vmatmul.mubr.bf16.gmra.mrb[0].mxu0 %v330
  %v648 = vpop.f32.mrb[0].mxu0
  %v649 = vadd.f32 %v116, %v648
  %v650 = vpop.f32.mrb[0].mxu0
  %v651 = vpop.f32.mrb[0].mxu0
  %v652 = vadd.f32 %v116, %v651
  %v653 = vpop.f32.mrb[0].mxu0
  %654 = vmatprep.mubr.bf16.mxu0 %v333
  %655 = vmatmul.mubr.bf16.gmra.mrb[0].mxu0 %v332
  %v656 = vpop.f32.mrb[0].mxu0
  %v657 = vadd.f32 %v116, %v656
  %v658 = vpop.f32.mrb[0].mxu0
  %v659 = vpop.f32.mrb[0].mxu0
  %v660 = vadd.f32 %v116, %v659
  %v661 = vpop.f32.mrb[0].mxu0
  %662 = vmatprep.mubr.bf16.mxu0 %v335
  %663 = vmatmul.mubr.bf16.gmra.mrb[0].mxu0 %v334
  %v664 = vpop.f32.mrb[0].mxu0
  %v665 = vadd.f32 %v116, %v664
  %v666 = vpop.f32.mrb[0].mxu0
  %v667 = vpop.f32.mrb[0].mxu0
  %v668 = vadd.f32 %v116, %v667
  %v669 = vpop.f32.mrb[0].mxu0
  %670 = vmatprep.mubr.bf16.mxu0 %v337
  %671 = vmatmul.mubr.bf16.gmra.mrb[0].mxu0 %v336
  %v672 = vpop.f32.mrb[0].mxu0
  %v673 = vadd.f32 %v116, %v672
  %v674 = vpop.f32.mrb[0].mxu0
  %v675 = vpop.f32.mrb[0].mxu0
  %v676 = vadd.f32 %v116, %v675
  %v677 = vpop.f32.mrb[0].mxu0
  %678 = vmatprep.mubr.bf16.mxu0 %v339
  %679 = vmatmul.mubr.bf16.gmra.mrb[0].mxu0 %v338
  %v680 = vpop.f32.mrb[0].mxu0
  %v681 = vadd.f32 %v116, %v680
  %v682 = vpop.f32.mrb[0].mxu0
  %v683 = vpop.f32.mrb[0].mxu0
  %v684 = vadd.f32 %v116, %v683
  %v685 = vpop.f32.mrb[0].mxu0
  %686 = vmatprep.mubr.bf16.mxu0 %v341
  %687 = vmatmul.mubr.bf16.gmra.mrb[0].mxu0 %v340
  %v688 = vpop.f32.mrb[0].mxu0
  %v689 = vadd.f32 %v116, %v688
  %v690 = vpop.f32.mrb[0].mxu0
  %v691 = vpop.f32.mrb[0].mxu0
  %v692 = vadd.f32 %v116, %v691
  %v693 = vpop.f32.mrb[0].mxu0
  %694 = vmatprep.mubr.bf16.mxu0 %v343
  %695 = vmatmul.mubr.bf16.gmra.mrb[0].mxu0 %v342
  %v696 = vpop.f32.mrb[0].mxu0
  %v697 = vadd.f32 %v116, %v696
  %v698 = vpop.f32.mrb[0].mxu0
  %v699 = vpop.f32.mrb[0].mxu0
  %v700 = vadd.f32 %v116, %v699
  %v701 = vpop.f32.mrb[0].mxu0
  %702 = vmatprep.mubr.bf16.mxu0 %v345
  %703 = vmatmul.mubr.bf16.gmra.mrb[0].mxu0 %v344
  %v704 = vpop.f32.mrb[0].mxu0
  %v705 = vadd.f32 %v116, %v704
  %v706 = vpop.f32.mrb[0].mxu0
  %v707 = vpop.f32.mrb[0].mxu0
  %v708 = vadd.f32 %v116, %v707
  %v709 = vpop.f32.mrb[0].mxu0
  %710 = vmatprep.mubr.bf16.mxu0 %v347
  %711 = vmatmul.mubr.bf16.gmra.mrb[0].mxu0 %v346
  %v712 = vpop.f32.mrb[0].mxu0
  %v713 = vadd.f32 %v116, %v712
  %v714 = vpop.f32.mrb[0].mxu0
  %v715 = vpop.f32.mrb[0].mxu0
  %v716 = vadd.f32 %v116, %v715
  %v717 = vpop.f32.mrb[0].mxu0
  %718 = vmatprep.mubr.bf16.mxu0 %v349
  %719 = vmatmul.mubr.bf16.gmra.mrb[0].mxu0 %v348
  %v720 = vpop.f32.mrb[0].mxu0
  %v721 = vadd.f32 %v116, %v720
  %v722 = vpop.f32.mrb[0].mxu0
  %v723 = vpop.f32.mrb[0].mxu0
  %v724 = vadd.f32 %v116, %v723
  %v725 = vpop.f32.mrb[0].mxu0
  %726 = vmatprep.mubr.bf16.mxu0 %v351
  %727 = vmatmul.mubr.bf16.gmra.mrb[0].mxu0 %v350
  %v728 = vpop.f32.mrb[0].mxu0
  %v729 = vadd.f32 %v116, %v728
  %v730 = vpop.f32.mrb[0].mxu0
  %v731 = vpop.f32.mrb[0].mxu0
  %v732 = vadd.f32 %v116, %v731
  %v733 = vpop.f32.mrb[0].mxu0
  %734 = vmatprep.mubr.bf16.mxu0 %v353
  %735 = vmatmul.mubr.bf16.gmra.mrb[0].mxu0 %v352
  %v736 = vpop.f32.mrb[0].mxu0
  %v737 = vadd.f32 %v116, %v736
  %v738 = vpop.f32.mrb[0].mxu0
  %v739 = vpop.f32.mrb[0].mxu0
  %v740 = vadd.f32 %v116, %v739
  %v741 = vpop.f32.mrb[0].mxu0
  %742 = vmatprep.mubr.bf16.mxu0 %v355
  %743 = vmatmul.mubr.bf16.gmra.mrb[0].mxu0 %v354
  %v744 = vpop.f32.mrb[0].mxu0
  %v745 = vadd.f32 %v116, %v744
  %v746 = vpop.f32.mrb[0].mxu0
  %v747 = vpop.f32.mrb[0].mxu0
  %v748 = vadd.f32 %v116, %v747
  %v749 = vpop.f32.mrb[0].mxu0
  %750 = vmatprep.mubr.bf16.mxu0 %v357
  %751 = vmatmul.mubr.bf16.gmra.mrb[0].mxu0 %v356
  %v752 = vpop.f32.mrb[0].mxu0
  %v753 = vadd.f32 %v116, %v752
  %v754 = vpop.f32.mrb[0].mxu0
  %v755 = vpop.f32.mrb[0].mxu0
  %v756 = vadd.f32 %v116, %v755
  %v757 = vpop.f32.mrb[0].mxu0
  %758 = vmatprep.mubr.bf16.mxu0 %v359
  %759 = vmatmul.mubr.bf16.gmra.mrb[0].mxu0 %v358
  %v760 = vpop.f32.mrb[0].mxu0
  %v761 = vadd.f32 %v116, %v760
  %v762 = vpop.f32.mrb[0].mxu0
  %v763 = vpop.f32.mrb[0].mxu0
  %v764 = vadd.f32 %v116, %v763
  %v765 = vpop.f32.mrb[0].mxu0
  %766 = vmatprep.mubr.bf16.mxu0 %v361
  %767 = vmatmul.mubr.bf16.gmra.mrb[0].mxu0 %v360
  %v768 = vpop.f32.mrb[0].mxu0
  %v769 = vadd.f32 %v116, %v768
  %v770 = vpop.f32.mrb[0].mxu0
  %v771 = vpop.f32.mrb[0].mxu0
  %v772 = vadd.f32 %v116, %v771
  %v773 = vpop.f32.mrb[0].mxu0
  %774 = vmatprep.mubr.bf16.mxu0 %v363
  %775 = vmatmul.mubr.bf16.gmra.mrb[0].mxu0 %v362
  %v776 = vpop.f32.mrb[0].mxu0
  %v777 = vadd.f32 %v116, %v776
  %v778 = vpop.f32.mrb[0].mxu0
  %v779 = vpop.f32.mrb[0].mxu0
  %v780 = vadd.f32 %v116, %v779
  %v781 = vpop.f32.mrb[0].mxu0
  %782 = vmatprep.mubr.bf16.mxu0 %v365
  %783 = vmatmul.mubr.bf16.gmra.mrb[0].mxu0 %v364
  %v784 = vpop.f32.mrb[0].mxu0
  %v785 = vadd.f32 %v116, %v784
  %v786 = vpop.f32.mrb[0].mxu0
  %v787 = vpop.f32.mrb[0].mxu0
  %v788 = vadd.f32 %v116, %v787
  %v789 = vpop.f32.mrb[0].mxu0
  %790 = vmatprep.mubr.bf16.mxu0 %v367
  %791 = vmatmul.mubr.bf16.gmra.mrb[0].mxu0 %v366
  %v792 = vpop.f32.mrb[0].mxu0
  %v793 = vadd.f32 %v116, %v792
  %v794 = vpop.f32.mrb[0].mxu0
  %v795 = vpop.f32.mrb[0].mxu0
  %v796 = vadd.f32 %v116, %v795
  %v797 = vpop.f32.mrb[0].mxu0
  %798 = vmatprep.mubr.bf16.mxu0 %v369
  %799 = vmatmul.mubr.bf16.gmra.mrb[0].mxu0 %v368
  %v800 = vpop.f32.mrb[0].mxu0
  %v801 = vadd.f32 %v116, %v800
  %v802 = vpop.f32.mrb[0].mxu0
  %v803 = vpop.f32.mrb[0].mxu0
  %v804 = vadd.f32 %v116, %v803
  %v805 = vpop.f32.mrb[0].mxu0
  %806 = vmatprep.mubr.bf16.mxu0 %v371
  %807 = vmatmul.mubr.bf16.gmra.mrb[0].mxu0 %v370
  %v808 = vpop.f32.mrb[0].mxu0
  %v809 = vadd.f32 %v116, %v808
  %v810 = vpop.f32.mrb[0].mxu0
  %v811 = vpop.f32.mrb[0].mxu0
  %v812 = vadd.f32 %v116, %v811
  %v813 = vpop.f32.mrb[0].mxu0
  %814 = vmatprep.mubr.bf16.mxu0 %v373
  %815 = vmatmul.mubr.bf16.gmra.mrb[0].mxu0 %v372
  %v816 = vpop.f32.mrb[0].mxu0
  %v817 = vadd.f32 %v116, %v816
  %v818 = vpop.f32.mrb[0].mxu0
  %v819 = vpop.f32.mrb[0].mxu0
  %v820 = vadd.f32 %v116, %v819
  %v821 = vpop.f32.mrb[0].mxu0
  %822 = vdwg.mxu0
  %v823 = vmax.f32 %v569, 0.0
  %v824 = vmax.f32 %v572, 0.0
  %v825 = vmax.f32 %v577, 0.0
  %v826 = vmax.f32 %v580, 0.0
  %v827 = vmax.f32 %v585, 0.0
  %v828 = vmax.f32 %v588, 0.0
  %v829 = vmax.f32 %v593, 0.0
  %v830 = vmax.f32 %v596, 0.0
  %v831 = vmax.f32 %v601, 0.0
  %v832 = vmax.f32 %v604, 0.0
  %v833 = vmax.f32 %v609, 0.0
  %v834 = vmax.f32 %v612, 0.0
  %v835 = vmax.f32 %v617, 0.0
  %v836 = vmax.f32 %v620, 0.0
  %v837 = vmax.f32 %v625, 0.0
  %v838 = vmax.f32 %v628, 0.0
  %v839 = vmax.f32 %v633, 0.0
  %v840 = vmax.f32 %v636, 0.0
  %v841 = vmax.f32 %v641, 0.0
  %v842 = vmax.f32 %v644, 0.0
  %v843 = vmax.f32 %v649, 0.0
  %v844 = vmax.f32 %v652, 0.0
  %v845 = vmax.f32 %v657, 0.0
  %v846 = vmax.f32 %v660, 0.0
  %v847 = vmax.f32 %v665, 0.0
  %v848 = vmax.f32 %v668, 0.0
  %v849 = vmax.f32 %v673, 0.0
  %v850 = vmax.f32 %v676, 0.0
  %v851 = vmax.f32 %v681, 0.0
  %v852 = vmax.f32 %v684, 0.0
  %v853 = vmax.f32 %v689, 0.0
  %v854 = vmax.f32 %v692, 0.0
  %v855 = vmax.f32 %v697, 0.0
  %v856 = vmax.f32 %v700, 0.0
  %v857 = vmax.f32 %v705, 0.0
  %v858 = vmax.f32 %v708, 0.0
  %v859 = vmax.f32 %v713, 0.0
  %v860 = vmax.f32 %v716, 0.0
  %v861 = vmax.f32 %v721, 0.0
  %v862 = vmax.f32 %v724, 0.0
  %v863 = vmax.f32 %v729, 0.0
  %v864 = vmax.f32 %v732, 0.0
  %v865 = vmax.f32 %v737, 0.0
  %v866 = vmax.f32 %v740, 0.0
  %v867 = vmax.f32 %v745, 0.0
  %v868 = vmax.f32 %v748, 0.0
  %v869 = vmax.f32 %v753, 0.0
  %v870 = vmax.f32 %v756, 0.0
  %v871 = vmax.f32 %v761, 0.0
  %v872 = vmax.f32 %v764, 0.0
  %v873 = vmax.f32 %v769, 0.0
  %v874 = vmax.f32 %v772, 0.0
  %v875 = vmax.f32 %v777, 0.0
  %v876 = vmax.f32 %v780, 0.0
  %v877 = vmax.f32 %v785, 0.0
  %v878 = vmax.f32 %v788, 0.0
  %v879 = vmax.f32 %v793, 0.0
  %v880 = vmax.f32 %v796, 0.0
  %v881 = vmax.f32 %v801, 0.0
  %v882 = vmax.f32 %v804, 0.0
  %v883 = vmax.f32 %v809, 0.0
  %v884 = vmax.f32 %v812, 0.0
  %v885 = vmax.f32 %v817, 0.0
  %v886 = vmax.f32 %v820, 0.0
  %v887 = vpack.c.bf16 %v824, %v823
  %v888 = vpack.c.bf16 %v826, %v825
  %v889 = vpack.c.bf16 %v828, %v827
  %v890 = vpack.c.bf16 %v830, %v829
  %v891 = vpack.c.bf16 %v832, %v831
  %v892 = vpack.c.bf16 %v834, %v833
  %v893 = vpack.c.bf16 %v836, %v835
  %v894 = vpack.c.bf16 %v838, %v837
  %v895 = vpack.c.bf16 %v840, %v839
  %v896 = vpack.c.bf16 %v842, %v841
  %v897 = vpack.c.bf16 %v844, %v843
  %v898 = vpack.c.bf16 %v846, %v845
  %v899 = vpack.c.bf16 %v848, %v847
  %v900 = vpack.c.bf16 %v850, %v849
  %v901 = vpack.c.bf16 %v852, %v851
  %v902 = vpack.c.bf16 %v854, %v853
  %v903 = vpack.c.bf16 %v856, %v855
  %v904 = vpack.c.bf16 %v858, %v857
  %v905 = vpack.c.bf16 %v860, %v859
  %v906 = vpack.c.bf16 %v862, %v861
  %v907 = vpack.c.bf16 %v864, %v863
  %v908 = vpack.c.bf16 %v866, %v865
  %v909 = vpack.c.bf16 %v868, %v867
  %v910 = vpack.c.bf16 %v870, %v869
  %v911 = vpack.c.bf16 %v872, %v871
  %v912 = vpack.c.bf16 %v874, %v873
  %v913 = vpack.c.bf16 %v876, %v875
  %v914 = vpack.c.bf16 %v878, %v877
  %v915 = vpack.c.bf16 %v880, %v879
  %v916 = vpack.c.bf16 %v882, %v881
  %v917 = vpack.c.bf16 %v884, %v883
  %v918 = vpack.c.bf16 %v886, %v885
  %v951 = vunpack.c.l.b16 %v887
  %v952 = vunpack.c.h.b16 %v887
  %v953 = vunpack.c.l.b16 %v888
  %v954 = vunpack.c.h.b16 %v888
  %v955 = vunpack.c.l.b16 %v889
  %v956 = vunpack.c.h.b16 %v889
  %v957 = vunpack.c.l.b16 %v890
  %v958 = vunpack.c.h.b16 %v890
  %v959 = vunpack.c.l.b16 %v891
  %v960 = vunpack.c.h.b16 %v891
  %v961 = vunpack.c.l.b16 %v892
  %v962 = vunpack.c.h.b16 %v892
  %v963 = vunpack.c.l.b16 %v893
  %v964 = vunpack.c.h.b16 %v893
  %v965 = vunpack.c.l.b16 %v894
  %v966 = vunpack.c.h.b16 %v894
  %v967 = vunpack.c.l.b16 %v895
  %v968 = vunpack.c.h.b16 %v895
  %v969 = vunpack.c.l.b16 %v896
  %v970 = vunpack.c.h.b16 %v896
  %v971 = vunpack.c.l.b16 %v897
  %v972 = vunpack.c.h.b16 %v897
  %v973 = vunpack.c.l.b16 %v898
  %v974 = vunpack.c.h.b16 %v898
  %v975 = vunpack.c.l.b16 %v899
  %v976 = vunpack.c.h.b16 %v899
  %v977 = vunpack.c.l.b16 %v900
  %v978 = vunpack.c.h.b16 %v900
  %v979 = vunpack.c.l.b16 %v901
  %v980 = vunpack.c.h.b16 %v901
  %v981 = vunpack.c.l.b16 %v902
  %v982 = vunpack.c.h.b16 %v902
  %v983 = vunpack.c.l.b16 %v903
  %v984 = vunpack.c.h.b16 %v903
  %v985 = vunpack.c.l.b16 %v904
  %v986 = vunpack.c.h.b16 %v904
  %v987 = vunpack.c.l.b16 %v905
  %v988 = vunpack.c.h.b16 %v905
  %v989 = vunpack.c.l.b16 %v906
  %v990 = vunpack.c.h.b16 %v906
  %v991 = vunpack.c.l.b16 %v907
  %v992 = vunpack.c.h.b16 %v907
  %v993 = vunpack.c.l.b16 %v908
  %v994 = vunpack.c.h.b16 %v908
  %v995 = vunpack.c.l.b16 %v909
  %v996 = vunpack.c.h.b16 %v909
  %v997 = vunpack.c.l.b16 %v910
  %v998 = vunpack.c.h.b16 %v910
  %v999 = vunpack.c.l.b16 %v911
  %v1000 = vunpack.c.h.b16 %v911
  %v1001 = vunpack.c.l.b16 %v912
  %v1002 = vunpack.c.h.b16 %v912
  %v1003 = vunpack.c.l.b16 %v913
  %v1004 = vunpack.c.h.b16 %v913
  %v1005 = vunpack.c.l.b16 %v914
  %v1006 = vunpack.c.h.b16 %v914
  %v1007 = vunpack.c.l.b16 %v915
  %v1008 = vunpack.c.h.b16 %v915
  %v1009 = vunpack.c.l.b16 %v916
  %v1010 = vunpack.c.h.b16 %v916
  %v1011 = vunpack.c.l.b16 %v917
  %v1012 = vunpack.c.h.b16 %v917
  %v1013 = vunpack.c.l.b16 %v918
  %v1014 = vunpack.c.h.b16 %v918
  %v1015 = vpack.c.b16 %v951, %v951
  %v1016 = vpack.c.b16 %v952, %v952
  %v1017 = vpack.c.b16 %v953, %v953
  %v1018 = vpack.c.b16 %v954, %v954
  %v1019 = vpack.c.b16 %v955, %v955
  %v1020 = vpack.c.b16 %v956, %v956
  %v1021 = vpack.c.b16 %v957, %v957
  %v1022 = vpack.c.b16 %v958, %v958
  %v1023 = vpack.c.b16 %v959, %v959
  %v1024 = vpack.c.b16 %v960, %v960
  %v1025 = vpack.c.b16 %v961, %v961
  %v1026 = vpack.c.b16 %v962, %v962
  %v1027 = vpack.c.b16 %v963, %v963
  %v1028 = vpack.c.b16 %v964, %v964
  %v1029 = vpack.c.b16 %v965, %v965
  %v1030 = vpack.c.b16 %v966, %v966
  %v1031 = vpack.c.b16 %v967, %v967
  %v1032 = vpack.c.b16 %v968, %v968
  %v1033 = vpack.c.b16 %v969, %v969
  %v1034 = vpack.c.b16 %v970, %v970
  %v1035 = vpack.c.b16 %v971, %v971
  %v1036 = vpack.c.b16 %v972, %v972
  %v1037 = vpack.c.b16 %v973, %v973
  %v1038 = vpack.c.b16 %v974, %v974
  %v1039 = vpack.c.b16 %v975, %v975
  %v1040 = vpack.c.b16 %v976, %v976
  %v1041 = vpack.c.b16 %v977, %v977
  %v1042 = vpack.c.b16 %v978, %v978
  %v1043 = vpack.c.b16 %v979, %v979
  %v1044 = vpack.c.b16 %v980, %v980
  %v1045 = vpack.c.b16 %v981, %v981
  %v1046 = vpack.c.b16 %v982, %v982
  %v1047 = vpack.c.b16 %v983, %v983
  %v1048 = vpack.c.b16 %v984, %v984
  %v1049 = vpack.c.b16 %v985, %v985
  %v1050 = vpack.c.b16 %v986, %v986
  %v1051 = vpack.c.b16 %v987, %v987
  %v1052 = vpack.c.b16 %v988, %v988
  %v1053 = vpack.c.b16 %v989, %v989
  %v1054 = vpack.c.b16 %v990, %v990
  %v1055 = vpack.c.b16 %v991, %v991
  %v1056 = vpack.c.b16 %v992, %v992
  %v1057 = vpack.c.b16 %v993, %v993
  %v1058 = vpack.c.b16 %v994, %v994
  %v1059 = vpack.c.b16 %v995, %v995
  %v1060 = vpack.c.b16 %v996, %v996
  %v1061 = vpack.c.b16 %v997, %v997
  %v1062 = vpack.c.b16 %v998, %v998
  %v1063 = vpack.c.b16 %v999, %v999
  %v1064 = vpack.c.b16 %v1000, %v1000
  %v1065 = vpack.c.b16 %v1001, %v1001
  %v1066 = vpack.c.b16 %v1002, %v1002
  %v1067 = vpack.c.b16 %v1003, %v1003
  %v1068 = vpack.c.b16 %v1004, %v1004
  %v1069 = vpack.c.b16 %v1005, %v1005
  %v1070 = vpack.c.b16 %v1006, %v1006
  %v1071 = vpack.c.b16 %v1007, %v1007
  %v1072 = vpack.c.b16 %v1008, %v1008
  %v1073 = vpack.c.b16 %v1009, %v1009
  %v1074 = vpack.c.b16 %v1010, %v1010
  %v1075 = vpack.c.b16 %v1011, %v1011
  %v1076 = vpack.c.b16 %v1012, %v1012
  %v1077 = vpack.c.b16 %v1013, %v1013
  %v1078 = vpack.c.b16 %v1014, %v1014
  %1143 = vst [vmem:[%s3] sm:$0xf] %v1015
  %1144 = vst [vmem:[%s3 + $0x4] sm:$0xf] %v1016
  %1145 = vst [vmem:[%s3 + $0x8] sm:$0xf] %v1017
  %1146 = vst [vmem:[%s3 + $0xc] sm:$0xf] %v1018
  %1147 = vst [vmem:[%s3 + $0x10] sm:$0xf] %v1019
  %1148 = vst [vmem:[%s3 + $0x14] sm:$0xf] %v1020
  %1149 = vst [vmem:[%s3 + $0x18] sm:$0xf] %v1021
  %1150 = vst [vmem:[%s3 + $0x1c] sm:$0xf] %v1022
  %1151 = vst [vmem:[%s3 + $0x20] sm:$0xf] %v1023
  %1152 = vst [vmem:[%s3 + $0x24] sm:$0xf] %v1024
  %1153 = vst [vmem:[%s3 + $0x28] sm:$0xf] %v1025
  %1154 = vst [vmem:[%s3 + $0x2c] sm:$0xf] %v1026
  %1155 = vst [vmem:[%s3 + $0x30] sm:$0xf] %v1027
  %1156 = vst [vmem:[%s3 + $0x34] sm:$0xf] %v1028
  %1157 = vst [vmem:[%s3 + $0x38] sm:$0xf] %v1029
  %1158 = vst [vmem:[%s3 + $0x3c] sm:$0xf] %v1030
  %1159 = vst [vmem:[%s3 + $0x40] sm:$0xf] %v1031
  %1160 = vst [vmem:[%s3 + $0x44] sm:$0xf] %v1032
  %1161 = vst [vmem:[%s3 + $0x48] sm:$0xf] %v1033
  %1162 = vst [vmem:[%s3 + $0x4c] sm:$0xf] %v1034
  %1163 = vst [vmem:[%s3 + $0x50] sm:$0xf] %v1035
  %1164 = vst [vmem:[%s3 + $0x54] sm:$0xf] %v1036
  %1165 = vst [vmem:[%s3 + $0x58] sm:$0xf] %v1037
  %1166 = vst [vmem:[%s3 + $0x5c] sm:$0xf] %v1038
  %1167 = vst [vmem:[%s3 + $0x60] sm:$0xf] %v1039
  %1168 = vst [vmem:[%s3 + $0x64] sm:$0xf] %v1040
  %1169 = vst [vmem:[%s3 + $0x68] sm:$0xf] %v1041
  %1170 = vst [vmem:[%s3 + $0x6c] sm:$0xf] %v1042
  %1171 = vst [vmem:[%s3 + $0x70] sm:$0xf] %v1043
  %1172 = vst [vmem:[%s3 + $0x74] sm:$0xf] %v1044
  %1173 = vst [vmem:[%s3 + $0x78] sm:$0xf] %v1045
  %1174 = vst [vmem:[%s3 + $0x7c] sm:$0xf] %v1046
  %1175 = vst [vmem:[%s3 + $0x80] sm:$0xf] %v1047
  %1176 = vst [vmem:[%s3 + $0x84] sm:$0xf] %v1048
  %1177 = vst [vmem:[%s3 + $0x88] sm:$0xf] %v1049
  %1178 = vst [vmem:[%s3 + $0x8c] sm:$0xf] %v1050
  %1179 = vst [vmem:[%s3 + $0x90] sm:$0xf] %v1051
  %1180 = vst [vmem:[%s3 + $0x94] sm:$0xf] %v1052
  %1181 = vst [vmem:[%s3 + $0x98] sm:$0xf] %v1053
  %1182 = vst [vmem:[%s3 + $0x9c] sm:$0xf] %v1054
  %1183 = vst [vmem:[%s3 + $0xa0] sm:$0xf] %v1055
  %1184 = vst [vmem:[%s3 + $0xa4] sm:$0xf] %v1056
  %1185 = vst [vmem:[%s3 + $0xa8] sm:$0xf] %v1057
  %1186 = vst [vmem:[%s3 + $0xac] sm:$0xf] %v1058
  %1187 = vst [vmem:[%s3 + $0xb0] sm:$0xf] %v1059
  %1188 = vst [vmem:[%s3 + $0xb4] sm:$0xf] %v1060
  %1189 = vst [vmem:[%s3 + $0xb8] sm:$0xf] %v1061
  %1190 = vst [vmem:[%s3 + $0xbc] sm:$0xf] %v1062
  %1191 = vst [vmem:[%s3 + $0xc0] sm:$0xf] %v1063
  %1192 = vst [vmem:[%s3 + $0xc4] sm:$0xf] %v1064
  %1193 = vst [vmem:[%s3 + $0xc8] sm:$0xf] %v1065
  %1194 = vst [vmem:[%s3 + $0xcc] sm:$0xf] %v1066
  %1195 = vst [vmem:[%s3 + $0xd0] sm:$0xf] %v1067
  %1196 = vst [vmem:[%s3 + $0xd4] sm:$0xf] %v1068
  %1197 = vst [vmem:[%s3 + $0xd8] sm:$0xf] %v1069
  %1198 = vst [vmem:[%s3 + $0xdc] sm:$0xf] %v1070
  %1199 = vst [vmem:[%s3 + $0xe0] sm:$0xf] %v1071
  %1200 = vst [vmem:[%s3 + $0xe4] sm:$0xf] %v1072
  %1201 = vst [vmem:[%s3 + $0xe8] sm:$0xf] %v1073
  %1202 = vst [vmem:[%s3 + $0xec] sm:$0xf] %v1074
  %1203 = vst [vmem:[%s3 + $0xf0] sm:$0xf] %v1075
  %1204 = vst [vmem:[%s3 + $0xf4] sm:$0xf] %v1076
  %1205 = vst [vmem:[%s3 + $0xf8] sm:$0xf] %v1077
  %1206 = vst [vmem:[%s3 + $0xfc] sm:$0xf] %v1078
  // Predicated region
  $region14: #{resnet_forward.15} parent=0 // pred_check
    _
  $region15: #{resnet_forward.15} parent=0 // pred_check_branch
    %1208 = sbr.rel (0) target = $region17
  $region16: #{resnet_forward.15} parent=0 // pred_region
    _
  $region17: #{resnet_forward.15} parent=0 // pred_fallthru
    _
  // Predicated region
  $region18: #{resnet_forward.15} parent=0 // pred_check
    _
  $region19: #{resnet_forward.15} parent=0 // pred_check_branch
    %1210 = sbr.rel (0) target = $region21
  $region20: #{resnet_forward.15} parent=0 // pred_region
    _
  $region21: #{resnet_forward.15} parent=0 // pred_fallthru
    _

// kernel: resnet_forward.16
$region0: #{resnet_forward.16}
  #allocation0 [shape = 'u32[]', space=smem, size = 0x4, offset = 0x4, fixed_abs, tag = 'smem constant byte address 0x4 - core index']
  #allocation1 [shape = 'u32[144,128]{1,0:T(1,128)}', space=vmem, size = 0x12000, scoped, tag = 'internal scratch']
  %s0 = inlined_call_operand.vmem [shape: bf16[9,128,64], index: 0, kind: input, shape index: {}]
  %s1 = inlined_call_operand.vmem [shape: bf16[128,64], index: 1, kind: output, shape index: {}]
  %s2 = sld [smem:[#allocation0]]
  $region14: #{resnet_forward.16} parent=0
    _
  %s4 = ssub.s32 1, %s2
  %s5 = scalar_select 0, %s4, %s2
  // Predicated region
  $region2: #{resnet_forward.16} parent=0 // pred_check
    _
  $region3: #{resnet_forward.16} parent=0 // pred_check_branch
    %7 = sbr.rel (0) target = $region5
  $region4: #{resnet_forward.16} parent=0 // pred_region
    _
  $region5: #{resnet_forward.16} parent=0 // pred_fallthru
    _
  %v9 = vld [vmem:[%s0] sm:$0xf]
  %v10 = vld [vmem:[%s0 + $0x4] sm:$0xf]
  %v11 = vld [vmem:[%s0 + $0x8] sm:$0xf]
  %v12 = vld [vmem:[%s0 + $0xc] sm:$0xf]
  %v13 = vld [vmem:[%s0 + $0x10] sm:$0xf]
  %v14 = vld [vmem:[%s0 + $0x14] sm:$0xf]
  %v15 = vld [vmem:[%s0 + $0x18] sm:$0xf]
  %v16 = vld [vmem:[%s0 + $0x1c] sm:$0xf]
  %v17 = vld [vmem:[%s0 + $0x20] sm:$0xf]
  %v18 = vld [vmem:[%s0 + $0x24] sm:$0xf]
  %v19 = vld [vmem:[%s0 + $0x28] sm:$0xf]
  %v20 = vld [vmem:[%s0 + $0x2c] sm:$0xf]
  %v21 = vld [vmem:[%s0 + $0x30] sm:$0xf]
  %v22 = vld [vmem:[%s0 + $0x34] sm:$0xf]
  %v23 = vld [vmem:[%s0 + $0x38] sm:$0xf]
  %v24 = vld [vmem:[%s0 + $0x3c] sm:$0xf]
  %v25 = vld [vmem:[%s0 + $0x40] sm:$0xf]
  %v26 = vld [vmem:[%s0 + $0x44] sm:$0xf]
  %v27 = vld [vmem:[%s0 + $0x48] sm:$0xf]
  %v28 = vld [vmem:[%s0 + $0x4c] sm:$0xf]
  %v29 = vld [vmem:[%s0 + $0x50] sm:$0xf]
  %v30 = vld [vmem:[%s0 + $0x54] sm:$0xf]
  %v31 = vld [vmem:[%s0 + $0x58] sm:$0xf]
  %v32 = vld [vmem:[%s0 + $0x5c] sm:$0xf]
  %v33 = vld [vmem:[%s0 + $0x60] sm:$0xf]
  %v34 = vld [vmem:[%s0 + $0x64] sm:$0xf]
  %v35 = vld [vmem:[%s0 + $0x68] sm:$0xf]
  %v36 = vld [vmem:[%s0 + $0x6c] sm:$0xf]
  %v37 = vld [vmem:[%s0 + $0x70] sm:$0xf]
  %v38 = vld [vmem:[%s0 + $0x74] sm:$0xf]
  %v39 = vld [vmem:[%s0 + $0x78] sm:$0xf]
  %v40 = vld [vmem:[%s0 + $0x7c] sm:$0xf]
  %v41 = vld [vmem:[%s0 + $0x80] sm:$0xf]
  %v42 = vld [vmem:[%s0 + $0x84] sm:$0xf]
  %v43 = vld [vmem:[%s0 + $0x88] sm:$0xf]
  %v44 = vld [vmem:[%s0 + $0x8c] sm:$0xf]
  %v45 = vld [vmem:[%s0 + $0x90] sm:$0xf]
  %v46 = vld [vmem:[%s0 + $0x94] sm:$0xf]
  %v47 = vld [vmem:[%s0 + $0x98] sm:$0xf]
  %v48 = vld [vmem:[%s0 + $0x9c] sm:$0xf]
  %v49 = vld [vmem:[%s0 + $0xa0] sm:$0xf]
  %v50 = vld [vmem:[%s0 + $0xa4] sm:$0xf]
  %v51 = vld [vmem:[%s0 + $0xa8] sm:$0xf]
  %v52 = vld [vmem:[%s0 + $0xac] sm:$0xf]
  %v53 = vld [vmem:[%s0 + $0xb0] sm:$0xf]
  %v54 = vld [vmem:[%s0 + $0xb4] sm:$0xf]
  %v55 = vld [vmem:[%s0 + $0xb8] sm:$0xf]
  %v56 = vld [vmem:[%s0 + $0xbc] sm:$0xf]
  %v57 = vld [vmem:[%s0 + $0xc0] sm:$0xf]
  %v58 = vld [vmem:[%s0 + $0xc4] sm:$0xf]
  %v59 = vld [vmem:[%s0 + $0xc8] sm:$0xf]
  %v60 = vld [vmem:[%s0 + $0xcc] sm:$0xf]
  %v61 = vld [vmem:[%s0 + $0xd0] sm:$0xf]
  %v62 = vld [vmem:[%s0 + $0xd4] sm:$0xf]
  %v63 = vld [vmem:[%s0 + $0xd8] sm:$0xf]
  %v64 = vld [vmem:[%s0 + $0xdc] sm:$0xf]
  %v65 = vld [vmem:[%s0 + $0xe0] sm:$0xf]
  %v66 = vld [vmem:[%s0 + $0xe4] sm:$0xf]
  %v67 = vld [vmem:[%s0 + $0xe8] sm:$0xf]
  %v68 = vld [vmem:[%s0 + $0xec] sm:$0xf]
  %v69 = vld [vmem:[%s0 + $0xf0] sm:$0xf]
  %v70 = vld [vmem:[%s0 + $0xf4] sm:$0xf]
  %v71 = vld [vmem:[%s0 + $0xf8] sm:$0xf]
  %v72 = vld [vmem:[%s0 + $0xfc] sm:$0xf]
  %v73 = vld [vmem:[%s0 + $0x100] sm:$0xf]
  %v74 = vld [vmem:[%s0 + $0x104] sm:$0xf]
  %v75 = vld [vmem:[%s0 + $0x108] sm:$0xf]
  %v76 = vld [vmem:[%s0 + $0x10c] sm:$0xf]
  %v77 = vld [vmem:[%s0 + $0x110] sm:$0xf]
  %v78 = vld [vmem:[%s0 + $0x114] sm:$0xf]
  %v79 = vld [vmem:[%s0 + $0x118] sm:$0xf]
  %v80 = vld [vmem:[%s0 + $0x11c] sm:$0xf]
  %v81 = vld [vmem:[%s0 + $0x120] sm:$0xf]
  %v82 = vld [vmem:[%s0 + $0x124] sm:$0xf]
  %v83 = vld [vmem:[%s0 + $0x128] sm:$0xf]
  %v84 = vld [vmem:[%s0 + $0x12c] sm:$0xf]
  %v85 = vld [vmem:[%s0 + $0x130] sm:$0xf]
  %v86 = vld [vmem:[%s0 + $0x134] sm:$0xf]
  %v87 = vld [vmem:[%s0 + $0x138] sm:$0xf]
  %v88 = vld [vmem:[%s0 + $0x13c] sm:$0xf]
  %v89 = vld [vmem:[%s0 + $0x140] sm:$0xf]
  %v90 = vld [vmem:[%s0 + $0x144] sm:$0xf]
  %v91 = vld [vmem:[%s0 + $0x148] sm:$0xf]
  %v92 = vld [vmem:[%s0 + $0x14c] sm:$0xf]
  %v93 = vld [vmem:[%s0 + $0x150] sm:$0xf]
  %v94 = vld [vmem:[%s0 + $0x154] sm:$0xf]
  %v95 = vld [vmem:[%s0 + $0x158] sm:$0xf]
  %v96 = vld [vmem:[%s0 + $0x15c] sm:$0xf]
  %v97 = vld [vmem:[%s0 + $0x160] sm:$0xf]
  %v98 = vld [vmem:[%s0 + $0x164] sm:$0xf]
  %v99 = vld [vmem:[%s0 + $0x168] sm:$0xf]
  %v100 = vld [vmem:[%s0 + $0x16c] sm:$0xf]
  %v101 = vld [vmem:[%s0 + $0x170] sm:$0xf]
  %v102 = vld [vmem:[%s0 + $0x174] sm:$0xf]
  %v103 = vld [vmem:[%s0 + $0x178] sm:$0xf]
  %v104 = vld [vmem:[%s0 + $0x17c] sm:$0xf]
  %v105 = vld [vmem:[%s0 + $0x180] sm:$0xf]
  %v106 = vld [vmem:[%s0 + $0x184] sm:$0xf]
  %v107 = vld [vmem:[%s0 + $0x188] sm:$0xf]
  %v108 = vld [vmem:[%s0 + $0x18c] sm:$0xf]
  %v109 = vld [vmem:[%s0 + $0x190] sm:$0xf]
  %v110 = vld [vmem:[%s0 + $0x194] sm:$0xf]
  %v111 = vld [vmem:[%s0 + $0x198] sm:$0xf]
  %v112 = vld [vmem:[%s0 + $0x19c] sm:$0xf]
  %v113 = vld [vmem:[%s0 + $0x1a0] sm:$0xf]
  %v114 = vld [vmem:[%s0 + $0x1a4] sm:$0xf]
  %v115 = vld [vmem:[%s0 + $0x1a8] sm:$0xf]
  %v116 = vld [vmem:[%s0 + $0x1ac] sm:$0xf]
  %v117 = vld [vmem:[%s0 + $0x1b0] sm:$0xf]
  %v118 = vld [vmem:[%s0 + $0x1b4] sm:$0xf]
  %v119 = vld [vmem:[%s0 + $0x1b8] sm:$0xf]
  %v120 = vld [vmem:[%s0 + $0x1bc] sm:$0xf]
  %v121 = vld [vmem:[%s0 + $0x1c0] sm:$0xf]
  %v122 = vld [vmem:[%s0 + $0x1c4] sm:$0xf]
  %v123 = vld [vmem:[%s0 + $0x1c8] sm:$0xf]
  %v124 = vld [vmem:[%s0 + $0x1cc] sm:$0xf]
  %v125 = vld [vmem:[%s0 + $0x1d0] sm:$0xf]
  %v126 = vld [vmem:[%s0 + $0x1d4] sm:$0xf]
  %v127 = vld [vmem:[%s0 + $0x1d8] sm:$0xf]
  %v128 = vld [vmem:[%s0 + $0x1dc] sm:$0xf]
  %v129 = vld [vmem:[%s0 + $0x1e0] sm:$0xf]
  %v130 = vld [vmem:[%s0 + $0x1e4] sm:$0xf]
  %v131 = vld [vmem:[%s0 + $0x1e8] sm:$0xf]
  %v132 = vld [vmem:[%s0 + $0x1ec] sm:$0xf]
  %v133 = vld [vmem:[%s0 + $0x1f0] sm:$0xf]
  %v134 = vld [vmem:[%s0 + $0x1f4] sm:$0xf]
  %v135 = vld [vmem:[%s0 + $0x1f8] sm:$0xf]
  %v136 = vld [vmem:[%s0 + $0x1fc] sm:$0xf]
  %v137 = vld [vmem:[%s0 + $0x200] sm:$0xf]
  %v138 = vld [vmem:[%s0 + $0x204] sm:$0xf]
  %v139 = vld [vmem:[%s0 + $0x208] sm:$0xf]
  %v140 = vld [vmem:[%s0 + $0x20c] sm:$0xf]
  %v141 = vld [vmem:[%s0 + $0x210] sm:$0xf]
  %v142 = vld [vmem:[%s0 + $0x214] sm:$0xf]
  %v143 = vld [vmem:[%s0 + $0x218] sm:$0xf]
  %v144 = vld [vmem:[%s0 + $0x21c] sm:$0xf]
  %v145 = vld [vmem:[%s0 + $0x220] sm:$0xf]
  %v146 = vld [vmem:[%s0 + $0x224] sm:$0xf]
  %v147 = vld [vmem:[%s0 + $0x228] sm:$0xf]
  %v148 = vld [vmem:[%s0 + $0x22c] sm:$0xf]
  %v149 = vld [vmem:[%s0 + $0x230] sm:$0xf]
  %v150 = vld [vmem:[%s0 + $0x234] sm:$0xf]
  %v151 = vld [vmem:[%s0 + $0x238] sm:$0xf]
  %v152 = vld [vmem:[%s0 + $0x23c] sm:$0xf]
  %vm153 = vcmask 519168
  %v156 = vsel %vm153, %v9, 4286644096
  %v159 = vsel %vm153, %v25, 4286644096
  %v161 = vmax.bf16 %v156, %v159
  %v163 = vsel %vm153, %v41, 4286644096
  %v165 = vmax.bf16 %v161, %v163
  %v167 = vsel %vm153, %v57, 4286644096
  %v169 = vmax.bf16 %v165, %v167
  %v171 = vsel %vm153, %v73, 4286644096
  %v173 = vmax.bf16 %v169, %v171
  %v175 = vsel %vm153, %v89, 4286644096
  %v177 = vmax.bf16 %v173, %v175
  %v179 = vsel %vm153, %v105, 4286644096
  %v181 = vmax.bf16 %v177, %v179
  %v183 = vsel %vm153, %v121, 4286644096
  %v185 = vmax.bf16 %v181, %v183
  %v187 = vsel %vm153, %v137, 4286644096
  %v189 = vmax.bf16 %v185, %v187
  %v191 = vsel %vm153, %v10, 4286644096
  %v194 = vsel %vm153, %v26, 4286644096
  %v196 = vmax.bf16 %v191, %v194
  %v198 = vsel %vm153, %v42, 4286644096
  %v200 = vmax.bf16 %v196, %v198
  %v202 = vsel %vm153, %v58, 4286644096
  %v204 = vmax.bf16 %v200, %v202
  %v206 = vsel %vm153, %v74, 4286644096
  %v208 = vmax.bf16 %v204, %v206
  %v210 = vsel %vm153, %v90, 4286644096
  %v212 = vmax.bf16 %v208, %v210
  %v214 = vsel %vm153, %v106, 4286644096
  %v216 = vmax.bf16 %v212, %v214
  %v218 = vsel %vm153, %v122, 4286644096
  %v220 = vmax.bf16 %v216, %v218
  %v222 = vsel %vm153, %v138, 4286644096
  %v224 = vmax.bf16 %v220, %v222
  %v226 = vsel %vm153, %v11, 4286644096
  %v229 = vsel %vm153, %v27, 4286644096
  %v231 = vmax.bf16 %v226, %v229
  %v233 = vsel %vm153, %v43, 4286644096
  %v235 = vmax.bf16 %v231, %v233
  %v237 = vsel %vm153, %v59, 4286644096
  %v239 = vmax.bf16 %v235, %v237
  %v241 = vsel %vm153, %v75, 4286644096
  %v243 = vmax.bf16 %v239, %v241
  %v245 = vsel %vm153, %v91, 4286644096
  %v247 = vmax.bf16 %v243, %v245
  %v249 = vsel %vm153, %v107, 4286644096
  %v251 = vmax.bf16 %v247, %v249
  %v253 = vsel %vm153, %v123, 4286644096
  %v255 = vmax.bf16 %v251, %v253
  %v257 = vsel %vm153, %v139, 4286644096
  %v259 = vmax.bf16 %v255, %v257
  %v261 = vsel %vm153, %v12, 4286644096
  %v264 = vsel %vm153, %v28, 4286644096
  %v266 = vmax.bf16 %v261, %v264
  %v268 = vsel %vm153, %v44, 4286644096
  %v270 = vmax.bf16 %v266, %v268
  %v272 = vsel %vm153, %v60, 4286644096
  %v274 = vmax.bf16 %v270, %v272
  %v276 = vsel %vm153, %v76, 4286644096
  %v278 = vmax.bf16 %v274, %v276
  %v280 = vsel %vm153, %v92, 4286644096
  %v282 = vmax.bf16 %v278, %v280
  %v284 = vsel %vm153, %v108, 4286644096
  %v286 = vmax.bf16 %v282, %v284
  %v288 = vsel %vm153, %v124, 4286644096
  %v290 = vmax.bf16 %v286, %v288
  %v292 = vsel %vm153, %v140, 4286644096
  %v294 = vmax.bf16 %v290, %v292
  %v296 = vsel %vm153, %v13, 4286644096
  %v299 = vsel %vm153, %v29, 4286644096
  %v301 = vmax.bf16 %v296, %v299
  %v303 = vsel %vm153, %v45, 4286644096
  %v305 = vmax.bf16 %v301, %v303
  %v307 = vsel %vm153, %v61, 4286644096
  %v309 = vmax.bf16 %v305, %v307
  %v311 = vsel %vm153, %v77, 4286644096
  %v313 = vmax.bf16 %v309, %v311
  %v315 = vsel %vm153, %v93, 4286644096
  %v317 = vmax.bf16 %v313, %v315
  %v319 = vsel %vm153, %v109, 4286644096
  %v321 = vmax.bf16 %v317, %v319
  %v323 = vsel %vm153, %v125, 4286644096
  %v325 = vmax.bf16 %v321, %v323
  %v327 = vsel %vm153, %v141, 4286644096
  %v329 = vmax.bf16 %v325, %v327
  %v331 = vsel %vm153, %v14, 4286644096
  %v334 = vsel %vm153, %v30, 4286644096
  %v336 = vmax.bf16 %v331, %v334
  %v338 = vsel %vm153, %v46, 4286644096
  %v340 = vmax.bf16 %v336, %v338
  %v342 = vsel %vm153, %v62, 4286644096
  %v344 = vmax.bf16 %v340, %v342
  %v346 = vsel %vm153, %v78, 4286644096
  %v348 = vmax.bf16 %v344, %v346
  %v350 = vsel %vm153, %v94, 4286644096
  %v352 = vmax.bf16 %v348, %v350
  %v354 = vsel %vm153, %v110, 4286644096
  %v356 = vmax.bf16 %v352, %v354
  %v358 = vsel %vm153, %v126, 4286644096
  %v360 = vmax.bf16 %v356, %v358
  %v362 = vsel %vm153, %v142, 4286644096
  %v364 = vmax.bf16 %v360, %v362
  %v366 = vsel %vm153, %v15, 4286644096
  %v369 = vsel %vm153, %v31, 4286644096
  %v371 = vmax.bf16 %v366, %v369
  %v373 = vsel %vm153, %v47, 4286644096
  %v375 = vmax.bf16 %v371, %v373
  %v377 = vsel %vm153, %v63, 4286644096
  %v379 = vmax.bf16 %v375, %v377
  %v381 = vsel %vm153, %v79, 4286644096
  %v383 = vmax.bf16 %v379, %v381
  %v385 = vsel %vm153, %v95, 4286644096
  %v387 = vmax.bf16 %v383, %v385
  %v389 = vsel %vm153, %v111, 4286644096
  %v391 = vmax.bf16 %v387, %v389
  %v393 = vsel %vm153, %v127, 4286644096
  %v395 = vmax.bf16 %v391, %v393
  %v397 = vsel %vm153, %v143, 4286644096
  %v399 = vmax.bf16 %v395, %v397
  %v401 = vsel %vm153, %v16, 4286644096
  %v404 = vsel %vm153, %v32, 4286644096
  %v406 = vmax.bf16 %v401, %v404
  %v408 = vsel %vm153, %v48, 4286644096
  %v410 = vmax.bf16 %v406, %v408
  %v412 = vsel %vm153, %v64, 4286644096
  %v414 = vmax.bf16 %v410, %v412
  %v416 = vsel %vm153, %v80, 4286644096
  %v418 = vmax.bf16 %v414, %v416
  %v420 = vsel %vm153, %v96, 4286644096
  %v422 = vmax.bf16 %v418, %v420
  %v424 = vsel %vm153, %v112, 4286644096
  %v426 = vmax.bf16 %v422, %v424
  %v428 = vsel %vm153, %v128, 4286644096
  %v430 = vmax.bf16 %v426, %v428
  %v432 = vsel %vm153, %v144, 4286644096
  %v434 = vmax.bf16 %v430, %v432
  %v436 = vsel %vm153, %v17, 4286644096
  %v439 = vsel %vm153, %v33, 4286644096
  %v441 = vmax.bf16 %v436, %v439
  %v443 = vsel %vm153, %v49, 4286644096
  %v445 = vmax.bf16 %v441, %v443
  %v447 = vsel %vm153, %v65, 4286644096
  %v449 = vmax.bf16 %v445, %v447
  %v451 = vsel %vm153, %v81, 4286644096
  %v453 = vmax.bf16 %v449, %v451
  %v455 = vsel %vm153, %v97, 4286644096
  %v457 = vmax.bf16 %v453, %v455
  %v459 = vsel %vm153, %v113, 4286644096
  %v461 = vmax.bf16 %v457, %v459
  %v463 = vsel %vm153, %v129, 4286644096
  %v465 = vmax.bf16 %v461, %v463
  %v467 = vsel %vm153, %v145, 4286644096
  %v469 = vmax.bf16 %v465, %v467
  %v471 = vsel %vm153, %v18, 4286644096
  %v474 = vsel %vm153, %v34, 4286644096
  %v476 = vmax.bf16 %v471, %v474
  %v478 = vsel %vm153, %v50, 4286644096
  %v480 = vmax.bf16 %v476, %v478
  %v482 = vsel %vm153, %v66, 4286644096
  %v484 = vmax.bf16 %v480, %v482
  %v486 = vsel %vm153, %v82, 4286644096
  %v488 = vmax.bf16 %v484, %v486
  %v490 = vsel %vm153, %v98, 4286644096
  %v492 = vmax.bf16 %v488, %v490
  %v494 = vsel %vm153, %v114, 4286644096
  %v496 = vmax.bf16 %v492, %v494
  %v498 = vsel %vm153, %v130, 4286644096
  %v500 = vmax.bf16 %v496, %v498
  %v502 = vsel %vm153, %v146, 4286644096
  %v504 = vmax.bf16 %v500, %v502
  %v506 = vsel %vm153, %v19, 4286644096
  %v509 = vsel %vm153, %v35, 4286644096
  %v511 = vmax.bf16 %v506, %v509
  %v513 = vsel %vm153, %v51, 4286644096
  %v515 = vmax.bf16 %v511, %v513
  %v517 = vsel %vm153, %v67, 4286644096
  %v519 = vmax.bf16 %v515, %v517
  %v521 = vsel %vm153, %v83, 4286644096
  %v523 = vmax.bf16 %v519, %v521
  %v525 = vsel %vm153, %v99, 4286644096
  %v527 = vmax.bf16 %v523, %v525
  %v529 = vsel %vm153, %v115, 4286644096
  %v531 = vmax.bf16 %v527, %v529
  %v533 = vsel %vm153, %v131, 4286644096
  %v535 = vmax.bf16 %v531, %v533
  %v537 = vsel %vm153, %v147, 4286644096
  %v539 = vmax.bf16 %v535, %v537
  %v541 = vsel %vm153, %v20, 4286644096
  %v544 = vsel %vm153, %v36, 4286644096
  %v546 = vmax.bf16 %v541, %v544
  %v548 = vsel %vm153, %v52, 4286644096
  %v550 = vmax.bf16 %v546, %v548
  %v552 = vsel %vm153, %v68, 4286644096
  %v554 = vmax.bf16 %v550, %v552
  %v556 = vsel %vm153, %v84, 4286644096
  %v558 = vmax.bf16 %v554, %v556
  %v560 = vsel %vm153, %v100, 4286644096
  %v562 = vmax.bf16 %v558, %v560
  %v564 = vsel %vm153, %v116, 4286644096
  %v566 = vmax.bf16 %v562, %v564
  %v568 = vsel %vm153, %v132, 4286644096
  %v570 = vmax.bf16 %v566, %v568
  %v572 = vsel %vm153, %v148, 4286644096
  %v574 = vmax.bf16 %v570, %v572
  %v576 = vsel %vm153, %v21, 4286644096
  %v579 = vsel %vm153, %v37, 4286644096
  %v581 = vmax.bf16 %v576, %v579
  %v583 = vsel %vm153, %v53, 4286644096
  %v585 = vmax.bf16 %v581, %v583
  %v587 = vsel %vm153, %v69, 4286644096
  %v589 = vmax.bf16 %v585, %v587
  %v591 = vsel %vm153, %v85, 4286644096
  %v593 = vmax.bf16 %v589, %v591
  %v595 = vsel %vm153, %v101, 4286644096
  %v597 = vmax.bf16 %v593, %v595
  %v599 = vsel %vm153, %v117, 4286644096
  %v601 = vmax.bf16 %v597, %v599
  %v603 = vsel %vm153, %v133, 4286644096
  %v605 = vmax.bf16 %v601, %v603
  %v607 = vsel %vm153, %v149, 4286644096
  %v609 = vmax.bf16 %v605, %v607
  %v611 = vsel %vm153, %v22, 4286644096
  %v614 = vsel %vm153, %v38, 4286644096
  %v616 = vmax.bf16 %v611, %v614
  %v618 = vsel %vm153, %v54, 4286644096
  %v620 = vmax.bf16 %v616, %v618
  %v622 = vsel %vm153, %v70, 4286644096
  %v624 = vmax.bf16 %v620, %v622
  %v626 = vsel %vm153, %v86, 4286644096
  %v628 = vmax.bf16 %v624, %v626
  %v630 = vsel %vm153, %v102, 4286644096
  %v632 = vmax.bf16 %v628, %v630
  %v634 = vsel %vm153, %v118, 4286644096
  %v636 = vmax.bf16 %v632, %v634
  %v638 = vsel %vm153, %v134, 4286644096
  %v640 = vmax.bf16 %v636, %v638
  %v642 = vsel %vm153, %v150, 4286644096
  %v644 = vmax.bf16 %v640, %v642
  %v646 = vsel %vm153, %v23, 4286644096
  %v649 = vsel %vm153, %v39, 4286644096
  %v651 = vmax.bf16 %v646, %v649
  %v653 = vsel %vm153, %v55, 4286644096
  %v655 = vmax.bf16 %v651, %v653
  %v657 = vsel %vm153, %v71, 4286644096
  %v659 = vmax.bf16 %v655, %v657
  %v661 = vsel %vm153, %v87, 4286644096
  %v663 = vmax.bf16 %v659, %v661
  %v665 = vsel %vm153, %v103, 4286644096
  %v667 = vmax.bf16 %v663, %v665
  %v669 = vsel %vm153, %v119, 4286644096
  %v671 = vmax.bf16 %v667, %v669
  %v673 = vsel %vm153, %v135, 4286644096
  %v675 = vmax.bf16 %v671, %v673
  %v677 = vsel %vm153, %v151, 4286644096
  %v679 = vmax.bf16 %v675, %v677
  %v681 = vsel %vm153, %v24, 4286644096
  %v684 = vsel %vm153, %v40, 4286644096
  %v686 = vmax.bf16 %v681, %v684
  %v688 = vsel %vm153, %v56, 4286644096
  %v690 = vmax.bf16 %v686, %v688
  %v692 = vsel %vm153, %v72, 4286644096
  %v694 = vmax.bf16 %v690, %v692
  %v696 = vsel %vm153, %v88, 4286644096
  %v698 = vmax.bf16 %v694, %v696
  %v700 = vsel %vm153, %v104, 4286644096
  %v702 = vmax.bf16 %v698, %v700
  %v704 = vsel %vm153, %v120, 4286644096
  %v706 = vmax.bf16 %v702, %v704
  %v708 = vsel %vm153, %v136, 4286644096
  %v710 = vmax.bf16 %v706, %v708
  %v712 = vsel %vm153, %v152, 4286644096
  %v714 = vmax.bf16 %v710, %v712
  %715 = vst.msk [vmem:[%s1] sm:$0xf] %vm153, %v189
  %716 = vst.msk [vmem:[%s1 + $0x4] sm:$0xf] %vm153, %v224
  %717 = vst.msk [vmem:[%s1 + $0x8] sm:$0xf] %vm153, %v259
  %718 = vst.msk [vmem:[%s1 + $0xc] sm:$0xf] %vm153, %v294
  %719 = vst.msk [vmem:[%s1 + $0x10] sm:$0xf] %vm153, %v329
  %720 = vst.msk [vmem:[%s1 + $0x14] sm:$0xf] %vm153, %v364
  %721 = vst.msk [vmem:[%s1 + $0x18] sm:$0xf] %vm153, %v399
  %722 = vst.msk [vmem:[%s1 + $0x1c] sm:$0xf] %vm153, %v434
  %723 = vst.msk [vmem:[%s1 + $0x20] sm:$0xf] %vm153, %v469
  %724 = vst.msk [vmem:[%s1 + $0x24] sm:$0xf] %vm153, %v504
  %725 = vst.msk [vmem:[%s1 + $0x28] sm:$0xf] %vm153, %v539
  %726 = vst.msk [vmem:[%s1 + $0x2c] sm:$0xf] %vm153, %v574
  %727 = vst.msk [vmem:[%s1 + $0x30] sm:$0xf] %vm153, %v609
  %728 = vst.msk [vmem:[%s1 + $0x34] sm:$0xf] %vm153, %v644
  %729 = vst.msk [vmem:[%s1 + $0x38] sm:$0xf] %vm153, %v679
  %730 = vst.msk [vmem:[%s1 + $0x3c] sm:$0xf] %vm153, %v714
  // Predicated region
  $region6: #{resnet_forward.16} parent=0 // pred_check
    _
  $region7: #{resnet_forward.16} parent=0 // pred_check_branch
    %732 = sbr.rel (0) target = $region9
  $region8: #{resnet_forward.16} parent=0 // pred_region
    _
  $region9: #{resnet_forward.16} parent=0 // pred_fallthru
    _
  // Predicated region
  $region10: #{resnet_forward.16} parent=0 // pred_check
    _
  $region11: #{resnet_forward.16} parent=0 // pred_check_branch
    %734 = sbr.rel (0) target = $region13
  $region12: #{resnet_forward.16} parent=0 // pred_region
    _
  $region13: #{resnet_forward.16} parent=0 // pred_fallthru
    _

// kernel: resnet_forward.17
$region0: #{resnet_forward.17}
  #allocation0 [shape = 'u32[]', space=smem, size = 0x4, offset = 0x4, fixed_abs, tag = 'smem constant byte address 0x4 - core index']
  #allocation1 [shape = 'u32[144,128]{1,0:T(1,128)}', space=vmem, size = 0x12000, scoped, tag = 'internal scratch']
  %s0 = inlined_call_operand.vmem [shape: bf16[128,128], index: 0, kind: input, shape index: {}]
  %s1 = inlined_call_operand.vmem [shape: bf16[128,128], index: 1, kind: input, shape index: {}]
  %s2 = inlined_call_operand.vmem [shape: f32[1,128], index: 2, kind: input, shape index: {}]
  %s3 = inlined_call_operand.vmem [shape: bf16[128,128], index: 3, kind: output, shape index: {}]
  %s4 = sld [smem:[#allocation0]]
  $region22: #{resnet_forward.17} parent=0
    _
  %s6 = ssub.s32 1, %s4
  %s7 = scalar_select 0, %s6, %s4
  // Predicated region
  $region2: #{resnet_forward.17} parent=0 // pred_check
    _
  $region3: #{resnet_forward.17} parent=0 // pred_check_branch
    %9 = sbr.rel (0) target = $region5
  $region4: #{resnet_forward.17} parent=0 // pred_region
    _
  $region5: #{resnet_forward.17} parent=0 // pred_fallthru
    _
  // Predicated region
  $region6: #{resnet_forward.17} parent=0 // pred_check
    _
  $region7: #{resnet_forward.17} parent=0 // pred_check_branch
    %11 = sbr.rel (0) target = $region9
  $region8: #{resnet_forward.17} parent=0 // pred_region
    _
  $region9: #{resnet_forward.17} parent=0 // pred_fallthru
    _
  // Predicated region
  $region10: #{resnet_forward.17} parent=0 // pred_check
    _
  $region11: #{resnet_forward.17} parent=0 // pred_check_branch
    %13 = sbr.rel (0) target = $region13
  $region12: #{resnet_forward.17} parent=0 // pred_region
    _
  $region13: #{resnet_forward.17} parent=0 // pred_fallthru
    _
  %v15 = vld [vmem:[%s0] sm:$0xf]
  %v16 = vld [vmem:[%s0 + $0x4] sm:$0xf]
  %v17 = vld [vmem:[%s0 + $0x8] sm:$0xf]
  %v18 = vld [vmem:[%s0 + $0xc] sm:$0xf]
  %v19 = vld [vmem:[%s0 + $0x10] sm:$0xf]
  %v20 = vld [vmem:[%s0 + $0x14] sm:$0xf]
  %v21 = vld [vmem:[%s0 + $0x18] sm:$0xf]
  %v22 = vld [vmem:[%s0 + $0x1c] sm:$0xf]
  %v23 = vld [vmem:[%s0 + $0x20] sm:$0xf]
  %v24 = vld [vmem:[%s0 + $0x24] sm:$0xf]
  %v25 = vld [vmem:[%s0 + $0x28] sm:$0xf]
  %v26 = vld [vmem:[%s0 + $0x2c] sm:$0xf]
  %v27 = vld [vmem:[%s0 + $0x30] sm:$0xf]
  %v28 = vld [vmem:[%s0 + $0x34] sm:$0xf]
  %v29 = vld [vmem:[%s0 + $0x38] sm:$0xf]
  %v30 = vld [vmem:[%s0 + $0x3c] sm:$0xf]
  %v31 = vld [vmem:[%s1] sm:$0xf]
  %v32 = vld [vmem:[%s1 + $0x4] sm:$0xf]
  %v33 = vld [vmem:[%s1 + $0x8] sm:$0xf]
  %v34 = vld [vmem:[%s1 + $0xc] sm:$0xf]
  %v35 = vld [vmem:[%s1 + $0x10] sm:$0xf]
  %v36 = vld [vmem:[%s1 + $0x14] sm:$0xf]
  %v37 = vld [vmem:[%s1 + $0x18] sm:$0xf]
  %v38 = vld [vmem:[%s1 + $0x1c] sm:$0xf]
  %v39 = vld [vmem:[%s1 + $0x20] sm:$0xf]
  %v40 = vld [vmem:[%s1 + $0x24] sm:$0xf]
  %v41 = vld [vmem:[%s1 + $0x28] sm:$0xf]
  %v42 = vld [vmem:[%s1 + $0x2c] sm:$0xf]
  %v43 = vld [vmem:[%s1 + $0x30] sm:$0xf]
  %v44 = vld [vmem:[%s1 + $0x34] sm:$0xf]
  %v45 = vld [vmem:[%s1 + $0x38] sm:$0xf]
  %v46 = vld [vmem:[%s1 + $0x3c] sm:$0xf]
  %v47 = vld [vmem:[%s2] sm:$0x1]
  %v49 = vlaneseq
  %v50 = vshrl.u32 %v49, 7
  %v51 = vsub.s32 0, %v50
  %v52 = vrot.slane %v47, %v51
  %v70 = vunpack.c.l.b16 %v15
  %v71 = vunpack.c.l.b16 %v16
  %v72 = vunpack.c.l.b16 %v17
  %v73 = vunpack.c.l.b16 %v18
  %v74 = vunpack.c.l.b16 %v19
  %v75 = vunpack.c.l.b16 %v20
  %v76 = vunpack.c.l.b16 %v21
  %v77 = vunpack.c.l.b16 %v22
  %v78 = vunpack.c.l.b16 %v23
  %v79 = vunpack.c.l.b16 %v24
  %v80 = vunpack.c.l.b16 %v25
  %v81 = vunpack.c.l.b16 %v26
  %v82 = vunpack.c.l.b16 %v27
  %v83 = vunpack.c.l.b16 %v28
  %v84 = vunpack.c.l.b16 %v29
  %v85 = vunpack.c.l.b16 %v30
  %v86 = vpack.c.b16 %v71, %v70
  %v87 = vpack.c.b16 %v73, %v72
  %v88 = vpack.c.b16 %v75, %v74
  %v89 = vpack.c.b16 %v77, %v76
  %v90 = vpack.c.b16 %v79, %v78
  %v91 = vpack.c.b16 %v81, %v80
  %v92 = vpack.c.b16 %v83, %v82
  %v93 = vpack.c.b16 %v85, %v84
  %v118 = vunpack.c.l.b16 %v31
  %v119 = vunpack.c.l.b16 %v32
  %v120 = vunpack.c.l.b16 %v33
  %v121 = vunpack.c.l.b16 %v34
  %v122 = vunpack.c.l.b16 %v35
  %v123 = vunpack.c.l.b16 %v36
  %v124 = vunpack.c.l.b16 %v37
  %v125 = vunpack.c.l.b16 %v38
  %v126 = vunpack.c.l.b16 %v39
  %v127 = vunpack.c.l.b16 %v40
  %v128 = vunpack.c.l.b16 %v41
  %v129 = vunpack.c.l.b16 %v42
  %v130 = vunpack.c.l.b16 %v43
  %v131 = vunpack.c.l.b16 %v44
  %v132 = vunpack.c.l.b16 %v45
  %v133 = vunpack.c.l.b16 %v46
  %v134 = vpack.c.b16 %v119, %v118
  %v135 = vpack.c.b16 %v121, %v120
  %v136 = vpack.c.b16 %v123, %v122
  %v137 = vpack.c.b16 %v125, %v124
  %v138 = vpack.c.b16 %v127, %v126
  %v139 = vpack.c.b16 %v129, %v128
  %v140 = vpack.c.b16 %v131, %v130
  %v141 = vpack.c.b16 %v133, %v132
  %150 = vmatprep.subr.bf16.mxu0 0
  %151 = vmatpush1.bf16.msra.mxu0 %v134
  %152 = vmatprep.subr.bf16.mxu0 0
  %153 = vmatpush1.bf16.msra.mxu0 %v135
  %154 = vmatprep.subr.bf16.mxu0 0
  %155 = vmatpush1.bf16.msra.mxu0 %v136
  %156 = vmatprep.subr.bf16.mxu0 0
  %157 = vmatpush1.bf16.msra.mxu0 %v137
  %158 = vmatprep.subr.bf16.mxu0 0
  %159 = vmatpush1.bf16.msra.mxu0 %v138
  %160 = vmatprep.subr.bf16.mxu0 0
  %161 = vmatpush1.bf16.msra.mxu0 %v139
  %162 = vmatprep.subr.bf16.mxu0 0
  %163 = vmatpush1.bf16.msra.mxu0 %v140
  %164 = vmatprep.subr.bf16.mxu0 0
  %165 = vmatpush1.bf16.msra.mxu0 %v141
  %166 = vmatprep.subr.bf16.mxu0 0
  %167 = vmatpush1.bf16.msra.mxu0 0
  %168 = vmatprep.subr.bf16.mxu0 0
  %169 = vmatpush1.bf16.msra.mxu0 0
  %170 = vmatprep.subr.bf16.mxu0 0
  %171 = vmatpush1.bf16.msra.mxu0 0
  %172 = vmatprep.subr.bf16.mxu0 0
  %173 = vmatpush1.bf16.msra.mxu0 0
  %174 = vmatprep.subr.bf16.mxu0 0
  %175 = vmatpush1.bf16.msra.mxu0 0
  %176 = vmatprep.subr.bf16.mxu0 0
  %177 = vmatpush1.bf16.msra.mxu0 0
  %178 = vmatprep.subr.bf16.mxu0 0
  %179 = vmatpush1.bf16.msra.mxu0 0
  %180 = vmatprep.subr.bf16.mxu0 0
  %181 = vmatpush1.bf16.msra.mxu0 0
  %182 = vmatprep.mubr.bf16.mxu0 0
  %183 = vmatmul.mubr.bf16.gmra.mrb[0].mxu0 %v86
  %v184 = vpop.f32.mrb[0].mxu0
  %v185 = vadd.f32 %v52, %v184
  %v186 = vpop.f32.mrb[0].mxu0
  %v187 = vpop.f32.mrb[0].mxu0
  %v188 = vadd.f32 %v52, %v187
  %v189 = vpop.f32.mrb[0].mxu0
  %190 = vmatprep.mubr.bf16.mxu0 0
  %191 = vmatmul.mubr.bf16.gmra.mrb[0].mxu0 %v87
  %v192 = vpop.f32.mrb[0].mxu0
  %v193 = vadd.f32 %v52, %v192
  %v194 = vpop.f32.mrb[0].mxu0
  %v195 = vpop.f32.mrb[0].mxu0
  %v196 = vadd.f32 %v52, %v195
  %v197 = vpop.f32.mrb[0].mxu0
  %198 = vmatprep.mubr.bf16.mxu0 0
  %199 = vmatmul.mubr.bf16.gmra.mrb[0].mxu0 %v88
  %v200 = vpop.f32.mrb[0].mxu0
  %v201 = vadd.f32 %v52, %v200
  %v202 = vpop.f32.mrb[0].mxu0
  %v203 = vpop.f32.mrb[0].mxu0
  %v204 = vadd.f32 %v52, %v203
  %v205 = vpop.f32.mrb[0].mxu0
  %206 = vmatprep.mubr.bf16.mxu0 0
  %207 = vmatmul.mubr.bf16.gmra.mrb[0].mxu0 %v89
  %v208 = vpop.f32.mrb[0].mxu0
  %v209 = vadd.f32 %v52, %v208
  %v210 = vpop.f32.mrb[0].mxu0
  %v211 = vpop.f32.mrb[0].mxu0
  %v212 = vadd.f32 %v52, %v211
  %v213 = vpop.f32.mrb[0].mxu0
  %214 = vmatprep.mubr.bf16.mxu0 0
  %215 = vmatmul.mubr.bf16.gmra.mrb[0].mxu0 %v90
  %v216 = vpop.f32.mrb[0].mxu0
  %v217 = vadd.f32 %v52, %v216
  %v218 = vpop.f32.mrb[0].mxu0
  %v219 = vpop.f32.mrb[0].mxu0
  %v220 = vadd.f32 %v52, %v219
  %v221 = vpop.f32.mrb[0].mxu0
  %222 = vmatprep.mubr.bf16.mxu0 0
  %223 = vmatmul.mubr.bf16.gmra.mrb[0].mxu0 %v91
  %v224 = vpop.f32.mrb[0].mxu0
  %v225 = vadd.f32 %v52, %v224
  %v226 = vpop.f32.mrb[0].mxu0
  %v227 = vpop.f32.mrb[0].mxu0
  %v228 = vadd.f32 %v52, %v227
  %v229 = vpop.f32.mrb[0].mxu0
  %230 = vmatprep.mubr.bf16.mxu0 0
  %231 = vmatmul.mubr.bf16.gmra.mrb[0].mxu0 %v92
  %v232 = vpop.f32.mrb[0].mxu0
  %v233 = vadd.f32 %v52, %v232
  %v234 = vpop.f32.mrb[0].mxu0
  %v235 = vpop.f32.mrb[0].mxu0
  %v236 = vadd.f32 %v52, %v235
  %v237 = vpop.f32.mrb[0].mxu0
  %238 = vmatprep.mubr.bf16.mxu0 0
  %239 = vmatmul.mubr.bf16.gmra.mrb[0].mxu0 %v93
  %v240 = vpop.f32.mrb[0].mxu0
  %v241 = vadd.f32 %v52, %v240
  %v242 = vpop.f32.mrb[0].mxu0
  %v243 = vpop.f32.mrb[0].mxu0
  %v244 = vadd.f32 %v52, %v243
  %v245 = vpop.f32.mrb[0].mxu0
  %246 = vdwg.mxu0
  %v247 = vmax.f32 %v185, 0.0
  %v248 = vmax.f32 %v188, 0.0
  %v249 = vmax.f32 %v193, 0.0
  %v250 = vmax.f32 %v196, 0.0
  %v251 = vmax.f32 %v201, 0.0
  %v252 = vmax.f32 %v204, 0.0
  %v253 = vmax.f32 %v209, 0.0
  %v254 = vmax.f32 %v212, 0.0
  %v255 = vmax.f32 %v217, 0.0
  %v256 = vmax.f32 %v220, 0.0
  %v257 = vmax.f32 %v225, 0.0
  %v258 = vmax.f32 %v228, 0.0
  %v259 = vmax.f32 %v233, 0.0
  %v260 = vmax.f32 %v236, 0.0
  %v261 = vmax.f32 %v241, 0.0
  %v262 = vmax.f32 %v244, 0.0
  %v263 = vpack.c.bf16 %v248, %v247
  %v264 = vpack.c.bf16 %v250, %v249
  %v265 = vpack.c.bf16 %v252, %v251
  %v266 = vpack.c.bf16 %v254, %v253
  %v267 = vpack.c.bf16 %v256, %v255
  %v268 = vpack.c.bf16 %v258, %v257
  %v269 = vpack.c.bf16 %v260, %v259
  %v270 = vpack.c.bf16 %v262, %v261
  %v279 = vunpack.c.l.b16 %v263
  %v280 = vunpack.c.h.b16 %v263
  %v281 = vunpack.c.l.b16 %v264
  %v282 = vunpack.c.h.b16 %v264
  %v283 = vunpack.c.l.b16 %v265
  %v284 = vunpack.c.h.b16 %v265
  %v285 = vunpack.c.l.b16 %v266
  %v286 = vunpack.c.h.b16 %v266
  %v287 = vunpack.c.l.b16 %v267
  %v288 = vunpack.c.h.b16 %v267
  %v289 = vunpack.c.l.b16 %v268
  %v290 = vunpack.c.h.b16 %v268
  %v291 = vunpack.c.l.b16 %v269
  %v292 = vunpack.c.h.b16 %v269
  %v293 = vunpack.c.l.b16 %v270
  %v294 = vunpack.c.h.b16 %v270
  %v295 = vpack.c.b16 %v279, %v279
  %v296 = vpack.c.b16 %v280, %v280
  %v297 = vpack.c.b16 %v281, %v281
  %v298 = vpack.c.b16 %v282, %v282
  %v299 = vpack.c.b16 %v283, %v283
  %v300 = vpack.c.b16 %v284, %v284
  %v301 = vpack.c.b16 %v285, %v285
  %v302 = vpack.c.b16 %v286, %v286
  %v303 = vpack.c.b16 %v287, %v287
  %v304 = vpack.c.b16 %v288, %v288
  %v305 = vpack.c.b16 %v289, %v289
  %v306 = vpack.c.b16 %v290, %v290
  %v307 = vpack.c.b16 %v291, %v291
  %v308 = vpack.c.b16 %v292, %v292
  %v309 = vpack.c.b16 %v293, %v293
  %v310 = vpack.c.b16 %v294, %v294
  %327 = vst [vmem:[%s3] sm:$0xf] %v295
  %328 = vst [vmem:[%s3 + $0x4] sm:$0xf] %v296
  %329 = vst [vmem:[%s3 + $0x8] sm:$0xf] %v297
  %330 = vst [vmem:[%s3 + $0xc] sm:$0xf] %v298
  %331 = vst [vmem:[%s3 + $0x10] sm:$0xf] %v299
  %332 = vst [vmem:[%s3 + $0x14] sm:$0xf] %v300
  %333 = vst [vmem:[%s3 + $0x18] sm:$0xf] %v301
  %334 = vst [vmem:[%s3 + $0x1c] sm:$0xf] %v302
  %335 = vst [vmem:[%s3 + $0x20] sm:$0xf] %v303
  %336 = vst [vmem:[%s3 + $0x24] sm:$0xf] %v304
  %337 = vst [vmem:[%s3 + $0x28] sm:$0xf] %v305
  %338 = vst [vmem:[%s3 + $0x2c] sm:$0xf] %v306
  %339 = vst [vmem:[%s3 + $0x30] sm:$0xf] %v307
  %340 = vst [vmem:[%s3 + $0x34] sm:$0xf] %v308
  %341 = vst [vmem:[%s3 + $0x38] sm:$0xf] %v309
  %342 = vst [vmem:[%s3 + $0x3c] sm:$0xf] %v310
  // Predicated region
  $region14: #{resnet_forward.17} parent=0 // pred_check
    _
  $region15: #{resnet_forward.17} parent=0 // pred_check_branch
    %344 = sbr.rel (0) target = $region17
  $region16: #{resnet_forward.17} parent=0 // pred_region
    _
  $region17: #{resnet_forward.17} parent=0 // pred_fallthru
    _
  // Predicated region
  $region18: #{resnet_forward.17} parent=0 // pred_check
    _
  $region19: #{resnet_forward.17} parent=0 // pred_check_branch
    %346 = sbr.rel (0) target = $region21
  $region20: #{resnet_forward.17} parent=0 // pred_region
    _
  $region21: #{resnet_forward.17} parent=0 // pred_fallthru
    _

// kernel: resnet_forward.18
$region0: #{resnet_forward.18}
  #allocation0 [shape = 'u32[]', space=smem, size = 0x4, offset = 0x4, fixed_abs, tag = 'smem constant byte address 0x4 - core index']
  #allocation1 [shape = 'u32[144,128]{1,0:T(1,128)}', space=vmem, size = 0x12000, scoped, tag = 'internal scratch']
  %s0 = inlined_call_operand.vmem [shape: bf16[128,640], index: 0, kind: input, shape index: {}]
  %s1 = inlined_call_operand.vmem [shape: bf16[640,128], index: 1, kind: input, shape index: {}]
  %s2 = inlined_call_operand.vmem [shape: f32[1,128], index: 2, kind: input, shape index: {}]
  %s3 = inlined_call_operand.vmem [shape: bf16[128,128], index: 3, kind: output, shape index: {}]
  %s4 = sld [smem:[#allocation0]]
  $region22: #{resnet_forward.18} parent=0
    _
  %s6 = ssub.s32 1, %s4
  %s7 = scalar_select 0, %s6, %s4
  // Predicated region
  $region2: #{resnet_forward.18} parent=0 // pred_check
    _
  $region3: #{resnet_forward.18} parent=0 // pred_check_branch
    %9 = sbr.rel (0) target = $region5
  $region4: #{resnet_forward.18} parent=0 // pred_region
    _
  $region5: #{resnet_forward.18} parent=0 // pred_fallthru
    _
  // Predicated region
  $region6: #{resnet_forward.18} parent=0 // pred_check
    _
  $region7: #{resnet_forward.18} parent=0 // pred_check_branch
    %11 = sbr.rel (0) target = $region9
  $region8: #{resnet_forward.18} parent=0 // pred_region
    _
  $region9: #{resnet_forward.18} parent=0 // pred_fallthru
    _
  // Predicated region
  $region10: #{resnet_forward.18} parent=0 // pred_check
    _
  $region11: #{resnet_forward.18} parent=0 // pred_check_branch
    %13 = sbr.rel (0) target = $region13
  $region12: #{resnet_forward.18} parent=0 // pred_region
    _
  $region13: #{resnet_forward.18} parent=0 // pred_fallthru
    _
  %v15 = vld [vmem:[%s0] sm:$0xff]
  %v16 = vld [vmem:[%s0 + $0x8] sm:$0xff]
  %v17 = vld [vmem:[%s0 + $0x10] sm:$0xf]
  %v18 = vld [vmem:[%s0 + $0x14] sm:$0xff]
  %v19 = vld [vmem:[%s0 + $0x1c] sm:$0xff]
  %v20 = vld [vmem:[%s0 + $0x24] sm:$0xf]
  %v21 = vld [vmem:[%s0 + $0x28] sm:$0xff]
  %v22 = vld [vmem:[%s0 + $0x30] sm:$0xff]
  %v23 = vld [vmem:[%s0 + $0x38] sm:$0xf]
  %v24 = vld [vmem:[%s0 + $0x3c] sm:$0xff]
  %v25 = vld [vmem:[%s0 + $0x44] sm:$0xff]
  %v26 = vld [vmem:[%s0 + $0x4c] sm:$0xf]
  %v27 = vld [vmem:[%s0 + $0x50] sm:$0xff]
  %v28 = vld [vmem:[%s0 + $0x58] sm:$0xff]
  %v29 = vld [vmem:[%s0 + $0x60] sm:$0xf]
  %v30 = vld [vmem:[%s0 + $0x64] sm:$0xff]
  %v31 = vld [vmem:[%s0 + $0x6c] sm:$0xff]
  %v32 = vld [vmem:[%s0 + $0x74] sm:$0xf]
  %v33 = vld [vmem:[%s0 + $0x78] sm:$0xff]
  %v34 = vld [vmem:[%s0 + $0x80] sm:$0xff]
  %v35 = vld [vmem:[%s0 + $0x88] sm:$0xf]
  %v36 = vld [vmem:[%s0 + $0x8c] sm:$0xff]
  %v37 = vld [vmem:[%s0 + $0x94] sm:$0xff]
  %v38 = vld [vmem:[%s0 + $0x9c] sm:$0xf]
  %v39 = vld [vmem:[%s0 + $0xa0] sm:$0xff]
  %v40 = vld [vmem:[%s0 + $0xa8] sm:$0xff]
  %v41 = vld [vmem:[%s0 + $0xb0] sm:$0xf]
  %v42 = vld [vmem:[%s0 + $0xb4] sm:$0xff]
  %v43 = vld [vmem:[%s0 + $0xbc] sm:$0xff]
  %v44 = vld [vmem:[%s0 + $0xc4] sm:$0xf]
  %v45 = vld [vmem:[%s0 + $0xc8] sm:$0xff]
  %v46 = vld [vmem:[%s0 + $0xd0] sm:$0xff]
  %v47 = vld [vmem:[%s0 + $0xd8] sm:$0xf]
  %v48 = vld [vmem:[%s0 + $0xdc] sm:$0xff]
  %v49 = vld [vmem:[%s0 + $0xe4] sm:$0xff]
  %v50 = vld [vmem:[%s0 + $0xec] sm:$0xf]
  %v51 = vld [vmem:[%s0 + $0xf0] sm:$0xff]
  %v52 = vld [vmem:[%s0 + $0xf8] sm:$0xff]
  %v53 = vld [vmem:[%s0 + $0x100] sm:$0xf]
  %v54 = vld [vmem:[%s0 + $0x104] sm:$0xff]
  %v55 = vld [vmem:[%s0 + $0x10c] sm:$0xff]
  %v56 = vld [vmem:[%s0 + $0x114] sm:$0xf]
  %v57 = vld [vmem:[%s0 + $0x118] sm:$0xff]
  %v58 = vld [vmem:[%s0 + $0x120] sm:$0xff]
  %v59 = vld [vmem:[%s0 + $0x128] sm:$0xf]
  %v60 = vld [vmem:[%s0 + $0x12c] sm:$0xff]
  %v61 = vld [vmem:[%s0 + $0x134] sm:$0xff]
  %v62 = vld [vmem:[%s0 + $0x13c] sm:$0xf]
  %v63 = vld [vmem:[%s1] sm:$0xf]
  %v64 = vld [vmem:[%s1 + $0x4] sm:$0xf]
  %v65 = vld [vmem:[%s1 + $0x8] sm:$0xf]
  %v66 = vld [vmem:[%s1 + $0xc] sm:$0xf]
  %v67 = vld [vmem:[%s1 + $0x10] sm:$0xf]
  %v68 = vld [vmem:[%s1 + $0x14] sm:$0xf]
  %v69 = vld [vmem:[%s1 + $0x18] sm:$0xf]
  %v70 = vld [vmem:[%s1 + $0x1c] sm:$0xf]
  %v71 = vld [vmem:[%s1 + $0x20] sm:$0xf]
  %v72 = vld [vmem:[%s1 + $0x24] sm:$0xf]
  %v73 = vld [vmem:[%s1 + $0x28] sm:$0xf]
  %v74 = vld [vmem:[%s1 + $0x2c] sm:$0xf]
  %v75 = vld [vmem:[%s1 + $0x30] sm:$0xf]
  %v76 = vld [vmem:[%s1 + $0x34] sm:$0xf]
  %v77 = vld [vmem:[%s1 + $0x38] sm:$0xf]
  %v78 = vld [vmem:[%s1 + $0x3c] sm:$0xf]
  %v79 = vld [vmem:[%s1 + $0x40] sm:$0xf]
  %v80 = vld [vmem:[%s1 + $0x44] sm:$0xf]
  %v81 = vld [vmem:[%s1 + $0x48] sm:$0xf]
  %v82 = vld [vmem:[%s1 + $0x4c] sm:$0xf]
  %v83 = vld [vmem:[%s1 + $0x50] sm:$0xf]
  %v84 = vld [vmem:[%s1 + $0x54] sm:$0xf]
  %v85 = vld [vmem:[%s1 + $0x58] sm:$0xf]
  %v86 = vld [vmem:[%s1 + $0x5c] sm:$0xf]
  %v87 = vld [vmem:[%s1 + $0x60] sm:$0xf]
  %v88 = vld [vmem:[%s1 + $0x64] sm:$0xf]
  %v89 = vld [vmem:[%s1 + $0x68] sm:$0xf]
  %v90 = vld [vmem:[%s1 + $0x6c] sm:$0xf]
  %v91 = vld [vmem:[%s1 + $0x70] sm:$0xf]
  %v92 = vld [vmem:[%s1 + $0x74] sm:$0xf]
  %v93 = vld [vmem:[%s1 + $0x78] sm:$0xf]
  %v94 = vld [vmem:[%s1 + $0x7c] sm:$0xf]
  %v95 = vld [vmem:[%s1 + $0x80] sm:$0xf]
  %v96 = vld [vmem:[%s1 + $0x84] sm:$0xf]
  %v97 = vld [vmem:[%s1 + $0x88] sm:$0xf]
  %v98 = vld [vmem:[%s1 + $0x8c] sm:$0xf]
  %v99 = vld [vmem:[%s1 + $0x90] sm:$0xf]
  %v100 = vld [vmem:[%s1 + $0x94] sm:$0xf]
  %v101 = vld [vmem:[%s1 + $0x98] sm:$0xf]
  %v102 = vld [vmem:[%s1 + $0x9c] sm:$0xf]
  %v103 = vld [vmem:[%s1 + $0xa0] sm:$0xf]
  %v104 = vld [vmem:[%s1 + $0xa4] sm:$0xf]
  %v105 = vld [vmem:[%s1 + $0xa8] sm:$0xf]
  %v106 = vld [vmem:[%s1 + $0xac] sm:$0xf]
  %v107 = vld [vmem:[%s1 + $0xb0] sm:$0xf]
  %v108 = vld [vmem:[%s1 + $0xb4] sm:$0xf]
  %v109 = vld [vmem:[%s1 + $0xb8] sm:$0xf]
  %v110 = vld [vmem:[%s1 + $0xbc] sm:$0xf]
  %v111 = vld [vmem:[%s1 + $0xc0] sm:$0xf]
  %v112 = vld [vmem:[%s1 + $0xc4] sm:$0xf]
  %v113 = vld [vmem:[%s1 + $0xc8] sm:$0xf]
  %v114 = vld [vmem:[%s1 + $0xcc] sm:$0xf]
  %v115 = vld [vmem:[%s1 + $0xd0] sm:$0xf]
  %v116 = vld [vmem:[%s1 + $0xd4] sm:$0xf]
  %v117 = vld [vmem:[%s1 + $0xd8] sm:$0xf]
  %v118 = vld [vmem:[%s1 + $0xdc] sm:$0xf]
  %v119 = vld [vmem:[%s1 + $0xe0] sm:$0xf]
  %v120 = vld [vmem:[%s1 + $0xe4] sm:$0xf]
  %v121 = vld [vmem:[%s1 + $0xe8] sm:$0xf]
  %v122 = vld [vmem:[%s1 + $0xec] sm:$0xf]
  %v123 = vld [vmem:[%s1 + $0xf0] sm:$0xf]
  %v124 = vld [vmem:[%s1 + $0xf4] sm:$0xf]
  %v125 = vld [vmem:[%s1 + $0xf8] sm:$0xf]
  %v126 = vld [vmem:[%s1 + $0xfc] sm:$0xf]
  %v127 = vld [vmem:[%s1 + $0x100] sm:$0xf]
  %v128 = vld [vmem:[%s1 + $0x104] sm:$0xf]
  %v129 = vld [vmem:[%s1 + $0x108] sm:$0xf]
  %v130 = vld [vmem:[%s1 + $0x10c] sm:$0xf]
  %v131 = vld [vmem:[%s1 + $0x110] sm:$0xf]
  %v132 = vld [vmem:[%s1 + $0x114] sm:$0xf]
  %v133 = vld [vmem:[%s1 + $0x118] sm:$0xf]
  %v134 = vld [vmem:[%s1 + $0x11c] sm:$0xf]
  %v135 = vld [vmem:[%s1 + $0x120] sm:$0xf]
  %v136 = vld [vmem:[%s1 + $0x124] sm:$0xf]
  %v137 = vld [vmem:[%s1 + $0x128] sm:$0xf]
  %v138 = vld [vmem:[%s1 + $0x12c] sm:$0xf]
  %v139 = vld [vmem:[%s1 + $0x130] sm:$0xf]
  %v140 = vld [vmem:[%s1 + $0x134] sm:$0xf]
  %v141 = vld [vmem:[%s1 + $0x138] sm:$0xf]
  %v142 = vld [vmem:[%s1 + $0x13c] sm:$0xf]
  %v143 = vld [vmem:[%s2] sm:$0x1]
  %v145 = vlaneseq
  %v146 = vshrl.u32 %v145, 7
  %v147 = vsub.s32 0, %v146
  %v148 = vrot.slane %v143, %v147
  %v198 = vunpack.c.l.b16 %v15
  %v199 = vunpack.c.h.b16 %v15
  %v200 = vunpack.c.l.b16 %v16
  %v201 = vunpack.c.h.b16 %v16
  %v202 = vunpack.c.l.b16 %v17
  %v203 = vunpack.c.l.b16 %v18
  %v204 = vunpack.c.h.b16 %v18
  %v205 = vunpack.c.l.b16 %v19
  %v206 = vunpack.c.h.b16 %v19
  %v207 = vunpack.c.l.b16 %v20
  %v208 = vunpack.c.l.b16 %v21
  %v209 = vunpack.c.h.b16 %v21
  %v210 = vunpack.c.l.b16 %v22
  %v211 = vunpack.c.h.b16 %v22
  %v212 = vunpack.c.l.b16 %v23
  %v213 = vunpack.c.l.b16 %v24
  %v214 = vunpack.c.h.b16 %v24
  %v215 = vunpack.c.l.b16 %v25
  %v216 = vunpack.c.h.b16 %v25
  %v217 = vunpack.c.l.b16 %v26
  %v218 = vunpack.c.l.b16 %v27
  %v219 = vunpack.c.h.b16 %v27
  %v220 = vunpack.c.l.b16 %v28
  %v221 = vunpack.c.h.b16 %v28
  %v222 = vunpack.c.l.b16 %v29
  %v223 = vunpack.c.l.b16 %v30
  %v224 = vunpack.c.h.b16 %v30
  %v225 = vunpack.c.l.b16 %v31
  %v226 = vunpack.c.h.b16 %v31
  %v227 = vunpack.c.l.b16 %v32
  %v228 = vunpack.c.l.b16 %v33
  %v229 = vunpack.c.h.b16 %v33
  %v230 = vunpack.c.l.b16 %v34
  %v231 = vunpack.c.h.b16 %v34
  %v232 = vunpack.c.l.b16 %v35
  %v233 = vunpack.c.l.b16 %v36
  %v234 = vunpack.c.h.b16 %v36
  %v235 = vunpack.c.l.b16 %v37
  %v236 = vunpack.c.h.b16 %v37
  %v237 = vunpack.c.l.b16 %v38
  %v238 = vunpack.c.l.b16 %v39
  %v239 = vunpack.c.h.b16 %v39
  %v240 = vunpack.c.l.b16 %v40
  %v241 = vunpack.c.h.b16 %v40
  %v242 = vunpack.c.l.b16 %v41
  %v243 = vunpack.c.l.b16 %v42
  %v244 = vunpack.c.h.b16 %v42
  %v245 = vunpack.c.l.b16 %v43
  %v246 = vunpack.c.h.b16 %v43
  %v247 = vunpack.c.l.b16 %v44
  %v248 = vunpack.c.l.b16 %v45
  %v249 = vunpack.c.h.b16 %v45
  %v250 = vunpack.c.l.b16 %v46
  %v251 = vunpack.c.h.b16 %v46
  %v252 = vunpack.c.l.b16 %v47
  %v253 = vunpack.c.l.b16 %v48
  %v254 = vunpack.c.h.b16 %v48
  %v255 = vunpack.c.l.b16 %v49
  %v256 = vunpack.c.h.b16 %v49
  %v257 = vunpack.c.l.b16 %v50
  %v258 = vunpack.c.l.b16 %v51
  %v259 = vunpack.c.h.b16 %v51
  %v260 = vunpack.c.l.b16 %v52
  %v261 = vunpack.c.h.b16 %v52
  %v262 = vunpack.c.l.b16 %v53
  %v263 = vunpack.c.l.b16 %v54
  %v264 = vunpack.c.h.b16 %v54
  %v265 = vunpack.c.l.b16 %v55
  %v266 = vunpack.c.h.b16 %v55
  %v267 = vunpack.c.l.b16 %v56
  %v268 = vunpack.c.l.b16 %v57
  %v269 = vunpack.c.h.b16 %v57
  %v270 = vunpack.c.l.b16 %v58
  %v271 = vunpack.c.h.b16 %v58
  %v272 = vunpack.c.l.b16 %v59
  %v273 = vunpack.c.l.b16 %v60
  %v274 = vunpack.c.h.b16 %v60
  %v275 = vunpack.c.l.b16 %v61
  %v276 = vunpack.c.h.b16 %v61
  %v277 = vunpack.c.l.b16 %v62
  %v278 = vpack.c.b16 %v203, %v198
  %v279 = vpack.c.b16 %v204, %v199
  %v280 = vpack.c.b16 %v205, %v200
  %v281 = vpack.c.b16 %v206, %v201
  %v282 = vpack.c.b16 %v207, %v202
  %v283 = vpack.c.b16 %v213, %v208
  %v284 = vpack.c.b16 %v214, %v209
  %v285 = vpack.c.b16 %v215, %v210
  %v286 = vpack.c.b16 %v216, %v211
  %v287 = vpack.c.b16 %v217, %v212
  %v288 = vpack.c.b16 %v223, %v218
  %v289 = vpack.c.b16 %v224, %v219
  %v290 = vpack.c.b16 %v225, %v220
  %v291 = vpack.c.b16 %v226, %v221
  %v292 = vpack.c.b16 %v227, %v222
  %v293 = vpack.c.b16 %v233, %v228
  %v294 = vpack.c.b16 %v234, %v229
  %v295 = vpack.c.b16 %v235, %v230
  %v296 = vpack.c.b16 %v236, %v231
  %v297 = vpack.c.b16 %v237, %v232
  %v298 = vpack.c.b16 %v243, %v238
  %v299 = vpack.c.b16 %v244, %v239
  %v300 = vpack.c.b16 %v245, %v240
  %v301 = vpack.c.b16 %v246, %v241
  %v302 = vpack.c.b16 %v247, %v242
  %v303 = vpack.c.b16 %v253, %v248
  %v304 = vpack.c.b16 %v254, %v249
  %v305 = vpack.c.b16 %v255, %v250
  %v306 = vpack.c.b16 %v256, %v251
  %v307 = vpack.c.b16 %v257, %v252
  %v308 = vpack.c.b16 %v263, %v258
  %v309 = vpack.c.b16 %v264, %v259
  %v310 = vpack.c.b16 %v265, %v260
  %v311 = vpack.c.b16 %v266, %v261
  %v312 = vpack.c.b16 %v267, %v262
  %v313 = vpack.c.b16 %v273, %v268
  %v314 = vpack.c.b16 %v274, %v269
  %v315 = vpack.c.b16 %v275, %v270
  %v316 = vpack.c.b16 %v276, %v271
  %v317 = vpack.c.b16 %v277, %v272
  %v438 = vunpack.c.l.b16 %v63
  %v439 = vunpack.c.l.b16 %v64
  %v440 = vunpack.c.l.b16 %v65
  %v441 = vunpack.c.l.b16 %v66
  %v442 = vunpack.c.l.b16 %v67
  %v443 = vunpack.c.l.b16 %v68
  %v444 = vunpack.c.l.b16 %v69
  %v445 = vunpack.c.l.b16 %v70
  %v446 = vunpack.c.l.b16 %v71
  %v447 = vunpack.c.l.b16 %v72
  %v448 = vunpack.c.l.b16 %v73
  %v449 = vunpack.c.l.b16 %v74
  %v450 = vunpack.c.l.b16 %v75
  %v451 = vunpack.c.l.b16 %v76
  %v452 = vunpack.c.l.b16 %v77
  %v453 = vunpack.c.l.b16 %v78
  %v454 = vunpack.c.l.b16 %v79
  %v455 = vunpack.c.l.b16 %v80
  %v456 = vunpack.c.l.b16 %v81
  %v457 = vunpack.c.l.b16 %v82
  %v458 = vunpack.c.l.b16 %v83
  %v459 = vunpack.c.l.b16 %v84
  %v460 = vunpack.c.l.b16 %v85
  %v461 = vunpack.c.l.b16 %v86
  %v462 = vunpack.c.l.b16 %v87
  %v463 = vunpack.c.l.b16 %v88
  %v464 = vunpack.c.l.b16 %v89
  %v465 = vunpack.c.l.b16 %v90
  %v466 = vunpack.c.l.b16 %v91
  %v467 = vunpack.c.l.b16 %v92
  %v468 = vunpack.c.l.b16 %v93
  %v469 = vunpack.c.l.b16 %v94
  %v470 = vunpack.c.l.b16 %v95
  %v471 = vunpack.c.l.b16 %v96
  %v472 = vunpack.c.l.b16 %v97
  %v473 = vunpack.c.l.b16 %v98
  %v474 = vunpack.c.l.b16 %v99
  %v475 = vunpack.c.l.b16 %v100
  %v476 = vunpack.c.l.b16 %v101
  %v477 = vunpack.c.l.b16 %v102
  %v478 = vunpack.c.l.b16 %v103
  %v479 = vunpack.c.l.b16 %v104
  %v480 = vunpack.c.l.b16 %v105
  %v481 = vunpack.c.l.b16 %v106
  %v482 = vunpack.c.l.b16 %v107
  %v483 = vunpack.c.l.b16 %v108
  %v484 = vunpack.c.l.b16 %v109
  %v485 = vunpack.c.l.b16 %v110
  %v486 = vunpack.c.l.b16 %v111
  %v487 = vunpack.c.l.b16 %v112
  %v488 = vunpack.c.l.b16 %v113
  %v489 = vunpack.c.l.b16 %v114
  %v490 = vunpack.c.l.b16 %v115
  %v491 = vunpack.c.l.b16 %v116
  %v492 = vunpack.c.l.b16 %v117
  %v493 = vunpack.c.l.b16 %v118
  %v494 = vunpack.c.l.b16 %v119
  %v495 = vunpack.c.l.b16 %v120
  %v496 = vunpack.c.l.b16 %v121
  %v497 = vunpack.c.l.b16 %v122
  %v498 = vunpack.c.l.b16 %v123
  %v499 = vunpack.c.l.b16 %v124
  %v500 = vunpack.c.l.b16 %v125
  %v501 = vunpack.c.l.b16 %v126
  %v502 = vunpack.c.l.b16 %v127
  %v503 = vunpack.c.l.b16 %v128
  %v504 = vunpack.c.l.b16 %v129
  %v505 = vunpack.c.l.b16 %v130
  %v506 = vunpack.c.l.b16 %v131
  %v507 = vunpack.c.l.b16 %v132
  %v508 = vunpack.c.l.b16 %v133
  %v509 = vunpack.c.l.b16 %v134
  %v510 = vunpack.c.l.b16 %v135
  %v511 = vunpack.c.l.b16 %v136
  %v512 = vunpack.c.l.b16 %v137
  %v513 = vunpack.c.l.b16 %v138
  %v514 = vunpack.c.l.b16 %v139
  %v515 = vunpack.c.l.b16 %v140
  %v516 = vunpack.c.l.b16 %v141
  %v517 = vunpack.c.l.b16 %v142
  %v518 = vpack.c.b16 %v439, %v438
  %v519 = vpack.c.b16 %v441, %v440
  %v520 = vpack.c.b16 %v443, %v442
  %v521 = vpack.c.b16 %v445, %v444
  %v522 = vpack.c.b16 %v447, %v446
  %v523 = vpack.c.b16 %v449, %v448
  %v524 = vpack.c.b16 %v451, %v450
  %v525 = vpack.c.b16 %v453, %v452
  %v526 = vpack.c.b16 %v455, %v454
  %v527 = vpack.c.b16 %v457, %v456
  %v528 = vpack.c.b16 %v459, %v458
  %v529 = vpack.c.b16 %v461, %v460
  %v530 = vpack.c.b16 %v463, %v462
  %v531 = vpack.c.b16 %v465, %v464
  %v532 = vpack.c.b16 %v467, %v466
  %v533 = vpack.c.b16 %v469, %v468
  %v534 = vpack.c.b16 %v471, %v470
  %v535 = vpack.c.b16 %v473, %v472
  %v536 = vpack.c.b16 %v475, %v474
  %v537 = vpack.c.b16 %v477, %v476
  %v538 = vpack.c.b16 %v479, %v478
  %v539 = vpack.c.b16 %v481, %v480
  %v540 = vpack.c.b16 %v483, %v482
  %v541 = vpack.c.b16 %v485, %v484
  %v542 = vpack.c.b16 %v487, %v486
  %v543 = vpack.c.b16 %v489, %v488
  %v544 = vpack.c.b16 %v491, %v490
  %v545 = vpack.c.b16 %v493, %v492
  %v546 = vpack.c.b16 %v495, %v494
  %v547 = vpack.c.b16 %v497, %v496
  %v548 = vpack.c.b16 %v499, %v498
  %v549 = vpack.c.b16 %v501, %v500
  %v550 = vpack.c.b16 %v503, %v502
  %v551 = vpack.c.b16 %v505, %v504
  %v552 = vpack.c.b16 %v507, %v506
  %v553 = vpack.c.b16 %v509, %v508
  %v554 = vpack.c.b16 %v511, %v510
  %v555 = vpack.c.b16 %v513, %v512
  %v556 = vpack.c.b16 %v515, %v514
  %v557 = vpack.c.b16 %v517, %v516
  %598 = vmatprep.subr.bf16.mxu0 0
  %599 = vmatpush1.bf16.msra.mxu0 %v518
  %600 = vmatprep.subr.bf16.mxu0 0
  %601 = vmatpush1.bf16.msra.mxu0 %v519
  %602 = vmatprep.subr.bf16.mxu0 0
  %603 = vmatpush1.bf16.msra.mxu0 %v520
  %604 = vmatprep.subr.bf16.mxu0 0
  %605 = vmatpush1.bf16.msra.mxu0 %v521
  %606 = vmatprep.subr.bf16.mxu0 0
  %607 = vmatpush1.bf16.msra.mxu0 %v522
  %608 = vmatprep.subr.bf16.mxu0 0
  %609 = vmatpush1.bf16.msra.mxu0 %v523
  %610 = vmatprep.subr.bf16.mxu0 0
  %611 = vmatpush1.bf16.msra.mxu0 %v524
  %612 = vmatprep.subr.bf16.mxu0 0
  %613 = vmatpush1.bf16.msra.mxu0 %v525
  %614 = vmatprep.subr.bf16.mxu0 0
  %615 = vmatpush1.bf16.msra.mxu0 %v526
  %616 = vmatprep.subr.bf16.mxu0 0
  %617 = vmatpush1.bf16.msra.mxu0 %v527
  %618 = vmatprep.subr.bf16.mxu0 0
  %619 = vmatpush1.bf16.msra.mxu0 %v528
  %620 = vmatprep.subr.bf16.mxu0 0
  %621 = vmatpush1.bf16.msra.mxu0 %v529
  %622 = vmatprep.subr.bf16.mxu0 0
  %623 = vmatpush1.bf16.msra.mxu0 %v530
  %624 = vmatprep.subr.bf16.mxu0 0
  %625 = vmatpush1.bf16.msra.mxu0 %v531
  %626 = vmatprep.subr.bf16.mxu0 0
  %627 = vmatpush1.bf16.msra.mxu0 %v532
  %628 = vmatprep.subr.bf16.mxu0 0
  %629 = vmatpush1.bf16.msra.mxu0 %v533
  %630 = vmatprep.mubr.bf16.mxu0 %v279
  %631 = vmatmul.mubr.bf16.gmra.mrb[0].mxu0 %v278
  %v632 = vpop.f32.mrb[0].mxu0
  %v633 = vadd.f32 %v148, %v632
  %v634 = vpop.f32.mrb[0].mxu0
  %v635 = vpop.f32.mrb[0].mxu0
  %v636 = vadd.f32 %v148, %v635
  %v637 = vpop.f32.mrb[0].mxu0
  %638 = vmatprep.mubr.bf16.mxu0 %v284
  %639 = vmatmul.mubr.bf16.gmra.mrb[0].mxu0 %v283
  %v640 = vpop.f32.mrb[0].mxu0
  %v641 = vadd.f32 %v148, %v640
  %v642 = vpop.f32.mrb[0].mxu0
  %v643 = vpop.f32.mrb[0].mxu0
  %v644 = vadd.f32 %v148, %v643
  %v645 = vpop.f32.mrb[0].mxu0
  %646 = vmatprep.mubr.bf16.mxu0 %v289
  %647 = vmatmul.mubr.bf16.gmra.mrb[0].mxu0 %v288
  %v648 = vpop.f32.mrb[0].mxu0
  %v649 = vadd.f32 %v148, %v648
  %v650 = vpop.f32.mrb[0].mxu0
  %v651 = vpop.f32.mrb[0].mxu0
  %v652 = vadd.f32 %v148, %v651
  %v653 = vpop.f32.mrb[0].mxu0
  %654 = vmatprep.mubr.bf16.mxu0 %v294
  %655 = vmatmul.mubr.bf16.gmra.mrb[0].mxu0 %v293
  %v656 = vpop.f32.mrb[0].mxu0
  %v657 = vadd.f32 %v148, %v656
  %v658 = vpop.f32.mrb[0].mxu0
  %v659 = vpop.f32.mrb[0].mxu0
  %v660 = vadd.f32 %v148, %v659
  %v661 = vpop.f32.mrb[0].mxu0
  %662 = vmatprep.mubr.bf16.mxu0 %v299
  %663 = vmatmul.mubr.bf16.gmra.mrb[0].mxu0 %v298
  %v664 = vpop.f32.mrb[0].mxu0
  %v665 = vadd.f32 %v148, %v664
  %v666 = vpop.f32.mrb[0].mxu0
  %v667 = vpop.f32.mrb[0].mxu0
  %v668 = vadd.f32 %v148, %v667
  %v669 = vpop.f32.mrb[0].mxu0
  %670 = vmatprep.mubr.bf16.mxu0 %v304
  %671 = vmatmul.mubr.bf16.gmra.mrb[0].mxu0 %v303
  %v672 = vpop.f32.mrb[0].mxu0
  %v673 = vadd.f32 %v148, %v672
  %v674 = vpop.f32.mrb[0].mxu0
  %v675 = vpop.f32.mrb[0].mxu0
  %v676 = vadd.f32 %v148, %v675
  %v677 = vpop.f32.mrb[0].mxu0
  %678 = vmatprep.mubr.bf16.mxu0 %v309
  %679 = vmatmul.mubr.bf16.gmra.mrb[0].mxu0 %v308
  %v680 = vpop.f32.mrb[0].mxu0
  %v681 = vadd.f32 %v148, %v680
  %v682 = vpop.f32.mrb[0].mxu0
  %v683 = vpop.f32.mrb[0].mxu0
  %v684 = vadd.f32 %v148, %v683
  %v685 = vpop.f32.mrb[0].mxu0
  %686 = vmatprep.mubr.bf16.mxu0 %v314
  %687 = vmatmul.mubr.bf16.gmra.mrb[0].mxu0 %v313
  %v688 = vpop.f32.mrb[0].mxu0
  %v689 = vadd.f32 %v148, %v688
  %v690 = vpop.f32.mrb[0].mxu0
  %v691 = vpop.f32.mrb[0].mxu0
  %v692 = vadd.f32 %v148, %v691
  %v693 = vpop.f32.mrb[0].mxu0
  %694 = vdwg.mxu0
  %695 = vmatprep.subr.bf16.mxu0 0
  %696 = vmatpush1.bf16.msra.mxu0 %v534
  %697 = vmatprep.subr.bf16.mxu0 0
  %698 = vmatpush1.bf16.msra.mxu0 %v535
  %699 = vmatprep.subr.bf16.mxu0 0
  %700 = vmatpush1.bf16.msra.mxu0 %v536
  %701 = vmatprep.subr.bf16.mxu0 0
  %702 = vmatpush1.bf16.msra.mxu0 %v537
  %703 = vmatprep.subr.bf16.mxu0 0
  %704 = vmatpush1.bf16.msra.mxu0 %v538
  %705 = vmatprep.subr.bf16.mxu0 0
  %706 = vmatpush1.bf16.msra.mxu0 %v539
  %707 = vmatprep.subr.bf16.mxu0 0
  %708 = vmatpush1.bf16.msra.mxu0 %v540
  %709 = vmatprep.subr.bf16.mxu0 0
  %710 = vmatpush1.bf16.msra.mxu0 %v541
  %711 = vmatprep.subr.bf16.mxu0 0
  %712 = vmatpush1.bf16.msra.mxu0 %v542
  %713 = vmatprep.subr.bf16.mxu0 0
  %714 = vmatpush1.bf16.msra.mxu0 %v543
  %715 = vmatprep.subr.bf16.mxu0 0
  %716 = vmatpush1.bf16.msra.mxu0 %v544
  %717 = vmatprep.subr.bf16.mxu0 0
  %718 = vmatpush1.bf16.msra.mxu0 %v545
  %719 = vmatprep.subr.bf16.mxu0 0
  %720 = vmatpush1.bf16.msra.mxu0 %v546
  %721 = vmatprep.subr.bf16.mxu0 0
  %722 = vmatpush1.bf16.msra.mxu0 %v547
  %723 = vmatprep.subr.bf16.mxu0 0
  %724 = vmatpush1.bf16.msra.mxu0 %v548
  %725 = vmatprep.subr.bf16.mxu0 0
  %726 = vmatpush1.bf16.msra.mxu0 %v549
  %727 = vmatprep.mubr.bf16.mxu0 %v281
  %728 = vmatmul.mubr.bf16.gmra.mrb[0].mxu0 %v280
  %v729 = vpop.f32.mrb[0].mxu0
  %v730 = vadd.f32 %v633, %v729
  %v731 = vpop.f32.mrb[0].mxu0
  %v732 = vpop.f32.mrb[0].mxu0
  %v733 = vadd.f32 %v636, %v732
  %v734 = vpop.f32.mrb[0].mxu0
  %735 = vmatprep.mubr.bf16.mxu0 %v286
  %736 = vmatmul.mubr.bf16.gmra.mrb[0].mxu0 %v285
  %v737 = vpop.f32.mrb[0].mxu0
  %v738 = vadd.f32 %v641, %v737
  %v739 = vpop.f32.mrb[0].mxu0
  %v740 = vpop.f32.mrb[0].mxu0
  %v741 = vadd.f32 %v644, %v740
  %v742 = vpop.f32.mrb[0].mxu0
  %743 = vmatprep.mubr.bf16.mxu0 %v291
  %744 = vmatmul.mubr.bf16.gmra.mrb[0].mxu0 %v290
  %v745 = vpop.f32.mrb[0].mxu0
  %v746 = vadd.f32 %v649, %v745
  %v747 = vpop.f32.mrb[0].mxu0
  %v748 = vpop.f32.mrb[0].mxu0
  %v749 = vadd.f32 %v652, %v748
  %v750 = vpop.f32.mrb[0].mxu0
  %751 = vmatprep.mubr.bf16.mxu0 %v296
  %752 = vmatmul.mubr.bf16.gmra.mrb[0].mxu0 %v295
  %v753 = vpop.f32.mrb[0].mxu0
  %v754 = vadd.f32 %v657, %v753
  %v755 = vpop.f32.mrb[0].mxu0
  %v756 = vpop.f32.mrb[0].mxu0
  %v757 = vadd.f32 %v660, %v756
  %v758 = vpop.f32.mrb[0].mxu0
  %759 = vmatprep.mubr.bf16.mxu0 %v301
  %760 = vmatmul.mubr.bf16.gmra.mrb[0].mxu0 %v300
  %v761 = vpop.f32.mrb[0].mxu0
  %v762 = vadd.f32 %v665, %v761
  %v763 = vpop.f32.mrb[0].mxu0
  %v764 = vpop.f32.mrb[0].mxu0
  %v765 = vadd.f32 %v668, %v764
  %v766 = vpop.f32.mrb[0].mxu0
  %767 = vmatprep.mubr.bf16.mxu0 %v306
  %768 = vmatmul.mubr.bf16.gmra.mrb[0].mxu0 %v305
  %v769 = vpop.f32.mrb[0].mxu0
  %v770 = vadd.f32 %v673, %v769
  %v771 = vpop.f32.mrb[0].mxu0
  %v772 = vpop.f32.mrb[0].mxu0
  %v773 = vadd.f32 %v676, %v772
  %v774 = vpop.f32.mrb[0].mxu0
  %775 = vmatprep.mubr.bf16.mxu0 %v311
  %776 = vmatmul.mubr.bf16.gmra.mrb[0].mxu0 %v310
  %v777 = vpop.f32.mrb[0].mxu0
  %v778 = vadd.f32 %v681, %v777
  %v779 = vpop.f32.mrb[0].mxu0
  %v780 = vpop.f32.mrb[0].mxu0
  %v781 = vadd.f32 %v684, %v780
  %v782 = vpop.f32.mrb[0].mxu0
  %783 = vmatprep.mubr.bf16.mxu0 %v316
  %784 = vmatmul.mubr.bf16.gmra.mrb[0].mxu0 %v315
  %v785 = vpop.f32.mrb[0].mxu0
  %v786 = vadd.f32 %v689, %v785
  %v787 = vpop.f32.mrb[0].mxu0
  %v788 = vpop.f32.mrb[0].mxu0
  %v789 = vadd.f32 %v692, %v788
  %v790 = vpop.f32.mrb[0].mxu0
  %791 = vdwg.mxu0
  %792 = vmatprep.subr.bf16.mxu0 0
  %793 = vmatpush1.bf16.msra.mxu0 %v550
  %794 = vmatprep.subr.bf16.mxu0 0
  %795 = vmatpush1.bf16.msra.mxu0 %v551
  %796 = vmatprep.subr.bf16.mxu0 0
  %797 = vmatpush1.bf16.msra.mxu0 %v552
  %798 = vmatprep.subr.bf16.mxu0 0
  %799 = vmatpush1.bf16.msra.mxu0 %v553
  %800 = vmatprep.subr.bf16.mxu0 0
  %801 = vmatpush1.bf16.msra.mxu0 %v554
  %802 = vmatprep.subr.bf16.mxu0 0
  %803 = vmatpush1.bf16.msra.mxu0 %v555
  %804 = vmatprep.subr.bf16.mxu0 0
  %805 = vmatpush1.bf16.msra.mxu0 %v556
  %806 = vmatprep.subr.bf16.mxu0 0
  %807 = vmatpush1.bf16.msra.mxu0 %v557
  %808 = vmatprep.subr.bf16.mxu0 0
  %809 = vmatpush1.bf16.msra.mxu0 0
  %810 = vmatprep.subr.bf16.mxu0 0
  %811 = vmatpush1.bf16.msra.mxu0 0
  %812 = vmatprep.subr.bf16.mxu0 0
  %813 = vmatpush1.bf16.msra.mxu0 0
  %814 = vmatprep.subr.bf16.mxu0 0
  %815 = vmatpush1.bf16.msra.mxu0 0
  %816 = vmatprep.subr.bf16.mxu0 0
  %817 = vmatpush1.bf16.msra.mxu0 0
  %818 = vmatprep.subr.bf16.mxu0 0
  %819 = vmatpush1.bf16.msra.mxu0 0
  %820 = vmatprep.subr.bf16.mxu0 0
  %821 = vmatpush1.bf16.msra.mxu0 0
  %822 = vmatprep.subr.bf16.mxu0 0
  %823 = vmatpush1.bf16.msra.mxu0 0
  %824 = vmatprep.mubr.bf16.mxu0 0
  %825 = vmatmul.mubr.bf16.gmra.mrb[0].mxu0 %v282
  %v826 = vpop.f32.mrb[0].mxu0
  %v827 = vadd.f32 %v730, %v826
  %v828 = vpop.f32.mrb[0].mxu0
  %v829 = vpop.f32.mrb[0].mxu0
  %v830 = vadd.f32 %v733, %v829
  %v831 = vpop.f32.mrb[0].mxu0
  %832 = vmatprep.mubr.bf16.mxu0 0
  %833 = vmatmul.mubr.bf16.gmra.mrb[0].mxu0 %v287
  %v834 = vpop.f32.mrb[0].mxu0
  %v835 = vadd.f32 %v738, %v834
  %v836 = vpop.f32.mrb[0].mxu0
  %v837 = vpop.f32.mrb[0].mxu0
  %v838 = vadd.f32 %v741, %v837
  %v839 = vpop.f32.mrb[0].mxu0
  %840 = vmatprep.mubr.bf16.mxu0 0
  %841 = vmatmul.mubr.bf16.gmra.mrb[0].mxu0 %v292
  %v842 = vpop.f32.mrb[0].mxu0
  %v843 = vadd.f32 %v746, %v842
  %v844 = vpop.f32.mrb[0].mxu0
  %v845 = vpop.f32.mrb[0].mxu0
  %v846 = vadd.f32 %v749, %v845
  %v847 = vpop.f32.mrb[0].mxu0
  %848 = vmatprep.mubr.bf16.mxu0 0
  %849 = vmatmul.mubr.bf16.gmra.mrb[0].mxu0 %v297
  %v850 = vpop.f32.mrb[0].mxu0
  %v851 = vadd.f32 %v754, %v850
  %v852 = vpop.f32.mrb[0].mxu0
  %v853 = vpop.f32.mrb[0].mxu0
  %v854 = vadd.f32 %v757, %v853
  %v855 = vpop.f32.mrb[0].mxu0
  %856 = vmatprep.mubr.bf16.mxu0 0
  %857 = vmatmul.mubr.bf16.gmra.mrb[0].mxu0 %v302
  %v858 = vpop.f32.mrb[0].mxu0
  %v859 = vadd.f32 %v762, %v858
  %v860 = vpop.f32.mrb[0].mxu0
  %v861 = vpop.f32.mrb[0].mxu0
  %v862 = vadd.f32 %v765, %v861
  %v863 = vpop.f32.mrb[0].mxu0
  %864 = vmatprep.mubr.bf16.mxu0 0
  %865 = vmatmul.mubr.bf16.gmra.mrb[0].mxu0 %v307
  %v866 = vpop.f32.mrb[0].mxu0
  %v867 = vadd.f32 %v770, %v866
  %v868 = vpop.f32.mrb[0].mxu0
  %v869 = vpop.f32.mrb[0].mxu0
  %v870 = vadd.f32 %v773, %v869
  %v871 = vpop.f32.mrb[0].mxu0
  %872 = vmatprep.mubr.bf16.mxu0 0
  %873 = vmatmul.mubr.bf16.gmra.mrb[0].mxu0 %v312
  %v874 = vpop.f32.mrb[0].mxu0
  %v875 = vadd.f32 %v778, %v874
  %v876 = vpop.f32.mrb[0].mxu0
  %v877 = vpop.f32.mrb[0].mxu0
  %v878 = vadd.f32 %v781, %v877
  %v879 = vpop.f32.mrb[0].mxu0
  %880 = vmatprep.mubr.bf16.mxu0 0
  %881 = vmatmul.mubr.bf16.gmra.mrb[0].mxu0 %v317
  %v882 = vpop.f32.mrb[0].mxu0
  %v883 = vadd.f32 %v786, %v882
  %v884 = vpop.f32.mrb[0].mxu0
  %v885 = vpop.f32.mrb[0].mxu0
  %v886 = vadd.f32 %v789, %v885
  %v887 = vpop.f32.mrb[0].mxu0
  %888 = vdwg.mxu0
  %v889 = vmax.f32 %v827, 0.0
  %v890 = vmax.f32 %v830, 0.0
  %v891 = vmax.f32 %v835, 0.0
  %v892 = vmax.f32 %v838, 0.0
  %v893 = vmax.f32 %v843, 0.0
  %v894 = vmax.f32 %v846, 0.0
  %v895 = vmax.f32 %v851, 0.0
  %v896 = vmax.f32 %v854, 0.0
  %v897 = vmax.f32 %v859, 0.0
  %v898 = vmax.f32 %v862, 0.0
  %v899 = vmax.f32 %v867, 0.0
  %v900 = vmax.f32 %v870, 0.0
  %v901 = vmax.f32 %v875, 0.0
  %v902 = vmax.f32 %v878, 0.0
  %v903 = vmax.f32 %v883, 0.0
  %v904 = vmax.f32 %v886, 0.0
  %v905 = vpack.c.bf16 %v890, %v889
  %v906 = vpack.c.bf16 %v892, %v891
  %v907 = vpack.c.bf16 %v894, %v893
  %v908 = vpack.c.bf16 %v896, %v895
  %v909 = vpack.c.bf16 %v898, %v897
  %v910 = vpack.c.bf16 %v900, %v899
  %v911 = vpack.c.bf16 %v902, %v901
  %v912 = vpack.c.bf16 %v904, %v903
  %v921 = vunpack.c.l.b16 %v905
  %v922 = vunpack.c.h.b16 %v905
  %v923 = vunpack.c.l.b16 %v906
  %v924 = vunpack.c.h.b16 %v906
  %v925 = vunpack.c.l.b16 %v907
  %v926 = vunpack.c.h.b16 %v907
  %v927 = vunpack.c.l.b16 %v908
  %v928 = vunpack.c.h.b16 %v908
  %v929 = vunpack.c.l.b16 %v909
  %v930 = vunpack.c.h.b16 %v909
  %v931 = vunpack.c.l.b16 %v910
  %v932 = vunpack.c.h.b16 %v910
  %v933 = vunpack.c.l.b16 %v911
  %v934 = vunpack.c.h.b16 %v911
  %v935 = vunpack.c.l.b16 %v912
  %v936 = vunpack.c.h.b16 %v912
  %v937 = vpack.c.b16 %v921, %v921
  %v938 = vpack.c.b16 %v922, %v922
  %v939 = vpack.c.b16 %v923, %v923
  %v940 = vpack.c.b16 %v924, %v924
  %v941 = vpack.c.b16 %v925, %v925
  %v942 = vpack.c.b16 %v926, %v926
  %v943 = vpack.c.b16 %v927, %v927
  %v944 = vpack.c.b16 %v928, %v928
  %v945 = vpack.c.b16 %v929, %v929
  %v946 = vpack.c.b16 %v930, %v930
  %v947 = vpack.c.b16 %v931, %v931
  %v948 = vpack.c.b16 %v932, %v932
  %v949 = vpack.c.b16 %v933, %v933
  %v950 = vpack.c.b16 %v934, %v934
  %v951 = vpack.c.b16 %v935, %v935
  %v952 = vpack.c.b16 %v936, %v936
  %969 = vst [vmem:[%s3] sm:$0xf] %v937
  %970 = vst [vmem:[%s3 + $0x4] sm:$0xf] %v938
  %971 = vst [vmem:[%s3 + $0x8] sm:$0xf] %v939
  %972 = vst [vmem:[%s3 + $0xc] sm:$0xf] %v940
  %973 = vst [vmem:[%s3 + $0x10] sm:$0xf] %v941
  %974 = vst [vmem:[%s3 + $0x14] sm:$0xf] %v942
  %975 = vst [vmem:[%s3 + $0x18] sm:$0xf] %v943
  %976 = vst [vmem:[%s3 + $0x1c] sm:$0xf] %v944
  %977 = vst [vmem:[%s3 + $0x20] sm:$0xf] %v945
  %978 = vst [vmem:[%s3 + $0x24] sm:$0xf] %v946
  %979 = vst [vmem:[%s3 + $0x28] sm:$0xf] %v947
  %980 = vst [vmem:[%s3 + $0x2c] sm:$0xf] %v948
  %981 = vst [vmem:[%s3 + $0x30] sm:$0xf] %v949
  %982 = vst [vmem:[%s3 + $0x34] sm:$0xf] %v950
  %983 = vst [vmem:[%s3 + $0x38] sm:$0xf] %v951
  %984 = vst [vmem:[%s3 + $0x3c] sm:$0xf] %v952
  // Predicated region
  $region14: #{resnet_forward.18} parent=0 // pred_check
    _
  $region15: #{resnet_forward.18} parent=0 // pred_check_branch
    %986 = sbr.rel (0) target = $region17
  $region16: #{resnet_forward.18} parent=0 // pred_region
    _
  $region17: #{resnet_forward.18} parent=0 // pred_fallthru
    _
  // Predicated region
  $region18: #{resnet_forward.18} parent=0 // pred_check
    _
  $region19: #{resnet_forward.18} parent=0 // pred_check_branch
    %988 = sbr.rel (0) target = $region21
  $region20: #{resnet_forward.18} parent=0 // pred_region
    _
  $region21: #{resnet_forward.18} parent=0 // pred_fallthru
    _

// kernel: resnet_forward.19
$region0: #{resnet_forward.19}
  #allocation0 [shape = 'u32[]', space=smem, size = 0x4, offset = 0x4, fixed_abs, tag = 'smem constant byte address 0x4 - core index']
  #allocation1 [shape = 'u32[144,128]{1,0:T(1,128)}', space=vmem, size = 0x12000, scoped, tag = 'internal scratch']
  %s0 = inlined_call_operand.vmem [shape: bf16[128,128], index: 0, kind: input, shape index: {}]
  %s1 = inlined_call_operand.vmem [shape: bf16[128,256], index: 1, kind: input, shape index: {}]
  %s2 = inlined_call_operand.vmem [shape: f32[1,256], index: 2, kind: input, shape index: {}]
  %s3 = inlined_call_operand.vmem [shape: bf16[128,256], index: 3, kind: output, shape index: {}]
  %s4 = sld [smem:[#allocation0]]
  $region22: #{resnet_forward.19} parent=0
    _
  %s6 = ssub.s32 1, %s4
  %s7 = scalar_select 0, %s6, %s4
  // Predicated region
  $region2: #{resnet_forward.19} parent=0 // pred_check
    _
  $region3: #{resnet_forward.19} parent=0 // pred_check_branch
    %9 = sbr.rel (0) target = $region5
  $region4: #{resnet_forward.19} parent=0 // pred_region
    _
  $region5: #{resnet_forward.19} parent=0 // pred_fallthru
    _
  // Predicated region
  $region6: #{resnet_forward.19} parent=0 // pred_check
    _
  $region7: #{resnet_forward.19} parent=0 // pred_check_branch
    %11 = sbr.rel (0) target = $region9
  $region8: #{resnet_forward.19} parent=0 // pred_region
    _
  $region9: #{resnet_forward.19} parent=0 // pred_fallthru
    _
  // Predicated region
  $region10: #{resnet_forward.19} parent=0 // pred_check
    _
  $region11: #{resnet_forward.19} parent=0 // pred_check_branch
    %13 = sbr.rel (0) target = $region13
  $region12: #{resnet_forward.19} parent=0 // pred_region
    _
  $region13: #{resnet_forward.19} parent=0 // pred_fallthru
    _
  %v15 = vld [vmem:[%s0] sm:$0xf]
  %v16 = vld [vmem:[%s0 + $0x4] sm:$0xf]
  %v17 = vld [vmem:[%s0 + $0x8] sm:$0xf]
  %v18 = vld [vmem:[%s0 + $0xc] sm:$0xf]
  %v19 = vld [vmem:[%s0 + $0x10] sm:$0xf]
  %v20 = vld [vmem:[%s0 + $0x14] sm:$0xf]
  %v21 = vld [vmem:[%s0 + $0x18] sm:$0xf]
  %v22 = vld [vmem:[%s0 + $0x1c] sm:$0xf]
  %v23 = vld [vmem:[%s0 + $0x20] sm:$0xf]
  %v24 = vld [vmem:[%s0 + $0x24] sm:$0xf]
  %v25 = vld [vmem:[%s0 + $0x28] sm:$0xf]
  %v26 = vld [vmem:[%s0 + $0x2c] sm:$0xf]
  %v27 = vld [vmem:[%s0 + $0x30] sm:$0xf]
  %v28 = vld [vmem:[%s0 + $0x34] sm:$0xf]
  %v29 = vld [vmem:[%s0 + $0x38] sm:$0xf]
  %v30 = vld [vmem:[%s0 + $0x3c] sm:$0xf]
  %v31 = vld [vmem:[%s1] sm:$0xff]
  %v32 = vld [vmem:[%s1 + $0x8] sm:$0xff]
  %v33 = vld [vmem:[%s1 + $0x10] sm:$0xff]
  %v34 = vld [vmem:[%s1 + $0x18] sm:$0xff]
  %v35 = vld [vmem:[%s1 + $0x20] sm:$0xff]
  %v36 = vld [vmem:[%s1 + $0x28] sm:$0xff]
  %v37 = vld [vmem:[%s1 + $0x30] sm:$0xff]
  %v38 = vld [vmem:[%s1 + $0x38] sm:$0xff]
  %v39 = vld [vmem:[%s1 + $0x40] sm:$0xff]
  %v40 = vld [vmem:[%s1 + $0x48] sm:$0xff]
  %v41 = vld [vmem:[%s1 + $0x50] sm:$0xff]
  %v42 = vld [vmem:[%s1 + $0x58] sm:$0xff]
  %v43 = vld [vmem:[%s1 + $0x60] sm:$0xff]
  %v44 = vld [vmem:[%s1 + $0x68] sm:$0xff]
  %v45 = vld [vmem:[%s1 + $0x70] sm:$0xff]
  %v46 = vld [vmem:[%s1 + $0x78] sm:$0xff]
  %v47 = vld [vmem:[%s2] sm:$0x3]
  %v49 = vlaneseq
  %v50 = vshrl.u32 %v49, 7
  %v51 = vsub.s32 0, %v50
  %v52 = vrot.slane %v47, %v51
  %v53 = vlaneseq
  %v54 = vshrl.u32 %v53, 7
  %v55 = vsub.s32 1, %v54
  %v56 = vrot.slane %v47, %v55
  %v75 = vunpack.c.l.b16 %v15
  %v76 = vunpack.c.l.b16 %v16
  %v77 = vunpack.c.l.b16 %v17
  %v78 = vunpack.c.l.b16 %v18
  %v79 = vunpack.c.l.b16 %v19
  %v80 = vunpack.c.l.b16 %v20
  %v81 = vunpack.c.l.b16 %v21
  %v82 = vunpack.c.l.b16 %v22
  %v83 = vunpack.c.l.b16 %v23
  %v84 = vunpack.c.l.b16 %v24
  %v85 = vunpack.c.l.b16 %v25
  %v86 = vunpack.c.l.b16 %v26
  %v87 = vunpack.c.l.b16 %v27
  %v88 = vunpack.c.l.b16 %v28
  %v89 = vunpack.c.l.b16 %v29
  %v90 = vunpack.c.l.b16 %v30
  %v91 = vpack.c.b16 %v76, %v75
  %v92 = vpack.c.b16 %v78, %v77
  %v93 = vpack.c.b16 %v80, %v79
  %v94 = vpack.c.b16 %v82, %v81
  %v95 = vpack.c.b16 %v84, %v83
  %v96 = vpack.c.b16 %v86, %v85
  %v97 = vpack.c.b16 %v88, %v87
  %v98 = vpack.c.b16 %v90, %v89
  %v123 = vunpack.c.l.b16 %v31
  %v124 = vunpack.c.h.b16 %v31
  %v125 = vunpack.c.l.b16 %v32
  %v126 = vunpack.c.h.b16 %v32
  %v127 = vunpack.c.l.b16 %v33
  %v128 = vunpack.c.h.b16 %v33
  %v129 = vunpack.c.l.b16 %v34
  %v130 = vunpack.c.h.b16 %v34
  %v131 = vunpack.c.l.b16 %v35
  %v132 = vunpack.c.h.b16 %v35
  %v133 = vunpack.c.l.b16 %v36
  %v134 = vunpack.c.h.b16 %v36
  %v135 = vunpack.c.l.b16 %v37
  %v136 = vunpack.c.h.b16 %v37
  %v137 = vunpack.c.l.b16 %v38
  %v138 = vunpack.c.h.b16 %v38
  %v139 = vunpack.c.l.b16 %v39
  %v140 = vunpack.c.h.b16 %v39
  %v141 = vunpack.c.l.b16 %v40
  %v142 = vunpack.c.h.b16 %v40
  %v143 = vunpack.c.l.b16 %v41
  %v144 = vunpack.c.h.b16 %v41
  %v145 = vunpack.c.l.b16 %v42
  %v146 = vunpack.c.h.b16 %v42
  %v147 = vunpack.c.l.b16 %v43
  %v148 = vunpack.c.h.b16 %v43
  %v149 = vunpack.c.l.b16 %v44
  %v150 = vunpack.c.h.b16 %v44
  %v151 = vunpack.c.l.b16 %v45
  %v152 = vunpack.c.h.b16 %v45
  %v153 = vunpack.c.l.b16 %v46
  %v154 = vunpack.c.h.b16 %v46
  %v155 = vpack.c.b16 %v125, %v123
  %v156 = vpack.c.b16 %v126, %v124
  %v157 = vpack.c.b16 %v129, %v127
  %v158 = vpack.c.b16 %v130, %v128
  %v159 = vpack.c.b16 %v133, %v131
  %v160 = vpack.c.b16 %v134, %v132
  %v161 = vpack.c.b16 %v137, %v135
  %v162 = vpack.c.b16 %v138, %v136
  %v163 = vpack.c.b16 %v141, %v139
  %v164 = vpack.c.b16 %v142, %v140
  %v165 = vpack.c.b16 %v145, %v143
  %v166 = vpack.c.b16 %v146, %v144
  %v167 = vpack.c.b16 %v149, %v147
  %v168 = vpack.c.b16 %v150, %v148
  %v169 = vpack.c.b16 %v153, %v151
  %v170 = vpack.c.b16 %v154, %v152
  %187 = vmatprep.subr.bf16.mxu0 %v156
  %188 = vmatpush1.bf16.msra.mxu0 %v155
  %189 = vmatprep.subr.bf16.mxu0 %v158
  %190 = vmatpush1.bf16.msra.mxu0 %v157
  %191 = vmatprep.subr.bf16.mxu0 %v160
  %192 = vmatpush1.bf16.msra.mxu0 %v159
  %193 = vmatprep.subr.bf16.mxu0 %v162
  %194 = vmatpush1.bf16.msra.mxu0 %v161
  %195 = vmatprep.subr.bf16.mxu0 %v164
  %196 = vmatpush1.bf16.msra.mxu0 %v163
  %197 = vmatprep.subr.bf16.mxu0 %v166
  %198 = vmatpush1.bf16.msra.mxu0 %v165
  %199 = vmatprep.subr.bf16.mxu0 %v168
  %200 = vmatpush1.bf16.msra.mxu0 %v167
  %201 = vmatprep.subr.bf16.mxu0 %v170
  %202 = vmatpush1.bf16.msra.mxu0 %v169
  %203 = vmatprep.subr.bf16.mxu0 0
  %204 = vmatpush1.bf16.msra.mxu0 0
  %205 = vmatprep.subr.bf16.mxu0 0
  %206 = vmatpush1.bf16.msra.mxu0 0
  %207 = vmatprep.subr.bf16.mxu0 0
  %208 = vmatpush1.bf16.msra.mxu0 0
  %209 = vmatprep.subr.bf16.mxu0 0
  %210 = vmatpush1.bf16.msra.mxu0 0
  %211 = vmatprep.subr.bf16.mxu0 0
  %212 = vmatpush1.bf16.msra.mxu0 0
  %213 = vmatprep.subr.bf16.mxu0 0
  %214 = vmatpush1.bf16.msra.mxu0 0
  %215 = vmatprep.subr.bf16.mxu0 0
  %216 = vmatpush1.bf16.msra.mxu0 0
  %217 = vmatprep.subr.bf16.mxu0 0
  %218 = vmatpush1.bf16.msra.mxu0 0
  %219 = vmatprep.mubr.bf16.mxu0 0
  %220 = vmatmul.mubr.bf16.gmra.mrb[0].mxu0 %v91
  %v221 = vpop.f32.mrb[0].mxu0
  %v222 = vadd.f32 %v52, %v221
  %v223 = vpop.f32.mrb[0].mxu0
  %v224 = vadd.f32 %v56, %v223
  %v225 = vpop.f32.mrb[0].mxu0
  %v226 = vadd.f32 %v52, %v225
  %v227 = vpop.f32.mrb[0].mxu0
  %v228 = vadd.f32 %v56, %v227
  %229 = vmatprep.mubr.bf16.mxu0 0
  %230 = vmatmul.mubr.bf16.gmra.mrb[0].mxu0 %v92
  %v231 = vpop.f32.mrb[0].mxu0
  %v232 = vadd.f32 %v52, %v231
  %v233 = vpop.f32.mrb[0].mxu0
  %v234 = vadd.f32 %v56, %v233
  %v235 = vpop.f32.mrb[0].mxu0
  %v236 = vadd.f32 %v52, %v235
  %v237 = vpop.f32.mrb[0].mxu0
  %v238 = vadd.f32 %v56, %v237
  %239 = vmatprep.mubr.bf16.mxu0 0
  %240 = vmatmul.mubr.bf16.gmra.mrb[0].mxu0 %v93
  %v241 = vpop.f32.mrb[0].mxu0
  %v242 = vadd.f32 %v52, %v241
  %v243 = vpop.f32.mrb[0].mxu0
  %v244 = vadd.f32 %v56, %v243
  %v245 = vpop.f32.mrb[0].mxu0
  %v246 = vadd.f32 %v52, %v245
  %v247 = vpop.f32.mrb[0].mxu0
  %v248 = vadd.f32 %v56, %v247
  %249 = vmatprep.mubr.bf16.mxu0 0
  %250 = vmatmul.mubr.bf16.gmra.mrb[0].mxu0 %v94
  %v251 = vpop.f32.mrb[0].mxu0
  %v252 = vadd.f32 %v52, %v251
  %v253 = vpop.f32.mrb[0].mxu0
  %v254 = vadd.f32 %v56, %v253
  %v255 = vpop.f32.mrb[0].mxu0
  %v256 = vadd.f32 %v52, %v255
  %v257 = vpop.f32.mrb[0].mxu0
  %v258 = vadd.f32 %v56, %v257
  %259 = vmatprep.mubr.bf16.mxu0 0
  %260 = vmatmul.mubr.bf16.gmra.mrb[0].mxu0 %v95
  %v261 = vpop.f32.mrb[0].mxu0
  %v262 = vadd.f32 %v52, %v261
  %v263 = vpop.f32.mrb[0].mxu0
  %v264 = vadd.f32 %v56, %v263
  %v265 = vpop.f32.mrb[0].mxu0
  %v266 = vadd.f32 %v52, %v265
  %v267 = vpop.f32.mrb[0].mxu0
  %v268 = vadd.f32 %v56, %v267
  %269 = vmatprep.mubr.bf16.mxu0 0
  %270 = vmatmul.mubr.bf16.gmra.mrb[0].mxu0 %v96
  %v271 = vpop.f32.mrb[0].mxu0
  %v272 = vadd.f32 %v52, %v271
  %v273 = vpop.f32.mrb[0].mxu0
  %v274 = vadd.f32 %v56, %v273
  %v275 = vpop.f32.mrb[0].mxu0
  %v276 = vadd.f32 %v52, %v275
  %v277 = vpop.f32.mrb[0].mxu0
  %v278 = vadd.f32 %v56, %v277
  %279 = vmatprep.mubr.bf16.mxu0 0
  %280 = vmatmul.mubr.bf16.gmra.mrb[0].mxu0 %v97
  %v281 = vpop.f32.mrb[0].mxu0
  %v282 = vadd.f32 %v52, %v281
  %v283 = vpop.f32.mrb[0].mxu0
  %v284 = vadd.f32 %v56, %v283
  %v285 = vpop.f32.mrb[0].mxu0
  %v286 = vadd.f32 %v52, %v285
  %v287 = vpop.f32.mrb[0].mxu0
  %v288 = vadd.f32 %v56, %v287
  %289 = vmatprep.mubr.bf16.mxu0 0
  %290 = vmatmul.mubr.bf16.gmra.mrb[0].mxu0 %v98
  %v291 = vpop.f32.mrb[0].mxu0
  %v292 = vadd.f32 %v52, %v291
  %v293 = vpop.f32.mrb[0].mxu0
  %v294 = vadd.f32 %v56, %v293
  %v295 = vpop.f32.mrb[0].mxu0
  %v296 = vadd.f32 %v52, %v295
  %v297 = vpop.f32.mrb[0].mxu0
  %v298 = vadd.f32 %v56, %v297
  %299 = vdwg.mxu0
  %v300 = vpack.c.bf16 %v226, %v222
  %v301 = vpack.c.bf16 %v228, %v224
  %v302 = vpack.c.bf16 %v236, %v232
  %v303 = vpack.c.bf16 %v238, %v234
  %v304 = vpack.c.bf16 %v246, %v242
  %v305 = vpack.c.bf16 %v248, %v244
  %v306 = vpack.c.bf16 %v256, %v252
  %v307 = vpack.c.bf16 %v258, %v254
  %v308 = vpack.c.bf16 %v266, %v262
  %v309 = vpack.c.bf16 %v268, %v264
  %v310 = vpack.c.bf16 %v276, %v272
  %v311 = vpack.c.bf16 %v278, %v274
  %v312 = vpack.c.bf16 %v286, %v282
  %v313 = vpack.c.bf16 %v288, %v284
  %v314 = vpack.c.bf16 %v296, %v292
  %v315 = vpack.c.bf16 %v298, %v294
  %v332 = vunpack.c.l.b16 %v300
  %v333 = vunpack.c.l.b16 %v301
  %v334 = vunpack.c.h.b16 %v300
  %v335 = vunpack.c.h.b16 %v301
  %v336 = vunpack.c.l.b16 %v302
  %v337 = vunpack.c.l.b16 %v303
  %v338 = vunpack.c.h.b16 %v302
  %v339 = vunpack.c.h.b16 %v303
  %v340 = vunpack.c.l.b16 %v304
  %v341 = vunpack.c.l.b16 %v305
  %v342 = vunpack.c.h.b16 %v304
  %v343 = vunpack.c.h.b16 %v305
  %v344 = vunpack.c.l.b16 %v306
  %v345 = vunpack.c.l.b16 %v307
  %v346 = vunpack.c.h.b16 %v306
  %v347 = vunpack.c.h.b16 %v307
  %v348 = vunpack.c.l.b16 %v308
  %v349 = vunpack.c.l.b16 %v309
  %v350 = vunpack.c.h.b16 %v308
  %v351 = vunpack.c.h.b16 %v309
  %v352 = vunpack.c.l.b16 %v310
  %v353 = vunpack.c.l.b16 %v311
  %v354 = vunpack.c.h.b16 %v310
  %v355 = vunpack.c.h.b16 %v311
  %v356 = vunpack.c.l.b16 %v312
  %v357 = vunpack.c.l.b16 %v313
  %v358 = vunpack.c.h.b16 %v312
  %v359 = vunpack.c.h.b16 %v313
  %v360 = vunpack.c.l.b16 %v314
  %v361 = vunpack.c.l.b16 %v315
  %v362 = vunpack.c.h.b16 %v314
  %v363 = vunpack.c.h.b16 %v315
  %v364 = vpack.c.b16 %v333, %v332
  %v365 = vpack.c.b16 %v335, %v334
  %v366 = vpack.c.b16 %v337, %v336
  %v367 = vpack.c.b16 %v339, %v338
  %v368 = vpack.c.b16 %v341, %v340
  %v369 = vpack.c.b16 %v343, %v342
  %v370 = vpack.c.b16 %v345, %v344
  %v371 = vpack.c.b16 %v347, %v346
  %v372 = vpack.c.b16 %v349, %v348
  %v373 = vpack.c.b16 %v351, %v350
  %v374 = vpack.c.b16 %v353, %v352
  %v375 = vpack.c.b16 %v355, %v354
  %v376 = vpack.c.b16 %v357, %v356
  %v377 = vpack.c.b16 %v359, %v358
  %v378 = vpack.c.b16 %v361, %v360
  %v379 = vpack.c.b16 %v363, %v362
  %396 = vst [vmem:[%s3] sm:$0xff] %v364
  %397 = vst [vmem:[%s3 + $0x8] sm:$0xff] %v365
  %398 = vst [vmem:[%s3 + $0x10] sm:$0xff] %v366
  %399 = vst [vmem:[%s3 + $0x18] sm:$0xff] %v367
  %400 = vst [vmem:[%s3 + $0x20] sm:$0xff] %v368
  %401 = vst [vmem:[%s3 + $0x28] sm:$0xff] %v369
  %402 = vst [vmem:[%s3 + $0x30] sm:$0xff] %v370
  %403 = vst [vmem:[%s3 + $0x38] sm:$0xff] %v371
  %404 = vst [vmem:[%s3 + $0x40] sm:$0xff] %v372
  %405 = vst [vmem:[%s3 + $0x48] sm:$0xff] %v373
  %406 = vst [vmem:[%s3 + $0x50] sm:$0xff] %v374
  %407 = vst [vmem:[%s3 + $0x58] sm:$0xff] %v375
  %408 = vst [vmem:[%s3 + $0x60] sm:$0xff] %v376
  %409 = vst [vmem:[%s3 + $0x68] sm:$0xff] %v377
  %410 = vst [vmem:[%s3 + $0x70] sm:$0xff] %v378
  %411 = vst [vmem:[%s3 + $0x78] sm:$0xff] %v379
  // Predicated region
  $region14: #{resnet_forward.19} parent=0 // pred_check
    _
  $region15: #{resnet_forward.19} parent=0 // pred_check_branch
    %413 = sbr.rel (0) target = $region17
  $region16: #{resnet_forward.19} parent=0 // pred_region
    _
  $region17: #{resnet_forward.19} parent=0 // pred_fallthru
    _
  // Predicated region
  $region18: #{resnet_forward.19} parent=0 // pred_check
    _
  $region19: #{resnet_forward.19} parent=0 // pred_check_branch
    %415 = sbr.rel (0) target = $region21
  $region20: #{resnet_forward.19} parent=0 // pred_region
    _
  $region21: #{resnet_forward.19} parent=0 // pred_fallthru
    _

// kernel: resnet_forward.20
$region0: #{resnet_forward.20}
  #allocation0 [shape = 'u32[]', space=smem, size = 0x4, offset = 0x4, fixed_abs, tag = 'smem constant byte address 0x4 - core index']
  #allocation1 [shape = 'u32[144,128]{1,0:T(1,128)}', space=vmem, size = 0x12000, scoped, tag = 'internal scratch']
  %s0 = inlined_call_operand.vmem [shape: bf16[128,128], index: 0, kind: input, shape index: {}]
  %s1 = inlined_call_operand.vmem [shape: bf16[128,256], index: 1, kind: input, shape index: {}]
  %s2 = inlined_call_operand.vmem [shape: f32[1,256], index: 2, kind: input, shape index: {}]
  %s3 = inlined_call_operand.vmem [shape: bf16[128,256], index: 3, kind: input, shape index: {}]
  %s4 = inlined_call_operand.vmem [shape: bf16[128,256], index: 4, kind: output, shape index: {}]
  %s5 = sld [smem:[#allocation0]]
  $region26: #{resnet_forward.20} parent=0
    _
  %s7 = ssub.s32 1, %s5
  %s8 = scalar_select 0, %s7, %s5
  // Predicated region
  $region2: #{resnet_forward.20} parent=0 // pred_check
    _
  $region3: #{resnet_forward.20} parent=0 // pred_check_branch
    %10 = sbr.rel (0) target = $region5
  $region4: #{resnet_forward.20} parent=0 // pred_region
    _
  $region5: #{resnet_forward.20} parent=0 // pred_fallthru
    _
  // Predicated region
  $region6: #{resnet_forward.20} parent=0 // pred_check
    _
  $region7: #{resnet_forward.20} parent=0 // pred_check_branch
    %12 = sbr.rel (0) target = $region9
  $region8: #{resnet_forward.20} parent=0 // pred_region
    _
  $region9: #{resnet_forward.20} parent=0 // pred_fallthru
    _
  // Predicated region
  $region10: #{resnet_forward.20} parent=0 // pred_check
    _
  $region11: #{resnet_forward.20} parent=0 // pred_check_branch
    %14 = sbr.rel (0) target = $region13
  $region12: #{resnet_forward.20} parent=0 // pred_region
    _
  $region13: #{resnet_forward.20} parent=0 // pred_fallthru
    _
  // Predicated region
  $region14: #{resnet_forward.20} parent=0 // pred_check
    _
  $region15: #{resnet_forward.20} parent=0 // pred_check_branch
    %16 = sbr.rel (0) target = $region17
  $region16: #{resnet_forward.20} parent=0 // pred_region
    _
  $region17: #{resnet_forward.20} parent=0 // pred_fallthru
    _
  %v18 = vld [vmem:[%s0] sm:$0xf]
  %v19 = vld [vmem:[%s0 + $0x4] sm:$0xf]
  %v20 = vld [vmem:[%s0 + $0x8] sm:$0xf]
  %v21 = vld [vmem:[%s0 + $0xc] sm:$0xf]
  %v22 = vld [vmem:[%s0 + $0x10] sm:$0xf]
  %v23 = vld [vmem:[%s0 + $0x14] sm:$0xf]
  %v24 = vld [vmem:[%s0 + $0x18] sm:$0xf]
  %v25 = vld [vmem:[%s0 + $0x1c] sm:$0xf]
  %v26 = vld [vmem:[%s0 + $0x20] sm:$0xf]
  %v27 = vld [vmem:[%s0 + $0x24] sm:$0xf]
  %v28 = vld [vmem:[%s0 + $0x28] sm:$0xf]
  %v29 = vld [vmem:[%s0 + $0x2c] sm:$0xf]
  %v30 = vld [vmem:[%s0 + $0x30] sm:$0xf]
  %v31 = vld [vmem:[%s0 + $0x34] sm:$0xf]
  %v32 = vld [vmem:[%s0 + $0x38] sm:$0xf]
  %v33 = vld [vmem:[%s0 + $0x3c] sm:$0xf]
  %v34 = vld [vmem:[%s1] sm:$0xff]
  %v35 = vld [vmem:[%s1 + $0x8] sm:$0xff]
  %v36 = vld [vmem:[%s1 + $0x10] sm:$0xff]
  %v37 = vld [vmem:[%s1 + $0x18] sm:$0xff]
  %v38 = vld [vmem:[%s1 + $0x20] sm:$0xff]
  %v39 = vld [vmem:[%s1 + $0x28] sm:$0xff]
  %v40 = vld [vmem:[%s1 + $0x30] sm:$0xff]
  %v41 = vld [vmem:[%s1 + $0x38] sm:$0xff]
  %v42 = vld [vmem:[%s1 + $0x40] sm:$0xff]
  %v43 = vld [vmem:[%s1 + $0x48] sm:$0xff]
  %v44 = vld [vmem:[%s1 + $0x50] sm:$0xff]
  %v45 = vld [vmem:[%s1 + $0x58] sm:$0xff]
  %v46 = vld [vmem:[%s1 + $0x60] sm:$0xff]
  %v47 = vld [vmem:[%s1 + $0x68] sm:$0xff]
  %v48 = vld [vmem:[%s1 + $0x70] sm:$0xff]
  %v49 = vld [vmem:[%s1 + $0x78] sm:$0xff]
  %v50 = vld [vmem:[%s2] sm:$0x3]
  %v52 = vlaneseq
  %v53 = vshrl.u32 %v52, 7
  %v54 = vsub.s32 0, %v53
  %v55 = vrot.slane %v50, %v54
  %v56 = vlaneseq
  %v57 = vshrl.u32 %v56, 7
  %v58 = vsub.s32 1, %v57
  %v59 = vrot.slane %v50, %v58
  %v78 = vunpack.c.l.b16 %v18
  %v79 = vunpack.c.l.b16 %v19
  %v80 = vunpack.c.l.b16 %v20
  %v81 = vunpack.c.l.b16 %v21
  %v82 = vunpack.c.l.b16 %v22
  %v83 = vunpack.c.l.b16 %v23
  %v84 = vunpack.c.l.b16 %v24
  %v85 = vunpack.c.l.b16 %v25
  %v86 = vunpack.c.l.b16 %v26
  %v87 = vunpack.c.l.b16 %v27
  %v88 = vunpack.c.l.b16 %v28
  %v89 = vunpack.c.l.b16 %v29
  %v90 = vunpack.c.l.b16 %v30
  %v91 = vunpack.c.l.b16 %v31
  %v92 = vunpack.c.l.b16 %v32
  %v93 = vunpack.c.l.b16 %v33
  %v94 = vpack.c.b16 %v79, %v78
  %v95 = vpack.c.b16 %v81, %v80
  %v96 = vpack.c.b16 %v83, %v82
  %v97 = vpack.c.b16 %v85, %v84
  %v98 = vpack.c.b16 %v87, %v86
  %v99 = vpack.c.b16 %v89, %v88
  %v100 = vpack.c.b16 %v91, %v90
  %v101 = vpack.c.b16 %v93, %v92
  %v126 = vunpack.c.l.b16 %v34
  %v127 = vunpack.c.h.b16 %v34
  %v128 = vunpack.c.l.b16 %v35
  %v129 = vunpack.c.h.b16 %v35
  %v130 = vunpack.c.l.b16 %v36
  %v131 = vunpack.c.h.b16 %v36
  %v132 = vunpack.c.l.b16 %v37
  %v133 = vunpack.c.h.b16 %v37
  %v134 = vunpack.c.l.b16 %v38
  %v135 = vunpack.c.h.b16 %v38
  %v136 = vunpack.c.l.b16 %v39
  %v137 = vunpack.c.h.b16 %v39
  %v138 = vunpack.c.l.b16 %v40
  %v139 = vunpack.c.h.b16 %v40
  %v140 = vunpack.c.l.b16 %v41
  %v141 = vunpack.c.h.b16 %v41
  %v142 = vunpack.c.l.b16 %v42
  %v143 = vunpack.c.h.b16 %v42
  %v144 = vunpack.c.l.b16 %v43
  %v145 = vunpack.c.h.b16 %v43
  %v146 = vunpack.c.l.b16 %v44
  %v147 = vunpack.c.h.b16 %v44
  %v148 = vunpack.c.l.b16 %v45
  %v149 = vunpack.c.h.b16 %v45
  %v150 = vunpack.c.l.b16 %v46
  %v151 = vunpack.c.h.b16 %v46
  %v152 = vunpack.c.l.b16 %v47
  %v153 = vunpack.c.h.b16 %v47
  %v154 = vunpack.c.l.b16 %v48
  %v155 = vunpack.c.h.b16 %v48
  %v156 = vunpack.c.l.b16 %v49
  %v157 = vunpack.c.h.b16 %v49
  %v158 = vpack.c.b16 %v128, %v126
  %v159 = vpack.c.b16 %v129, %v127
  %v160 = vpack.c.b16 %v132, %v130
  %v161 = vpack.c.b16 %v133, %v131
  %v162 = vpack.c.b16 %v136, %v134
  %v163 = vpack.c.b16 %v137, %v135
  %v164 = vpack.c.b16 %v140, %v138
  %v165 = vpack.c.b16 %v141, %v139
  %v166 = vpack.c.b16 %v144, %v142
  %v167 = vpack.c.b16 %v145, %v143
  %v168 = vpack.c.b16 %v148, %v146
  %v169 = vpack.c.b16 %v149, %v147
  %v170 = vpack.c.b16 %v152, %v150
  %v171 = vpack.c.b16 %v153, %v151
  %v172 = vpack.c.b16 %v156, %v154
  %v173 = vpack.c.b16 %v157, %v155
  %190 = vmatprep.subr.bf16.mxu0 %v159
  %191 = vmatpush1.bf16.msra.mxu0 %v158
  %192 = vmatprep.subr.bf16.mxu0 %v161
  %193 = vmatpush1.bf16.msra.mxu0 %v160
  %194 = vmatprep.subr.bf16.mxu0 %v163
  %195 = vmatpush1.bf16.msra.mxu0 %v162
  %196 = vmatprep.subr.bf16.mxu0 %v165
  %197 = vmatpush1.bf16.msra.mxu0 %v164
  %198 = vmatprep.subr.bf16.mxu0 %v167
  %199 = vmatpush1.bf16.msra.mxu0 %v166
  %200 = vmatprep.subr.bf16.mxu0 %v169
  %201 = vmatpush1.bf16.msra.mxu0 %v168
  %202 = vmatprep.subr.bf16.mxu0 %v171
  %203 = vmatpush1.bf16.msra.mxu0 %v170
  %204 = vmatprep.subr.bf16.mxu0 %v173
  %205 = vmatpush1.bf16.msra.mxu0 %v172
  %206 = vmatprep.subr.bf16.mxu0 0
  %207 = vmatpush1.bf16.msra.mxu0 0
  %208 = vmatprep.subr.bf16.mxu0 0
  %209 = vmatpush1.bf16.msra.mxu0 0
  %210 = vmatprep.subr.bf16.mxu0 0
  %211 = vmatpush1.bf16.msra.mxu0 0
  %212 = vmatprep.subr.bf16.mxu0 0
  %213 = vmatpush1.bf16.msra.mxu0 0
  %214 = vmatprep.subr.bf16.mxu0 0
  %215 = vmatpush1.bf16.msra.mxu0 0
  %216 = vmatprep.subr.bf16.mxu0 0
  %217 = vmatpush1.bf16.msra.mxu0 0
  %218 = vmatprep.subr.bf16.mxu0 0
  %219 = vmatpush1.bf16.msra.mxu0 0
  %220 = vmatprep.subr.bf16.mxu0 0
  %221 = vmatpush1.bf16.msra.mxu0 0
  %222 = vmatprep.mubr.bf16.mxu0 0
  %223 = vmatmul.mubr.bf16.gmra.mrb[0].mxu0 %v94
  %v224 = vpop.f32.mrb[0].mxu0
  %v225 = vadd.f32 %v55, %v224
  %v226 = vpop.f32.mrb[0].mxu0
  %v227 = vadd.f32 %v59, %v226
  %v228 = vpop.f32.mrb[0].mxu0
  %v229 = vadd.f32 %v55, %v228
  %v230 = vpop.f32.mrb[0].mxu0
  %v231 = vadd.f32 %v59, %v230
  %232 = vmatprep.mubr.bf16.mxu0 0
  %233 = vmatmul.mubr.bf16.gmra.mrb[0].mxu0 %v95
  %v234 = vpop.f32.mrb[0].mxu0
  %v235 = vadd.f32 %v55, %v234
  %v236 = vpop.f32.mrb[0].mxu0
  %v237 = vadd.f32 %v59, %v236
  %v238 = vpop.f32.mrb[0].mxu0
  %v239 = vadd.f32 %v55, %v238
  %v240 = vpop.f32.mrb[0].mxu0
  %v241 = vadd.f32 %v59, %v240
  %242 = vmatprep.mubr.bf16.mxu0 0
  %243 = vmatmul.mubr.bf16.gmra.mrb[0].mxu0 %v96
  %v244 = vpop.f32.mrb[0].mxu0
  %v245 = vadd.f32 %v55, %v244
  %v246 = vpop.f32.mrb[0].mxu0
  %v247 = vadd.f32 %v59, %v246
  %v248 = vpop.f32.mrb[0].mxu0
  %v249 = vadd.f32 %v55, %v248
  %v250 = vpop.f32.mrb[0].mxu0
  %v251 = vadd.f32 %v59, %v250
  %252 = vmatprep.mubr.bf16.mxu0 0
  %253 = vmatmul.mubr.bf16.gmra.mrb[0].mxu0 %v97
  %v254 = vpop.f32.mrb[0].mxu0
  %v255 = vadd.f32 %v55, %v254
  %v256 = vpop.f32.mrb[0].mxu0
  %v257 = vadd.f32 %v59, %v256
  %v258 = vpop.f32.mrb[0].mxu0
  %v259 = vadd.f32 %v55, %v258
  %v260 = vpop.f32.mrb[0].mxu0
  %v261 = vadd.f32 %v59, %v260
  %262 = vmatprep.mubr.bf16.mxu0 0
  %263 = vmatmul.mubr.bf16.gmra.mrb[0].mxu0 %v98
  %v264 = vpop.f32.mrb[0].mxu0
  %v265 = vadd.f32 %v55, %v264
  %v266 = vpop.f32.mrb[0].mxu0
  %v267 = vadd.f32 %v59, %v266
  %v268 = vpop.f32.mrb[0].mxu0
  %v269 = vadd.f32 %v55, %v268
  %v270 = vpop.f32.mrb[0].mxu0
  %v271 = vadd.f32 %v59, %v270
  %272 = vmatprep.mubr.bf16.mxu0 0
  %273 = vmatmul.mubr.bf16.gmra.mrb[0].mxu0 %v99
  %v274 = vpop.f32.mrb[0].mxu0
  %v275 = vadd.f32 %v55, %v274
  %v276 = vpop.f32.mrb[0].mxu0
  %v277 = vadd.f32 %v59, %v276
  %v278 = vpop.f32.mrb[0].mxu0
  %v279 = vadd.f32 %v55, %v278
  %v280 = vpop.f32.mrb[0].mxu0
  %v281 = vadd.f32 %v59, %v280
  %282 = vmatprep.mubr.bf16.mxu0 0
  %283 = vmatmul.mubr.bf16.gmra.mrb[0].mxu0 %v100
  %v284 = vpop.f32.mrb[0].mxu0
  %v285 = vadd.f32 %v55, %v284
  %v286 = vpop.f32.mrb[0].mxu0
  %v287 = vadd.f32 %v59, %v286
  %v288 = vpop.f32.mrb[0].mxu0
  %v289 = vadd.f32 %v55, %v288
  %v290 = vpop.f32.mrb[0].mxu0
  %v291 = vadd.f32 %v59, %v290
  %292 = vmatprep.mubr.bf16.mxu0 0
  %293 = vmatmul.mubr.bf16.gmra.mrb[0].mxu0 %v101
  %v294 = vpop.f32.mrb[0].mxu0
  %v295 = vadd.f32 %v55, %v294
  %v296 = vpop.f32.mrb[0].mxu0
  %v297 = vadd.f32 %v59, %v296
  %v298 = vpop.f32.mrb[0].mxu0
  %v299 = vadd.f32 %v55, %v298
  %v300 = vpop.f32.mrb[0].mxu0
  %v301 = vadd.f32 %v59, %v300
  %302 = vdwg.mxu0
  %v303 = vld [vmem:[%s3] sm:$0xff]
  %v304 = vld [vmem:[%s3 + $0x8] sm:$0xff]
  %v305 = vld [vmem:[%s3 + $0x10] sm:$0xff]
  %v306 = vld [vmem:[%s3 + $0x18] sm:$0xff]
  %v307 = vld [vmem:[%s3 + $0x20] sm:$0xff]
  %v308 = vld [vmem:[%s3 + $0x28] sm:$0xff]
  %v309 = vld [vmem:[%s3 + $0x30] sm:$0xff]
  %v310 = vld [vmem:[%s3 + $0x38] sm:$0xff]
  %v311 = vld [vmem:[%s3 + $0x40] sm:$0xff]
  %v312 = vld [vmem:[%s3 + $0x48] sm:$0xff]
  %v313 = vld [vmem:[%s3 + $0x50] sm:$0xff]
  %v314 = vld [vmem:[%s3 + $0x58] sm:$0xff]
  %v315 = vld [vmem:[%s3 + $0x60] sm:$0xff]
  %v316 = vld [vmem:[%s3 + $0x68] sm:$0xff]
  %v317 = vld [vmem:[%s3 + $0x70] sm:$0xff]
  %v318 = vld [vmem:[%s3 + $0x78] sm:$0xff]
  %v319 = vunpack.c.l.bf16 %v303
  %v320 = vunpack.c.h.bf16 %v303
  %v321 = vunpack.c.l.bf16 %v304
  %v322 = vunpack.c.h.bf16 %v304
  %v323 = vunpack.c.l.bf16 %v305
  %v324 = vunpack.c.h.bf16 %v305
  %v325 = vunpack.c.l.bf16 %v306
  %v326 = vunpack.c.h.bf16 %v306
  %v327 = vunpack.c.l.bf16 %v307
  %v328 = vunpack.c.h.bf16 %v307
  %v329 = vunpack.c.l.bf16 %v308
  %v330 = vunpack.c.h.bf16 %v308
  %v331 = vunpack.c.l.bf16 %v309
  %v332 = vunpack.c.h.bf16 %v309
  %v333 = vunpack.c.l.bf16 %v310
  %v334 = vunpack.c.h.bf16 %v310
  %v335 = vunpack.c.l.bf16 %v311
  %v336 = vunpack.c.h.bf16 %v311
  %v337 = vunpack.c.l.bf16 %v312
  %v338 = vunpack.c.h.bf16 %v312
  %v339 = vunpack.c.l.bf16 %v313
  %v340 = vunpack.c.h.bf16 %v313
  %v341 = vunpack.c.l.bf16 %v314
  %v342 = vunpack.c.h.bf16 %v314
  %v343 = vunpack.c.l.bf16 %v315
  %v344 = vunpack.c.h.bf16 %v315
  %v345 = vunpack.c.l.bf16 %v316
  %v346 = vunpack.c.h.bf16 %v316
  %v347 = vunpack.c.l.bf16 %v317
  %v348 = vunpack.c.h.bf16 %v317
  %v349 = vunpack.c.l.bf16 %v318
  %v350 = vunpack.c.h.bf16 %v318
  %v351 = vadd.f32 %v225, %v319
  %v352 = vadd.f32 %v227, %v320
  %v353 = vadd.f32 %v229, %v321
  %v354 = vadd.f32 %v231, %v322
  %v355 = vadd.f32 %v235, %v323
  %v356 = vadd.f32 %v237, %v324
  %v357 = vadd.f32 %v239, %v325
  %v358 = vadd.f32 %v241, %v326
  %v359 = vadd.f32 %v245, %v327
  %v360 = vadd.f32 %v247, %v328
  %v361 = vadd.f32 %v249, %v329
  %v362 = vadd.f32 %v251, %v330
  %v363 = vadd.f32 %v255, %v331
  %v364 = vadd.f32 %v257, %v332
  %v365 = vadd.f32 %v259, %v333
  %v366 = vadd.f32 %v261, %v334
  %v367 = vadd.f32 %v265, %v335
  %v368 = vadd.f32 %v267, %v336
  %v369 = vadd.f32 %v269, %v337
  %v370 = vadd.f32 %v271, %v338
  %v371 = vadd.f32 %v275, %v339
  %v372 = vadd.f32 %v277, %v340
  %v373 = vadd.f32 %v279, %v341
  %v374 = vadd.f32 %v281, %v342
  %v375 = vadd.f32 %v285, %v343
  %v376 = vadd.f32 %v287, %v344
  %v377 = vadd.f32 %v289, %v345
  %v378 = vadd.f32 %v291, %v346
  %v379 = vadd.f32 %v295, %v347
  %v380 = vadd.f32 %v297, %v348
  %v381 = vadd.f32 %v299, %v349
  %v382 = vadd.f32 %v301, %v350
  %v383 = vmax.f32 %v351, 0.0
  %v384 = vmax.f32 %v352, 0.0
  %v385 = vmax.f32 %v353, 0.0
  %v386 = vmax.f32 %v354, 0.0
  %v387 = vmax.f32 %v355, 0.0
  %v388 = vmax.f32 %v356, 0.0
  %v389 = vmax.f32 %v357, 0.0
  %v390 = vmax.f32 %v358, 0.0
  %v391 = vmax.f32 %v359, 0.0
  %v392 = vmax.f32 %v360, 0.0
  %v393 = vmax.f32 %v361, 0.0
  %v394 = vmax.f32 %v362, 0.0
  %v395 = vmax.f32 %v363, 0.0
  %v396 = vmax.f32 %v364, 0.0
  %v397 = vmax.f32 %v365, 0.0
  %v398 = vmax.f32 %v366, 0.0
  %v399 = vmax.f32 %v367, 0.0
  %v400 = vmax.f32 %v368, 0.0
  %v401 = vmax.f32 %v369, 0.0
  %v402 = vmax.f32 %v370, 0.0
  %v403 = vmax.f32 %v371, 0.0
  %v404 = vmax.f32 %v372, 0.0
  %v405 = vmax.f32 %v373, 0.0
  %v406 = vmax.f32 %v374, 0.0
  %v407 = vmax.f32 %v375, 0.0
  %v408 = vmax.f32 %v376, 0.0
  %v409 = vmax.f32 %v377, 0.0
  %v410 = vmax.f32 %v378, 0.0
  %v411 = vmax.f32 %v379, 0.0
  %v412 = vmax.f32 %v380, 0.0
  %v413 = vmax.f32 %v381, 0.0
  %v414 = vmax.f32 %v382, 0.0
  %v415 = vpack.c.bf16 %v385, %v383
  %v416 = vpack.c.bf16 %v386, %v384
  %v417 = vpack.c.bf16 %v389, %v387
  %v418 = vpack.c.bf16 %v390, %v388
  %v419 = vpack.c.bf16 %v393, %v391
  %v420 = vpack.c.bf16 %v394, %v392
  %v421 = vpack.c.bf16 %v397, %v395
  %v422 = vpack.c.bf16 %v398, %v396
  %v423 = vpack.c.bf16 %v401, %v399
  %v424 = vpack.c.bf16 %v402, %v400
  %v425 = vpack.c.bf16 %v405, %v403
  %v426 = vpack.c.bf16 %v406, %v404
  %v427 = vpack.c.bf16 %v409, %v407
  %v428 = vpack.c.bf16 %v410, %v408
  %v429 = vpack.c.bf16 %v413, %v411
  %v430 = vpack.c.bf16 %v414, %v412
  %v447 = vunpack.c.l.b16 %v415
  %v448 = vunpack.c.l.b16 %v416
  %v449 = vunpack.c.h.b16 %v415
  %v450 = vunpack.c.h.b16 %v416
  %v451 = vunpack.c.l.b16 %v417
  %v452 = vunpack.c.l.b16 %v418
  %v453 = vunpack.c.h.b16 %v417
  %v454 = vunpack.c.h.b16 %v418
  %v455 = vunpack.c.l.b16 %v419
  %v456 = vunpack.c.l.b16 %v420
  %v457 = vunpack.c.h.b16 %v419
  %v458 = vunpack.c.h.b16 %v420
  %v459 = vunpack.c.l.b16 %v421
  %v460 = vunpack.c.l.b16 %v422
  %v461 = vunpack.c.h.b16 %v421
  %v462 = vunpack.c.h.b16 %v422
  %v463 = vunpack.c.l.b16 %v423
  %v464 = vunpack.c.l.b16 %v424
  %v465 = vunpack.c.h.b16 %v423
  %v466 = vunpack.c.h.b16 %v424
  %v467 = vunpack.c.l.b16 %v425
  %v468 = vunpack.c.l.b16 %v426
  %v469 = vunpack.c.h.b16 %v425
  %v470 = vunpack.c.h.b16 %v426
  %v471 = vunpack.c.l.b16 %v427
  %v472 = vunpack.c.l.b16 %v428
  %v473 = vunpack.c.h.b16 %v427
  %v474 = vunpack.c.h.b16 %v428
  %v475 = vunpack.c.l.b16 %v429
  %v476 = vunpack.c.l.b16 %v430
  %v477 = vunpack.c.h.b16 %v429
  %v478 = vunpack.c.h.b16 %v430
  %v479 = vpack.c.b16 %v448, %v447
  %v480 = vpack.c.b16 %v450, %v449
  %v481 = vpack.c.b16 %v452, %v451
  %v482 = vpack.c.b16 %v454, %v453
  %v483 = vpack.c.b16 %v456, %v455
  %v484 = vpack.c.b16 %v458, %v457
  %v485 = vpack.c.b16 %v460, %v459
  %v486 = vpack.c.b16 %v462, %v461
  %v487 = vpack.c.b16 %v464, %v463
  %v488 = vpack.c.b16 %v466, %v465
  %v489 = vpack.c.b16 %v468, %v467
  %v490 = vpack.c.b16 %v470, %v469
  %v491 = vpack.c.b16 %v472, %v471
  %v492 = vpack.c.b16 %v474, %v473
  %v493 = vpack.c.b16 %v476, %v475
  %v494 = vpack.c.b16 %v478, %v477
  %511 = vst [vmem:[%s4] sm:$0xff] %v479
  %512 = vst [vmem:[%s4 + $0x8] sm:$0xff] %v480
  %513 = vst [vmem:[%s4 + $0x10] sm:$0xff] %v481
  %514 = vst [vmem:[%s4 + $0x18] sm:$0xff] %v482
  %515 = vst [vmem:[%s4 + $0x20] sm:$0xff] %v483
  %516 = vst [vmem:[%s4 + $0x28] sm:$0xff] %v484
  %517 = vst [vmem:[%s4 + $0x30] sm:$0xff] %v485
  %518 = vst [vmem:[%s4 + $0x38] sm:$0xff] %v486
  %519 = vst [vmem:[%s4 + $0x40] sm:$0xff] %v487
  %520 = vst [vmem:[%s4 + $0x48] sm:$0xff] %v488
  %521 = vst [vmem:[%s4 + $0x50] sm:$0xff] %v489
  %522 = vst [vmem:[%s4 + $0x58] sm:$0xff] %v490
  %523 = vst [vmem:[%s4 + $0x60] sm:$0xff] %v491
  %524 = vst [vmem:[%s4 + $0x68] sm:$0xff] %v492
  %525 = vst [vmem:[%s4 + $0x70] sm:$0xff] %v493
  %526 = vst [vmem:[%s4 + $0x78] sm:$0xff] %v494
  // Predicated region
  $region18: #{resnet_forward.20} parent=0 // pred_check
    _
  $region19: #{resnet_forward.20} parent=0 // pred_check_branch
    %528 = sbr.rel (0) target = $region21
  $region20: #{resnet_forward.20} parent=0 // pred_region
    _
  $region21: #{resnet_forward.20} parent=0 // pred_fallthru
    _
  // Predicated region
  $region22: #{resnet_forward.20} parent=0 // pred_check
    _
  $region23: #{resnet_forward.20} parent=0 // pred_check_branch
    %530 = sbr.rel (0) target = $region25
  $region24: #{resnet_forward.20} parent=0 // pred_region
    _
  $region25: #{resnet_forward.20} parent=0 // pred_fallthru
    _

// kernel: resnet_forward.21
$region0: #{resnet_forward.21}
  #allocation0 [shape = 'u32[]', space=smem, size = 0x4, offset = 0x4, fixed_abs, tag = 'smem constant byte address 0x4 - core index']
  #allocation1 [shape = 'u32[144,128]{1,0:T(1,128)}', space=vmem, size = 0x12000, scoped, tag = 'internal scratch']
  %s0 = inlined_call_operand.vmem [shape: bf16[128,256], index: 0, kind: input, shape index: {}]
  %s1 = inlined_call_operand.vmem [shape: bf16[256,128], index: 1, kind: input, shape index: {}]
  %s2 = inlined_call_operand.vmem [shape: f32[1,128], index: 2, kind: input, shape index: {}]
  %s3 = inlined_call_operand.vmem [shape: bf16[128,128], index: 3, kind: output, shape index: {}]
  %s4 = sld [smem:[#allocation0]]
  $region22: #{resnet_forward.21} parent=0
    _
  %s6 = ssub.s32 1, %s4
  %s7 = scalar_select 0, %s6, %s4
  // Predicated region
  $region2: #{resnet_forward.21} parent=0 // pred_check
    _
  $region3: #{resnet_forward.21} parent=0 // pred_check_branch
    %9 = sbr.rel (0) target = $region5
  $region4: #{resnet_forward.21} parent=0 // pred_region
    _
  $region5: #{resnet_forward.21} parent=0 // pred_fallthru
    _
  // Predicated region
  $region6: #{resnet_forward.21} parent=0 // pred_check
    _
  $region7: #{resnet_forward.21} parent=0 // pred_check_branch
    %11 = sbr.rel (0) target = $region9
  $region8: #{resnet_forward.21} parent=0 // pred_region
    _
  $region9: #{resnet_forward.21} parent=0 // pred_fallthru
    _
  // Predicated region
  $region10: #{resnet_forward.21} parent=0 // pred_check
    _
  $region11: #{resnet_forward.21} parent=0 // pred_check_branch
    %13 = sbr.rel (0) target = $region13
  $region12: #{resnet_forward.21} parent=0 // pred_region
    _
  $region13: #{resnet_forward.21} parent=0 // pred_fallthru
    _
  %v15 = vld [vmem:[%s0] sm:$0xff]
  %v16 = vld [vmem:[%s0 + $0x8] sm:$0xff]
  %v17 = vld [vmem:[%s0 + $0x10] sm:$0xff]
  %v18 = vld [vmem:[%s0 + $0x18] sm:$0xff]
  %v19 = vld [vmem:[%s0 + $0x20] sm:$0xff]
  %v20 = vld [vmem:[%s0 + $0x28] sm:$0xff]
  %v21 = vld [vmem:[%s0 + $0x30] sm:$0xff]
  %v22 = vld [vmem:[%s0 + $0x38] sm:$0xff]
  %v23 = vld [vmem:[%s0 + $0x40] sm:$0xff]
  %v24 = vld [vmem:[%s0 + $0x48] sm:$0xff]
  %v25 = vld [vmem:[%s0 + $0x50] sm:$0xff]
  %v26 = vld [vmem:[%s0 + $0x58] sm:$0xff]
  %v27 = vld [vmem:[%s0 + $0x60] sm:$0xff]
  %v28 = vld [vmem:[%s0 + $0x68] sm:$0xff]
  %v29 = vld [vmem:[%s0 + $0x70] sm:$0xff]
  %v30 = vld [vmem:[%s0 + $0x78] sm:$0xff]
  %v31 = vld [vmem:[%s1] sm:$0xf]
  %v32 = vld [vmem:[%s1 + $0x4] sm:$0xf]
  %v33 = vld [vmem:[%s1 + $0x8] sm:$0xf]
  %v34 = vld [vmem:[%s1 + $0xc] sm:$0xf]
  %v35 = vld [vmem:[%s1 + $0x10] sm:$0xf]
  %v36 = vld [vmem:[%s1 + $0x14] sm:$0xf]
  %v37 = vld [vmem:[%s1 + $0x18] sm:$0xf]
  %v38 = vld [vmem:[%s1 + $0x1c] sm:$0xf]
  %v39 = vld [vmem:[%s1 + $0x20] sm:$0xf]
  %v40 = vld [vmem:[%s1 + $0x24] sm:$0xf]
  %v41 = vld [vmem:[%s1 + $0x28] sm:$0xf]
  %v42 = vld [vmem:[%s1 + $0x2c] sm:$0xf]
  %v43 = vld [vmem:[%s1 + $0x30] sm:$0xf]
  %v44 = vld [vmem:[%s1 + $0x34] sm:$0xf]
  %v45 = vld [vmem:[%s1 + $0x38] sm:$0xf]
  %v46 = vld [vmem:[%s1 + $0x3c] sm:$0xf]
  %v47 = vld [vmem:[%s1 + $0x40] sm:$0xf]
  %v48 = vld [vmem:[%s1 + $0x44] sm:$0xf]
  %v49 = vld [vmem:[%s1 + $0x48] sm:$0xf]
  %v50 = vld [vmem:[%s1 + $0x4c] sm:$0xf]
  %v51 = vld [vmem:[%s1 + $0x50] sm:$0xf]
  %v52 = vld [vmem:[%s1 + $0x54] sm:$0xf]
  %v53 = vld [vmem:[%s1 + $0x58] sm:$0xf]
  %v54 = vld [vmem:[%s1 + $0x5c] sm:$0xf]
  %v55 = vld [vmem:[%s1 + $0x60] sm:$0xf]
  %v56 = vld [vmem:[%s1 + $0x64] sm:$0xf]
  %v57 = vld [vmem:[%s1 + $0x68] sm:$0xf]
  %v58 = vld [vmem:[%s1 + $0x6c] sm:$0xf]
  %v59 = vld [vmem:[%s1 + $0x70] sm:$0xf]
  %v60 = vld [vmem:[%s1 + $0x74] sm:$0xf]
  %v61 = vld [vmem:[%s1 + $0x78] sm:$0xf]
  %v62 = vld [vmem:[%s1 + $0x7c] sm:$0xf]
  %v63 = vld [vmem:[%s2] sm:$0x1]
  %v65 = vlaneseq
  %v66 = vshrl.u32 %v65, 7
  %v67 = vsub.s32 0, %v66
  %v68 = vrot.slane %v63, %v67
  %v86 = vunpack.c.l.b16 %v15
  %v87 = vunpack.c.h.b16 %v15
  %v88 = vunpack.c.l.b16 %v16
  %v89 = vunpack.c.h.b16 %v16
  %v90 = vunpack.c.l.b16 %v17
  %v91 = vunpack.c.h.b16 %v17
  %v92 = vunpack.c.l.b16 %v18
  %v93 = vunpack.c.h.b16 %v18
  %v94 = vunpack.c.l.b16 %v19
  %v95 = vunpack.c.h.b16 %v19
  %v96 = vunpack.c.l.b16 %v20
  %v97 = vunpack.c.h.b16 %v20
  %v98 = vunpack.c.l.b16 %v21
  %v99 = vunpack.c.h.b16 %v21
  %v100 = vunpack.c.l.b16 %v22
  %v101 = vunpack.c.h.b16 %v22
  %v102 = vunpack.c.l.b16 %v23
  %v103 = vunpack.c.h.b16 %v23
  %v104 = vunpack.c.l.b16 %v24
  %v105 = vunpack.c.h.b16 %v24
  %v106 = vunpack.c.l.b16 %v25
  %v107 = vunpack.c.h.b16 %v25
  %v108 = vunpack.c.l.b16 %v26
  %v109 = vunpack.c.h.b16 %v26
  %v110 = vunpack.c.l.b16 %v27
  %v111 = vunpack.c.h.b16 %v27
  %v112 = vunpack.c.l.b16 %v28
  %v113 = vunpack.c.h.b16 %v28
  %v114 = vunpack.c.l.b16 %v29
  %v115 = vunpack.c.h.b16 %v29
  %v116 = vunpack.c.l.b16 %v30
  %v117 = vunpack.c.h.b16 %v30
  %v118 = vpack.c.b16 %v88, %v86
  %v119 = vpack.c.b16 %v89, %v87
  %v120 = vpack.c.b16 %v92, %v90
  %v121 = vpack.c.b16 %v93, %v91
  %v122 = vpack.c.b16 %v96, %v94
  %v123 = vpack.c.b16 %v97, %v95
  %v124 = vpack.c.b16 %v100, %v98
  %v125 = vpack.c.b16 %v101, %v99
  %v126 = vpack.c.b16 %v104, %v102
  %v127 = vpack.c.b16 %v105, %v103
  %v128 = vpack.c.b16 %v108, %v106
  %v129 = vpack.c.b16 %v109, %v107
  %v130 = vpack.c.b16 %v112, %v110
  %v131 = vpack.c.b16 %v113, %v111
  %v132 = vpack.c.b16 %v116, %v114
  %v133 = vpack.c.b16 %v117, %v115
  %v182 = vunpack.c.l.b16 %v31
  %v183 = vunpack.c.l.b16 %v32
  %v184 = vunpack.c.l.b16 %v33
  %v185 = vunpack.c.l.b16 %v34
  %v186 = vunpack.c.l.b16 %v35
  %v187 = vunpack.c.l.b16 %v36
  %v188 = vunpack.c.l.b16 %v37
  %v189 = vunpack.c.l.b16 %v38
  %v190 = vunpack.c.l.b16 %v39
  %v191 = vunpack.c.l.b16 %v40
  %v192 = vunpack.c.l.b16 %v41
  %v193 = vunpack.c.l.b16 %v42
  %v194 = vunpack.c.l.b16 %v43
  %v195 = vunpack.c.l.b16 %v44
  %v196 = vunpack.c.l.b16 %v45
  %v197 = vunpack.c.l.b16 %v46
  %v198 = vunpack.c.l.b16 %v47
  %v199 = vunpack.c.l.b16 %v48
  %v200 = vunpack.c.l.b16 %v49
  %v201 = vunpack.c.l.b16 %v50
  %v202 = vunpack.c.l.b16 %v51
  %v203 = vunpack.c.l.b16 %v52
  %v204 = vunpack.c.l.b16 %v53
  %v205 = vunpack.c.l.b16 %v54
  %v206 = vunpack.c.l.b16 %v55
  %v207 = vunpack.c.l.b16 %v56
  %v208 = vunpack.c.l.b16 %v57
  %v209 = vunpack.c.l.b16 %v58
  %v210 = vunpack.c.l.b16 %v59
  %v211 = vunpack.c.l.b16 %v60
  %v212 = vunpack.c.l.b16 %v61
  %v213 = vunpack.c.l.b16 %v62
  %v214 = vpack.c.b16 %v183, %v182
  %v215 = vpack.c.b16 %v185, %v184
  %v216 = vpack.c.b16 %v187, %v186
  %v217 = vpack.c.b16 %v189, %v188
  %v218 = vpack.c.b16 %v191, %v190
  %v219 = vpack.c.b16 %v193, %v192
  %v220 = vpack.c.b16 %v195, %v194
  %v221 = vpack.c.b16 %v197, %v196
  %v222 = vpack.c.b16 %v199, %v198
  %v223 = vpack.c.b16 %v201, %v200
  %v224 = vpack.c.b16 %v203, %v202
  %v225 = vpack.c.b16 %v205, %v204
  %v226 = vpack.c.b16 %v207, %v206
  %v227 = vpack.c.b16 %v209, %v208
  %v228 = vpack.c.b16 %v211, %v210
  %v229 = vpack.c.b16 %v213, %v212
  %246 = vmatprep.subr.bf16.mxu0 0
  %247 = vmatpush1.bf16.msra.mxu0 %v214
  %248 = vmatprep.subr.bf16.mxu0 0
  %249 = vmatpush1.bf16.msra.mxu0 %v215
  %250 = vmatprep.subr.bf16.mxu0 0
  %251 = vmatpush1.bf16.msra.mxu0 %v216
  %252 = vmatprep.subr.bf16.mxu0 0
  %253 = vmatpush1.bf16.msra.mxu0 %v217
  %254 = vmatprep.subr.bf16.mxu0 0
  %255 = vmatpush1.bf16.msra.mxu0 %v218
  %256 = vmatprep.subr.bf16.mxu0 0
  %257 = vmatpush1.bf16.msra.mxu0 %v219
  %258 = vmatprep.subr.bf16.mxu0 0
  %259 = vmatpush1.bf16.msra.mxu0 %v220
  %260 = vmatprep.subr.bf16.mxu0 0
  %261 = vmatpush1.bf16.msra.mxu0 %v221
  %262 = vmatprep.subr.bf16.mxu0 0
  %263 = vmatpush1.bf16.msra.mxu0 %v222
  %264 = vmatprep.subr.bf16.mxu0 0
  %265 = vmatpush1.bf16.msra.mxu0 %v223
  %266 = vmatprep.subr.bf16.mxu0 0
  %267 = vmatpush1.bf16.msra.mxu0 %v224
  %268 = vmatprep.subr.bf16.mxu0 0
  %269 = vmatpush1.bf16.msra.mxu0 %v225
  %270 = vmatprep.subr.bf16.mxu0 0
  %271 = vmatpush1.bf16.msra.mxu0 %v226
  %272 = vmatprep.subr.bf16.mxu0 0
  %273 = vmatpush1.bf16.msra.mxu0 %v227
  %274 = vmatprep.subr.bf16.mxu0 0
  %275 = vmatpush1.bf16.msra.mxu0 %v228
  %276 = vmatprep.subr.bf16.mxu0 0
  %277 = vmatpush1.bf16.msra.mxu0 %v229
  %278 = vmatprep.mubr.bf16.mxu0 %v119
  %279 = vmatmul.mubr.bf16.gmra.mrb[0].mxu0 %v118
  %v280 = vpop.f32.mrb[0].mxu0
  %v281 = vadd.f32 %v68, %v280
  %v282 = vpop.f32.mrb[0].mxu0
  %v283 = vpop.f32.mrb[0].mxu0
  %v284 = vadd.f32 %v68, %v283
  %v285 = vpop.f32.mrb[0].mxu0
  %286 = vmatprep.mubr.bf16.mxu0 %v121
  %287 = vmatmul.mubr.bf16.gmra.mrb[0].mxu0 %v120
  %v288 = vpop.f32.mrb[0].mxu0
  %v289 = vadd.f32 %v68, %v288
  %v290 = vpop.f32.mrb[0].mxu0
  %v291 = vpop.f32.mrb[0].mxu0
  %v292 = vadd.f32 %v68, %v291
  %v293 = vpop.f32.mrb[0].mxu0
  %294 = vmatprep.mubr.bf16.mxu0 %v123
  %295 = vmatmul.mubr.bf16.gmra.mrb[0].mxu0 %v122
  %v296 = vpop.f32.mrb[0].mxu0
  %v297 = vadd.f32 %v68, %v296
  %v298 = vpop.f32.mrb[0].mxu0
  %v299 = vpop.f32.mrb[0].mxu0
  %v300 = vadd.f32 %v68, %v299
  %v301 = vpop.f32.mrb[0].mxu0
  %302 = vmatprep.mubr.bf16.mxu0 %v125
  %303 = vmatmul.mubr.bf16.gmra.mrb[0].mxu0 %v124
  %v304 = vpop.f32.mrb[0].mxu0
  %v305 = vadd.f32 %v68, %v304
  %v306 = vpop.f32.mrb[0].mxu0
  %v307 = vpop.f32.mrb[0].mxu0
  %v308 = vadd.f32 %v68, %v307
  %v309 = vpop.f32.mrb[0].mxu0
  %310 = vmatprep.mubr.bf16.mxu0 %v127
  %311 = vmatmul.mubr.bf16.gmra.mrb[0].mxu0 %v126
  %v312 = vpop.f32.mrb[0].mxu0
  %v313 = vadd.f32 %v68, %v312
  %v314 = vpop.f32.mrb[0].mxu0
  %v315 = vpop.f32.mrb[0].mxu0
  %v316 = vadd.f32 %v68, %v315
  %v317 = vpop.f32.mrb[0].mxu0
  %318 = vmatprep.mubr.bf16.mxu0 %v129
  %319 = vmatmul.mubr.bf16.gmra.mrb[0].mxu0 %v128
  %v320 = vpop.f32.mrb[0].mxu0
  %v321 = vadd.f32 %v68, %v320
  %v322 = vpop.f32.mrb[0].mxu0
  %v323 = vpop.f32.mrb[0].mxu0
  %v324 = vadd.f32 %v68, %v323
  %v325 = vpop.f32.mrb[0].mxu0
  %326 = vmatprep.mubr.bf16.mxu0 %v131
  %327 = vmatmul.mubr.bf16.gmra.mrb[0].mxu0 %v130
  %v328 = vpop.f32.mrb[0].mxu0
  %v329 = vadd.f32 %v68, %v328
  %v330 = vpop.f32.mrb[0].mxu0
  %v331 = vpop.f32.mrb[0].mxu0
  %v332 = vadd.f32 %v68, %v331
  %v333 = vpop.f32.mrb[0].mxu0
  %334 = vmatprep.mubr.bf16.mxu0 %v133
  %335 = vmatmul.mubr.bf16.gmra.mrb[0].mxu0 %v132
  %v336 = vpop.f32.mrb[0].mxu0
  %v337 = vadd.f32 %v68, %v336
  %v338 = vpop.f32.mrb[0].mxu0
  %v339 = vpop.f32.mrb[0].mxu0
  %v340 = vadd.f32 %v68, %v339
  %v341 = vpop.f32.mrb[0].mxu0
  %342 = vdwg.mxu0
  %v343 = vmax.f32 %v281, 0.0
  %v344 = vmax.f32 %v284, 0.0
  %v345 = vmax.f32 %v289, 0.0
  %v346 = vmax.f32 %v292, 0.0
  %v347 = vmax.f32 %v297, 0.0
  %v348 = vmax.f32 %v300, 0.0
  %v349 = vmax.f32 %v305, 0.0
  %v350 = vmax.f32 %v308, 0.0
  %v351 = vmax.f32 %v313, 0.0
  %v352 = vmax.f32 %v316, 0.0
  %v353 = vmax.f32 %v321, 0.0
  %v354 = vmax.f32 %v324, 0.0
  %v355 = vmax.f32 %v329, 0.0
  %v356 = vmax.f32 %v332, 0.0
  %v357 = vmax.f32 %v337, 0.0
  %v358 = vmax.f32 %v340, 0.0
  %v359 = vpack.c.bf16 %v344, %v343
  %v360 = vpack.c.bf16 %v346, %v345
  %v361 = vpack.c.bf16 %v348, %v347
  %v362 = vpack.c.bf16 %v350, %v349
  %v363 = vpack.c.bf16 %v352, %v351
  %v364 = vpack.c.bf16 %v354, %v353
  %v365 = vpack.c.bf16 %v356, %v355
  %v366 = vpack.c.bf16 %v358, %v357
  %v375 = vunpack.c.l.b16 %v359
  %v376 = vunpack.c.h.b16 %v359
  %v377 = vunpack.c.l.b16 %v360
  %v378 = vunpack.c.h.b16 %v360
  %v379 = vunpack.c.l.b16 %v361
  %v380 = vunpack.c.h.b16 %v361
  %v381 = vunpack.c.l.b16 %v362
  %v382 = vunpack.c.h.b16 %v362
  %v383 = vunpack.c.l.b16 %v363
  %v384 = vunpack.c.h.b16 %v363
  %v385 = vunpack.c.l.b16 %v364
  %v386 = vunpack.c.h.b16 %v364
  %v387 = vunpack.c.l.b16 %v365
  %v388 = vunpack.c.h.b16 %v365
  %v389 = vunpack.c.l.b16 %v366
  %v390 = vunpack.c.h.b16 %v366
  %v391 = vpack.c.b16 %v375, %v375
  %v392 = vpack.c.b16 %v376, %v376
  %v393 = vpack.c.b16 %v377, %v377
  %v394 = vpack.c.b16 %v378, %v378
  %v395 = vpack.c.b16 %v379, %v379
  %v396 = vpack.c.b16 %v380, %v380
  %v397 = vpack.c.b16 %v381, %v381
  %v398 = vpack.c.b16 %v382, %v382
  %v399 = vpack.c.b16 %v383, %v383
  %v400 = vpack.c.b16 %v384, %v384
  %v401 = vpack.c.b16 %v385, %v385
  %v402 = vpack.c.b16 %v386, %v386
  %v403 = vpack.c.b16 %v387, %v387
  %v404 = vpack.c.b16 %v388, %v388
  %v405 = vpack.c.b16 %v389, %v389
  %v406 = vpack.c.b16 %v390, %v390
  %423 = vst [vmem:[%s3] sm:$0xf] %v391
  %424 = vst [vmem:[%s3 + $0x4] sm:$0xf] %v392
  %425 = vst [vmem:[%s3 + $0x8] sm:$0xf] %v393
  %426 = vst [vmem:[%s3 + $0xc] sm:$0xf] %v394
  %427 = vst [vmem:[%s3 + $0x10] sm:$0xf] %v395
  %428 = vst [vmem:[%s3 + $0x14] sm:$0xf] %v396
  %429 = vst [vmem:[%s3 + $0x18] sm:$0xf] %v397
  %430 = vst [vmem:[%s3 + $0x1c] sm:$0xf] %v398
  %431 = vst [vmem:[%s3 + $0x20] sm:$0xf] %v399
  %432 = vst [vmem:[%s3 + $0x24] sm:$0xf] %v400
  %433 = vst [vmem:[%s3 + $0x28] sm:$0xf] %v401
  %434 = vst [vmem:[%s3 + $0x2c] sm:$0xf] %v402
  %435 = vst [vmem:[%s3 + $0x30] sm:$0xf] %v403
  %436 = vst [vmem:[%s3 + $0x34] sm:$0xf] %v404
  %437 = vst [vmem:[%s3 + $0x38] sm:$0xf] %v405
  %438 = vst [vmem:[%s3 + $0x3c] sm:$0xf] %v406
  // Predicated region
  $region14: #{resnet_forward.21} parent=0 // pred_check
    _
  $region15: #{resnet_forward.21} parent=0 // pred_check_branch
    %440 = sbr.rel (0) target = $region17
  $region16: #{resnet_forward.21} parent=0 // pred_region
    _
  $region17: #{resnet_forward.21} parent=0 // pred_fallthru
    _
  // Predicated region
  $region18: #{resnet_forward.21} parent=0 // pred_check
    _
  $region19: #{resnet_forward.21} parent=0 // pred_check_branch
    %442 = sbr.rel (0) target = $region21
  $region20: #{resnet_forward.21} parent=0 // pred_region
    _
  $region21: #{resnet_forward.21} parent=0 // pred_fallthru
    _

// kernel: resnet_forward.23
$region0: #{resnet_forward.23}
  #allocation0 [shape = 'u32[]', space=smem, size = 0x4, offset = 0x4, fixed_abs, tag = 'smem constant byte address 0x4 - core index']
  #allocation1 [shape = 'u32[144,128]{1,0:T(1,128)}', space=vmem, size = 0x12000, scoped, tag = 'internal scratch']
  %s0 = inlined_call_operand.vmem [shape: bf16[32,256], index: 0, kind: input, shape index: {}]
  %s1 = inlined_call_operand.vmem [shape: bf16[256,512], index: 1, kind: input, shape index: {}]
  %s2 = inlined_call_operand.vmem [shape: f32[1,512], index: 2, kind: input, shape index: {}]
  %s3 = inlined_call_operand.vmem [shape: bf16[32,512], index: 3, kind: output, shape index: {}]
  %s4 = sld [smem:[#allocation0]]
  $region117: #{resnet_forward.23} parent=0
    _
  %s6 = ssub.s32 1, %s4
  %s7 = scalar_select 0, %s6, %s4
  $region1: #{resnet_forward.23} parent=0
    #allocation2 [shape = 'u8[262144]{0}', space=vmem, size = 0x40000, scoped, tag = 'input window, operand 1']
    #allocation3 [shape = 'u8[32768]{0}', space=vmem, size = 0x8000, scoped, tag = 'output window, operand 0']
    loop: start=0, step=1, limit=4
    $region2: #{resnet_forward.23} parent=1 // loop_pre_header
      _
    $region3: #{resnet_forward.23} parent=1 // loop_header
      %s9 = sphi 0, %s13
      %p10 = scmp.ge.s32.totalorder %s9, 4
      %s16 = sphi 0, %s28
      %s17 = sphi 0, %s24
      %s18 = sphi 0, %s16
      %s19 = sphi 0, %s17
      %s20 = sphi 0, %s18
      %s21 = sphi 0, %s19
      %s31 = sphi 0, %s33
      %s34 = sphi 0, %s31
      %s35 = sphi 0, %s34
      %s51 = sphi 0, %s35
      %s57 = sphi 0, %s59
      %s60 = sphi 0, %s57
      %s61 = sphi 0, %s60
      %s77 = sphi 0, %s61
      %s83 = sphi 0, %s85
      %s86 = sphi 0, %s83
      %s87 = sphi 0, %s86
      %s103 = sphi 0, %s87
      %s111 = sphi 0, %s113
      %s114 = sphi 0, %s111
      %s115 = sphi 0, %s114
      %s131 = sphi 0, %s115
    $region4: #{resnet_forward.23} parent=1 // loop_header_branch
      %12 = sbr.rel (%p10) target = $region8
    $region5: #{resnet_forward.23} parent=1 // loop_body
      %s14 = ssub.s32 %s9, 1
      %s15 = ssub.s32 %s9, 2
      %s22 = sadd.s32 1, %s17
      %p23 = scmp.ge.s32.totalorder %s22, 2
      %s24 = scalar_select %p23, 0, %s22
      %s25 = sadd.s32 1, %s16
      %s26 = scalar_select %p23, %s25, %s16
      %p27 = scmp.ge.s32.totalorder %s26, 1
      %s28 = scalar_select %p27, 0, %s26
      %s29 = ssub.s32 %s16, %s28
      %p30 = scmp.eq.s32.totalorder %s29, 0
      %s32 = sadd.s32 %s31, 1
      %s33 = scalar_select %p30, %s31, %s32
      %p36 = pneg %p30
      %p37 = scmp.eq.s32.totalorder %s9, 1
      %p38 = por %p36, %p37
      %p39 = scmp.ne.s32.totalorder %s31, %s34
      %p40 = scmp.eq.s32.totalorder %s9, 0
      %p41 = por %p39, %p40
      %p42 = scmp.ne.s32.totalorder %s31, %s34
      %p43 = scmp.eq.s32.totalorder %s14, 1
      %p44 = por %p42, %p43
      %p45 = scmp.ne.s32.totalorder %s34, %s35
      %p46 = scmp.eq.s32.totalorder %s14, 0
      %p47 = por %p45, %p46
      %p48 = scmp.ne.s32.totalorder %s34, %s35
      %p49 = scmp.eq.s32.totalorder %s15, 1
      %p50 = por %p48, %p49
      %p52 = scmp.ne.s32.totalorder %s35, %s51
      %p53 = scmp.eq.s32.totalorder %s15, 0
      %p54 = por %p52, %p53
      %s55 = ssub.s32 %s17, %s24
      %p56 = scmp.eq.s32.totalorder %s55, 0
      %s58 = sadd.s32 %s57, 1
      %s59 = scalar_select %p56, %s57, %s58
      %p62 = pneg %p56
      %p63 = scmp.eq.s32.totalorder %s9, 1
      %p64 = por %p62, %p63
      %p65 = scmp.ne.s32.totalorder %s57, %s60
      %p66 = scmp.eq.s32.totalorder %s9, 0
      %p67 = por %p65, %p66
      %p68 = scmp.ne.s32.totalorder %s57, %s60
      %p69 = scmp.eq.s32.totalorder %s14, 1
      %p70 = por %p68, %p69
      %p71 = scmp.ne.s32.totalorder %s60, %s61
      %p72 = scmp.eq.s32.totalorder %s14, 0
      %p73 = por %p71, %p72
      %p74 = scmp.ne.s32.totalorder %s60, %s61
      %p75 = scmp.eq.s32.totalorder %s15, 1
      %p76 = por %p74, %p75
      %p78 = scmp.ne.s32.totalorder %s61, %s77
      %p79 = scmp.eq.s32.totalorder %s15, 0
      %p80 = por %p78, %p79
      %s81 = ssub.s32 %s17, %s24
      %p82 = scmp.eq.s32.totalorder %s81, 0
      %s84 = sadd.s32 %s83, 1
      %s85 = scalar_select %p82, %s83, %s84
      %p88 = pneg %p82
      %p89 = scmp.eq.s32.totalorder %s9, 1
      %p90 = por %p88, %p89
      %p91 = scmp.ne.s32.totalorder %s83, %s86
      %p92 = scmp.eq.s32.totalorder %s9, 0
      %p93 = por %p91, %p92
      %p94 = scmp.ne.s32.totalorder %s83, %s86
      %p95 = scmp.eq.s32.totalorder %s14, 1
      %p96 = por %p94, %p95
      %p97 = scmp.ne.s32.totalorder %s86, %s87
      %p98 = scmp.eq.s32.totalorder %s14, 0
      %p99 = por %p97, %p98
      %p100 = scmp.ne.s32.totalorder %s86, %s87
      %p101 = scmp.eq.s32.totalorder %s15, 1
      %p102 = por %p100, %p101
      %p104 = scmp.ne.s32.totalorder %s87, %s103
      %p105 = scmp.eq.s32.totalorder %s15, 0
      %p106 = por %p104, %p105
      %s107 = ssub.s32 %s16, %s28
      %s108 = ssub.s32 %s17, %s24
      %s109 = sor.u32 %s107, %s108
      %p110 = scmp.eq.s32.totalorder %s109, 0
      %s112 = sadd.s32 %s111, 1
      %s113 = scalar_select %p110, %s111, %s112
      %p116 = pneg %p110
      %p117 = scmp.eq.s32.totalorder %s9, 1
      %p118 = por %p116, %p117
      %p119 = scmp.ne.s32.totalorder %s111, %s114
      %p120 = scmp.eq.s32.totalorder %s9, 0
      %p121 = por %p119, %p120
      %p122 = scmp.ne.s32.totalorder %s111, %s114
      %p123 = scmp.eq.s32.totalorder %s14, 1
      %p124 = por %p122, %p123
      %p125 = scmp.ne.s32.totalorder %s114, %s115
      %p126 = scmp.eq.s32.totalorder %s14, 0
      %p127 = por %p125, %p126
      %p128 = scmp.ne.s32.totalorder %s114, %s115
      %p129 = scmp.eq.s32.totalorder %s15, 1
      %p130 = por %p128, %p129
      %p132 = scmp.ne.s32.totalorder %s115, %s131
      %p133 = scmp.eq.s32.totalorder %s15, 0
      %p134 = por %p132, %p133
      %p135 = scmp.le.s32.totalorder 1, %s9
      %p136 = scmp.lt.s32.totalorder %s9, 3
      %p137 = pnand %p135, %p136
      %p138 = pneg %p137
      // Predicated region
      $region9: #{resnet_forward.23} parent=5 // pred_check
        _
      $region10: #{resnet_forward.23} parent=5 // pred_check_branch
        %140 = sbr.rel (%p137) target = $region12
      $region11: #{resnet_forward.23} parent=5 // pred_region
        %s141 = ssub.s32 %s9, 1
        // Predicated region
        $region13: #{resnet_forward.23} parent=11 // pred_check
          %p142 = pneg %p47
        $region14: #{resnet_forward.23} parent=11 // pred_check_branch
          %144 = sbr.rel (%p142) target = $region16
        $region15: #{resnet_forward.23} parent=11 // pred_region
          %s145 = smul.u32 4, %s18
          %p146 = scmp.lt.s32.totalorder %s145, 3
          %s147 = scalar_select %p146, %s145, 3
          %s148 = smul.addr %s147, 2
          %s149 = smul.addr %s148, 4
          %s150 = scalar_lea.vmem %s0, %s149
          %s151 = smul.u32 4, %s18
        $region16: #{resnet_forward.23} parent=11 // pred_fallthru
          _
      $region12: #{resnet_forward.23} parent=5 // pred_fallthru
        _
      %p152 = scmp.lt.s32.totalorder %s9, 2
      // Predicated region
      $region17: #{resnet_forward.23} parent=5 // pred_check
        %p153 = pneg %p152
      $region18: #{resnet_forward.23} parent=5 // pred_check_branch
        %155 = sbr.rel (%p153) target = $region20
      $region19: #{resnet_forward.23} parent=5 // pred_region
        // Predicated region
        $region21: #{resnet_forward.23} parent=19 // pred_check
          %p156 = pneg %p67
        $region22: #{resnet_forward.23} parent=19 // pred_check_branch
          %158 = sbr.rel (%p156) target = $region24
        $region23: #{resnet_forward.23} parent=19 // pred_region
          %s159 = sand.u32 %s57, 1
          %s160 = sand.u32 %s57, 1
          %s161 = smul.addr %s160, 256
          %s162 = scalar_lea.vmem [#allocation2], %s161
          %s163 = smul.u32 2, %s17
          %s164 = smul.addr %s163, 4
          %s165 = scalar_lea.vmem %s1, %s164
          // Predicated region
          $region25: #{resnet_forward.23} parent=23 // pred_check
            _
          $region26: #{resnet_forward.23} parent=23 // pred_check_branch
            %167 = sbr.rel (0) target = $region28
          $region27: #{resnet_forward.23} parent=23 // pred_region
            // Predicated region
            $region29: #{resnet_forward.23} parent=27 // pred_check
              _
            $region30: #{resnet_forward.23} parent=27 // pred_check_branch
              %169 = sbr.rel (0) target = $region32
            $region31: #{resnet_forward.23} parent=27 // pred_region
              // Predicated region
              $region44: #{resnet_forward.23} parent=31 // pred_check
                _
              $region45: #{resnet_forward.23} parent=31 // pred_check_branch
                %246 = sbr.rel (0) target = $region47
              $region46: #{resnet_forward.23} parent=31 // pred_region
                loop: start=0, step=1, limit=1
                $region48: #{resnet_forward.23} parent=46 // loop_pre_header
                  _
                $region49: #{resnet_forward.23} parent=46 // loop_header
                  %s248 = sphi 0, %s252
                  %p249 = scmp.ge.s32.totalorder %s248, 1
                  %s253 = sphi %s165, %s165
                  %s254 = sphi %s162, %s162
                $region50: #{resnet_forward.23} parent=46 // loop_header_branch
                  %251 = sbr.rel (%p249) target = $region54
                $region51: #{resnet_forward.23} parent=46 // loop_body
                  %v255 = vld [vmem:[%s253] sm:$0xff]
                  %256 = vst [vmem:[%s254] sm:$0xff] %v255
                  %v257 = vld [vmem:[%s253 + $0x10] sm:$0xff]
                  %258 = vst [vmem:[%s254 + $0x8] sm:$0xff] %v257
                  %v259 = vld [vmem:[%s253 + $0x20] sm:$0xff]
                  %260 = vst [vmem:[%s254 + $0x10] sm:$0xff] %v259
                  %v261 = vld [vmem:[%s253 + $0x30] sm:$0xff]
                  %262 = vst [vmem:[%s254 + $0x18] sm:$0xff] %v261
                  %v263 = vld [vmem:[%s253 + $0x40] sm:$0xff]
                  %264 = vst [vmem:[%s254 + $0x20] sm:$0xff] %v263
                  %v265 = vld [vmem:[%s253 + $0x50] sm:$0xff]
                  %266 = vst [vmem:[%s254 + $0x28] sm:$0xff] %v265
                  %v267 = vld [vmem:[%s253 + $0x60] sm:$0xff]
                  %268 = vst [vmem:[%s254 + $0x30] sm:$0xff] %v267
                  %v269 = vld [vmem:[%s253 + $0x70] sm:$0xff]
                  %270 = vst [vmem:[%s254 + $0x38] sm:$0xff] %v269
                  %v271 = vld [vmem:[%s253 + $0x80] sm:$0xff]
                  %272 = vst [vmem:[%s254 + $0x40] sm:$0xff] %v271
                  %v273 = vld [vmem:[%s253 + $0x90] sm:$0xff]
                  %274 = vst [vmem:[%s254 + $0x48] sm:$0xff] %v273
                  %v275 = vld [vmem:[%s253 + $0xa0] sm:$0xff]
                  %276 = vst [vmem:[%s254 + $0x50] sm:$0xff] %v275
                  %v277 = vld [vmem:[%s253 + $0xb0] sm:$0xff]
                  %278 = vst [vmem:[%s254 + $0x58] sm:$0xff] %v277
                  %v279 = vld [vmem:[%s253 + $0xc0] sm:$0xff]
                  %280 = vst [vmem:[%s254 + $0x60] sm:$0xff] %v279
                  %v281 = vld [vmem:[%s253 + $0xd0] sm:$0xff]
                  %282 = vst [vmem:[%s254 + $0x68] sm:$0xff] %v281
                  %v283 = vld [vmem:[%s253 + $0xe0] sm:$0xff]
                  %284 = vst [vmem:[%s254 + $0x70] sm:$0xff] %v283
                  %v285 = vld [vmem:[%s253 + $0xf0] sm:$0xff]
                  %286 = vst [vmem:[%s254 + $0x78] sm:$0xff] %v285
                  %v287 = vld [vmem:[%s253 + $0x100] sm:$0xff]
                  %288 = vst [vmem:[%s254 + $0x80] sm:$0xff] %v287
                  %v289 = vld [vmem:[%s253 + $0x110] sm:$0xff]
                  %290 = vst [vmem:[%s254 + $0x88] sm:$0xff] %v289
                  %v291 = vld [vmem:[%s253 + $0x120] sm:$0xff]
                  %292 = vst [vmem:[%s254 + $0x90] sm:$0xff] %v291
                  %v293 = vld [vmem:[%s253 + $0x130] sm:$0xff]
                  %294 = vst [vmem:[%s254 + $0x98] sm:$0xff] %v293
                  %v295 = vld [vmem:[%s253 + $0x140] sm:$0xff]
                  %296 = vst [vmem:[%s254 + $0xa0] sm:$0xff] %v295
                  %v297 = vld [vmem:[%s253 + $0x150] sm:$0xff]
                  %298 = vst [vmem:[%s254 + $0xa8] sm:$0xff] %v297
                  %v299 = vld [vmem:[%s253 + $0x160] sm:$0xff]
                  %300 = vst [vmem:[%s254 + $0xb0] sm:$0xff] %v299
                  %v301 = vld [vmem:[%s253 + $0x170] sm:$0xff]
                  %302 = vst [vmem:[%s254 + $0xb8] sm:$0xff] %v301
                  %v303 = vld [vmem:[%s253 + $0x180] sm:$0xff]
                  %304 = vst [vmem:[%s254 + $0xc0] sm:$0xff] %v303
                  %v305 = vld [vmem:[%s253 + $0x190] sm:$0xff]
                  %306 = vst [vmem:[%s254 + $0xc8] sm:$0xff] %v305
                  %v307 = vld [vmem:[%s253 + $0x1a0] sm:$0xff]
                  %308 = vst [vmem:[%s254 + $0xd0] sm:$0xff] %v307
                  %v309 = vld [vmem:[%s253 + $0x1b0] sm:$0xff]
                  %310 = vst [vmem:[%s254 + $0xd8] sm:$0xff] %v309
                  %v311 = vld [vmem:[%s253 + $0x1c0] sm:$0xff]
                  %312 = vst [vmem:[%s254 + $0xe0] sm:$0xff] %v311
                  %v313 = vld [vmem:[%s253 + $0x1d0] sm:$0xff]
                  %314 = vst [vmem:[%s254 + $0xe8] sm:$0xff] %v313
                  %v315 = vld [vmem:[%s253 + $0x1e0] sm:$0xff]
                  %316 = vst [vmem:[%s254 + $0xf0] sm:$0xff] %v315
                  %v317 = vld [vmem:[%s253 + $0x1f0] sm:$0xff]
                  %318 = vst [vmem:[%s254 + $0xf8] sm:$0xff] %v317
                $region52: #{resnet_forward.23} parent=46 // loop_footer
                  %s252 = sadd.s32 1, %s248
                $region53: #{resnet_forward.23} parent=46 // loop_footer_branch
                  %247 = sbr.rel target = $region49
                $region54: #{resnet_forward.23} parent=46 // loop_exit
                  _
              $region47: #{resnet_forward.23} parent=31 // pred_fallthru
                _
              // Predicated region
              $region55: #{resnet_forward.23} parent=31 // pred_check
                _
              $region56: #{resnet_forward.23} parent=31 // pred_check_branch
                %320 = sbr.rel target = $region58
              $region57: #{resnet_forward.23} parent=31 // pred_region
                _
              $region58: #{resnet_forward.23} parent=31 // pred_fallthru
                _
            $region32: #{resnet_forward.23} parent=27 // pred_fallthru
              _
            // Predicated region
            $region33: #{resnet_forward.23} parent=27 // pred_check
              _
            $region34: #{resnet_forward.23} parent=27 // pred_check_branch
              %171 = sbr.rel target = $region36
            $region35: #{resnet_forward.23} parent=27 // pred_region
              loop: start=0, step=1, limit=1
              $region37: #{resnet_forward.23} parent=35 // loop_pre_header
                _
              $region38: #{resnet_forward.23} parent=35 // loop_header
                %s174 = sphi 0, %s178
                %p175 = scmp.ge.s32.totalorder %s174, 1
                %s179 = sphi %s165, %s165
                %s180 = sphi %s162, %s162
              $region39: #{resnet_forward.23} parent=35 // loop_header_branch
                %177 = sbr.rel (%p175) target = $region43
              $region40: #{resnet_forward.23} parent=35 // loop_body
                %v181 = vld [vmem:[%s179] sm:$0xff]
                %182 = vst [vmem:[%s180] sm:$0xff] %v181
                %v183 = vld [vmem:[%s179 + $0x10] sm:$0xff]
                %184 = vst [vmem:[%s180 + $0x8] sm:$0xff] %v183
                %v185 = vld [vmem:[%s179 + $0x20] sm:$0xff]
                %186 = vst [vmem:[%s180 + $0x10] sm:$0xff] %v185
                %v187 = vld [vmem:[%s179 + $0x30] sm:$0xff]
                %188 = vst [vmem:[%s180 + $0x18] sm:$0xff] %v187
                %v189 = vld [vmem:[%s179 + $0x40] sm:$0xff]
                %190 = vst [vmem:[%s180 + $0x20] sm:$0xff] %v189
                %v191 = vld [vmem:[%s179 + $0x50] sm:$0xff]
                %192 = vst [vmem:[%s180 + $0x28] sm:$0xff] %v191
                %v193 = vld [vmem:[%s179 + $0x60] sm:$0xff]
                %194 = vst [vmem:[%s180 + $0x30] sm:$0xff] %v193
                %v195 = vld [vmem:[%s179 + $0x70] sm:$0xff]
                %196 = vst [vmem:[%s180 + $0x38] sm:$0xff] %v195
                %v197 = vld [vmem:[%s179 + $0x80] sm:$0xff]
                %198 = vst [vmem:[%s180 + $0x40] sm:$0xff] %v197
                %v199 = vld [vmem:[%s179 + $0x90] sm:$0xff]
                %200 = vst [vmem:[%s180 + $0x48] sm:$0xff] %v199
                %v201 = vld [vmem:[%s179 + $0xa0] sm:$0xff]
                %202 = vst [vmem:[%s180 + $0x50] sm:$0xff] %v201
                %v203 = vld [vmem:[%s179 + $0xb0] sm:$0xff]
                %204 = vst [vmem:[%s180 + $0x58] sm:$0xff] %v203
                %v205 = vld [vmem:[%s179 + $0xc0] sm:$0xff]
                %206 = vst [vmem:[%s180 + $0x60] sm:$0xff] %v205
                %v207 = vld [vmem:[%s179 + $0xd0] sm:$0xff]
                %208 = vst [vmem:[%s180 + $0x68] sm:$0xff] %v207
                %v209 = vld [vmem:[%s179 + $0xe0] sm:$0xff]
                %210 = vst [vmem:[%s180 + $0x70] sm:$0xff] %v209
                %v211 = vld [vmem:[%s179 + $0xf0] sm:$0xff]
                %212 = vst [vmem:[%s180 + $0x78] sm:$0xff] %v211
                %v213 = vld [vmem:[%s179 + $0x100] sm:$0xff]
                %214 = vst [vmem:[%s180 + $0x80] sm:$0xff] %v213
                %v215 = vld [vmem:[%s179 + $0x110] sm:$0xff]
                %216 = vst [vmem:[%s180 + $0x88] sm:$0xff] %v215
                %v217 = vld [vmem:[%s179 + $0x120] sm:$0xff]
                %218 = vst [vmem:[%s180 + $0x90] sm:$0xff] %v217
                %v219 = vld [vmem:[%s179 + $0x130] sm:$0xff]
                %220 = vst [vmem:[%s180 + $0x98] sm:$0xff] %v219
                %v221 = vld [vmem:[%s179 + $0x140] sm:$0xff]
                %222 = vst [vmem:[%s180 + $0xa0] sm:$0xff] %v221
                %v223 = vld [vmem:[%s179 + $0x150] sm:$0xff]
                %224 = vst [vmem:[%s180 + $0xa8] sm:$0xff] %v223
                %v225 = vld [vmem:[%s179 + $0x160] sm:$0xff]
                %226 = vst [vmem:[%s180 + $0xb0] sm:$0xff] %v225
                %v227 = vld [vmem:[%s179 + $0x170] sm:$0xff]
                %228 = vst [vmem:[%s180 + $0xb8] sm:$0xff] %v227
                %v229 = vld [vmem:[%s179 + $0x180] sm:$0xff]
                %230 = vst [vmem:[%s180 + $0xc0] sm:$0xff] %v229
                %v231 = vld [vmem:[%s179 + $0x190] sm:$0xff]
                %232 = vst [vmem:[%s180 + $0xc8] sm:$0xff] %v231
                %v233 = vld [vmem:[%s179 + $0x1a0] sm:$0xff]
                %234 = vst [vmem:[%s180 + $0xd0] sm:$0xff] %v233
                %v235 = vld [vmem:[%s179 + $0x1b0] sm:$0xff]
                %236 = vst [vmem:[%s180 + $0xd8] sm:$0xff] %v235
                %v237 = vld [vmem:[%s179 + $0x1c0] sm:$0xff]
                %238 = vst [vmem:[%s180 + $0xe0] sm:$0xff] %v237
                %v239 = vld [vmem:[%s179 + $0x1d0] sm:$0xff]
                %240 = vst [vmem:[%s180 + $0xe8] sm:$0xff] %v239
                %v241 = vld [vmem:[%s179 + $0x1e0] sm:$0xff]
                %242 = vst [vmem:[%s180 + $0xf0] sm:$0xff] %v241
                %v243 = vld [vmem:[%s179 + $0x1f0] sm:$0xff]
                %244 = vst [vmem:[%s180 + $0xf8] sm:$0xff] %v243
              $region41: #{resnet_forward.23} parent=35 // loop_footer
                %s178 = sadd.s32 1, %s174
              $region42: #{resnet_forward.23} parent=35 // loop_footer_branch
                %173 = sbr.rel target = $region38
              $region43: #{resnet_forward.23} parent=35 // loop_exit
                _
            $region36: #{resnet_forward.23} parent=27 // pred_fallthru
              _
          $region28: #{resnet_forward.23} parent=23 // pred_fallthru
            _
          %321 = vnop
        $region24: #{resnet_forward.23} parent=19 // pred_fallthru
          _
        // Predicated region
        $region59: #{resnet_forward.23} parent=19 // pred_check
          %p322 = pneg %p93
        $region60: #{resnet_forward.23} parent=19 // pred_check_branch
          %324 = sbr.rel (%p322) target = $region62
        $region61: #{resnet_forward.23} parent=19 // pred_region
          %s325 = smul.u32 2, %s17
          %p326 = scmp.lt.s32.totalorder %s325, 3
          %s327 = scalar_select %p326, %s325, 3
          %s328 = scalar_lea.vmem %s2, %s327
          %s329 = smul.u32 2, %s17
        $region62: #{resnet_forward.23} parent=19 // pred_fallthru
          _
      $region20: #{resnet_forward.23} parent=5 // pred_fallthru
        _
      %p330 = scmp.le.s32.totalorder 1, %s9
      %p331 = scmp.lt.s32.totalorder %s9, 3
      %p332 = pnand %p330, %p331
      %p333 = pneg %p332
      // Predicated region
      $region63: #{resnet_forward.23} parent=5 // pred_check
        _
      $region64: #{resnet_forward.23} parent=5 // pred_check_branch
        %335 = sbr.rel (%p332) target = $region66
      $region65: #{resnet_forward.23} parent=5 // pred_region
        %s336 = ssub.s32 %s9, 1
        %s337 = sand.u32 %s60, 1
        %s338 = sand.u32 %s60, 1
        %s339 = smul.addr %s338, 256
        %s340 = scalar_lea.vmem [#allocation2], %s339
        // Predicated region
        $region67: #{resnet_forward.23} parent=65 // pred_check
          %p341 = pneg %p73
        $region68: #{resnet_forward.23} parent=65 // pred_check_branch
          %343 = sbr.rel (%p341) target = $region70
        $region69: #{resnet_forward.23} parent=65 // pred_region
          _
        $region70: #{resnet_forward.23} parent=65 // pred_fallthru
          _
        %s344 = smul.u32 4, %s18
        %p345 = scmp.lt.s32.totalorder %s344, 3
        %s346 = scalar_select %p345, %s344, 3
        %s347 = smul.addr %s346, 2
        %s348 = smul.addr %s347, 4
        %s349 = scalar_lea.vmem %s0, %s348
        %p350 = pneg %p47
        %p351 = pneg %p44
        %s352 = sand.u32 %s60, 1
        %s353 = sand.u32 %s60, 1
        %s354 = smul.addr %s353, 256
        %s355 = scalar_lea.vmem [#allocation2], %s354
        %p356 = pneg %p73
        %p357 = pneg %p70
        %s358 = smul.u32 2, %s19
        %p359 = scmp.lt.s32.totalorder %s358, 3
        %s360 = scalar_select %p359, %s358, 3
        %s361 = scalar_lea.vmem %s2, %s360
        %p362 = pneg %p99
        %p363 = pneg %p96
        %p364 = pneg %p127
        %p365 = pneg %p124
        %s366 = sand.u32 %s114, 1
        %s367 = sand.u32 %s114, 1
        %s368 = smul.addr %s367, 32
        %s369 = scalar_lea.vmem [#allocation3], %s368
        %s370 = smul.u32 4, %s18
        %p371 = scmp.lt.s32.totalorder %s370, 3
        %s372 = scalar_select %p371, %s370, 3
        %s373 = smul.addr %s372, 2
        %s374 = smul.addr %s373, 4
        %s375 = scalar_lea.vmem %s0, %s374
        %s376 = smul.u32 4, %s18
        %s377 = smul.u32 2, %s19
        %s378 = smul.u32 2, %s19
        %p379 = scmp.lt.s32.totalorder %s378, 3
        %s380 = scalar_select %p379, %s378, 3
        %s381 = scalar_lea.vmem %s2, %s380
        %s382 = smul.u32 2, %s19
        %s383 = smul.u32 4, %s18
        %s384 = smul.u32 2, %s19
        %v385 = vld [vmem:[%s375] sm:$0xff]
        %v386 = vld [vmem:[%s375 + $0x8] sm:$0xff]
        %v387 = vld [vmem:[%s375 + $0x10] sm:$0xff]
        %v388 = vld [vmem:[%s375 + $0x18] sm:$0xff]
        %v389 = vld [vmem:[%s340] sm:$0xff]
        %v390 = vld [vmem:[%s340 + $0x8] sm:$0xff]
        %v391 = vld [vmem:[%s340 + $0x10] sm:$0xff]
        %v392 = vld [vmem:[%s340 + $0x18] sm:$0xff]
        %v393 = vld [vmem:[%s340 + $0x20] sm:$0xff]
        %v394 = vld [vmem:[%s340 + $0x28] sm:$0xff]
        %v395 = vld [vmem:[%s340 + $0x30] sm:$0xff]
        %v396 = vld [vmem:[%s340 + $0x38] sm:$0xff]
        %v397 = vld [vmem:[%s340 + $0x40] sm:$0xff]
        %v398 = vld [vmem:[%s340 + $0x48] sm:$0xff]
        %v399 = vld [vmem:[%s340 + $0x50] sm:$0xff]
        %v400 = vld [vmem:[%s340 + $0x58] sm:$0xff]
        %v401 = vld [vmem:[%s340 + $0x60] sm:$0xff]
        %v402 = vld [vmem:[%s340 + $0x68] sm:$0xff]
        %v403 = vld [vmem:[%s340 + $0x70] sm:$0xff]
        %v404 = vld [vmem:[%s340 + $0x78] sm:$0xff]
        %v405 = vld [vmem:[%s340 + $0x80] sm:$0xff]
        %v406 = vld [vmem:[%s340 + $0x88] sm:$0xff]
        %v407 = vld [vmem:[%s340 + $0x90] sm:$0xff]
        %v408 = vld [vmem:[%s340 + $0x98] sm:$0xff]
        %v409 = vld [vmem:[%s340 + $0xa0] sm:$0xff]
        %v410 = vld [vmem:[%s340 + $0xa8] sm:$0xff]
        %v411 = vld [vmem:[%s340 + $0xb0] sm:$0xff]
        %v412 = vld [vmem:[%s340 + $0xb8] sm:$0xff]
        %v413 = vld [vmem:[%s340 + $0xc0] sm:$0xff]
        %v414 = vld [vmem:[%s340 + $0xc8] sm:$0xff]
        %v415 = vld [vmem:[%s340 + $0xd0] sm:$0xff]
        %v416 = vld [vmem:[%s340 + $0xd8] sm:$0xff]
        %v417 = vld [vmem:[%s340 + $0xe0] sm:$0xff]
        %v418 = vld [vmem:[%s340 + $0xe8] sm:$0xff]
        %v419 = vld [vmem:[%s340 + $0xf0] sm:$0xff]
        %v420 = vld [vmem:[%s340 + $0xf8] sm:$0xff]
        %v421 = vld [vmem:[%s381] sm:$0x3]
        %v423 = vlaneseq
        %v424 = vshrl.u32 %v423, 7
        %v425 = vsub.s32 0, %v424
        %v426 = vrot.slane %v421, %v425
        %v427 = vlaneseq
        %v428 = vshrl.u32 %v427, 7
        %v429 = vsub.s32 1, %v428
        %v430 = vrot.slane %v421, %v429
        %v437 = vunpack.c.l.b16 %v385
        %v438 = vunpack.c.h.b16 %v385
        %v439 = vunpack.c.l.b16 %v386
        %v440 = vunpack.c.h.b16 %v386
        %v441 = vunpack.c.l.b16 %v387
        %v442 = vunpack.c.h.b16 %v387
        %v443 = vunpack.c.l.b16 %v388
        %v444 = vunpack.c.h.b16 %v388
        %v445 = vpack.c.b16 %v439, %v437
        %v446 = vpack.c.b16 %v440, %v438
        %v447 = vpack.c.b16 %v443, %v441
        %v448 = vpack.c.b16 %v444, %v442
        %v485 = vunpack.c.l.b16 %v389
        %v486 = vunpack.c.h.b16 %v389
        %v487 = vunpack.c.l.b16 %v390
        %v488 = vunpack.c.h.b16 %v390
        %v489 = vunpack.c.l.b16 %v391
        %v490 = vunpack.c.h.b16 %v391
        %v491 = vunpack.c.l.b16 %v392
        %v492 = vunpack.c.h.b16 %v392
        %v493 = vunpack.c.l.b16 %v393
        %v494 = vunpack.c.h.b16 %v393
        %v495 = vunpack.c.l.b16 %v394
        %v496 = vunpack.c.h.b16 %v394
        %v497 = vunpack.c.l.b16 %v395
        %v498 = vunpack.c.h.b16 %v395
        %v499 = vunpack.c.l.b16 %v396
        %v500 = vunpack.c.h.b16 %v396
        %v501 = vunpack.c.l.b16 %v397
        %v502 = vunpack.c.h.b16 %v397
        %v503 = vunpack.c.l.b16 %v398
        %v504 = vunpack.c.h.b16 %v398
        %v505 = vunpack.c.l.b16 %v399
        %v506 = vunpack.c.h.b16 %v399
        %v507 = vunpack.c.l.b16 %v400
        %v508 = vunpack.c.h.b16 %v400
        %v509 = vunpack.c.l.b16 %v401
        %v510 = vunpack.c.h.b16 %v401
        %v511 = vunpack.c.l.b16 %v402
        %v512 = vunpack.c.h.b16 %v402
        %v513 = vunpack.c.l.b16 %v403
        %v514 = vunpack.c.h.b16 %v403
        %v515 = vunpack.c.l.b16 %v404
        %v516 = vunpack.c.h.b16 %v404
        %v517 = vunpack.c.l.b16 %v405
        %v518 = vunpack.c.h.b16 %v405
        %v519 = vunpack.c.l.b16 %v406
        %v520 = vunpack.c.h.b16 %v406
        %v521 = vunpack.c.l.b16 %v407
        %v522 = vunpack.c.h.b16 %v407
        %v523 = vunpack.c.l.b16 %v408
        %v524 = vunpack.c.h.b16 %v408
        %v525 = vunpack.c.l.b16 %v409
        %v526 = vunpack.c.h.b16 %v409
        %v527 = vunpack.c.l.b16 %v410
        %v528 = vunpack.c.h.b16 %v410
        %v529 = vunpack.c.l.b16 %v411
        %v530 = vunpack.c.h.b16 %v411
        %v531 = vunpack.c.l.b16 %v412
        %v532 = vunpack.c.h.b16 %v412
        %v533 = vunpack.c.l.b16 %v413
        %v534 = vunpack.c.h.b16 %v413
        %v535 = vunpack.c.l.b16 %v414
        %v536 = vunpack.c.h.b16 %v414
        %v537 = vunpack.c.l.b16 %v415
        %v538 = vunpack.c.h.b16 %v415
        %v539 = vunpack.c.l.b16 %v416
        %v540 = vunpack.c.h.b16 %v416
        %v541 = vunpack.c.l.b16 %v417
        %v542 = vunpack.c.h.b16 %v417
        %v543 = vunpack.c.l.b16 %v418
        %v544 = vunpack.c.h.b16 %v418
        %v545 = vunpack.c.l.b16 %v419
        %v546 = vunpack.c.h.b16 %v419
        %v547 = vunpack.c.l.b16 %v420
        %v548 = vunpack.c.h.b16 %v420
        %v549 = vpack.c.b16 %v487, %v485
        %v550 = vpack.c.b16 %v488, %v486
        %v551 = vpack.c.b16 %v491, %v489
        %v552 = vpack.c.b16 %v492, %v490
        %v553 = vpack.c.b16 %v495, %v493
        %v554 = vpack.c.b16 %v496, %v494
        %v555 = vpack.c.b16 %v499, %v497
        %v556 = vpack.c.b16 %v500, %v498
        %v557 = vpack.c.b16 %v503, %v501
        %v558 = vpack.c.b16 %v504, %v502
        %v559 = vpack.c.b16 %v507, %v505
        %v560 = vpack.c.b16 %v508, %v506
        %v561 = vpack.c.b16 %v511, %v509
        %v562 = vpack.c.b16 %v512, %v510
        %v563 = vpack.c.b16 %v515, %v513
        %v564 = vpack.c.b16 %v516, %v514
        %v565 = vpack.c.b16 %v519, %v517
        %v566 = vpack.c.b16 %v520, %v518
        %v567 = vpack.c.b16 %v523, %v521
        %v568 = vpack.c.b16 %v524, %v522
        %v569 = vpack.c.b16 %v527, %v525
        %v570 = vpack.c.b16 %v528, %v526
        %v571 = vpack.c.b16 %v531, %v529
        %v572 = vpack.c.b16 %v532, %v530
        %v573 = vpack.c.b16 %v535, %v533
        %v574 = vpack.c.b16 %v536, %v534
        %v575 = vpack.c.b16 %v539, %v537
        %v576 = vpack.c.b16 %v540, %v538
        %v577 = vpack.c.b16 %v543, %v541
        %v578 = vpack.c.b16 %v544, %v542
        %v579 = vpack.c.b16 %v547, %v545
        %v580 = vpack.c.b16 %v548, %v546
        %613 = vmatprep.subr.bf16.mxu0 %v550
        %614 = vmatpush1.bf16.msra.mxu0 %v549
        %615 = vmatprep.subr.bf16.mxu0 %v552
        %616 = vmatpush1.bf16.msra.mxu0 %v551
        %617 = vmatprep.subr.bf16.mxu0 %v554
        %618 = vmatpush1.bf16.msra.mxu0 %v553
        %619 = vmatprep.subr.bf16.mxu0 %v556
        %620 = vmatpush1.bf16.msra.mxu0 %v555
        %621 = vmatprep.subr.bf16.mxu0 %v558
        %622 = vmatpush1.bf16.msra.mxu0 %v557
        %623 = vmatprep.subr.bf16.mxu0 %v560
        %624 = vmatpush1.bf16.msra.mxu0 %v559
        %625 = vmatprep.subr.bf16.mxu0 %v562
        %626 = vmatpush1.bf16.msra.mxu0 %v561
        %627 = vmatprep.subr.bf16.mxu0 %v564
        %628 = vmatpush1.bf16.msra.mxu0 %v563
        %629 = vmatprep.subr.bf16.mxu0 %v566
        %630 = vmatpush1.bf16.msra.mxu0 %v565
        %631 = vmatprep.subr.bf16.mxu0 %v568
        %632 = vmatpush1.bf16.msra.mxu0 %v567
        %633 = vmatprep.subr.bf16.mxu0 %v570
        %634 = vmatpush1.bf16.msra.mxu0 %v569
        %635 = vmatprep.subr.bf16.mxu0 %v572
        %636 = vmatpush1.bf16.msra.mxu0 %v571
        %637 = vmatprep.subr.bf16.mxu0 %v574
        %638 = vmatpush1.bf16.msra.mxu0 %v573
        %639 = vmatprep.subr.bf16.mxu0 %v576
        %640 = vmatpush1.bf16.msra.mxu0 %v575
        %641 = vmatprep.subr.bf16.mxu0 %v578
        %642 = vmatpush1.bf16.msra.mxu0 %v577
        %643 = vmatprep.subr.bf16.mxu0 %v580
        %644 = vmatpush1.bf16.msra.mxu0 %v579
        %645 = vmatprep.mubr.bf16.mxu0 %v446
        %646 = vmatmul.mubr.bf16.gmra.mrb[0].mxu0 %v445
        %v647 = vpop.f32.mrb[0].mxu0
        %v648 = vadd.f32 %v426, %v647
        %v649 = vpop.f32.mrb[0].mxu0
        %v650 = vadd.f32 %v430, %v649
        %v651 = vpop.f32.mrb[0].mxu0
        %v652 = vadd.f32 %v426, %v651
        %v653 = vpop.f32.mrb[0].mxu0
        %v654 = vadd.f32 %v430, %v653
        %655 = vmatprep.mubr.bf16.mxu0 %v448
        %656 = vmatmul.mubr.bf16.gmra.mrb[0].mxu0 %v447
        %v657 = vpop.f32.mrb[0].mxu0
        %v658 = vadd.f32 %v426, %v657
        %v659 = vpop.f32.mrb[0].mxu0
        %v660 = vadd.f32 %v430, %v659
        %v661 = vpop.f32.mrb[0].mxu0
        %v662 = vadd.f32 %v426, %v661
        %v663 = vpop.f32.mrb[0].mxu0
        %v664 = vadd.f32 %v430, %v663
        %665 = vdwg.mxu0
        %v666 = vpack.c.bf16 %v652, %v648
        %v667 = vpack.c.bf16 %v654, %v650
        %v668 = vpack.c.bf16 %v662, %v658
        %v669 = vpack.c.bf16 %v664, %v660
        %v674 = vunpack.c.l.b16 %v666
        %v675 = vunpack.c.l.b16 %v667
        %v676 = vunpack.c.h.b16 %v666
        %v677 = vunpack.c.h.b16 %v667
        %v678 = vunpack.c.l.b16 %v668
        %v679 = vunpack.c.l.b16 %v669
        %v680 = vunpack.c.h.b16 %v668
        %v681 = vunpack.c.h.b16 %v669
        %v682 = vpack.c.b16 %v675, %v674
        %v683 = vpack.c.b16 %v677, %v676
        %v684 = vpack.c.b16 %v679, %v678
        %v685 = vpack.c.b16 %v681, %v680
        %690 = vst [vmem:[%s369] sm:$0xff] %v682
        %691 = vst [vmem:[%s369 + $0x8] sm:$0xff] %v683
        %692 = vst [vmem:[%s369 + $0x10] sm:$0xff] %v684
        %693 = vst [vmem:[%s369 + $0x18] sm:$0xff] %v685
        %s694 = sand.u32 %s114, 1
        %s695 = sand.u32 %s114, 1
        %s696 = smul.addr %s695, 32
        %s697 = scalar_lea.vmem [#allocation3], %s696
        // Predicated region
        $region71: #{resnet_forward.23} parent=65 // pred_check
          %p698 = pneg %p124
        $region72: #{resnet_forward.23} parent=65 // pred_check_branch
          %700 = sbr.rel (%p698) target = $region74
        $region73: #{resnet_forward.23} parent=65 // pred_region
          %s701 = smul.u32 4, %s18
          %s702 = smul.u32 2, %s19
          %s703 = smul.addr %s701, 4
          %s704 = sadd.s32 %s702, %s703
          %s705 = smul.addr %s704, 4
          %s706 = scalar_lea.vmem %s3, %s705
          // Predicated region
          $region75: #{resnet_forward.23} parent=73 // pred_check
            _
          $region76: #{resnet_forward.23} parent=73 // pred_check_branch
            %708 = sbr.rel (0) target = $region78
          $region77: #{resnet_forward.23} parent=73 // pred_region
            // Predicated region
            $region79: #{resnet_forward.23} parent=77 // pred_check
              _
            $region80: #{resnet_forward.23} parent=77 // pred_check_branch
              %710 = sbr.rel (0) target = $region82
            $region81: #{resnet_forward.23} parent=77 // pred_region
              // Predicated region
              $region94: #{resnet_forward.23} parent=81 // pred_check
                _
              $region95: #{resnet_forward.23} parent=81 // pred_check_branch
                %731 = sbr.rel (0) target = $region97
              $region96: #{resnet_forward.23} parent=81 // pred_region
                loop: start=0, step=1, limit=1
                $region98: #{resnet_forward.23} parent=96 // loop_pre_header
                  _
                $region99: #{resnet_forward.23} parent=96 // loop_header
                  %s733 = sphi 0, %s737
                  %p734 = scmp.ge.s32.totalorder %s733, 1
                  %s738 = sphi %s697, %s697
                  %s739 = sphi %s706, %s706
                $region100: #{resnet_forward.23} parent=96 // loop_header_branch
                  %736 = sbr.rel (%p734) target = $region104
                $region101: #{resnet_forward.23} parent=96 // loop_body
                  %v740 = vld [vmem:[%s738] sm:$0xff]
                  %741 = vst [vmem:[%s739] sm:$0xff] %v740
                  %v742 = vld [vmem:[%s738 + $0x8] sm:$0xff]
                  %743 = vst [vmem:[%s739 + $0x10] sm:$0xff] %v742
                  %v744 = vld [vmem:[%s738 + $0x10] sm:$0xff]
                  %745 = vst [vmem:[%s739 + $0x20] sm:$0xff] %v744
                  %v746 = vld [vmem:[%s738 + $0x18] sm:$0xff]
                  %747 = vst [vmem:[%s739 + $0x30] sm:$0xff] %v746
                $region102: #{resnet_forward.23} parent=96 // loop_footer
                  %s737 = sadd.s32 1, %s733
                $region103: #{resnet_forward.23} parent=96 // loop_footer_branch
                  %732 = sbr.rel target = $region99
                $region104: #{resnet_forward.23} parent=96 // loop_exit
                  _
              $region97: #{resnet_forward.23} parent=81 // pred_fallthru
                _
              // Predicated region
              $region105: #{resnet_forward.23} parent=81 // pred_check
                _
              $region106: #{resnet_forward.23} parent=81 // pred_check_branch
                %749 = sbr.rel target = $region108
              $region107: #{resnet_forward.23} parent=81 // pred_region
                _
              $region108: #{resnet_forward.23} parent=81 // pred_fallthru
                _
            $region82: #{resnet_forward.23} parent=77 // pred_fallthru
              _
            // Predicated region
            $region83: #{resnet_forward.23} parent=77 // pred_check
              _
            $region84: #{resnet_forward.23} parent=77 // pred_check_branch
              %712 = sbr.rel target = $region86
            $region85: #{resnet_forward.23} parent=77 // pred_region
              loop: start=0, step=1, limit=1
              $region87: #{resnet_forward.23} parent=85 // loop_pre_header
                _
              $region88: #{resnet_forward.23} parent=85 // loop_header
                %s715 = sphi 0, %s719
                %p716 = scmp.ge.s32.totalorder %s715, 1
                %s720 = sphi %s697, %s697
                %s721 = sphi %s706, %s706
              $region89: #{resnet_forward.23} parent=85 // loop_header_branch
                %718 = sbr.rel (%p716) target = $region93
              $region90: #{resnet_forward.23} parent=85 // loop_body
                %v722 = vld [vmem:[%s720] sm:$0xff]
                %723 = vst [vmem:[%s721] sm:$0xff] %v722
                %v724 = vld [vmem:[%s720 + $0x8] sm:$0xff]
                %725 = vst [vmem:[%s721 + $0x10] sm:$0xff] %v724
                %v726 = vld [vmem:[%s720 + $0x10] sm:$0xff]
                %727 = vst [vmem:[%s721 + $0x20] sm:$0xff] %v726
                %v728 = vld [vmem:[%s720 + $0x18] sm:$0xff]
                %729 = vst [vmem:[%s721 + $0x30] sm:$0xff] %v728
              $region91: #{resnet_forward.23} parent=85 // loop_footer
                %s719 = sadd.s32 1, %s715
              $region92: #{resnet_forward.23} parent=85 // loop_footer_branch
                %714 = sbr.rel target = $region88
              $region93: #{resnet_forward.23} parent=85 // loop_exit
                _
            $region86: #{resnet_forward.23} parent=77 // pred_fallthru
              _
          $region78: #{resnet_forward.23} parent=73 // pred_fallthru
            _
          %750 = vnop
        $region74: #{resnet_forward.23} parent=65 // pred_fallthru
          _
      $region66: #{resnet_forward.23} parent=5 // pred_fallthru
        _
      %p751 = scmp.le.s32.totalorder 2, %s9
      // Predicated region
      $region109: #{resnet_forward.23} parent=5 // pred_check
        %p752 = pneg %p751
      $region110: #{resnet_forward.23} parent=5 // pred_check_branch
        %754 = sbr.rel (%p752) target = $region112
      $region111: #{resnet_forward.23} parent=5 // pred_region
        %s755 = ssub.s32 %s9, 2
        // Predicated region
        $region113: #{resnet_forward.23} parent=111 // pred_check
          %p756 = pneg %p130
        $region114: #{resnet_forward.23} parent=111 // pred_check_branch
          %758 = sbr.rel (%p756) target = $region116
        $region115: #{resnet_forward.23} parent=111 // pred_region
          %s759 = sand.u32 %s115, 1
          %s760 = sand.u32 %s115, 1
          %s761 = smul.addr %s760, 32
          %s762 = scalar_lea.vmem [#allocation3], %s761
        $region116: #{resnet_forward.23} parent=111 // pred_fallthru
          _
      $region112: #{resnet_forward.23} parent=5 // pred_fallthru
        _
    $region6: #{resnet_forward.23} parent=1 // loop_footer
      %s13 = sadd.s32 1, %s9
    $region7: #{resnet_forward.23} parent=1 // loop_footer_branch
      %8 = sbr.rel target = $region3
    $region8: #{resnet_forward.23} parent=1 // loop_exit
      _

// kernel: resnet_forward.24
$region0: #{resnet_forward.24}
  #allocation0 [shape = 'u32[]', space=smem, size = 0x4, offset = 0x4, fixed_abs, tag = 'smem constant byte address 0x4 - core index']
  #allocation1 [shape = 'u32[144,128]{1,0:T(1,128)}', space=vmem, size = 0x12000, scoped, tag = 'internal scratch']
  %s0 = inlined_call_operand.vmem [shape: bf16[32,128], index: 0, kind: input, shape index: {}]
  %s1 = inlined_call_operand.vmem [shape: bf16[128,512], index: 1, kind: input, shape index: {}]
  %s2 = inlined_call_operand.vmem [shape: f32[1,512], index: 2, kind: input, shape index: {}]
  %s3 = inlined_call_operand.vmem [shape: bf16[32,512], index: 3, kind: input, shape index: {}]
  %s4 = inlined_call_operand.vmem [shape: bf16[32,512], index: 4, kind: output, shape index: {}]
  %s5 = sld [smem:[#allocation0]]
  $region159: #{resnet_forward.24} parent=0
    _
  %s7 = ssub.s32 1, %s5
  %s8 = scalar_select 0, %s7, %s5
  $region1: #{resnet_forward.24} parent=0
    #allocation2 [shape = 'u8[131072]{0}', space=vmem, size = 0x20000, scoped, tag = 'input window, operand 1']
    #allocation3 [shape = 'u8[32768]{0}', space=vmem, size = 0x8000, scoped, tag = 'input window, operand 3']
    #allocation4 [shape = 'u8[32768]{0}', space=vmem, size = 0x8000, scoped, tag = 'output window, operand 0']
    loop: start=0, step=1, limit=4
    $region2: #{resnet_forward.24} parent=1 // loop_pre_header
      _
    $region3: #{resnet_forward.24} parent=1 // loop_header
      %s10 = sphi 0, %s14
      %p11 = scmp.ge.s32.totalorder %s10, 4
      %s17 = sphi 0, %s29
      %s18 = sphi 0, %s25
      %s19 = sphi 0, %s17
      %s20 = sphi 0, %s18
      %s21 = sphi 0, %s19
      %s22 = sphi 0, %s20
      %s32 = sphi 0, %s34
      %s35 = sphi 0, %s32
      %s36 = sphi 0, %s35
      %s52 = sphi 0, %s36
      %s58 = sphi 0, %s60
      %s61 = sphi 0, %s58
      %s62 = sphi 0, %s61
      %s78 = sphi 0, %s62
      %s84 = sphi 0, %s86
      %s87 = sphi 0, %s84
      %s88 = sphi 0, %s87
      %s104 = sphi 0, %s88
      %s112 = sphi 0, %s114
      %s115 = sphi 0, %s112
      %s116 = sphi 0, %s115
      %s132 = sphi 0, %s116
      %s140 = sphi 0, %s142
      %s143 = sphi 0, %s140
      %s144 = sphi 0, %s143
      %s160 = sphi 0, %s144
    $region4: #{resnet_forward.24} parent=1 // loop_header_branch
      %13 = sbr.rel (%p11) target = $region8
    $region5: #{resnet_forward.24} parent=1 // loop_body
      %s15 = ssub.s32 %s10, 1
      %s16 = ssub.s32 %s10, 2
      %s23 = sadd.s32 1, %s18
      %p24 = scmp.ge.s32.totalorder %s23, 2
      %s25 = scalar_select %p24, 0, %s23
      %s26 = sadd.s32 1, %s17
      %s27 = scalar_select %p24, %s26, %s17
      %p28 = scmp.ge.s32.totalorder %s27, 1
      %s29 = scalar_select %p28, 0, %s27
      %s30 = ssub.s32 %s17, %s29
      %p31 = scmp.eq.s32.totalorder %s30, 0
      %s33 = sadd.s32 %s32, 1
      %s34 = scalar_select %p31, %s32, %s33
      %p37 = pneg %p31
      %p38 = scmp.eq.s32.totalorder %s10, 1
      %p39 = por %p37, %p38
      %p40 = scmp.ne.s32.totalorder %s32, %s35
      %p41 = scmp.eq.s32.totalorder %s10, 0
      %p42 = por %p40, %p41
      %p43 = scmp.ne.s32.totalorder %s32, %s35
      %p44 = scmp.eq.s32.totalorder %s15, 1
      %p45 = por %p43, %p44
      %p46 = scmp.ne.s32.totalorder %s35, %s36
      %p47 = scmp.eq.s32.totalorder %s15, 0
      %p48 = por %p46, %p47
      %p49 = scmp.ne.s32.totalorder %s35, %s36
      %p50 = scmp.eq.s32.totalorder %s16, 1
      %p51 = por %p49, %p50
      %p53 = scmp.ne.s32.totalorder %s36, %s52
      %p54 = scmp.eq.s32.totalorder %s16, 0
      %p55 = por %p53, %p54
      %s56 = ssub.s32 %s18, %s25
      %p57 = scmp.eq.s32.totalorder %s56, 0
      %s59 = sadd.s32 %s58, 1
      %s60 = scalar_select %p57, %s58, %s59
      %p63 = pneg %p57
      %p64 = scmp.eq.s32.totalorder %s10, 1
      %p65 = por %p63, %p64
      %p66 = scmp.ne.s32.totalorder %s58, %s61
      %p67 = scmp.eq.s32.totalorder %s10, 0
      %p68 = por %p66, %p67
      %p69 = scmp.ne.s32.totalorder %s58, %s61
      %p70 = scmp.eq.s32.totalorder %s15, 1
      %p71 = por %p69, %p70
      %p72 = scmp.ne.s32.totalorder %s61, %s62
      %p73 = scmp.eq.s32.totalorder %s15, 0
      %p74 = por %p72, %p73
      %p75 = scmp.ne.s32.totalorder %s61, %s62
      %p76 = scmp.eq.s32.totalorder %s16, 1
      %p77 = por %p75, %p76
      %p79 = scmp.ne.s32.totalorder %s62, %s78
      %p80 = scmp.eq.s32.totalorder %s16, 0
      %p81 = por %p79, %p80
      %s82 = ssub.s32 %s18, %s25
      %p83 = scmp.eq.s32.totalorder %s82, 0
      %s85 = sadd.s32 %s84, 1
      %s86 = scalar_select %p83, %s84, %s85
      %p89 = pneg %p83
      %p90 = scmp.eq.s32.totalorder %s10, 1
      %p91 = por %p89, %p90
      %p92 = scmp.ne.s32.totalorder %s84, %s87
      %p93 = scmp.eq.s32.totalorder %s10, 0
      %p94 = por %p92, %p93
      %p95 = scmp.ne.s32.totalorder %s84, %s87
      %p96 = scmp.eq.s32.totalorder %s15, 1
      %p97 = por %p95, %p96
      %p98 = scmp.ne.s32.totalorder %s87, %s88
      %p99 = scmp.eq.s32.totalorder %s15, 0
      %p100 = por %p98, %p99
      %p101 = scmp.ne.s32.totalorder %s87, %s88
      %p102 = scmp.eq.s32.totalorder %s16, 1
      %p103 = por %p101, %p102
      %p105 = scmp.ne.s32.totalorder %s88, %s104
      %p106 = scmp.eq.s32.totalorder %s16, 0
      %p107 = por %p105, %p106
      %s108 = ssub.s32 %s17, %s29
      %s109 = ssub.s32 %s18, %s25
      %s110 = sor.u32 %s108, %s109
      %p111 = scmp.eq.s32.totalorder %s110, 0
      %s113 = sadd.s32 %s112, 1
      %s114 = scalar_select %p111, %s112, %s113
      %p117 = pneg %p111
      %p118 = scmp.eq.s32.totalorder %s10, 1
      %p119 = por %p117, %p118
      %p120 = scmp.ne.s32.totalorder %s112, %s115
      %p121 = scmp.eq.s32.totalorder %s10, 0
      %p122 = por %p120, %p121
      %p123 = scmp.ne.s32.totalorder %s112, %s115
      %p124 = scmp.eq.s32.totalorder %s15, 1
      %p125 = por %p123, %p124
      %p126 = scmp.ne.s32.totalorder %s115, %s116
      %p127 = scmp.eq.s32.totalorder %s15, 0
      %p128 = por %p126, %p127
      %p129 = scmp.ne.s32.totalorder %s115, %s116
      %p130 = scmp.eq.s32.totalorder %s16, 1
      %p131 = por %p129, %p130
      %p133 = scmp.ne.s32.totalorder %s116, %s132
      %p134 = scmp.eq.s32.totalorder %s16, 0
      %p135 = por %p133, %p134
      %s136 = ssub.s32 %s17, %s29
      %s137 = ssub.s32 %s18, %s25
      %s138 = sor.u32 %s136, %s137
      %p139 = scmp.eq.s32.totalorder %s138, 0
      %s141 = sadd.s32 %s140, 1
      %s142 = scalar_select %p139, %s140, %s141
      %p145 = pneg %p139
      %p146 = scmp.eq.s32.totalorder %s10, 1
      %p147 = por %p145, %p146
      %p148 = scmp.ne.s32.totalorder %s140, %s143
      %p149 = scmp.eq.s32.totalorder %s10, 0
      %p150 = por %p148, %p149
      %p151 = scmp.ne.s32.totalorder %s140, %s143
      %p152 = scmp.eq.s32.totalorder %s15, 1
      %p153 = por %p151, %p152
      %p154 = scmp.ne.s32.totalorder %s143, %s144
      %p155 = scmp.eq.s32.totalorder %s15, 0
      %p156 = por %p154, %p155
      %p157 = scmp.ne.s32.totalorder %s143, %s144
      %p158 = scmp.eq.s32.totalorder %s16, 1
      %p159 = por %p157, %p158
      %p161 = scmp.ne.s32.totalorder %s144, %s160
      %p162 = scmp.eq.s32.totalorder %s16, 0
      %p163 = por %p161, %p162
      %p164 = scmp.le.s32.totalorder 1, %s10
      %p165 = scmp.lt.s32.totalorder %s10, 3
      %p166 = pnand %p164, %p165
      %p167 = pneg %p166
      // Predicated region
      $region9: #{resnet_forward.24} parent=5 // pred_check
        _
      $region10: #{resnet_forward.24} parent=5 // pred_check_branch
        %169 = sbr.rel (%p166) target = $region12
      $region11: #{resnet_forward.24} parent=5 // pred_region
        %s170 = ssub.s32 %s10, 1
        // Predicated region
        $region13: #{resnet_forward.24} parent=11 // pred_check
          %p171 = pneg %p48
        $region14: #{resnet_forward.24} parent=11 // pred_check_branch
          %173 = sbr.rel (%p171) target = $region16
        $region15: #{resnet_forward.24} parent=11 // pred_region
          %s174 = smul.u32 4, %s19
          %p175 = scmp.lt.s32.totalorder %s174, 3
          %s176 = scalar_select %p175, %s174, 3
          %s177 = smul.addr %s176, 4
          %s178 = scalar_lea.vmem %s0, %s177
          %s179 = smul.u32 4, %s19
        $region16: #{resnet_forward.24} parent=11 // pred_fallthru
          _
      $region12: #{resnet_forward.24} parent=5 // pred_fallthru
        _
      %p180 = scmp.lt.s32.totalorder %s10, 2
      // Predicated region
      $region17: #{resnet_forward.24} parent=5 // pred_check
        %p181 = pneg %p180
      $region18: #{resnet_forward.24} parent=5 // pred_check_branch
        %183 = sbr.rel (%p181) target = $region20
      $region19: #{resnet_forward.24} parent=5 // pred_region
        // Predicated region
        $region21: #{resnet_forward.24} parent=19 // pred_check
          %p184 = pneg %p68
        $region22: #{resnet_forward.24} parent=19 // pred_check_branch
          %186 = sbr.rel (%p184) target = $region24
        $region23: #{resnet_forward.24} parent=19 // pred_region
          %s187 = sand.u32 %s58, 1
          %s188 = sand.u32 %s58, 1
          %s189 = smul.addr %s188, 128
          %s190 = scalar_lea.vmem [#allocation2], %s189
          %s191 = smul.u32 2, %s18
          %s192 = smul.addr %s191, 4
          %s193 = scalar_lea.vmem %s1, %s192
          // Predicated region
          $region25: #{resnet_forward.24} parent=23 // pred_check
            _
          $region26: #{resnet_forward.24} parent=23 // pred_check_branch
            %195 = sbr.rel (0) target = $region28
          $region27: #{resnet_forward.24} parent=23 // pred_region
            // Predicated region
            $region29: #{resnet_forward.24} parent=27 // pred_check
              _
            $region30: #{resnet_forward.24} parent=27 // pred_check_branch
              %197 = sbr.rel (0) target = $region32
            $region31: #{resnet_forward.24} parent=27 // pred_region
              // Predicated region
              $region44: #{resnet_forward.24} parent=31 // pred_check
                _
              $region45: #{resnet_forward.24} parent=31 // pred_check_branch
                %242 = sbr.rel (0) target = $region47
              $region46: #{resnet_forward.24} parent=31 // pred_region
                loop: start=0, step=1, limit=1
                $region48: #{resnet_forward.24} parent=46 // loop_pre_header
                  _
                $region49: #{resnet_forward.24} parent=46 // loop_header
                  %s244 = sphi 0, %s248
                  %p245 = scmp.ge.s32.totalorder %s244, 1
                  %s249 = sphi %s193, %s193
                  %s250 = sphi %s190, %s190
                $region50: #{resnet_forward.24} parent=46 // loop_header_branch
                  %247 = sbr.rel (%p245) target = $region54
                $region51: #{resnet_forward.24} parent=46 // loop_body
                  %v251 = vld [vmem:[%s249] sm:$0xff]
                  %252 = vst [vmem:[%s250] sm:$0xff] %v251
                  %v253 = vld [vmem:[%s249 + $0x10] sm:$0xff]
                  %254 = vst [vmem:[%s250 + $0x8] sm:$0xff] %v253
                  %v255 = vld [vmem:[%s249 + $0x20] sm:$0xff]
                  %256 = vst [vmem:[%s250 + $0x10] sm:$0xff] %v255
                  %v257 = vld [vmem:[%s249 + $0x30] sm:$0xff]
                  %258 = vst [vmem:[%s250 + $0x18] sm:$0xff] %v257
                  %v259 = vld [vmem:[%s249 + $0x40] sm:$0xff]
                  %260 = vst [vmem:[%s250 + $0x20] sm:$0xff] %v259
                  %v261 = vld [vmem:[%s249 + $0x50] sm:$0xff]
                  %262 = vst [vmem:[%s250 + $0x28] sm:$0xff] %v261
                  %v263 = vld [vmem:[%s249 + $0x60] sm:$0xff]
                  %264 = vst [vmem:[%s250 + $0x30] sm:$0xff] %v263
                  %v265 = vld [vmem:[%s249 + $0x70] sm:$0xff]
                  %266 = vst [vmem:[%s250 + $0x38] sm:$0xff] %v265
                  %v267 = vld [vmem:[%s249 + $0x80] sm:$0xff]
                  %268 = vst [vmem:[%s250 + $0x40] sm:$0xff] %v267
                  %v269 = vld [vmem:[%s249 + $0x90] sm:$0xff]
                  %270 = vst [vmem:[%s250 + $0x48] sm:$0xff] %v269
                  %v271 = vld [vmem:[%s249 + $0xa0] sm:$0xff]
                  %272 = vst [vmem:[%s250 + $0x50] sm:$0xff] %v271
                  %v273 = vld [vmem:[%s249 + $0xb0] sm:$0xff]
                  %274 = vst [vmem:[%s250 + $0x58] sm:$0xff] %v273
                  %v275 = vld [vmem:[%s249 + $0xc0] sm:$0xff]
                  %276 = vst [vmem:[%s250 + $0x60] sm:$0xff] %v275
                  %v277 = vld [vmem:[%s249 + $0xd0] sm:$0xff]
                  %278 = vst [vmem:[%s250 + $0x68] sm:$0xff] %v277
                  %v279 = vld [vmem:[%s249 + $0xe0] sm:$0xff]
                  %280 = vst [vmem:[%s250 + $0x70] sm:$0xff] %v279
                  %v281 = vld [vmem:[%s249 + $0xf0] sm:$0xff]
                  %282 = vst [vmem:[%s250 + $0x78] sm:$0xff] %v281
                $region52: #{resnet_forward.24} parent=46 // loop_footer
                  %s248 = sadd.s32 1, %s244
                $region53: #{resnet_forward.24} parent=46 // loop_footer_branch
                  %243 = sbr.rel target = $region49
                $region54: #{resnet_forward.24} parent=46 // loop_exit
                  _
              $region47: #{resnet_forward.24} parent=31 // pred_fallthru
                _
              // Predicated region
              $region55: #{resnet_forward.24} parent=31 // pred_check
                _
              $region56: #{resnet_forward.24} parent=31 // pred_check_branch
                %284 = sbr.rel target = $region58
              $region57: #{resnet_forward.24} parent=31 // pred_region
                _
              $region58: #{resnet_forward.24} parent=31 // pred_fallthru
                _
            $region32: #{resnet_forward.24} parent=27 // pred_fallthru
              _
            // Predicated region
            $region33: #{resnet_forward.24} parent=27 // pred_check
              _
            $region34: #{resnet_forward.24} parent=27 // pred_check_branch
              %199 = sbr.rel target = $region36
            $region35: #{resnet_forward.24} parent=27 // pred_region
              loop: start=0, step=1, limit=1
              $region37: #{resnet_forward.24} parent=35 // loop_pre_header
                _
              $region38: #{resnet_forward.24} parent=35 // loop_header
                %s202 = sphi 0, %s206
                %p203 = scmp.ge.s32.totalorder %s202, 1
                %s207 = sphi %s193, %s193
                %s208 = sphi %s190, %s190
              $region39: #{resnet_forward.24} parent=35 // loop_header_branch
                %205 = sbr.rel (%p203) target = $region43
              $region40: #{resnet_forward.24} parent=35 // loop_body
                %v209 = vld [vmem:[%s207] sm:$0xff]
                %210 = vst [vmem:[%s208] sm:$0xff] %v209
                %v211 = vld [vmem:[%s207 + $0x10] sm:$0xff]
                %212 = vst [vmem:[%s208 + $0x8] sm:$0xff] %v211
                %v213 = vld [vmem:[%s207 + $0x20] sm:$0xff]
                %214 = vst [vmem:[%s208 + $0x10] sm:$0xff] %v213
                %v215 = vld [vmem:[%s207 + $0x30] sm:$0xff]
                %216 = vst [vmem:[%s208 + $0x18] sm:$0xff] %v215
                %v217 = vld [vmem:[%s207 + $0x40] sm:$0xff]
                %218 = vst [vmem:[%s208 + $0x20] sm:$0xff] %v217
                %v219 = vld [vmem:[%s207 + $0x50] sm:$0xff]
                %220 = vst [vmem:[%s208 + $0x28] sm:$0xff] %v219
                %v221 = vld [vmem:[%s207 + $0x60] sm:$0xff]
                %222 = vst [vmem:[%s208 + $0x30] sm:$0xff] %v221
                %v223 = vld [vmem:[%s207 + $0x70] sm:$0xff]
                %224 = vst [vmem:[%s208 + $0x38] sm:$0xff] %v223
                %v225 = vld [vmem:[%s207 + $0x80] sm:$0xff]
                %226 = vst [vmem:[%s208 + $0x40] sm:$0xff] %v225
                %v227 = vld [vmem:[%s207 + $0x90] sm:$0xff]
                %228 = vst [vmem:[%s208 + $0x48] sm:$0xff] %v227
                %v229 = vld [vmem:[%s207 + $0xa0] sm:$0xff]
                %230 = vst [vmem:[%s208 + $0x50] sm:$0xff] %v229
                %v231 = vld [vmem:[%s207 + $0xb0] sm:$0xff]
                %232 = vst [vmem:[%s208 + $0x58] sm:$0xff] %v231
                %v233 = vld [vmem:[%s207 + $0xc0] sm:$0xff]
                %234 = vst [vmem:[%s208 + $0x60] sm:$0xff] %v233
                %v235 = vld [vmem:[%s207 + $0xd0] sm:$0xff]
                %236 = vst [vmem:[%s208 + $0x68] sm:$0xff] %v235
                %v237 = vld [vmem:[%s207 + $0xe0] sm:$0xff]
                %238 = vst [vmem:[%s208 + $0x70] sm:$0xff] %v237
                %v239 = vld [vmem:[%s207 + $0xf0] sm:$0xff]
                %240 = vst [vmem:[%s208 + $0x78] sm:$0xff] %v239
              $region41: #{resnet_forward.24} parent=35 // loop_footer
                %s206 = sadd.s32 1, %s202
              $region42: #{resnet_forward.24} parent=35 // loop_footer_branch
                %201 = sbr.rel target = $region38
              $region43: #{resnet_forward.24} parent=35 // loop_exit
                _
            $region36: #{resnet_forward.24} parent=27 // pred_fallthru
              _
          $region28: #{resnet_forward.24} parent=23 // pred_fallthru
            _
          %285 = vnop
        $region24: #{resnet_forward.24} parent=19 // pred_fallthru
          _
        // Predicated region
        $region59: #{resnet_forward.24} parent=19 // pred_check
          %p286 = pneg %p94
        $region60: #{resnet_forward.24} parent=19 // pred_check_branch
          %288 = sbr.rel (%p286) target = $region62
        $region61: #{resnet_forward.24} parent=19 // pred_region
          %s289 = smul.u32 2, %s18
          %p290 = scmp.lt.s32.totalorder %s289, 3
          %s291 = scalar_select %p290, %s289, 3
          %s292 = scalar_lea.vmem %s2, %s291
          %s293 = smul.u32 2, %s18
        $region62: #{resnet_forward.24} parent=19 // pred_fallthru
          _
        // Predicated region
        $region63: #{resnet_forward.24} parent=19 // pred_check
          %p294 = pneg %p122
        $region64: #{resnet_forward.24} parent=19 // pred_check_branch
          %296 = sbr.rel (%p294) target = $region66
        $region65: #{resnet_forward.24} parent=19 // pred_region
          %s297 = sand.u32 %s112, 1
          %s298 = sand.u32 %s112, 1
          %s299 = smul.addr %s298, 32
          %s300 = scalar_lea.vmem [#allocation3], %s299
          %s301 = smul.u32 4, %s17
          %s302 = smul.u32 2, %s18
          %s303 = smul.addr %s301, 4
          %s304 = sadd.s32 %s302, %s303
          %s305 = smul.addr %s304, 4
          %s306 = scalar_lea.vmem %s3, %s305
          // Predicated region
          $region67: #{resnet_forward.24} parent=65 // pred_check
            _
          $region68: #{resnet_forward.24} parent=65 // pred_check_branch
            %308 = sbr.rel (0) target = $region70
          $region69: #{resnet_forward.24} parent=65 // pred_region
            // Predicated region
            $region71: #{resnet_forward.24} parent=69 // pred_check
              _
            $region72: #{resnet_forward.24} parent=69 // pred_check_branch
              %310 = sbr.rel (0) target = $region74
            $region73: #{resnet_forward.24} parent=69 // pred_region
              // Predicated region
              $region86: #{resnet_forward.24} parent=73 // pred_check
                _
              $region87: #{resnet_forward.24} parent=73 // pred_check_branch
                %331 = sbr.rel (0) target = $region89
              $region88: #{resnet_forward.24} parent=73 // pred_region
                loop: start=0, step=1, limit=1
                $region90: #{resnet_forward.24} parent=88 // loop_pre_header
                  _
                $region91: #{resnet_forward.24} parent=88 // loop_header
                  %s333 = sphi 0, %s337
                  %p334 = scmp.ge.s32.totalorder %s333, 1
                  %s338 = sphi %s306, %s306
                  %s339 = sphi %s300, %s300
                $region92: #{resnet_forward.24} parent=88 // loop_header_branch
                  %336 = sbr.rel (%p334) target = $region96
                $region93: #{resnet_forward.24} parent=88 // loop_body
                  %v340 = vld [vmem:[%s338] sm:$0xff]
                  %341 = vst [vmem:[%s339] sm:$0xff] %v340
                  %v342 = vld [vmem:[%s338 + $0x10] sm:$0xff]
                  %343 = vst [vmem:[%s339 + $0x8] sm:$0xff] %v342
                  %v344 = vld [vmem:[%s338 + $0x20] sm:$0xff]
                  %345 = vst [vmem:[%s339 + $0x10] sm:$0xff] %v344
                  %v346 = vld [vmem:[%s338 + $0x30] sm:$0xff]
                  %347 = vst [vmem:[%s339 + $0x18] sm:$0xff] %v346
                $region94: #{resnet_forward.24} parent=88 // loop_footer
                  %s337 = sadd.s32 1, %s333
                $region95: #{resnet_forward.24} parent=88 // loop_footer_branch
                  %332 = sbr.rel target = $region91
                $region96: #{resnet_forward.24} parent=88 // loop_exit
                  _
              $region89: #{resnet_forward.24} parent=73 // pred_fallthru
                _
              // Predicated region
              $region97: #{resnet_forward.24} parent=73 // pred_check
                _
              $region98: #{resnet_forward.24} parent=73 // pred_check_branch
                %349 = sbr.rel target = $region100
              $region99: #{resnet_forward.24} parent=73 // pred_region
                _
              $region100: #{resnet_forward.24} parent=73 // pred_fallthru
                _
            $region74: #{resnet_forward.24} parent=69 // pred_fallthru
              _
            // Predicated region
            $region75: #{resnet_forward.24} parent=69 // pred_check
              _
            $region76: #{resnet_forward.24} parent=69 // pred_check_branch
              %312 = sbr.rel target = $region78
            $region77: #{resnet_forward.24} parent=69 // pred_region
              loop: start=0, step=1, limit=1
              $region79: #{resnet_forward.24} parent=77 // loop_pre_header
                _
              $region80: #{resnet_forward.24} parent=77 // loop_header
                %s315 = sphi 0, %s319
                %p316 = scmp.ge.s32.totalorder %s315, 1
                %s320 = sphi %s306, %s306
                %s321 = sphi %s300, %s300
              $region81: #{resnet_forward.24} parent=77 // loop_header_branch
                %318 = sbr.rel (%p316) target = $region85
              $region82: #{resnet_forward.24} parent=77 // loop_body
                %v322 = vld [vmem:[%s320] sm:$0xff]
                %323 = vst [vmem:[%s321] sm:$0xff] %v322
                %v324 = vld [vmem:[%s320 + $0x10] sm:$0xff]
                %325 = vst [vmem:[%s321 + $0x8] sm:$0xff] %v324
                %v326 = vld [vmem:[%s320 + $0x20] sm:$0xff]
                %327 = vst [vmem:[%s321 + $0x10] sm:$0xff] %v326
                %v328 = vld [vmem:[%s320 + $0x30] sm:$0xff]
                %329 = vst [vmem:[%s321 + $0x18] sm:$0xff] %v328
              $region83: #{resnet_forward.24} parent=77 // loop_footer
                %s319 = sadd.s32 1, %s315
              $region84: #{resnet_forward.24} parent=77 // loop_footer_branch
                %314 = sbr.rel target = $region80
              $region85: #{resnet_forward.24} parent=77 // loop_exit
                _
            $region78: #{resnet_forward.24} parent=69 // pred_fallthru
              _
          $region70: #{resnet_forward.24} parent=65 // pred_fallthru
            _
          %350 = vnop
        $region66: #{resnet_forward.24} parent=19 // pred_fallthru
          _
      $region20: #{resnet_forward.24} parent=5 // pred_fallthru
        _
      %p351 = scmp.le.s32.totalorder 1, %s10
      %p352 = scmp.lt.s32.totalorder %s10, 3
      %p353 = pnand %p351, %p352
      %p354 = pneg %p353
      // Predicated region
      $region101: #{resnet_forward.24} parent=5 // pred_check
        _
      $region102: #{resnet_forward.24} parent=5 // pred_check_branch
        %356 = sbr.rel (%p353) target = $region104
      $region103: #{resnet_forward.24} parent=5 // pred_region
        %s357 = ssub.s32 %s10, 1
        %s358 = sand.u32 %s61, 1
        %s359 = sand.u32 %s61, 1
        %s360 = smul.addr %s359, 128
        %s361 = scalar_lea.vmem [#allocation2], %s360
        // Predicated region
        $region105: #{resnet_forward.24} parent=103 // pred_check
          %p362 = pneg %p74
        $region106: #{resnet_forward.24} parent=103 // pred_check_branch
          %364 = sbr.rel (%p362) target = $region108
        $region107: #{resnet_forward.24} parent=103 // pred_region
          _
        $region108: #{resnet_forward.24} parent=103 // pred_fallthru
          _
        %s365 = sand.u32 %s115, 1
        %s366 = sand.u32 %s115, 1
        %s367 = smul.addr %s366, 32
        %s368 = scalar_lea.vmem [#allocation3], %s367
        // Predicated region
        $region109: #{resnet_forward.24} parent=103 // pred_check
          %p369 = pneg %p128
        $region110: #{resnet_forward.24} parent=103 // pred_check_branch
          %371 = sbr.rel (%p369) target = $region112
        $region111: #{resnet_forward.24} parent=103 // pred_region
          _
        $region112: #{resnet_forward.24} parent=103 // pred_fallthru
          _
        %s372 = smul.u32 4, %s19
        %p373 = scmp.lt.s32.totalorder %s372, 3
        %s374 = scalar_select %p373, %s372, 3
        %s375 = smul.addr %s374, 4
        %s376 = scalar_lea.vmem %s0, %s375
        %p377 = pneg %p48
        %p378 = pneg %p45
        %s379 = sand.u32 %s61, 1
        %s380 = sand.u32 %s61, 1
        %s381 = smul.addr %s380, 128
        %s382 = scalar_lea.vmem [#allocation2], %s381
        %p383 = pneg %p74
        %p384 = pneg %p71
        %s385 = smul.u32 2, %s20
        %p386 = scmp.lt.s32.totalorder %s385, 3
        %s387 = scalar_select %p386, %s385, 3
        %s388 = scalar_lea.vmem %s2, %s387
        %p389 = pneg %p100
        %p390 = pneg %p97
        %s391 = sand.u32 %s115, 1
        %s392 = sand.u32 %s115, 1
        %s393 = smul.addr %s392, 32
        %s394 = scalar_lea.vmem [#allocation3], %s393
        %p395 = pneg %p128
        %p396 = pneg %p125
        %p397 = pneg %p156
        %p398 = pneg %p153
        %s399 = sand.u32 %s143, 1
        %s400 = sand.u32 %s143, 1
        %s401 = smul.addr %s400, 32
        %s402 = scalar_lea.vmem [#allocation4], %s401
        %s403 = smul.u32 4, %s19
        %p404 = scmp.lt.s32.totalorder %s403, 3
        %s405 = scalar_select %p404, %s403, 3
        %s406 = smul.addr %s405, 4
        %s407 = scalar_lea.vmem %s0, %s406
        %s408 = smul.u32 4, %s19
        %s409 = smul.u32 2, %s20
        %s410 = smul.u32 2, %s20
        %p411 = scmp.lt.s32.totalorder %s410, 3
        %s412 = scalar_select %p411, %s410, 3
        %s413 = scalar_lea.vmem %s2, %s412
        %s414 = smul.u32 2, %s20
        %s415 = smul.u32 4, %s19
        %s416 = smul.u32 2, %s20
        %s417 = smul.u32 4, %s19
        %s418 = smul.u32 2, %s20
        %v420 = vld [vmem:[%s407] sm:$0xf]
        %v421 = vld [vmem:[%s407 + $0x4] sm:$0xf]
        %v422 = vld [vmem:[%s407 + $0x8] sm:$0xf]
        %v423 = vld [vmem:[%s407 + $0xc] sm:$0xf]
        %v424 = vld [vmem:[%s361] sm:$0xff]
        %v425 = vld [vmem:[%s361 + $0x8] sm:$0xff]
        %v426 = vld [vmem:[%s361 + $0x10] sm:$0xff]
        %v427 = vld [vmem:[%s361 + $0x18] sm:$0xff]
        %v428 = vld [vmem:[%s361 + $0x20] sm:$0xff]
        %v429 = vld [vmem:[%s361 + $0x28] sm:$0xff]
        %v430 = vld [vmem:[%s361 + $0x30] sm:$0xff]
        %v431 = vld [vmem:[%s361 + $0x38] sm:$0xff]
        %v432 = vld [vmem:[%s361 + $0x40] sm:$0xff]
        %v433 = vld [vmem:[%s361 + $0x48] sm:$0xff]
        %v434 = vld [vmem:[%s361 + $0x50] sm:$0xff]
        %v435 = vld [vmem:[%s361 + $0x58] sm:$0xff]
        %v436 = vld [vmem:[%s361 + $0x60] sm:$0xff]
        %v437 = vld [vmem:[%s361 + $0x68] sm:$0xff]
        %v438 = vld [vmem:[%s361 + $0x70] sm:$0xff]
        %v439 = vld [vmem:[%s361 + $0x78] sm:$0xff]
        %v440 = vld [vmem:[%s413] sm:$0x3]
        %v442 = vlaneseq
        %v443 = vshrl.u32 %v442, 7
        %v444 = vsub.s32 0, %v443
        %v445 = vrot.slane %v440, %v444
        %v446 = vlaneseq
        %v447 = vshrl.u32 %v446, 7
        %v448 = vsub.s32 1, %v447
        %v449 = vrot.slane %v440, %v448
        %v456 = vunpack.c.l.b16 %v420
        %v457 = vunpack.c.l.b16 %v421
        %v458 = vunpack.c.l.b16 %v422
        %v459 = vunpack.c.l.b16 %v423
        %v460 = vpack.c.b16 %v457, %v456
        %v461 = vpack.c.b16 %v459, %v458
        %v480 = vunpack.c.l.b16 %v424
        %v481 = vunpack.c.h.b16 %v424
        %v482 = vunpack.c.l.b16 %v425
        %v483 = vunpack.c.h.b16 %v425
        %v484 = vunpack.c.l.b16 %v426
        %v485 = vunpack.c.h.b16 %v426
        %v486 = vunpack.c.l.b16 %v427
        %v487 = vunpack.c.h.b16 %v427
        %v488 = vunpack.c.l.b16 %v428
        %v489 = vunpack.c.h.b16 %v428
        %v490 = vunpack.c.l.b16 %v429
        %v491 = vunpack.c.h.b16 %v429
        %v492 = vunpack.c.l.b16 %v430
        %v493 = vunpack.c.h.b16 %v430
        %v494 = vunpack.c.l.b16 %v431
        %v495 = vunpack.c.h.b16 %v431
        %v496 = vunpack.c.l.b16 %v432
        %v497 = vunpack.c.h.b16 %v432
        %v498 = vunpack.c.l.b16 %v433
        %v499 = vunpack.c.h.b16 %v433
        %v500 = vunpack.c.l.b16 %v434
        %v501 = vunpack.c.h.b16 %v434
        %v502 = vunpack.c.l.b16 %v435
        %v503 = vunpack.c.h.b16 %v435
        %v504 = vunpack.c.l.b16 %v436
        %v505 = vunpack.c.h.b16 %v436
        %v506 = vunpack.c.l.b16 %v437
        %v507 = vunpack.c.h.b16 %v437
        %v508 = vunpack.c.l.b16 %v438
        %v509 = vunpack.c.h.b16 %v438
        %v510 = vunpack.c.l.b16 %v439
        %v511 = vunpack.c.h.b16 %v439
        %v512 = vpack.c.b16 %v482, %v480
        %v513 = vpack.c.b16 %v483, %v481
        %v514 = vpack.c.b16 %v486, %v484
        %v515 = vpack.c.b16 %v487, %v485
        %v516 = vpack.c.b16 %v490, %v488
        %v517 = vpack.c.b16 %v491, %v489
        %v518 = vpack.c.b16 %v494, %v492
        %v519 = vpack.c.b16 %v495, %v493
        %v520 = vpack.c.b16 %v498, %v496
        %v521 = vpack.c.b16 %v499, %v497
        %v522 = vpack.c.b16 %v502, %v500
        %v523 = vpack.c.b16 %v503, %v501
        %v524 = vpack.c.b16 %v506, %v504
        %v525 = vpack.c.b16 %v507, %v505
        %v526 = vpack.c.b16 %v510, %v508
        %v527 = vpack.c.b16 %v511, %v509
        %544 = vmatprep.subr.bf16.mxu0 %v513
        %545 = vmatpush1.bf16.msra.mxu0 %v512
        %546 = vmatprep.subr.bf16.mxu0 %v515
        %547 = vmatpush1.bf16.msra.mxu0 %v514
        %548 = vmatprep.subr.bf16.mxu0 %v517
        %549 = vmatpush1.bf16.msra.mxu0 %v516
        %550 = vmatprep.subr.bf16.mxu0 %v519
        %551 = vmatpush1.bf16.msra.mxu0 %v518
        %552 = vmatprep.subr.bf16.mxu0 %v521
        %553 = vmatpush1.bf16.msra.mxu0 %v520
        %554 = vmatprep.subr.bf16.mxu0 %v523
        %555 = vmatpush1.bf16.msra.mxu0 %v522
        %556 = vmatprep.subr.bf16.mxu0 %v525
        %557 = vmatpush1.bf16.msra.mxu0 %v524
        %558 = vmatprep.subr.bf16.mxu0 %v527
        %559 = vmatpush1.bf16.msra.mxu0 %v526
        %560 = vmatprep.subr.bf16.mxu0 0
        %561 = vmatpush1.bf16.msra.mxu0 0
        %562 = vmatprep.subr.bf16.mxu0 0
        %563 = vmatpush1.bf16.msra.mxu0 0
        %564 = vmatprep.subr.bf16.mxu0 0
        %565 = vmatpush1.bf16.msra.mxu0 0
        %566 = vmatprep.subr.bf16.mxu0 0
        %567 = vmatpush1.bf16.msra.mxu0 0
        %568 = vmatprep.subr.bf16.mxu0 0
        %569 = vmatpush1.bf16.msra.mxu0 0
        %570 = vmatprep.subr.bf16.mxu0 0
        %571 = vmatpush1.bf16.msra.mxu0 0
        %572 = vmatprep.subr.bf16.mxu0 0
        %573 = vmatpush1.bf16.msra.mxu0 0
        %574 = vmatprep.subr.bf16.mxu0 0
        %575 = vmatpush1.bf16.msra.mxu0 0
        %576 = vmatprep.mubr.bf16.mxu0 0
        %577 = vmatmul.mubr.bf16.gmra.mrb[0].mxu0 %v460
        %v578 = vpop.f32.mrb[0].mxu0
        %v579 = vadd.f32 %v445, %v578
        %v580 = vpop.f32.mrb[0].mxu0
        %v581 = vadd.f32 %v449, %v580
        %v582 = vpop.f32.mrb[0].mxu0
        %v583 = vadd.f32 %v445, %v582
        %v584 = vpop.f32.mrb[0].mxu0
        %v585 = vadd.f32 %v449, %v584
        %586 = vmatprep.mubr.bf16.mxu0 0
        %587 = vmatmul.mubr.bf16.gmra.mrb[0].mxu0 %v461
        %v588 = vpop.f32.mrb[0].mxu0
        %v589 = vadd.f32 %v445, %v588
        %v590 = vpop.f32.mrb[0].mxu0
        %v591 = vadd.f32 %v449, %v590
        %v592 = vpop.f32.mrb[0].mxu0
        %v593 = vadd.f32 %v445, %v592
        %v594 = vpop.f32.mrb[0].mxu0
        %v595 = vadd.f32 %v449, %v594
        %596 = vdwg.mxu0
        %v597 = vld [vmem:[%s368] sm:$0xff]
        %v598 = vld [vmem:[%s368 + $0x8] sm:$0xff]
        %v599 = vld [vmem:[%s368 + $0x10] sm:$0xff]
        %v600 = vld [vmem:[%s368 + $0x18] sm:$0xff]
        %v601 = vunpack.c.l.bf16 %v597
        %v602 = vunpack.c.h.bf16 %v597
        %v603 = vunpack.c.l.bf16 %v598
        %v604 = vunpack.c.h.bf16 %v598
        %v605 = vunpack.c.l.bf16 %v599
        %v606 = vunpack.c.h.bf16 %v599
        %v607 = vunpack.c.l.bf16 %v600
        %v608 = vunpack.c.h.bf16 %v600
        %v609 = vadd.f32 %v579, %v601
        %v610 = vadd.f32 %v581, %v602
        %v611 = vadd.f32 %v583, %v603
        %v612 = vadd.f32 %v585, %v604
        %v613 = vadd.f32 %v589, %v605
        %v614 = vadd.f32 %v591, %v606
        %v615 = vadd.f32 %v593, %v607
        %v616 = vadd.f32 %v595, %v608
        %v617 = vmax.f32 %v609, 0.0
        %v618 = vmax.f32 %v610, 0.0
        %v619 = vmax.f32 %v611, 0.0
        %v620 = vmax.f32 %v612, 0.0
        %v621 = vmax.f32 %v613, 0.0
        %v622 = vmax.f32 %v614, 0.0
        %v623 = vmax.f32 %v615, 0.0
        %v624 = vmax.f32 %v616, 0.0
        %v625 = vpack.c.bf16 %v619, %v617
        %v626 = vpack.c.bf16 %v620, %v618
        %v627 = vpack.c.bf16 %v623, %v621
        %v628 = vpack.c.bf16 %v624, %v622
        %v633 = vunpack.c.l.b16 %v625
        %v634 = vunpack.c.l.b16 %v626
        %v635 = vunpack.c.h.b16 %v625
        %v636 = vunpack.c.h.b16 %v626
        %v637 = vunpack.c.l.b16 %v627
        %v638 = vunpack.c.l.b16 %v628
        %v639 = vunpack.c.h.b16 %v627
        %v640 = vunpack.c.h.b16 %v628
        %v641 = vpack.c.b16 %v634, %v633
        %v642 = vpack.c.b16 %v636, %v635
        %v643 = vpack.c.b16 %v638, %v637
        %v644 = vpack.c.b16 %v640, %v639
        %649 = vst [vmem:[%s402] sm:$0xff] %v641
        %650 = vst [vmem:[%s402 + $0x8] sm:$0xff] %v642
        %651 = vst [vmem:[%s402 + $0x10] sm:$0xff] %v643
        %652 = vst [vmem:[%s402 + $0x18] sm:$0xff] %v644
        %s653 = sand.u32 %s143, 1
        %s654 = sand.u32 %s143, 1
        %s655 = smul.addr %s654, 32
        %s656 = scalar_lea.vmem [#allocation4], %s655
        // Predicated region
        $region113: #{resnet_forward.24} parent=103 // pred_check
          %p657 = pneg %p153
        $region114: #{resnet_forward.24} parent=103 // pred_check_branch
          %659 = sbr.rel (%p657) target = $region116
        $region115: #{resnet_forward.24} parent=103 // pred_region
          %s660 = smul.u32 4, %s19
          %s661 = smul.u32 2, %s20
          %s662 = smul.addr %s660, 4
          %s663 = sadd.s32 %s661, %s662
          %s664 = smul.addr %s663, 4
          %s665 = scalar_lea.vmem %s4, %s664
          // Predicated region
          $region117: #{resnet_forward.24} parent=115 // pred_check
            _
          $region118: #{resnet_forward.24} parent=115 // pred_check_branch
            %667 = sbr.rel (0) target = $region120
          $region119: #{resnet_forward.24} parent=115 // pred_region
            // Predicated region
            $region121: #{resnet_forward.24} parent=119 // pred_check
              _
            $region122: #{resnet_forward.24} parent=119 // pred_check_branch
              %669 = sbr.rel (0) target = $region124
            $region123: #{resnet_forward.24} parent=119 // pred_region
              // Predicated region
              $region136: #{resnet_forward.24} parent=123 // pred_check
                _
              $region137: #{resnet_forward.24} parent=123 // pred_check_branch
                %690 = sbr.rel (0) target = $region139
              $region138: #{resnet_forward.24} parent=123 // pred_region
                loop: start=0, step=1, limit=1
                $region140: #{resnet_forward.24} parent=138 // loop_pre_header
                  _
                $region141: #{resnet_forward.24} parent=138 // loop_header
                  %s692 = sphi 0, %s696
                  %p693 = scmp.ge.s32.totalorder %s692, 1
                  %s697 = sphi %s656, %s656
                  %s698 = sphi %s665, %s665
                $region142: #{resnet_forward.24} parent=138 // loop_header_branch
                  %695 = sbr.rel (%p693) target = $region146
                $region143: #{resnet_forward.24} parent=138 // loop_body
                  %v699 = vld [vmem:[%s697] sm:$0xff]
                  %700 = vst [vmem:[%s698] sm:$0xff] %v699
                  %v701 = vld [vmem:[%s697 + $0x8] sm:$0xff]
                  %702 = vst [vmem:[%s698 + $0x10] sm:$0xff] %v701
                  %v703 = vld [vmem:[%s697 + $0x10] sm:$0xff]
                  %704 = vst [vmem:[%s698 + $0x20] sm:$0xff] %v703
                  %v705 = vld [vmem:[%s697 + $0x18] sm:$0xff]
                  %706 = vst [vmem:[%s698 + $0x30] sm:$0xff] %v705
                $region144: #{resnet_forward.24} parent=138 // loop_footer
                  %s696 = sadd.s32 1, %s692
                $region145: #{resnet_forward.24} parent=138 // loop_footer_branch
                  %691 = sbr.rel target = $region141
                $region146: #{resnet_forward.24} parent=138 // loop_exit
                  _
              $region139: #{resnet_forward.24} parent=123 // pred_fallthru
                _
              // Predicated region
              $region147: #{resnet_forward.24} parent=123 // pred_check
                _
              $region148: #{resnet_forward.24} parent=123 // pred_check_branch
                %708 = sbr.rel target = $region150
              $region149: #{resnet_forward.24} parent=123 // pred_region
                _
              $region150: #{resnet_forward.24} parent=123 // pred_fallthru
                _
            $region124: #{resnet_forward.24} parent=119 // pred_fallthru
              _
            // Predicated region
            $region125: #{resnet_forward.24} parent=119 // pred_check
              _
            $region126: #{resnet_forward.24} parent=119 // pred_check_branch
              %671 = sbr.rel target = $region128
            $region127: #{resnet_forward.24} parent=119 // pred_region
              loop: start=0, step=1, limit=1
              $region129: #{resnet_forward.24} parent=127 // loop_pre_header
                _
              $region130: #{resnet_forward.24} parent=127 // loop_header
                %s674 = sphi 0, %s678
                %p675 = scmp.ge.s32.totalorder %s674, 1
                %s679 = sphi %s656, %s656
                %s680 = sphi %s665, %s665
              $region131: #{resnet_forward.24} parent=127 // loop_header_branch
                %677 = sbr.rel (%p675) target = $region135
              $region132: #{resnet_forward.24} parent=127 // loop_body
                %v681 = vld [vmem:[%s679] sm:$0xff]
                %682 = vst [vmem:[%s680] sm:$0xff] %v681
                %v683 = vld [vmem:[%s679 + $0x8] sm:$0xff]
                %684 = vst [vmem:[%s680 + $0x10] sm:$0xff] %v683
                %v685 = vld [vmem:[%s679 + $0x10] sm:$0xff]
                %686 = vst [vmem:[%s680 + $0x20] sm:$0xff] %v685
                %v687 = vld [vmem:[%s679 + $0x18] sm:$0xff]
                %688 = vst [vmem:[%s680 + $0x30] sm:$0xff] %v687
              $region133: #{resnet_forward.24} parent=127 // loop_footer
                %s678 = sadd.s32 1, %s674
              $region134: #{resnet_forward.24} parent=127 // loop_footer_branch
                %673 = sbr.rel target = $region130
              $region135: #{resnet_forward.24} parent=127 // loop_exit
                _
            $region128: #{resnet_forward.24} parent=119 // pred_fallthru
              _
          $region120: #{resnet_forward.24} parent=115 // pred_fallthru
            _
          %709 = vnop
        $region116: #{resnet_forward.24} parent=103 // pred_fallthru
          _
      $region104: #{resnet_forward.24} parent=5 // pred_fallthru
        _
      %p710 = scmp.le.s32.totalorder 2, %s10
      // Predicated region
      $region151: #{resnet_forward.24} parent=5 // pred_check
        %p711 = pneg %p710
      $region152: #{resnet_forward.24} parent=5 // pred_check_branch
        %713 = sbr.rel (%p711) target = $region154
      $region153: #{resnet_forward.24} parent=5 // pred_region
        %s714 = ssub.s32 %s10, 2
        // Predicated region
        $region155: #{resnet_forward.24} parent=153 // pred_check
          %p715 = pneg %p159
        $region156: #{resnet_forward.24} parent=153 // pred_check_branch
          %717 = sbr.rel (%p715) target = $region158
        $region157: #{resnet_forward.24} parent=153 // pred_region
          %s718 = sand.u32 %s144, 1
          %s719 = sand.u32 %s144, 1
          %s720 = smul.addr %s719, 32
          %s721 = scalar_lea.vmem [#allocation4], %s720
        $region158: #{resnet_forward.24} parent=153 // pred_fallthru
          _
      $region154: #{resnet_forward.24} parent=5 // pred_fallthru
        _
    $region6: #{resnet_forward.24} parent=1 // loop_footer
      %s14 = sadd.s32 1, %s10
    $region7: #{resnet_forward.24} parent=1 // loop_footer_branch
      %9 = sbr.rel target = $region3
    $region8: #{resnet_forward.24} parent=1 // loop_exit
      _

// kernel: resnet_forward.22
$region0: #{resnet_forward.22}
  #allocation0 [shape = 'u32[]', space=smem, size = 0x4, offset = 0x4, fixed_abs, tag = 'smem constant byte address 0x4 - core index']
  #allocation1 [shape = 'u32[144,128]{1,0:T(1,128)}', space=vmem, size = 0x12000, scoped, tag = 'internal scratch']
  %s0 = inlined_call_operand.vmem [shape: bf16[32,1152], index: 0, kind: input, shape index: {}]
  %s1 = inlined_call_operand.vmem [shape: bf16[1152,128], index: 1, kind: input, shape index: {}]
  %s2 = inlined_call_operand.vmem [shape: f32[1,128], index: 2, kind: input, shape index: {}]
  %s3 = inlined_call_operand.vmem [shape: bf16[32,128], index: 3, kind: output, shape index: {}]
  %s4 = sld [smem:[#allocation0]]
  $region22: #{resnet_forward.22} parent=0
    _
  %s6 = ssub.s32 1, %s4
  %s7 = scalar_select 0, %s6, %s4
  // Predicated region
  $region2: #{resnet_forward.22} parent=0 // pred_check
    _
  $region3: #{resnet_forward.22} parent=0 // pred_check_branch
    %9 = sbr.rel (0) target = $region5
  $region4: #{resnet_forward.22} parent=0 // pred_region
    _
  $region5: #{resnet_forward.22} parent=0 // pred_fallthru
    _
  // Predicated region
  $region6: #{resnet_forward.22} parent=0 // pred_check
    _
  $region7: #{resnet_forward.22} parent=0 // pred_check_branch
    %11 = sbr.rel (0) target = $region9
  $region8: #{resnet_forward.22} parent=0 // pred_region
    _
  $region9: #{resnet_forward.22} parent=0 // pred_fallthru
    _
  // Predicated region
  $region10: #{resnet_forward.22} parent=0 // pred_check
    _
  $region11: #{resnet_forward.22} parent=0 // pred_check_branch
    %13 = sbr.rel (0) target = $region13
  $region12: #{resnet_forward.22} parent=0 // pred_region
    _
  $region13: #{resnet_forward.22} parent=0 // pred_fallthru
    _
  %v15 = vld [vmem:[%s0] sm:$0xff]
  %v16 = vld [vmem:[%s0 + $0x8] sm:$0xff]
  %v17 = vld [vmem:[%s0 + $0x10] sm:$0xff]
  %v18 = vld [vmem:[%s0 + $0x18] sm:$0xff]
  %v19 = vld [vmem:[%s0 + $0x20] sm:$0xf]
  %v20 = vld [vmem:[%s0 + $0x24] sm:$0xff]
  %v21 = vld [vmem:[%s0 + $0x2c] sm:$0xff]
  %v22 = vld [vmem:[%s0 + $0x34] sm:$0xff]
  %v23 = vld [vmem:[%s0 + $0x3c] sm:$0xff]
  %v24 = vld [vmem:[%s0 + $0x44] sm:$0xf]
  %v25 = vld [vmem:[%s0 + $0x48] sm:$0xff]
  %v26 = vld [vmem:[%s0 + $0x50] sm:$0xff]
  %v27 = vld [vmem:[%s0 + $0x58] sm:$0xff]
  %v28 = vld [vmem:[%s0 + $0x60] sm:$0xff]
  %v29 = vld [vmem:[%s0 + $0x68] sm:$0xf]
  %v30 = vld [vmem:[%s0 + $0x6c] sm:$0xff]
  %v31 = vld [vmem:[%s0 + $0x74] sm:$0xff]
  %v32 = vld [vmem:[%s0 + $0x7c] sm:$0xff]
  %v33 = vld [vmem:[%s0 + $0x84] sm:$0xff]
  %v34 = vld [vmem:[%s0 + $0x8c] sm:$0xf]
  %v35 = vld [vmem:[%s1] sm:$0xf]
  %v36 = vld [vmem:[%s1 + $0x4] sm:$0xf]
  %v37 = vld [vmem:[%s1 + $0x8] sm:$0xf]
  %v38 = vld [vmem:[%s1 + $0xc] sm:$0xf]
  %v39 = vld [vmem:[%s1 + $0x10] sm:$0xf]
  %v40 = vld [vmem:[%s1 + $0x14] sm:$0xf]
  %v41 = vld [vmem:[%s1 + $0x18] sm:$0xf]
  %v42 = vld [vmem:[%s1 + $0x1c] sm:$0xf]
  %v43 = vld [vmem:[%s1 + $0x20] sm:$0xf]
  %v44 = vld [vmem:[%s1 + $0x24] sm:$0xf]
  %v45 = vld [vmem:[%s1 + $0x28] sm:$0xf]
  %v46 = vld [vmem:[%s1 + $0x2c] sm:$0xf]
  %v47 = vld [vmem:[%s1 + $0x30] sm:$0xf]
  %v48 = vld [vmem:[%s1 + $0x34] sm:$0xf]
  %v49 = vld [vmem:[%s1 + $0x38] sm:$0xf]
  %v50 = vld [vmem:[%s1 + $0x3c] sm:$0xf]
  %v51 = vld [vmem:[%s1 + $0x40] sm:$0xf]
  %v52 = vld [vmem:[%s1 + $0x44] sm:$0xf]
  %v53 = vld [vmem:[%s1 + $0x48] sm:$0xf]
  %v54 = vld [vmem:[%s1 + $0x4c] sm:$0xf]
  %v55 = vld [vmem:[%s1 + $0x50] sm:$0xf]
  %v56 = vld [vmem:[%s1 + $0x54] sm:$0xf]
  %v57 = vld [vmem:[%s1 + $0x58] sm:$0xf]
  %v58 = vld [vmem:[%s1 + $0x5c] sm:$0xf]
  %v59 = vld [vmem:[%s1 + $0x60] sm:$0xf]
  %v60 = vld [vmem:[%s1 + $0x64] sm:$0xf]
  %v61 = vld [vmem:[%s1 + $0x68] sm:$0xf]
  %v62 = vld [vmem:[%s1 + $0x6c] sm:$0xf]
  %v63 = vld [vmem:[%s1 + $0x70] sm:$0xf]
  %v64 = vld [vmem:[%s1 + $0x74] sm:$0xf]
  %v65 = vld [vmem:[%s1 + $0x78] sm:$0xf]
  %v66 = vld [vmem:[%s1 + $0x7c] sm:$0xf]
  %v67 = vld [vmem:[%s1 + $0x80] sm:$0xf]
  %v68 = vld [vmem:[%s1 + $0x84] sm:$0xf]
  %v69 = vld [vmem:[%s1 + $0x88] sm:$0xf]
  %v70 = vld [vmem:[%s1 + $0x8c] sm:$0xf]
  %v71 = vld [vmem:[%s1 + $0x90] sm:$0xf]
  %v72 = vld [vmem:[%s1 + $0x94] sm:$0xf]
  %v73 = vld [vmem:[%s1 + $0x98] sm:$0xf]
  %v74 = vld [vmem:[%s1 + $0x9c] sm:$0xf]
  %v75 = vld [vmem:[%s1 + $0xa0] sm:$0xf]
  %v76 = vld [vmem:[%s1 + $0xa4] sm:$0xf]
  %v77 = vld [vmem:[%s1 + $0xa8] sm:$0xf]
  %v78 = vld [vmem:[%s1 + $0xac] sm:$0xf]
  %v79 = vld [vmem:[%s1 + $0xb0] sm:$0xf]
  %v80 = vld [vmem:[%s1 + $0xb4] sm:$0xf]
  %v81 = vld [vmem:[%s1 + $0xb8] sm:$0xf]
  %v82 = vld [vmem:[%s1 + $0xbc] sm:$0xf]
  %v83 = vld [vmem:[%s1 + $0xc0] sm:$0xf]
  %v84 = vld [vmem:[%s1 + $0xc4] sm:$0xf]
  %v85 = vld [vmem:[%s1 + $0xc8] sm:$0xf]
  %v86 = vld [vmem:[%s1 + $0xcc] sm:$0xf]
  %v87 = vld [vmem:[%s1 + $0xd0] sm:$0xf]
  %v88 = vld [vmem:[%s1 + $0xd4] sm:$0xf]
  %v89 = vld [vmem:[%s1 + $0xd8] sm:$0xf]
  %v90 = vld [vmem:[%s1 + $0xdc] sm:$0xf]
  %v91 = vld [vmem:[%s1 + $0xe0] sm:$0xf]
  %v92 = vld [vmem:[%s1 + $0xe4] sm:$0xf]
  %v93 = vld [vmem:[%s1 + $0xe8] sm:$0xf]
  %v94 = vld [vmem:[%s1 + $0xec] sm:$0xf]
  %v95 = vld [vmem:[%s1 + $0xf0] sm:$0xf]
  %v96 = vld [vmem:[%s1 + $0xf4] sm:$0xf]
  %v97 = vld [vmem:[%s1 + $0xf8] sm:$0xf]
  %v98 = vld [vmem:[%s1 + $0xfc] sm:$0xf]
  %v99 = vld [vmem:[%s1 + $0x100] sm:$0xf]
  %v100 = vld [vmem:[%s1 + $0x104] sm:$0xf]
  %v101 = vld [vmem:[%s1 + $0x108] sm:$0xf]
  %v102 = vld [vmem:[%s1 + $0x10c] sm:$0xf]
  %v103 = vld [vmem:[%s1 + $0x110] sm:$0xf]
  %v104 = vld [vmem:[%s1 + $0x114] sm:$0xf]
  %v105 = vld [vmem:[%s1 + $0x118] sm:$0xf]
  %v106 = vld [vmem:[%s1 + $0x11c] sm:$0xf]
  %v107 = vld [vmem:[%s1 + $0x120] sm:$0xf]
  %v108 = vld [vmem:[%s1 + $0x124] sm:$0xf]
  %v109 = vld [vmem:[%s1 + $0x128] sm:$0xf]
  %v110 = vld [vmem:[%s1 + $0x12c] sm:$0xf]
  %v111 = vld [vmem:[%s1 + $0x130] sm:$0xf]
  %v112 = vld [vmem:[%s1 + $0x134] sm:$0xf]
  %v113 = vld [vmem:[%s1 + $0x138] sm:$0xf]
  %v114 = vld [vmem:[%s1 + $0x13c] sm:$0xf]
  %v115 = vld [vmem:[%s1 + $0x140] sm:$0xf]
  %v116 = vld [vmem:[%s1 + $0x144] sm:$0xf]
  %v117 = vld [vmem:[%s1 + $0x148] sm:$0xf]
  %v118 = vld [vmem:[%s1 + $0x14c] sm:$0xf]
  %v119 = vld [vmem:[%s1 + $0x150] sm:$0xf]
  %v120 = vld [vmem:[%s1 + $0x154] sm:$0xf]
  %v121 = vld [vmem:[%s1 + $0x158] sm:$0xf]
  %v122 = vld [vmem:[%s1 + $0x15c] sm:$0xf]
  %v123 = vld [vmem:[%s1 + $0x160] sm:$0xf]
  %v124 = vld [vmem:[%s1 + $0x164] sm:$0xf]
  %v125 = vld [vmem:[%s1 + $0x168] sm:$0xf]
  %v126 = vld [vmem:[%s1 + $0x16c] sm:$0xf]
  %v127 = vld [vmem:[%s1 + $0x170] sm:$0xf]
  %v128 = vld [vmem:[%s1 + $0x174] sm:$0xf]
  %v129 = vld [vmem:[%s1 + $0x178] sm:$0xf]
  %v130 = vld [vmem:[%s1 + $0x17c] sm:$0xf]
  %v131 = vld [vmem:[%s1 + $0x180] sm:$0xf]
  %v132 = vld [vmem:[%s1 + $0x184] sm:$0xf]
  %v133 = vld [vmem:[%s1 + $0x188] sm:$0xf]
  %v134 = vld [vmem:[%s1 + $0x18c] sm:$0xf]
  %v135 = vld [vmem:[%s1 + $0x190] sm:$0xf]
  %v136 = vld [vmem:[%s1 + $0x194] sm:$0xf]
  %v137 = vld [vmem:[%s1 + $0x198] sm:$0xf]
  %v138 = vld [vmem:[%s1 + $0x19c] sm:$0xf]
  %v139 = vld [vmem:[%s1 + $0x1a0] sm:$0xf]
  %v140 = vld [vmem:[%s1 + $0x1a4] sm:$0xf]
  %v141 = vld [vmem:[%s1 + $0x1a8] sm:$0xf]
  %v142 = vld [vmem:[%s1 + $0x1ac] sm:$0xf]
  %v143 = vld [vmem:[%s1 + $0x1b0] sm:$0xf]
  %v144 = vld [vmem:[%s1 + $0x1b4] sm:$0xf]
  %v145 = vld [vmem:[%s1 + $0x1b8] sm:$0xf]
  %v146 = vld [vmem:[%s1 + $0x1bc] sm:$0xf]
  %v147 = vld [vmem:[%s1 + $0x1c0] sm:$0xf]
  %v148 = vld [vmem:[%s1 + $0x1c4] sm:$0xf]
  %v149 = vld [vmem:[%s1 + $0x1c8] sm:$0xf]
  %v150 = vld [vmem:[%s1 + $0x1cc] sm:$0xf]
  %v151 = vld [vmem:[%s1 + $0x1d0] sm:$0xf]
  %v152 = vld [vmem:[%s1 + $0x1d4] sm:$0xf]
  %v153 = vld [vmem:[%s1 + $0x1d8] sm:$0xf]
  %v154 = vld [vmem:[%s1 + $0x1dc] sm:$0xf]
  %v155 = vld [vmem:[%s1 + $0x1e0] sm:$0xf]
  %v156 = vld [vmem:[%s1 + $0x1e4] sm:$0xf]
  %v157 = vld [vmem:[%s1 + $0x1e8] sm:$0xf]
  %v158 = vld [vmem:[%s1 + $0x1ec] sm:$0xf]
  %v159 = vld [vmem:[%s1 + $0x1f0] sm:$0xf]
  %v160 = vld [vmem:[%s1 + $0x1f4] sm:$0xf]
  %v161 = vld [vmem:[%s1 + $0x1f8] sm:$0xf]
  %v162 = vld [vmem:[%s1 + $0x1fc] sm:$0xf]
  %v163 = vld [vmem:[%s1 + $0x200] sm:$0xf]
  %v164 = vld [vmem:[%s1 + $0x204] sm:$0xf]
  %v165 = vld [vmem:[%s1 + $0x208] sm:$0xf]
  %v166 = vld [vmem:[%s1 + $0x20c] sm:$0xf]
  %v167 = vld [vmem:[%s1 + $0x210] sm:$0xf]
  %v168 = vld [vmem:[%s1 + $0x214] sm:$0xf]
  %v169 = vld [vmem:[%s1 + $0x218] sm:$0xf]
  %v170 = vld [vmem:[%s1 + $0x21c] sm:$0xf]
  %v171 = vld [vmem:[%s1 + $0x220] sm:$0xf]
  %v172 = vld [vmem:[%s1 + $0x224] sm:$0xf]
  %v173 = vld [vmem:[%s1 + $0x228] sm:$0xf]
  %v174 = vld [vmem:[%s1 + $0x22c] sm:$0xf]
  %v175 = vld [vmem:[%s1 + $0x230] sm:$0xf]
  %v176 = vld [vmem:[%s1 + $0x234] sm:$0xf]
  %v177 = vld [vmem:[%s1 + $0x238] sm:$0xf]
  %v178 = vld [vmem:[%s1 + $0x23c] sm:$0xf]
  %v179 = vld [vmem:[%s2] sm:$0x1]
  %v181 = vlaneseq
  %v182 = vshrl.u32 %v181, 7
  %v183 = vsub.s32 0, %v182
  %v184 = vrot.slane %v179, %v183
  %v206 = vunpack.c.l.b16 %v15
  %v207 = vunpack.c.h.b16 %v15
  %v208 = vunpack.c.l.b16 %v16
  %v209 = vunpack.c.h.b16 %v16
  %v210 = vunpack.c.l.b16 %v17
  %v211 = vunpack.c.h.b16 %v17
  %v212 = vunpack.c.l.b16 %v18
  %v213 = vunpack.c.h.b16 %v18
  %v214 = vunpack.c.l.b16 %v19
  %v215 = vunpack.c.l.b16 %v20
  %v216 = vunpack.c.h.b16 %v20
  %v217 = vunpack.c.l.b16 %v21
  %v218 = vunpack.c.h.b16 %v21
  %v219 = vunpack.c.l.b16 %v22
  %v220 = vunpack.c.h.b16 %v22
  %v221 = vunpack.c.l.b16 %v23
  %v222 = vunpack.c.h.b16 %v23
  %v223 = vunpack.c.l.b16 %v24
  %v224 = vunpack.c.l.b16 %v25
  %v225 = vunpack.c.h.b16 %v25
  %v226 = vunpack.c.l.b16 %v26
  %v227 = vunpack.c.h.b16 %v26
  %v228 = vunpack.c.l.b16 %v27
  %v229 = vunpack.c.h.b16 %v27
  %v230 = vunpack.c.l.b16 %v28
  %v231 = vunpack.c.h.b16 %v28
  %v232 = vunpack.c.l.b16 %v29
  %v233 = vunpack.c.l.b16 %v30
  %v234 = vunpack.c.h.b16 %v30
  %v235 = vunpack.c.l.b16 %v31
  %v236 = vunpack.c.h.b16 %v31
  %v237 = vunpack.c.l.b16 %v32
  %v238 = vunpack.c.h.b16 %v32
  %v239 = vunpack.c.l.b16 %v33
  %v240 = vunpack.c.h.b16 %v33
  %v241 = vunpack.c.l.b16 %v34
  %v242 = vpack.c.b16 %v215, %v206
  %v243 = vpack.c.b16 %v216, %v207
  %v244 = vpack.c.b16 %v217, %v208
  %v245 = vpack.c.b16 %v218, %v209
  %v246 = vpack.c.b16 %v219, %v210
  %v247 = vpack.c.b16 %v220, %v211
  %v248 = vpack.c.b16 %v221, %v212
  %v249 = vpack.c.b16 %v222, %v213
  %v250 = vpack.c.b16 %v223, %v214
  %v251 = vpack.c.b16 %v233, %v224
  %v252 = vpack.c.b16 %v234, %v225
  %v253 = vpack.c.b16 %v235, %v226
  %v254 = vpack.c.b16 %v236, %v227
  %v255 = vpack.c.b16 %v237, %v228
  %v256 = vpack.c.b16 %v238, %v229
  %v257 = vpack.c.b16 %v239, %v230
  %v258 = vpack.c.b16 %v240, %v231
  %v259 = vpack.c.b16 %v241, %v232
  %v422 = vunpack.c.l.b16 %v35
  %v423 = vunpack.c.l.b16 %v36
  %v424 = vunpack.c.l.b16 %v37
  %v425 = vunpack.c.l.b16 %v38
  %v426 = vunpack.c.l.b16 %v39
  %v427 = vunpack.c.l.b16 %v40
  %v428 = vunpack.c.l.b16 %v41
  %v429 = vunpack.c.l.b16 %v42
  %v430 = vunpack.c.l.b16 %v43
  %v431 = vunpack.c.l.b16 %v44
  %v432 = vunpack.c.l.b16 %v45
  %v433 = vunpack.c.l.b16 %v46
  %v434 = vunpack.c.l.b16 %v47
  %v435 = vunpack.c.l.b16 %v48
  %v436 = vunpack.c.l.b16 %v49
  %v437 = vunpack.c.l.b16 %v50
  %v438 = vunpack.c.l.b16 %v51
  %v439 = vunpack.c.l.b16 %v52
  %v440 = vunpack.c.l.b16 %v53
  %v441 = vunpack.c.l.b16 %v54
  %v442 = vunpack.c.l.b16 %v55
  %v443 = vunpack.c.l.b16 %v56
  %v444 = vunpack.c.l.b16 %v57
  %v445 = vunpack.c.l.b16 %v58
  %v446 = vunpack.c.l.b16 %v59
  %v447 = vunpack.c.l.b16 %v60
  %v448 = vunpack.c.l.b16 %v61
  %v449 = vunpack.c.l.b16 %v62
  %v450 = vunpack.c.l.b16 %v63
  %v451 = vunpack.c.l.b16 %v64
  %v452 = vunpack.c.l.b16 %v65
  %v453 = vunpack.c.l.b16 %v66
  %v454 = vunpack.c.l.b16 %v67
  %v455 = vunpack.c.l.b16 %v68
  %v456 = vunpack.c.l.b16 %v69
  %v457 = vunpack.c.l.b16 %v70
  %v458 = vunpack.c.l.b16 %v71
  %v459 = vunpack.c.l.b16 %v72
  %v460 = vunpack.c.l.b16 %v73
  %v461 = vunpack.c.l.b16 %v74
  %v462 = vunpack.c.l.b16 %v75
  %v463 = vunpack.c.l.b16 %v76
  %v464 = vunpack.c.l.b16 %v77
  %v465 = vunpack.c.l.b16 %v78
  %v466 = vunpack.c.l.b16 %v79
  %v467 = vunpack.c.l.b16 %v80
  %v468 = vunpack.c.l.b16 %v81
  %v469 = vunpack.c.l.b16 %v82
  %v470 = vunpack.c.l.b16 %v83
  %v471 = vunpack.c.l.b16 %v84
  %v472 = vunpack.c.l.b16 %v85
  %v473 = vunpack.c.l.b16 %v86
  %v474 = vunpack.c.l.b16 %v87
  %v475 = vunpack.c.l.b16 %v88
  %v476 = vunpack.c.l.b16 %v89
  %v477 = vunpack.c.l.b16 %v90
  %v478 = vunpack.c.l.b16 %v91
  %v479 = vunpack.c.l.b16 %v92
  %v480 = vunpack.c.l.b16 %v93
  %v481 = vunpack.c.l.b16 %v94
  %v482 = vunpack.c.l.b16 %v95
  %v483 = vunpack.c.l.b16 %v96
  %v484 = vunpack.c.l.b16 %v97
  %v485 = vunpack.c.l.b16 %v98
  %v486 = vunpack.c.l.b16 %v99
  %v487 = vunpack.c.l.b16 %v100
  %v488 = vunpack.c.l.b16 %v101
  %v489 = vunpack.c.l.b16 %v102
  %v490 = vunpack.c.l.b16 %v103
  %v491 = vunpack.c.l.b16 %v104
  %v492 = vunpack.c.l.b16 %v105
  %v493 = vunpack.c.l.b16 %v106
  %v494 = vunpack.c.l.b16 %v107
  %v495 = vunpack.c.l.b16 %v108
  %v496 = vunpack.c.l.b16 %v109
  %v497 = vunpack.c.l.b16 %v110
  %v498 = vunpack.c.l.b16 %v111
  %v499 = vunpack.c.l.b16 %v112
  %v500 = vunpack.c.l.b16 %v113
  %v501 = vunpack.c.l.b16 %v114
  %v502 = vunpack.c.l.b16 %v115
  %v503 = vunpack.c.l.b16 %v116
  %v504 = vunpack.c.l.b16 %v117
  %v505 = vunpack.c.l.b16 %v118
  %v506 = vunpack.c.l.b16 %v119
  %v507 = vunpack.c.l.b16 %v120
  %v508 = vunpack.c.l.b16 %v121
  %v509 = vunpack.c.l.b16 %v122
  %v510 = vunpack.c.l.b16 %v123
  %v511 = vunpack.c.l.b16 %v124
  %v512 = vunpack.c.l.b16 %v125
  %v513 = vunpack.c.l.b16 %v126
  %v514 = vunpack.c.l.b16 %v127
  %v515 = vunpack.c.l.b16 %v128
  %v516 = vunpack.c.l.b16 %v129
  %v517 = vunpack.c.l.b16 %v130
  %v518 = vunpack.c.l.b16 %v131
  %v519 = vunpack.c.l.b16 %v132
  %v520 = vunpack.c.l.b16 %v133
  %v521 = vunpack.c.l.b16 %v134
  %v522 = vunpack.c.l.b16 %v135
  %v523 = vunpack.c.l.b16 %v136
  %v524 = vunpack.c.l.b16 %v137
  %v525 = vunpack.c.l.b16 %v138
  %v526 = vunpack.c.l.b16 %v139
  %v527 = vunpack.c.l.b16 %v140
  %v528 = vunpack.c.l.b16 %v141
  %v529 = vunpack.c.l.b16 %v142
  %v530 = vunpack.c.l.b16 %v143
  %v531 = vunpack.c.l.b16 %v144
  %v532 = vunpack.c.l.b16 %v145
  %v533 = vunpack.c.l.b16 %v146
  %v534 = vunpack.c.l.b16 %v147
  %v535 = vunpack.c.l.b16 %v148
  %v536 = vunpack.c.l.b16 %v149
  %v537 = vunpack.c.l.b16 %v150
  %v538 = vunpack.c.l.b16 %v151
  %v539 = vunpack.c.l.b16 %v152
  %v540 = vunpack.c.l.b16 %v153
  %v541 = vunpack.c.l.b16 %v154
  %v542 = vunpack.c.l.b16 %v155
  %v543 = vunpack.c.l.b16 %v156
  %v544 = vunpack.c.l.b16 %v157
  %v545 = vunpack.c.l.b16 %v158
  %v546 = vunpack.c.l.b16 %v159
  %v547 = vunpack.c.l.b16 %v160
  %v548 = vunpack.c.l.b16 %v161
  %v549 = vunpack.c.l.b16 %v162
  %v550 = vunpack.c.l.b16 %v163
  %v551 = vunpack.c.l.b16 %v164
  %v552 = vunpack.c.l.b16 %v165
  %v553 = vunpack.c.l.b16 %v166
  %v554 = vunpack.c.l.b16 %v167
  %v555 = vunpack.c.l.b16 %v168
  %v556 = vunpack.c.l.b16 %v169
  %v557 = vunpack.c.l.b16 %v170
  %v558 = vunpack.c.l.b16 %v171
  %v559 = vunpack.c.l.b16 %v172
  %v560 = vunpack.c.l.b16 %v173
  %v561 = vunpack.c.l.b16 %v174
  %v562 = vunpack.c.l.b16 %v175
  %v563 = vunpack.c.l.b16 %v176
  %v564 = vunpack.c.l.b16 %v177
  %v565 = vunpack.c.l.b16 %v178
  %v566 = vpack.c.b16 %v423, %v422
  %v567 = vpack.c.b16 %v425, %v424
  %v568 = vpack.c.b16 %v427, %v426
  %v569 = vpack.c.b16 %v429, %v428
  %v570 = vpack.c.b16 %v431, %v430
  %v571 = vpack.c.b16 %v433, %v432
  %v572 = vpack.c.b16 %v435, %v434
  %v573 = vpack.c.b16 %v437, %v436
  %v574 = vpack.c.b16 %v439, %v438
  %v575 = vpack.c.b16 %v441, %v440
  %v576 = vpack.c.b16 %v443, %v442
  %v577 = vpack.c.b16 %v445, %v444
  %v578 = vpack.c.b16 %v447, %v446
  %v579 = vpack.c.b16 %v449, %v448
  %v580 = vpack.c.b16 %v451, %v450
  %v581 = vpack.c.b16 %v453, %v452
  %v582 = vpack.c.b16 %v455, %v454
  %v583 = vpack.c.b16 %v457, %v456
  %v584 = vpack.c.b16 %v459, %v458
  %v585 = vpack.c.b16 %v461, %v460
  %v586 = vpack.c.b16 %v463, %v462
  %v587 = vpack.c.b16 %v465, %v464
  %v588 = vpack.c.b16 %v467, %v466
  %v589 = vpack.c.b16 %v469, %v468
  %v590 = vpack.c.b16 %v471, %v470
  %v591 = vpack.c.b16 %v473, %v472
  %v592 = vpack.c.b16 %v475, %v474
  %v593 = vpack.c.b16 %v477, %v476
  %v594 = vpack.c.b16 %v479, %v478
  %v595 = vpack.c.b16 %v481, %v480
  %v596 = vpack.c.b16 %v483, %v482
  %v597 = vpack.c.b16 %v485, %v484
  %v598 = vpack.c.b16 %v487, %v486
  %v599 = vpack.c.b16 %v489, %v488
  %v600 = vpack.c.b16 %v491, %v490
  %v601 = vpack.c.b16 %v493, %v492
  %v602 = vpack.c.b16 %v495, %v494
  %v603 = vpack.c.b16 %v497, %v496
  %v604 = vpack.c.b16 %v499, %v498
  %v605 = vpack.c.b16 %v501, %v500
  %v606 = vpack.c.b16 %v503, %v502
  %v607 = vpack.c.b16 %v505, %v504
  %v608 = vpack.c.b16 %v507, %v506
  %v609 = vpack.c.b16 %v509, %v508
  %v610 = vpack.c.b16 %v511, %v510
  %v611 = vpack.c.b16 %v513, %v512
  %v612 = vpack.c.b16 %v515, %v514
  %v613 = vpack.c.b16 %v517, %v516
  %v614 = vpack.c.b16 %v519, %v518
  %v615 = vpack.c.b16 %v521, %v520
  %v616 = vpack.c.b16 %v523, %v522
  %v617 = vpack.c.b16 %v525, %v524
  %v618 = vpack.c.b16 %v527, %v526
  %v619 = vpack.c.b16 %v529, %v528
  %v620 = vpack.c.b16 %v531, %v530
  %v621 = vpack.c.b16 %v533, %v532
  %v622 = vpack.c.b16 %v535, %v534
  %v623 = vpack.c.b16 %v537, %v536
  %v624 = vpack.c.b16 %v539, %v538
  %v625 = vpack.c.b16 %v541, %v540
  %v626 = vpack.c.b16 %v543, %v542
  %v627 = vpack.c.b16 %v545, %v544
  %v628 = vpack.c.b16 %v547, %v546
  %v629 = vpack.c.b16 %v549, %v548
  %v630 = vpack.c.b16 %v551, %v550
  %v631 = vpack.c.b16 %v553, %v552
  %v632 = vpack.c.b16 %v555, %v554
  %v633 = vpack.c.b16 %v557, %v556
  %v634 = vpack.c.b16 %v559, %v558
  %v635 = vpack.c.b16 %v561, %v560
  %v636 = vpack.c.b16 %v563, %v562
  %v637 = vpack.c.b16 %v565, %v564
  %710 = vmatprep.subr.bf16.mxu0 0
  %711 = vmatpush1.bf16.msra.mxu0 %v566
  %712 = vmatprep.subr.bf16.mxu0 0
  %713 = vmatpush1.bf16.msra.mxu0 %v567
  %714 = vmatprep.subr.bf16.mxu0 0
  %715 = vmatpush1.bf16.msra.mxu0 %v568
  %716 = vmatprep.subr.bf16.mxu0 0
  %717 = vmatpush1.bf16.msra.mxu0 %v569
  %718 = vmatprep.subr.bf16.mxu0 0
  %719 = vmatpush1.bf16.msra.mxu0 %v570
  %720 = vmatprep.subr.bf16.mxu0 0
  %721 = vmatpush1.bf16.msra.mxu0 %v571
  %722 = vmatprep.subr.bf16.mxu0 0
  %723 = vmatpush1.bf16.msra.mxu0 %v572
  %724 = vmatprep.subr.bf16.mxu0 0
  %725 = vmatpush1.bf16.msra.mxu0 %v573
  %726 = vmatprep.subr.bf16.mxu0 0
  %727 = vmatpush1.bf16.msra.mxu0 %v574
  %728 = vmatprep.subr.bf16.mxu0 0
  %729 = vmatpush1.bf16.msra.mxu0 %v575
  %730 = vmatprep.subr.bf16.mxu0 0
  %731 = vmatpush1.bf16.msra.mxu0 %v576
  %732 = vmatprep.subr.bf16.mxu0 0
  %733 = vmatpush1.bf16.msra.mxu0 %v577
  %734 = vmatprep.subr.bf16.mxu0 0
  %735 = vmatpush1.bf16.msra.mxu0 %v578
  %736 = vmatprep.subr.bf16.mxu0 0
  %737 = vmatpush1.bf16.msra.mxu0 %v579
  %738 = vmatprep.subr.bf16.mxu0 0
  %739 = vmatpush1.bf16.msra.mxu0 %v580
  %740 = vmatprep.subr.bf16.mxu0 0
  %741 = vmatpush1.bf16.msra.mxu0 %v581
  %742 = vmatprep.mubr.bf16.mxu0 %v243
  %743 = vmatmul.mubr.bf16.gmra.mrb[0].mxu0 %v242
  %v744 = vpop.f32.mrb[0].mxu0
  %v745 = vadd.f32 %v184, %v744
  %v746 = vpop.f32.mrb[0].mxu0
  %v747 = vpop.f32.mrb[0].mxu0
  %v748 = vadd.f32 %v184, %v747
  %v749 = vpop.f32.mrb[0].mxu0
  %750 = vmatprep.mubr.bf16.mxu0 %v252
  %751 = vmatmul.mubr.bf16.gmra.mrb[0].mxu0 %v251
  %v752 = vpop.f32.mrb[0].mxu0
  %v753 = vadd.f32 %v184, %v752
  %v754 = vpop.f32.mrb[0].mxu0
  %v755 = vpop.f32.mrb[0].mxu0
  %v756 = vadd.f32 %v184, %v755
  %v757 = vpop.f32.mrb[0].mxu0
  %758 = vdwg.mxu0
  %759 = vmatprep.subr.bf16.mxu0 0
  %760 = vmatpush1.bf16.msra.mxu0 %v582
  %761 = vmatprep.subr.bf16.mxu0 0
  %762 = vmatpush1.bf16.msra.mxu0 %v583
  %763 = vmatprep.subr.bf16.mxu0 0
  %764 = vmatpush1.bf16.msra.mxu0 %v584
  %765 = vmatprep.subr.bf16.mxu0 0
  %766 = vmatpush1.bf16.msra.mxu0 %v585
  %767 = vmatprep.subr.bf16.mxu0 0
  %768 = vmatpush1.bf16.msra.mxu0 %v586
  %769 = vmatprep.subr.bf16.mxu0 0
  %770 = vmatpush1.bf16.msra.mxu0 %v587
  %771 = vmatprep.subr.bf16.mxu0 0
  %772 = vmatpush1.bf16.msra.mxu0 %v588
  %773 = vmatprep.subr.bf16.mxu0 0
  %774 = vmatpush1.bf16.msra.mxu0 %v589
  %775 = vmatprep.subr.bf16.mxu0 0
  %776 = vmatpush1.bf16.msra.mxu0 %v590
  %777 = vmatprep.subr.bf16.mxu0 0
  %778 = vmatpush1.bf16.msra.mxu0 %v591
  %779 = vmatprep.subr.bf16.mxu0 0
  %780 = vmatpush1.bf16.msra.mxu0 %v592
  %781 = vmatprep.subr.bf16.mxu0 0
  %782 = vmatpush1.bf16.msra.mxu0 %v593
  %783 = vmatprep.subr.bf16.mxu0 0
  %784 = vmatpush1.bf16.msra.mxu0 %v594
  %785 = vmatprep.subr.bf16.mxu0 0
  %786 = vmatpush1.bf16.msra.mxu0 %v595
  %787 = vmatprep.subr.bf16.mxu0 0
  %788 = vmatpush1.bf16.msra.mxu0 %v596
  %789 = vmatprep.subr.bf16.mxu0 0
  %790 = vmatpush1.bf16.msra.mxu0 %v597
  %791 = vmatprep.mubr.bf16.mxu0 %v245
  %792 = vmatmul.mubr.bf16.gmra.mrb[0].mxu0 %v244
  %v793 = vpop.f32.mrb[0].mxu0
  %v794 = vadd.f32 %v745, %v793
  %v795 = vpop.f32.mrb[0].mxu0
  %v796 = vpop.f32.mrb[0].mxu0
  %v797 = vadd.f32 %v748, %v796
  %v798 = vpop.f32.mrb[0].mxu0
  %799 = vmatprep.mubr.bf16.mxu0 %v254
  %800 = vmatmul.mubr.bf16.gmra.mrb[0].mxu0 %v253
  %v801 = vpop.f32.mrb[0].mxu0
  %v802 = vadd.f32 %v753, %v801
  %v803 = vpop.f32.mrb[0].mxu0
  %v804 = vpop.f32.mrb[0].mxu0
  %v805 = vadd.f32 %v756, %v804
  %v806 = vpop.f32.mrb[0].mxu0
  %807 = vdwg.mxu0
  %808 = vmatprep.subr.bf16.mxu0 0
  %809 = vmatpush1.bf16.msra.mxu0 %v598
  %810 = vmatprep.subr.bf16.mxu0 0
  %811 = vmatpush1.bf16.msra.mxu0 %v599
  %812 = vmatprep.subr.bf16.mxu0 0
  %813 = vmatpush1.bf16.msra.mxu0 %v600
  %814 = vmatprep.subr.bf16.mxu0 0
  %815 = vmatpush1.bf16.msra.mxu0 %v601
  %816 = vmatprep.subr.bf16.mxu0 0
  %817 = vmatpush1.bf16.msra.mxu0 %v602
  %818 = vmatprep.subr.bf16.mxu0 0
  %819 = vmatpush1.bf16.msra.mxu0 %v603
  %820 = vmatprep.subr.bf16.mxu0 0
  %821 = vmatpush1.bf16.msra.mxu0 %v604
  %822 = vmatprep.subr.bf16.mxu0 0
  %823 = vmatpush1.bf16.msra.mxu0 %v605
  %824 = vmatprep.subr.bf16.mxu0 0
  %825 = vmatpush1.bf16.msra.mxu0 %v606
  %826 = vmatprep.subr.bf16.mxu0 0
  %827 = vmatpush1.bf16.msra.mxu0 %v607
  %828 = vmatprep.subr.bf16.mxu0 0
  %829 = vmatpush1.bf16.msra.mxu0 %v608
  %830 = vmatprep.subr.bf16.mxu0 0
  %831 = vmatpush1.bf16.msra.mxu0 %v609
  %832 = vmatprep.subr.bf16.mxu0 0
  %833 = vmatpush1.bf16.msra.mxu0 %v610
  %834 = vmatprep.subr.bf16.mxu0 0
  %835 = vmatpush1.bf16.msra.mxu0 %v611
  %836 = vmatprep.subr.bf16.mxu0 0
  %837 = vmatpush1.bf16.msra.mxu0 %v612
  %838 = vmatprep.subr.bf16.mxu0 0
  %839 = vmatpush1.bf16.msra.mxu0 %v613
  %840 = vmatprep.mubr.bf16.mxu0 %v247
  %841 = vmatmul.mubr.bf16.gmra.mrb[0].mxu0 %v246
  %v842 = vpop.f32.mrb[0].mxu0
  %v843 = vadd.f32 %v794, %v842
  %v844 = vpop.f32.mrb[0].mxu0
  %v845 = vpop.f32.mrb[0].mxu0
  %v846 = vadd.f32 %v797, %v845
  %v847 = vpop.f32.mrb[0].mxu0
  %848 = vmatprep.mubr.bf16.mxu0 %v256
  %849 = vmatmul.mubr.bf16.gmra.mrb[0].mxu0 %v255
  %v850 = vpop.f32.mrb[0].mxu0
  %v851 = vadd.f32 %v802, %v850
  %v852 = vpop.f32.mrb[0].mxu0
  %v853 = vpop.f32.mrb[0].mxu0
  %v854 = vadd.f32 %v805, %v853
  %v855 = vpop.f32.mrb[0].mxu0
  %856 = vdwg.mxu0
  %857 = vmatprep.subr.bf16.mxu0 0
  %858 = vmatpush1.bf16.msra.mxu0 %v614
  %859 = vmatprep.subr.bf16.mxu0 0
  %860 = vmatpush1.bf16.msra.mxu0 %v615
  %861 = vmatprep.subr.bf16.mxu0 0
  %862 = vmatpush1.bf16.msra.mxu0 %v616
  %863 = vmatprep.subr.bf16.mxu0 0
  %864 = vmatpush1.bf16.msra.mxu0 %v617
  %865 = vmatprep.subr.bf16.mxu0 0
  %866 = vmatpush1.bf16.msra.mxu0 %v618
  %867 = vmatprep.subr.bf16.mxu0 0
  %868 = vmatpush1.bf16.msra.mxu0 %v619
  %869 = vmatprep.subr.bf16.mxu0 0
  %870 = vmatpush1.bf16.msra.mxu0 %v620
  %871 = vmatprep.subr.bf16.mxu0 0
  %872 = vmatpush1.bf16.msra.mxu0 %v621
  %873 = vmatprep.subr.bf16.mxu0 0
  %874 = vmatpush1.bf16.msra.mxu0 %v622
  %875 = vmatprep.subr.bf16.mxu0 0
  %876 = vmatpush1.bf16.msra.mxu0 %v623
  %877 = vmatprep.subr.bf16.mxu0 0
  %878 = vmatpush1.bf16.msra.mxu0 %v624
  %879 = vmatprep.subr.bf16.mxu0 0
  %880 = vmatpush1.bf16.msra.mxu0 %v625
  %881 = vmatprep.subr.bf16.mxu0 0
  %882 = vmatpush1.bf16.msra.mxu0 %v626
  %883 = vmatprep.subr.bf16.mxu0 0
  %884 = vmatpush1.bf16.msra.mxu0 %v627
  %885 = vmatprep.subr.bf16.mxu0 0
  %886 = vmatpush1.bf16.msra.mxu0 %v628
  %887 = vmatprep.subr.bf16.mxu0 0
  %888 = vmatpush1.bf16.msra.mxu0 %v629
  %889 = vmatprep.mubr.bf16.mxu0 %v249
  %890 = vmatmul.mubr.bf16.gmra.mrb[0].mxu0 %v248
  %v891 = vpop.f32.mrb[0].mxu0
  %v892 = vadd.f32 %v843, %v891
  %v893 = vpop.f32.mrb[0].mxu0
  %v894 = vpop.f32.mrb[0].mxu0
  %v895 = vadd.f32 %v846, %v894
  %v896 = vpop.f32.mrb[0].mxu0
  %897 = vmatprep.mubr.bf16.mxu0 %v258
  %898 = vmatmul.mubr.bf16.gmra.mrb[0].mxu0 %v257
  %v899 = vpop.f32.mrb[0].mxu0
  %v900 = vadd.f32 %v851, %v899
  %v901 = vpop.f32.mrb[0].mxu0
  %v902 = vpop.f32.mrb[0].mxu0
  %v903 = vadd.f32 %v854, %v902
  %v904 = vpop.f32.mrb[0].mxu0
  %905 = vdwg.mxu0
  %906 = vmatprep.subr.bf16.mxu0 0
  %907 = vmatpush1.bf16.msra.mxu0 %v630
  %908 = vmatprep.subr.bf16.mxu0 0
  %909 = vmatpush1.bf16.msra.mxu0 %v631
  %910 = vmatprep.subr.bf16.mxu0 0
  %911 = vmatpush1.bf16.msra.mxu0 %v632
  %912 = vmatprep.subr.bf16.mxu0 0
  %913 = vmatpush1.bf16.msra.mxu0 %v633
  %914 = vmatprep.subr.bf16.mxu0 0
  %915 = vmatpush1.bf16.msra.mxu0 %v634
  %916 = vmatprep.subr.bf16.mxu0 0
  %917 = vmatpush1.bf16.msra.mxu0 %v635
  %918 = vmatprep.subr.bf16.mxu0 0
  %919 = vmatpush1.bf16.msra.mxu0 %v636
  %920 = vmatprep.subr.bf16.mxu0 0
  %921 = vmatpush1.bf16.msra.mxu0 %v637
  %922 = vmatprep.subr.bf16.mxu0 0
  %923 = vmatpush1.bf16.msra.mxu0 0
  %924 = vmatprep.subr.bf16.mxu0 0
  %925 = vmatpush1.bf16.msra.mxu0 0
  %926 = vmatprep.subr.bf16.mxu0 0
  %927 = vmatpush1.bf16.msra.mxu0 0
  %928 = vmatprep.subr.bf16.mxu0 0
  %929 = vmatpush1.bf16.msra.mxu0 0
  %930 = vmatprep.subr.bf16.mxu0 0
  %931 = vmatpush1.bf16.msra.mxu0 0
  %932 = vmatprep.subr.bf16.mxu0 0
  %933 = vmatpush1.bf16.msra.mxu0 0
  %934 = vmatprep.subr.bf16.mxu0 0
  %935 = vmatpush1.bf16.msra.mxu0 0
  %936 = vmatprep.subr.bf16.mxu0 0
  %937 = vmatpush1.bf16.msra.mxu0 0
  %938 = vmatprep.mubr.bf16.mxu0 0
  %939 = vmatmul.mubr.bf16.gmra.mrb[0].mxu0 %v250
  %v940 = vpop.f32.mrb[0].mxu0
  %v941 = vadd.f32 %v892, %v940
  %v942 = vpop.f32.mrb[0].mxu0
  %v943 = vpop.f32.mrb[0].mxu0
  %v944 = vadd.f32 %v895, %v943
  %v945 = vpop.f32.mrb[0].mxu0
  %946 = vmatprep.mubr.bf16.mxu0 0
  %947 = vmatmul.mubr.bf16.gmra.mrb[0].mxu0 %v259
  %v948 = vpop.f32.mrb[0].mxu0
  %v949 = vadd.f32 %v900, %v948
  %v950 = vpop.f32.mrb[0].mxu0
  %v951 = vpop.f32.mrb[0].mxu0
  %v952 = vadd.f32 %v903, %v951
  %v953 = vpop.f32.mrb[0].mxu0
  %954 = vdwg.mxu0
  %v955 = vmax.f32 %v941, 0.0
  %v956 = vmax.f32 %v944, 0.0
  %v957 = vmax.f32 %v949, 0.0
  %v958 = vmax.f32 %v952, 0.0
  %v959 = vpack.c.bf16 %v956, %v955
  %v960 = vpack.c.bf16 %v958, %v957
  %v963 = vunpack.c.l.b16 %v959
  %v964 = vunpack.c.h.b16 %v959
  %v965 = vunpack.c.l.b16 %v960
  %v966 = vunpack.c.h.b16 %v960
  %v967 = vpack.c.b16 %v963, %v963
  %v968 = vpack.c.b16 %v964, %v964
  %v969 = vpack.c.b16 %v965, %v965
  %v970 = vpack.c.b16 %v966, %v966
  %975 = vst [vmem:[%s3] sm:$0xf] %v967
  %976 = vst [vmem:[%s3 + $0x4] sm:$0xf] %v968
  %977 = vst [vmem:[%s3 + $0x8] sm:$0xf] %v969
  %978 = vst [vmem:[%s3 + $0xc] sm:$0xf] %v970
  // Predicated region
  $region14: #{resnet_forward.22} parent=0 // pred_check
    _
  $region15: #{resnet_forward.22} parent=0 // pred_check_branch
    %980 = sbr.rel (0) target = $region17
  $region16: #{resnet_forward.22} parent=0 // pred_region
    _
  $region17: #{resnet_forward.22} parent=0 // pred_fallthru
    _
  // Predicated region
  $region18: #{resnet_forward.22} parent=0 // pred_check
    _
  $region19: #{resnet_forward.22} parent=0 // pred_check_branch
    %982 = sbr.rel (0) target = $region21
  $region20: #{resnet_forward.22} parent=0 // pred_region
    _
  $region21: #{resnet_forward.22} parent=0 // pred_fallthru
    _

// kernel: resnet_forward.25
$region0: #{resnet_forward.25}
  #allocation0 [shape = 'u32[]', space=smem, size = 0x4, offset = 0x4, fixed_abs, tag = 'smem constant byte address 0x4 - core index']
  #allocation1 [shape = 'u32[144,128]{1,0:T(1,128)}', space=vmem, size = 0x12000, scoped, tag = 'internal scratch']
  %s0 = inlined_call_operand.vmem [shape: bf16[32,512], index: 0, kind: input, shape index: {}]
  %s1 = inlined_call_operand.vmem [shape: bf16[512,256], index: 1, kind: input, shape index: {}]
  %s2 = inlined_call_operand.vmem [shape: f32[1,256], index: 2, kind: input, shape index: {}]
  %s3 = inlined_call_operand.vmem [shape: bf16[32,256], index: 3, kind: output, shape index: {}]
  %s4 = sld [smem:[#allocation0]]
  $region22: #{resnet_forward.25} parent=0
    _
  %s6 = ssub.s32 1, %s4
  %s7 = scalar_select 0, %s6, %s4
  // Predicated region
  $region2: #{resnet_forward.25} parent=0 // pred_check
    _
  $region3: #{resnet_forward.25} parent=0 // pred_check_branch
    %9 = sbr.rel (0) target = $region5
  $region4: #{resnet_forward.25} parent=0 // pred_region
    _
  $region5: #{resnet_forward.25} parent=0 // pred_fallthru
    _
  // Predicated region
  $region6: #{resnet_forward.25} parent=0 // pred_check
    _
  $region7: #{resnet_forward.25} parent=0 // pred_check_branch
    %11 = sbr.rel (0) target = $region9
  $region8: #{resnet_forward.25} parent=0 // pred_region
    _
  $region9: #{resnet_forward.25} parent=0 // pred_fallthru
    _
  // Predicated region
  $region10: #{resnet_forward.25} parent=0 // pred_check
    _
  $region11: #{resnet_forward.25} parent=0 // pred_check_branch
    %13 = sbr.rel (0) target = $region13
  $region12: #{resnet_forward.25} parent=0 // pred_region
    _
  $region13: #{resnet_forward.25} parent=0 // pred_fallthru
    _
  %v14 = vld [vmem:[%s0] sm:$0xff]
  %v15 = vld [vmem:[%s0 + $0x8] sm:$0xff]
  %v16 = vld [vmem:[%s0 + $0x10] sm:$0xff]
  %v17 = vld [vmem:[%s0 + $0x18] sm:$0xff]
  %v18 = vld [vmem:[%s0 + $0x20] sm:$0xff]
  %v19 = vld [vmem:[%s0 + $0x28] sm:$0xff]
  %v20 = vld [vmem:[%s0 + $0x30] sm:$0xff]
  %v21 = vld [vmem:[%s0 + $0x38] sm:$0xff]
  %v22 = vld [vmem:[%s1] sm:$0xff]
  %v23 = vld [vmem:[%s1 + $0x8] sm:$0xff]
  %v24 = vld [vmem:[%s1 + $0x10] sm:$0xff]
  %v25 = vld [vmem:[%s1 + $0x18] sm:$0xff]
  %v26 = vld [vmem:[%s1 + $0x20] sm:$0xff]
  %v27 = vld [vmem:[%s1 + $0x28] sm:$0xff]
  %v28 = vld [vmem:[%s1 + $0x30] sm:$0xff]
  %v29 = vld [vmem:[%s1 + $0x38] sm:$0xff]
  %v30 = vld [vmem:[%s1 + $0x40] sm:$0xff]
  %v31 = vld [vmem:[%s1 + $0x48] sm:$0xff]
  %v32 = vld [vmem:[%s1 + $0x50] sm:$0xff]
  %v33 = vld [vmem:[%s1 + $0x58] sm:$0xff]
  %v34 = vld [vmem:[%s1 + $0x60] sm:$0xff]
  %v35 = vld [vmem:[%s1 + $0x68] sm:$0xff]
  %v36 = vld [vmem:[%s1 + $0x70] sm:$0xff]
  %v37 = vld [vmem:[%s1 + $0x78] sm:$0xff]
  %v38 = vld [vmem:[%s1 + $0x80] sm:$0xff]
  %v39 = vld [vmem:[%s1 + $0x88] sm:$0xff]
  %v40 = vld [vmem:[%s1 + $0x90] sm:$0xff]
  %v41 = vld [vmem:[%s1 + $0x98] sm:$0xff]
  %v42 = vld [vmem:[%s1 + $0xa0] sm:$0xff]
  %v43 = vld [vmem:[%s1 + $0xa8] sm:$0xff]
  %v44 = vld [vmem:[%s1 + $0xb0] sm:$0xff]
  %v45 = vld [vmem:[%s1 + $0xb8] sm:$0xff]
  %v46 = vld [vmem:[%s1 + $0xc0] sm:$0xff]
  %v47 = vld [vmem:[%s1 + $0xc8] sm:$0xff]
  %v48 = vld [vmem:[%s1 + $0xd0] sm:$0xff]
  %v49 = vld [vmem:[%s1 + $0xd8] sm:$0xff]
  %v50 = vld [vmem:[%s1 + $0xe0] sm:$0xff]
  %v51 = vld [vmem:[%s1 + $0xe8] sm:$0xff]
  %v52 = vld [vmem:[%s1 + $0xf0] sm:$0xff]
  %v53 = vld [vmem:[%s1 + $0xf8] sm:$0xff]
  %v54 = vld [vmem:[%s1 + $0x100] sm:$0xff]
  %v55 = vld [vmem:[%s1 + $0x108] sm:$0xff]
  %v56 = vld [vmem:[%s1 + $0x110] sm:$0xff]
  %v57 = vld [vmem:[%s1 + $0x118] sm:$0xff]
  %v58 = vld [vmem:[%s1 + $0x120] sm:$0xff]
  %v59 = vld [vmem:[%s1 + $0x128] sm:$0xff]
  %v60 = vld [vmem:[%s1 + $0x130] sm:$0xff]
  %v61 = vld [vmem:[%s1 + $0x138] sm:$0xff]
  %v62 = vld [vmem:[%s1 + $0x140] sm:$0xff]
  %v63 = vld [vmem:[%s1 + $0x148] sm:$0xff]
  %v64 = vld [vmem:[%s1 + $0x150] sm:$0xff]
  %v65 = vld [vmem:[%s1 + $0x158] sm:$0xff]
  %v66 = vld [vmem:[%s1 + $0x160] sm:$0xff]
  %v67 = vld [vmem:[%s1 + $0x168] sm:$0xff]
  %v68 = vld [vmem:[%s1 + $0x170] sm:$0xff]
  %v69 = vld [vmem:[%s1 + $0x178] sm:$0xff]
  %v70 = vld [vmem:[%s1 + $0x180] sm:$0xff]
  %v71 = vld [vmem:[%s1 + $0x188] sm:$0xff]
  %v72 = vld [vmem:[%s1 + $0x190] sm:$0xff]
  %v73 = vld [vmem:[%s1 + $0x198] sm:$0xff]
  %v74 = vld [vmem:[%s1 + $0x1a0] sm:$0xff]
  %v75 = vld [vmem:[%s1 + $0x1a8] sm:$0xff]
  %v76 = vld [vmem:[%s1 + $0x1b0] sm:$0xff]
  %v77 = vld [vmem:[%s1 + $0x1b8] sm:$0xff]
  %v78 = vld [vmem:[%s1 + $0x1c0] sm:$0xff]
  %v79 = vld [vmem:[%s1 + $0x1c8] sm:$0xff]
  %v80 = vld [vmem:[%s1 + $0x1d0] sm:$0xff]
  %v81 = vld [vmem:[%s1 + $0x1d8] sm:$0xff]
  %v82 = vld [vmem:[%s1 + $0x1e0] sm:$0xff]
  %v83 = vld [vmem:[%s1 + $0x1e8] sm:$0xff]
  %v84 = vld [vmem:[%s1 + $0x1f0] sm:$0xff]
  %v85 = vld [vmem:[%s1 + $0x1f8] sm:$0xff]
  %v86 = vld [vmem:[%s2] sm:$0x3]
  %v88 = vlaneseq
  %v89 = vshrl.u32 %v88, 7
  %v90 = vsub.s32 0, %v89
  %v91 = vrot.slane %v86, %v90
  %v92 = vlaneseq
  %v93 = vshrl.u32 %v92, 7
  %v94 = vsub.s32 1, %v93
  %v95 = vrot.slane %v86, %v94
  %v106 = vunpack.c.l.b16 %v14
  %v107 = vunpack.c.h.b16 %v14
  %v108 = vunpack.c.l.b16 %v15
  %v109 = vunpack.c.h.b16 %v15
  %v110 = vunpack.c.l.b16 %v16
  %v111 = vunpack.c.h.b16 %v16
  %v112 = vunpack.c.l.b16 %v17
  %v113 = vunpack.c.h.b16 %v17
  %v114 = vunpack.c.l.b16 %v18
  %v115 = vunpack.c.h.b16 %v18
  %v116 = vunpack.c.l.b16 %v19
  %v117 = vunpack.c.h.b16 %v19
  %v118 = vunpack.c.l.b16 %v20
  %v119 = vunpack.c.h.b16 %v20
  %v120 = vunpack.c.l.b16 %v21
  %v121 = vunpack.c.h.b16 %v21
  %v122 = vpack.c.b16 %v110, %v106
  %v123 = vpack.c.b16 %v111, %v107
  %v124 = vpack.c.b16 %v112, %v108
  %v125 = vpack.c.b16 %v113, %v109
  %v126 = vpack.c.b16 %v118, %v114
  %v127 = vpack.c.b16 %v119, %v115
  %v128 = vpack.c.b16 %v120, %v116
  %v129 = vpack.c.b16 %v121, %v117
  %v202 = vunpack.c.l.b16 %v22
  %v203 = vunpack.c.h.b16 %v22
  %v204 = vunpack.c.l.b16 %v23
  %v205 = vunpack.c.h.b16 %v23
  %v206 = vunpack.c.l.b16 %v24
  %v207 = vunpack.c.h.b16 %v24
  %v208 = vunpack.c.l.b16 %v25
  %v209 = vunpack.c.h.b16 %v25
  %v210 = vunpack.c.l.b16 %v26
  %v211 = vunpack.c.h.b16 %v26
  %v212 = vunpack.c.l.b16 %v27
  %v213 = vunpack.c.h.b16 %v27
  %v214 = vunpack.c.l.b16 %v28
  %v215 = vunpack.c.h.b16 %v28
  %v216 = vunpack.c.l.b16 %v29
  %v217 = vunpack.c.h.b16 %v29
  %v218 = vunpack.c.l.b16 %v30
  %v219 = vunpack.c.h.b16 %v30
  %v220 = vunpack.c.l.b16 %v31
  %v221 = vunpack.c.h.b16 %v31
  %v222 = vunpack.c.l.b16 %v32
  %v223 = vunpack.c.h.b16 %v32
  %v224 = vunpack.c.l.b16 %v33
  %v225 = vunpack.c.h.b16 %v33
  %v226 = vunpack.c.l.b16 %v34
  %v227 = vunpack.c.h.b16 %v34
  %v228 = vunpack.c.l.b16 %v35
  %v229 = vunpack.c.h.b16 %v35
  %v230 = vunpack.c.l.b16 %v36
  %v231 = vunpack.c.h.b16 %v36
  %v232 = vunpack.c.l.b16 %v37
  %v233 = vunpack.c.h.b16 %v37
  %v234 = vunpack.c.l.b16 %v38
  %v235 = vunpack.c.h.b16 %v38
  %v236 = vunpack.c.l.b16 %v39
  %v237 = vunpack.c.h.b16 %v39
  %v238 = vunpack.c.l.b16 %v40
  %v239 = vunpack.c.h.b16 %v40
  %v240 = vunpack.c.l.b16 %v41
  %v241 = vunpack.c.h.b16 %v41
  %v242 = vunpack.c.l.b16 %v42
  %v243 = vunpack.c.h.b16 %v42
  %v244 = vunpack.c.l.b16 %v43
  %v245 = vunpack.c.h.b16 %v43
  %v246 = vunpack.c.l.b16 %v44
  %v247 = vunpack.c.h.b16 %v44
  %v248 = vunpack.c.l.b16 %v45
  %v249 = vunpack.c.h.b16 %v45
  %v250 = vunpack.c.l.b16 %v46
  %v251 = vunpack.c.h.b16 %v46
  %v252 = vunpack.c.l.b16 %v47
  %v253 = vunpack.c.h.b16 %v47
  %v254 = vunpack.c.l.b16 %v48
  %v255 = vunpack.c.h.b16 %v48
  %v256 = vunpack.c.l.b16 %v49
  %v257 = vunpack.c.h.b16 %v49
  %v258 = vunpack.c.l.b16 %v50
  %v259 = vunpack.c.h.b16 %v50
  %v260 = vunpack.c.l.b16 %v51
  %v261 = vunpack.c.h.b16 %v51
  %v262 = vunpack.c.l.b16 %v52
  %v263 = vunpack.c.h.b16 %v52
  %v264 = vunpack.c.l.b16 %v53
  %v265 = vunpack.c.h.b16 %v53
  %v266 = vunpack.c.l.b16 %v54
  %v267 = vunpack.c.h.b16 %v54
  %v268 = vunpack.c.l.b16 %v55
  %v269 = vunpack.c.h.b16 %v55
  %v270 = vunpack.c.l.b16 %v56
  %v271 = vunpack.c.h.b16 %v56
  %v272 = vunpack.c.l.b16 %v57
  %v273 = vunpack.c.h.b16 %v57
  %v274 = vunpack.c.l.b16 %v58
  %v275 = vunpack.c.h.b16 %v58
  %v276 = vunpack.c.l.b16 %v59
  %v277 = vunpack.c.h.b16 %v59
  %v278 = vunpack.c.l.b16 %v60
  %v279 = vunpack.c.h.b16 %v60
  %v280 = vunpack.c.l.b16 %v61
  %v281 = vunpack.c.h.b16 %v61
  %v282 = vunpack.c.l.b16 %v62
  %v283 = vunpack.c.h.b16 %v62
  %v284 = vunpack.c.l.b16 %v63
  %v285 = vunpack.c.h.b16 %v63
  %v286 = vunpack.c.l.b16 %v64
  %v287 = vunpack.c.h.b16 %v64
  %v288 = vunpack.c.l.b16 %v65
  %v289 = vunpack.c.h.b16 %v65
  %v290 = vunpack.c.l.b16 %v66
  %v291 = vunpack.c.h.b16 %v66
  %v292 = vunpack.c.l.b16 %v67
  %v293 = vunpack.c.h.b16 %v67
  %v294 = vunpack.c.l.b16 %v68
  %v295 = vunpack.c.h.b16 %v68
  %v296 = vunpack.c.l.b16 %v69
  %v297 = vunpack.c.h.b16 %v69
  %v298 = vunpack.c.l.b16 %v70
  %v299 = vunpack.c.h.b16 %v70
  %v300 = vunpack.c.l.b16 %v71
  %v301 = vunpack.c.h.b16 %v71
  %v302 = vunpack.c.l.b16 %v72
  %v303 = vunpack.c.h.b16 %v72
  %v304 = vunpack.c.l.b16 %v73
  %v305 = vunpack.c.h.b16 %v73
  %v306 = vunpack.c.l.b16 %v74
  %v307 = vunpack.c.h.b16 %v74
  %v308 = vunpack.c.l.b16 %v75
  %v309 = vunpack.c.h.b16 %v75
  %v310 = vunpack.c.l.b16 %v76
  %v311 = vunpack.c.h.b16 %v76
  %v312 = vunpack.c.l.b16 %v77
  %v313 = vunpack.c.h.b16 %v77
  %v314 = vunpack.c.l.b16 %v78
  %v315 = vunpack.c.h.b16 %v78
  %v316 = vunpack.c.l.b16 %v79
  %v317 = vunpack.c.h.b16 %v79
  %v318 = vunpack.c.l.b16 %v80
  %v319 = vunpack.c.h.b16 %v80
  %v320 = vunpack.c.l.b16 %v81
  %v321 = vunpack.c.h.b16 %v81
  %v322 = vunpack.c.l.b16 %v82
  %v323 = vunpack.c.h.b16 %v82
  %v324 = vunpack.c.l.b16 %v83
  %v325 = vunpack.c.h.b16 %v83
  %v326 = vunpack.c.l.b16 %v84
  %v327 = vunpack.c.h.b16 %v84
  %v328 = vunpack.c.l.b16 %v85
  %v329 = vunpack.c.h.b16 %v85
  %v330 = vpack.c.b16 %v204, %v202
  %v331 = vpack.c.b16 %v205, %v203
  %v332 = vpack.c.b16 %v208, %v206
  %v333 = vpack.c.b16 %v209, %v207
  %v334 = vpack.c.b16 %v212, %v210
  %v335 = vpack.c.b16 %v213, %v211
  %v336 = vpack.c.b16 %v216, %v214
  %v337 = vpack.c.b16 %v217, %v215
  %v338 = vpack.c.b16 %v220, %v218
  %v339 = vpack.c.b16 %v221, %v219
  %v340 = vpack.c.b16 %v224, %v222
  %v341 = vpack.c.b16 %v225, %v223
  %v342 = vpack.c.b16 %v228, %v226
  %v343 = vpack.c.b16 %v229, %v227
  %v344 = vpack.c.b16 %v232, %v230
  %v345 = vpack.c.b16 %v233, %v231
  %v346 = vpack.c.b16 %v236, %v234
  %v347 = vpack.c.b16 %v237, %v235
  %v348 = vpack.c.b16 %v240, %v238
  %v349 = vpack.c.b16 %v241, %v239
  %v350 = vpack.c.b16 %v244, %v242
  %v351 = vpack.c.b16 %v245, %v243
  %v352 = vpack.c.b16 %v248, %v246
  %v353 = vpack.c.b16 %v249, %v247
  %v354 = vpack.c.b16 %v252, %v250
  %v355 = vpack.c.b16 %v253, %v251
  %v356 = vpack.c.b16 %v256, %v254
  %v357 = vpack.c.b16 %v257, %v255
  %v358 = vpack.c.b16 %v260, %v258
  %v359 = vpack.c.b16 %v261, %v259
  %v360 = vpack.c.b16 %v264, %v262
  %v361 = vpack.c.b16 %v265, %v263
  %v362 = vpack.c.b16 %v268, %v266
  %v363 = vpack.c.b16 %v269, %v267
  %v364 = vpack.c.b16 %v272, %v270
  %v365 = vpack.c.b16 %v273, %v271
  %v366 = vpack.c.b16 %v276, %v274
  %v367 = vpack.c.b16 %v277, %v275
  %v368 = vpack.c.b16 %v280, %v278
  %v369 = vpack.c.b16 %v281, %v279
  %v370 = vpack.c.b16 %v284, %v282
  %v371 = vpack.c.b16 %v285, %v283
  %v372 = vpack.c.b16 %v288, %v286
  %v373 = vpack.c.b16 %v289, %v287
  %v374 = vpack.c.b16 %v292, %v290
  %v375 = vpack.c.b16 %v293, %v291
  %v376 = vpack.c.b16 %v296, %v294
  %v377 = vpack.c.b16 %v297, %v295
  %v378 = vpack.c.b16 %v300, %v298
  %v379 = vpack.c.b16 %v301, %v299
  %v380 = vpack.c.b16 %v304, %v302
  %v381 = vpack.c.b16 %v305, %v303
  %v382 = vpack.c.b16 %v308, %v306
  %v383 = vpack.c.b16 %v309, %v307
  %v384 = vpack.c.b16 %v312, %v310
  %v385 = vpack.c.b16 %v313, %v311
  %v386 = vpack.c.b16 %v316, %v314
  %v387 = vpack.c.b16 %v317, %v315
  %v388 = vpack.c.b16 %v320, %v318
  %v389 = vpack.c.b16 %v321, %v319
  %v390 = vpack.c.b16 %v324, %v322
  %v391 = vpack.c.b16 %v325, %v323
  %v392 = vpack.c.b16 %v328, %v326
  %v393 = vpack.c.b16 %v329, %v327
  %458 = vmatprep.subr.bf16.mxu0 %v331
  %459 = vmatpush1.bf16.msra.mxu0 %v330
  %460 = vmatprep.subr.bf16.mxu0 %v333
  %461 = vmatpush1.bf16.msra.mxu0 %v332
  %462 = vmatprep.subr.bf16.mxu0 %v335
  %463 = vmatpush1.bf16.msra.mxu0 %v334
  %464 = vmatprep.subr.bf16.mxu0 %v337
  %465 = vmatpush1.bf16.msra.mxu0 %v336
  %466 = vmatprep.subr.bf16.mxu0 %v339
  %467 = vmatpush1.bf16.msra.mxu0 %v338
  %468 = vmatprep.subr.bf16.mxu0 %v341
  %469 = vmatpush1.bf16.msra.mxu0 %v340
  %470 = vmatprep.subr.bf16.mxu0 %v343
  %471 = vmatpush1.bf16.msra.mxu0 %v342
  %472 = vmatprep.subr.bf16.mxu0 %v345
  %473 = vmatpush1.bf16.msra.mxu0 %v344
  %474 = vmatprep.subr.bf16.mxu0 %v347
  %475 = vmatpush1.bf16.msra.mxu0 %v346
  %476 = vmatprep.subr.bf16.mxu0 %v349
  %477 = vmatpush1.bf16.msra.mxu0 %v348
  %478 = vmatprep.subr.bf16.mxu0 %v351
  %479 = vmatpush1.bf16.msra.mxu0 %v350
  %480 = vmatprep.subr.bf16.mxu0 %v353
  %481 = vmatpush1.bf16.msra.mxu0 %v352
  %482 = vmatprep.subr.bf16.mxu0 %v355
  %483 = vmatpush1.bf16.msra.mxu0 %v354
  %484 = vmatprep.subr.bf16.mxu0 %v357
  %485 = vmatpush1.bf16.msra.mxu0 %v356
  %486 = vmatprep.subr.bf16.mxu0 %v359
  %487 = vmatpush1.bf16.msra.mxu0 %v358
  %488 = vmatprep.subr.bf16.mxu0 %v361
  %489 = vmatpush1.bf16.msra.mxu0 %v360
  %490 = vmatprep.mubr.bf16.mxu0 %v123
  %491 = vmatmul.mubr.bf16.gmra.mrb[0].mxu0 %v122
  %v492 = vpop.f32.mrb[0].mxu0
  %v493 = vadd.f32 %v91, %v492
  %v494 = vpop.f32.mrb[0].mxu0
  %v495 = vadd.f32 %v95, %v494
  %v496 = vpop.f32.mrb[0].mxu0
  %v497 = vadd.f32 %v91, %v496
  %v498 = vpop.f32.mrb[0].mxu0
  %v499 = vadd.f32 %v95, %v498
  %500 = vmatprep.mubr.bf16.mxu0 %v127
  %501 = vmatmul.mubr.bf16.gmra.mrb[0].mxu0 %v126
  %v502 = vpop.f32.mrb[0].mxu0
  %v503 = vadd.f32 %v91, %v502
  %v504 = vpop.f32.mrb[0].mxu0
  %v505 = vadd.f32 %v95, %v504
  %v506 = vpop.f32.mrb[0].mxu0
  %v507 = vadd.f32 %v91, %v506
  %v508 = vpop.f32.mrb[0].mxu0
  %v509 = vadd.f32 %v95, %v508
  %510 = vdwg.mxu0
  %511 = vmatprep.subr.bf16.mxu0 %v363
  %512 = vmatpush1.bf16.msra.mxu0 %v362
  %513 = vmatprep.subr.bf16.mxu0 %v365
  %514 = vmatpush1.bf16.msra.mxu0 %v364
  %515 = vmatprep.subr.bf16.mxu0 %v367
  %516 = vmatpush1.bf16.msra.mxu0 %v366
  %517 = vmatprep.subr.bf16.mxu0 %v369
  %518 = vmatpush1.bf16.msra.mxu0 %v368
  %519 = vmatprep.subr.bf16.mxu0 %v371
  %520 = vmatpush1.bf16.msra.mxu0 %v370
  %521 = vmatprep.subr.bf16.mxu0 %v373
  %522 = vmatpush1.bf16.msra.mxu0 %v372
  %523 = vmatprep.subr.bf16.mxu0 %v375
  %524 = vmatpush1.bf16.msra.mxu0 %v374
  %525 = vmatprep.subr.bf16.mxu0 %v377
  %526 = vmatpush1.bf16.msra.mxu0 %v376
  %527 = vmatprep.subr.bf16.mxu0 %v379
  %528 = vmatpush1.bf16.msra.mxu0 %v378
  %529 = vmatprep.subr.bf16.mxu0 %v381
  %530 = vmatpush1.bf16.msra.mxu0 %v380
  %531 = vmatprep.subr.bf16.mxu0 %v383
  %532 = vmatpush1.bf16.msra.mxu0 %v382
  %533 = vmatprep.subr.bf16.mxu0 %v385
  %534 = vmatpush1.bf16.msra.mxu0 %v384
  %535 = vmatprep.subr.bf16.mxu0 %v387
  %536 = vmatpush1.bf16.msra.mxu0 %v386
  %537 = vmatprep.subr.bf16.mxu0 %v389
  %538 = vmatpush1.bf16.msra.mxu0 %v388
  %539 = vmatprep.subr.bf16.mxu0 %v391
  %540 = vmatpush1.bf16.msra.mxu0 %v390
  %541 = vmatprep.subr.bf16.mxu0 %v393
  %542 = vmatpush1.bf16.msra.mxu0 %v392
  %543 = vmatprep.mubr.bf16.mxu0 %v125
  %544 = vmatmul.mubr.bf16.gmra.mrb[0].mxu0 %v124
  %v545 = vpop.f32.mrb[0].mxu0
  %v546 = vadd.f32 %v493, %v545
  %v547 = vpop.f32.mrb[0].mxu0
  %v548 = vadd.f32 %v495, %v547
  %v549 = vpop.f32.mrb[0].mxu0
  %v550 = vadd.f32 %v497, %v549
  %v551 = vpop.f32.mrb[0].mxu0
  %v552 = vadd.f32 %v499, %v551
  %553 = vmatprep.mubr.bf16.mxu0 %v129
  %554 = vmatmul.mubr.bf16.gmra.mrb[0].mxu0 %v128
  %v555 = vpop.f32.mrb[0].mxu0
  %v556 = vadd.f32 %v503, %v555
  %v557 = vpop.f32.mrb[0].mxu0
  %v558 = vadd.f32 %v505, %v557
  %v559 = vpop.f32.mrb[0].mxu0
  %v560 = vadd.f32 %v507, %v559
  %v561 = vpop.f32.mrb[0].mxu0
  %v562 = vadd.f32 %v509, %v561
  %563 = vdwg.mxu0
  %v564 = vmax.f32 %v546, 0.0
  %v565 = vmax.f32 %v548, 0.0
  %v566 = vmax.f32 %v550, 0.0
  %v567 = vmax.f32 %v552, 0.0
  %v568 = vmax.f32 %v556, 0.0
  %v569 = vmax.f32 %v558, 0.0
  %v570 = vmax.f32 %v560, 0.0
  %v571 = vmax.f32 %v562, 0.0
  %v572 = vpack.c.bf16 %v566, %v564
  %v573 = vpack.c.bf16 %v567, %v565
  %v574 = vpack.c.bf16 %v570, %v568
  %v575 = vpack.c.bf16 %v571, %v569
  %v580 = vunpack.c.l.b16 %v572
  %v581 = vunpack.c.l.b16 %v573
  %v582 = vunpack.c.h.b16 %v572
  %v583 = vunpack.c.h.b16 %v573
  %v584 = vunpack.c.l.b16 %v574
  %v585 = vunpack.c.l.b16 %v575
  %v586 = vunpack.c.h.b16 %v574
  %v587 = vunpack.c.h.b16 %v575
  %v588 = vpack.c.b16 %v581, %v580
  %v589 = vpack.c.b16 %v583, %v582
  %v590 = vpack.c.b16 %v585, %v584
  %v591 = vpack.c.b16 %v587, %v586
  %596 = vst [vmem:[%s3] sm:$0xff] %v588
  %597 = vst [vmem:[%s3 + $0x8] sm:$0xff] %v589
  %598 = vst [vmem:[%s3 + $0x10] sm:$0xff] %v590
  %599 = vst [vmem:[%s3 + $0x18] sm:$0xff] %v591
  // Predicated region
  $region14: #{resnet_forward.25} parent=0 // pred_check
    _
  $region15: #{resnet_forward.25} parent=0 // pred_check_branch
    %601 = sbr.rel (0) target = $region17
  $region16: #{resnet_forward.25} parent=0 // pred_region
    _
  $region17: #{resnet_forward.25} parent=0 // pred_fallthru
    _
  // Predicated region
  $region18: #{resnet_forward.25} parent=0 // pred_check
    _
  $region19: #{resnet_forward.25} parent=0 // pred_check_branch
    %603 = sbr.rel (0) target = $region21
  $region20: #{resnet_forward.25} parent=0 // pred_region
    _
  $region21: #{resnet_forward.25} parent=0 // pred_fallthru
    _

// kernel: resnet_forward.27
$region0: #{resnet_forward.27}
  #allocation0 [shape = 'u32[]', space=smem, size = 0x4, offset = 0x4, fixed_abs, tag = 'smem constant byte address 0x4 - core index']
  #allocation1 [shape = 'u32[144,128]{1,0:T(1,128)}', space=vmem, size = 0x12000, scoped, tag = 'internal scratch']
  %s0 = inlined_call_operand.vmem [shape: bf16[8,512], index: 0, kind: input, shape index: {}]
  %s1 = inlined_call_operand.vmem [shape: bf16[512,1024], index: 1, kind: input, shape index: {}]
  %s2 = inlined_call_operand.vmem [shape: f32[1,1024], index: 2, kind: input, shape index: {}]
  %s3 = inlined_call_operand.vmem [shape: bf16[8,1024], index: 3, kind: output, shape index: {}]
  %s4 = sld [smem:[#allocation0]]
  $region83: #{resnet_forward.27} parent=0
    _
  %s6 = ssub.s32 1, %s4
  %s7 = scalar_select 0, %s6, %s4
  $region1: #{resnet_forward.27} parent=0
    #allocation2 [shape = 'u8[524288]{0}', space=vmem, size = 0x80000, scoped, tag = 'input window, operand 1']
    loop: start=0, step=1, limit=6
    $region2: #{resnet_forward.27} parent=1 // loop_pre_header
      _
    $region3: #{resnet_forward.27} parent=1 // loop_header
      %s9 = sphi 0, %s13
      %p10 = scmp.ge.s32.totalorder %s9, 6
      %s16 = sphi 0, %s28
      %s17 = sphi 0, %s24
      %s18 = sphi 0, %s16
      %s19 = sphi 0, %s17
      %s20 = sphi 0, %s18
      %s21 = sphi 0, %s19
      %s31 = sphi 0, %s33
      %s34 = sphi 0, %s31
      %s35 = sphi 0, %s34
      %s51 = sphi 0, %s35
      %s57 = sphi 0, %s59
      %s60 = sphi 0, %s57
      %s61 = sphi 0, %s60
      %s77 = sphi 0, %s61
      %s83 = sphi 0, %s85
      %s86 = sphi 0, %s83
      %s87 = sphi 0, %s86
      %s103 = sphi 0, %s87
      %s111 = sphi 0, %s113
      %s114 = sphi 0, %s111
      %s115 = sphi 0, %s114
      %s131 = sphi 0, %s115
    $region4: #{resnet_forward.27} parent=1 // loop_header_branch
      %12 = sbr.rel (%p10) target = $region8
    $region5: #{resnet_forward.27} parent=1 // loop_body
      %s14 = ssub.s32 %s9, 1
      %s15 = ssub.s32 %s9, 2
      %s22 = sadd.s32 1, %s17
      %p23 = scmp.ge.s32.totalorder %s22, 4
      %s24 = scalar_select %p23, 0, %s22
      %s25 = sadd.s32 1, %s16
      %s26 = scalar_select %p23, %s25, %s16
      %p27 = scmp.ge.s32.totalorder %s26, 1
      %s28 = scalar_select %p27, 0, %s26
      %s29 = ssub.s32 %s16, %s28
      %p30 = scmp.eq.s32.totalorder %s29, 0
      %s32 = sadd.s32 %s31, 1
      %s33 = scalar_select %p30, %s31, %s32
      %p36 = pneg %p30
      %p37 = scmp.eq.s32.totalorder %s9, 3
      %p38 = por %p36, %p37
      %p39 = scmp.ne.s32.totalorder %s31, %s34
      %p40 = scmp.eq.s32.totalorder %s9, 0
      %p41 = por %p39, %p40
      %p42 = scmp.ne.s32.totalorder %s31, %s34
      %p43 = scmp.eq.s32.totalorder %s14, 3
      %p44 = por %p42, %p43
      %p45 = scmp.ne.s32.totalorder %s34, %s35
      %p46 = scmp.eq.s32.totalorder %s14, 0
      %p47 = por %p45, %p46
      %p48 = scmp.ne.s32.totalorder %s34, %s35
      %p49 = scmp.eq.s32.totalorder %s15, 3
      %p50 = por %p48, %p49
      %p52 = scmp.ne.s32.totalorder %s35, %s51
      %p53 = scmp.eq.s32.totalorder %s15, 0
      %p54 = por %p52, %p53
      %s55 = ssub.s32 %s17, %s24
      %p56 = scmp.eq.s32.totalorder %s55, 0
      %s58 = sadd.s32 %s57, 1
      %s59 = scalar_select %p56, %s57, %s58
      %p62 = pneg %p56
      %p63 = scmp.eq.s32.totalorder %s9, 3
      %p64 = por %p62, %p63
      %p65 = scmp.ne.s32.totalorder %s57, %s60
      %p66 = scmp.eq.s32.totalorder %s9, 0
      %p67 = por %p65, %p66
      %p68 = scmp.ne.s32.totalorder %s57, %s60
      %p69 = scmp.eq.s32.totalorder %s14, 3
      %p70 = por %p68, %p69
      %p71 = scmp.ne.s32.totalorder %s60, %s61
      %p72 = scmp.eq.s32.totalorder %s14, 0
      %p73 = por %p71, %p72
      %p74 = scmp.ne.s32.totalorder %s60, %s61
      %p75 = scmp.eq.s32.totalorder %s15, 3
      %p76 = por %p74, %p75
      %p78 = scmp.ne.s32.totalorder %s61, %s77
      %p79 = scmp.eq.s32.totalorder %s15, 0
      %p80 = por %p78, %p79
      %s81 = ssub.s32 %s17, %s24
      %p82 = scmp.eq.s32.totalorder %s81, 0
      %s84 = sadd.s32 %s83, 1
      %s85 = scalar_select %p82, %s83, %s84
      %p88 = pneg %p82
      %p89 = scmp.eq.s32.totalorder %s9, 3
      %p90 = por %p88, %p89
      %p91 = scmp.ne.s32.totalorder %s83, %s86
      %p92 = scmp.eq.s32.totalorder %s9, 0
      %p93 = por %p91, %p92
      %p94 = scmp.ne.s32.totalorder %s83, %s86
      %p95 = scmp.eq.s32.totalorder %s14, 3
      %p96 = por %p94, %p95
      %p97 = scmp.ne.s32.totalorder %s86, %s87
      %p98 = scmp.eq.s32.totalorder %s14, 0
      %p99 = por %p97, %p98
      %p100 = scmp.ne.s32.totalorder %s86, %s87
      %p101 = scmp.eq.s32.totalorder %s15, 3
      %p102 = por %p100, %p101
      %p104 = scmp.ne.s32.totalorder %s87, %s103
      %p105 = scmp.eq.s32.totalorder %s15, 0
      %p106 = por %p104, %p105
      %s107 = ssub.s32 %s16, %s28
      %s108 = ssub.s32 %s17, %s24
      %s109 = sor.u32 %s107, %s108
      %p110 = scmp.eq.s32.totalorder %s109, 0
      %s112 = sadd.s32 %s111, 1
      %s113 = scalar_select %p110, %s111, %s112
      %p116 = pneg %p110
      %p117 = scmp.eq.s32.totalorder %s9, 3
      %p118 = por %p116, %p117
      %p119 = scmp.ne.s32.totalorder %s111, %s114
      %p120 = scmp.eq.s32.totalorder %s9, 0
      %p121 = por %p119, %p120
      %p122 = scmp.ne.s32.totalorder %s111, %s114
      %p123 = scmp.eq.s32.totalorder %s14, 3
      %p124 = por %p122, %p123
      %p125 = scmp.ne.s32.totalorder %s114, %s115
      %p126 = scmp.eq.s32.totalorder %s14, 0
      %p127 = por %p125, %p126
      %p128 = scmp.ne.s32.totalorder %s114, %s115
      %p129 = scmp.eq.s32.totalorder %s15, 3
      %p130 = por %p128, %p129
      %p132 = scmp.ne.s32.totalorder %s115, %s131
      %p133 = scmp.eq.s32.totalorder %s15, 0
      %p134 = por %p132, %p133
      %p135 = scmp.le.s32.totalorder 1, %s9
      %p136 = scmp.lt.s32.totalorder %s9, 5
      %p137 = pnand %p135, %p136
      %p138 = pneg %p137
      // Predicated region
      $region9: #{resnet_forward.27} parent=5 // pred_check
        _
      $region10: #{resnet_forward.27} parent=5 // pred_check_branch
        %140 = sbr.rel (%p137) target = $region12
      $region11: #{resnet_forward.27} parent=5 // pred_region
        %s141 = ssub.s32 %s9, 1
        // Predicated region
        $region13: #{resnet_forward.27} parent=11 // pred_check
          %p142 = pneg %p47
        $region14: #{resnet_forward.27} parent=11 // pred_check_branch
          %144 = sbr.rel (%p142) target = $region16
        $region15: #{resnet_forward.27} parent=11 // pred_region
          %p145 = scmp.lt.s32.totalorder %s18, 0
          %s146 = scalar_select %p145, %s18, 0
          %s147 = smul.addr %s146, 4
          %s148 = smul.addr %s147, 4
          %s149 = scalar_lea.vmem %s0, %s148
        $region16: #{resnet_forward.27} parent=11 // pred_fallthru
          _
      $region12: #{resnet_forward.27} parent=5 // pred_fallthru
        _
      %p150 = scmp.lt.s32.totalorder %s9, 4
      // Predicated region
      $region17: #{resnet_forward.27} parent=5 // pred_check
        %p151 = pneg %p150
      $region18: #{resnet_forward.27} parent=5 // pred_check_branch
        %153 = sbr.rel (%p151) target = $region20
      $region19: #{resnet_forward.27} parent=5 // pred_region
        // Predicated region
        $region21: #{resnet_forward.27} parent=19 // pred_check
          %p154 = pneg %p67
        $region22: #{resnet_forward.27} parent=19 // pred_check_branch
          %156 = sbr.rel (%p154) target = $region24
        $region23: #{resnet_forward.27} parent=19 // pred_region
          %s157 = sand.u32 %s57, 1
          %s158 = sand.u32 %s57, 1
          %s159 = smul.addr %s158, 512
          %s160 = scalar_lea.vmem [#allocation2], %s159
          %s161 = smul.u32 2, %s17
          %s162 = smul.addr %s161, 4
          %s163 = scalar_lea.vmem %s1, %s162
          // Predicated region
          $region25: #{resnet_forward.27} parent=23 // pred_check
            _
          $region26: #{resnet_forward.27} parent=23 // pred_check_branch
            %165 = sbr.rel (0) target = $region28
          $region27: #{resnet_forward.27} parent=23 // pred_region
            // Predicated region
            $region29: #{resnet_forward.27} parent=27 // pred_check
              _
            $region30: #{resnet_forward.27} parent=27 // pred_check_branch
              %167 = sbr.rel (0) target = $region32
            $region31: #{resnet_forward.27} parent=27 // pred_region
              // Predicated region
              $region44: #{resnet_forward.27} parent=31 // pred_check
                _
              $region45: #{resnet_forward.27} parent=31 // pred_check_branch
                %308 = sbr.rel (0) target = $region47
              $region46: #{resnet_forward.27} parent=31 // pred_region
                loop: start=0, step=1, limit=1
                $region48: #{resnet_forward.27} parent=46 // loop_pre_header
                  _
                $region49: #{resnet_forward.27} parent=46 // loop_header
                  %s310 = sphi 0, %s314
                  %p311 = scmp.ge.s32.totalorder %s310, 1
                  %s315 = sphi %s163, %s163
                  %s316 = sphi %s160, %s160
                $region50: #{resnet_forward.27} parent=46 // loop_header_branch
                  %313 = sbr.rel (%p311) target = $region54
                $region51: #{resnet_forward.27} parent=46 // loop_body
                  %v317 = vld [vmem:[%s315] sm:$0xff]
                  %318 = vst [vmem:[%s316] sm:$0xff] %v317
                  %v319 = vld [vmem:[%s315 + $0x20] sm:$0xff]
                  %320 = vst [vmem:[%s316 + $0x8] sm:$0xff] %v319
                  %v321 = vld [vmem:[%s315 + $0x40] sm:$0xff]
                  %322 = vst [vmem:[%s316 + $0x10] sm:$0xff] %v321
                  %v323 = vld [vmem:[%s315 + $0x60] sm:$0xff]
                  %324 = vst [vmem:[%s316 + $0x18] sm:$0xff] %v323
                  %v325 = vld [vmem:[%s315 + $0x80] sm:$0xff]
                  %326 = vst [vmem:[%s316 + $0x20] sm:$0xff] %v325
                  %v327 = vld [vmem:[%s315 + $0xa0] sm:$0xff]
                  %328 = vst [vmem:[%s316 + $0x28] sm:$0xff] %v327
                  %v329 = vld [vmem:[%s315 + $0xc0] sm:$0xff]
                  %330 = vst [vmem:[%s316 + $0x30] sm:$0xff] %v329
                  %v331 = vld [vmem:[%s315 + $0xe0] sm:$0xff]
                  %332 = vst [vmem:[%s316 + $0x38] sm:$0xff] %v331
                  %v333 = vld [vmem:[%s315 + $0x100] sm:$0xff]
                  %334 = vst [vmem:[%s316 + $0x40] sm:$0xff] %v333
                  %v335 = vld [vmem:[%s315 + $0x120] sm:$0xff]
                  %336 = vst [vmem:[%s316 + $0x48] sm:$0xff] %v335
                  %v337 = vld [vmem:[%s315 + $0x140] sm:$0xff]
                  %338 = vst [vmem:[%s316 + $0x50] sm:$0xff] %v337
                  %v339 = vld [vmem:[%s315 + $0x160] sm:$0xff]
                  %340 = vst [vmem:[%s316 + $0x58] sm:$0xff] %v339
                  %v341 = vld [vmem:[%s315 + $0x180] sm:$0xff]
                  %342 = vst [vmem:[%s316 + $0x60] sm:$0xff] %v341
                  %v343 = vld [vmem:[%s315 + $0x1a0] sm:$0xff]
                  %344 = vst [vmem:[%s316 + $0x68] sm:$0xff] %v343
                  %v345 = vld [vmem:[%s315 + $0x1c0] sm:$0xff]
                  %346 = vst [vmem:[%s316 + $0x70] sm:$0xff] %v345
                  %v347 = vld [vmem:[%s315 + $0x1e0] sm:$0xff]
                  %348 = vst [vmem:[%s316 + $0x78] sm:$0xff] %v347
                  %v349 = vld [vmem:[%s315 + $0x200] sm:$0xff]
                  %350 = vst [vmem:[%s316 + $0x80] sm:$0xff] %v349
                  %v351 = vld [vmem:[%s315 + $0x220] sm:$0xff]
                  %352 = vst [vmem:[%s316 + $0x88] sm:$0xff] %v351
                  %v353 = vld [vmem:[%s315 + $0x240] sm:$0xff]
                  %354 = vst [vmem:[%s316 + $0x90] sm:$0xff] %v353
                  %v355 = vld [vmem:[%s315 + $0x260] sm:$0xff]
                  %356 = vst [vmem:[%s316 + $0x98] sm:$0xff] %v355
                  %v357 = vld [vmem:[%s315 + $0x280] sm:$0xff]
                  %358 = vst [vmem:[%s316 + $0xa0] sm:$0xff] %v357
                  %v359 = vld [vmem:[%s315 + $0x2a0] sm:$0xff]
                  %360 = vst [vmem:[%s316 + $0xa8] sm:$0xff] %v359
                  %v361 = vld [vmem:[%s315 + $0x2c0] sm:$0xff]
                  %362 = vst [vmem:[%s316 + $0xb0] sm:$0xff] %v361
                  %v363 = vld [vmem:[%s315 + $0x2e0] sm:$0xff]
                  %364 = vst [vmem:[%s316 + $0xb8] sm:$0xff] %v363
                  %v365 = vld [vmem:[%s315 + $0x300] sm:$0xff]
                  %366 = vst [vmem:[%s316 + $0xc0] sm:$0xff] %v365
                  %v367 = vld [vmem:[%s315 + $0x320] sm:$0xff]
                  %368 = vst [vmem:[%s316 + $0xc8] sm:$0xff] %v367
                  %v369 = vld [vmem:[%s315 + $0x340] sm:$0xff]
                  %370 = vst [vmem:[%s316 + $0xd0] sm:$0xff] %v369
                  %v371 = vld [vmem:[%s315 + $0x360] sm:$0xff]
                  %372 = vst [vmem:[%s316 + $0xd8] sm:$0xff] %v371
                  %v373 = vld [vmem:[%s315 + $0x380] sm:$0xff]
                  %374 = vst [vmem:[%s316 + $0xe0] sm:$0xff] %v373
                  %v375 = vld [vmem:[%s315 + $0x3a0] sm:$0xff]
                  %376 = vst [vmem:[%s316 + $0xe8] sm:$0xff] %v375
                  %v377 = vld [vmem:[%s315 + $0x3c0] sm:$0xff]
                  %378 = vst [vmem:[%s316 + $0xf0] sm:$0xff] %v377
                  %v379 = vld [vmem:[%s315 + $0x3e0] sm:$0xff]
                  %380 = vst [vmem:[%s316 + $0xf8] sm:$0xff] %v379
                  %v381 = vld [vmem:[%s315 + $0x400] sm:$0xff]
                  %382 = vst [vmem:[%s316 + $0x100] sm:$0xff] %v381
                  %v383 = vld [vmem:[%s315 + $0x420] sm:$0xff]
                  %384 = vst [vmem:[%s316 + $0x108] sm:$0xff] %v383
                  %v385 = vld [vmem:[%s315 + $0x440] sm:$0xff]
                  %386 = vst [vmem:[%s316 + $0x110] sm:$0xff] %v385
                  %v387 = vld [vmem:[%s315 + $0x460] sm:$0xff]
                  %388 = vst [vmem:[%s316 + $0x118] sm:$0xff] %v387
                  %v389 = vld [vmem:[%s315 + $0x480] sm:$0xff]
                  %390 = vst [vmem:[%s316 + $0x120] sm:$0xff] %v389
                  %v391 = vld [vmem:[%s315 + $0x4a0] sm:$0xff]
                  %392 = vst [vmem:[%s316 + $0x128] sm:$0xff] %v391
                  %v393 = vld [vmem:[%s315 + $0x4c0] sm:$0xff]
                  %394 = vst [vmem:[%s316 + $0x130] sm:$0xff] %v393
                  %v395 = vld [vmem:[%s315 + $0x4e0] sm:$0xff]
                  %396 = vst [vmem:[%s316 + $0x138] sm:$0xff] %v395
                  %v397 = vld [vmem:[%s315 + $0x500] sm:$0xff]
                  %398 = vst [vmem:[%s316 + $0x140] sm:$0xff] %v397
                  %v399 = vld [vmem:[%s315 + $0x520] sm:$0xff]
                  %400 = vst [vmem:[%s316 + $0x148] sm:$0xff] %v399
                  %v401 = vld [vmem:[%s315 + $0x540] sm:$0xff]
                  %402 = vst [vmem:[%s316 + $0x150] sm:$0xff] %v401
                  %v403 = vld [vmem:[%s315 + $0x560] sm:$0xff]
                  %404 = vst [vmem:[%s316 + $0x158] sm:$0xff] %v403
                  %v405 = vld [vmem:[%s315 + $0x580] sm:$0xff]
                  %406 = vst [vmem:[%s316 + $0x160] sm:$0xff] %v405
                  %v407 = vld [vmem:[%s315 + $0x5a0] sm:$0xff]
                  %408 = vst [vmem:[%s316 + $0x168] sm:$0xff] %v407
                  %v409 = vld [vmem:[%s315 + $0x5c0] sm:$0xff]
                  %410 = vst [vmem:[%s316 + $0x170] sm:$0xff] %v409
                  %v411 = vld [vmem:[%s315 + $0x5e0] sm:$0xff]
                  %412 = vst [vmem:[%s316 + $0x178] sm:$0xff] %v411
                  %v413 = vld [vmem:[%s315 + $0x600] sm:$0xff]
                  %414 = vst [vmem:[%s316 + $0x180] sm:$0xff] %v413
                  %v415 = vld [vmem:[%s315 + $0x620] sm:$0xff]
                  %416 = vst [vmem:[%s316 + $0x188] sm:$0xff] %v415
                  %v417 = vld [vmem:[%s315 + $0x640] sm:$0xff]
                  %418 = vst [vmem:[%s316 + $0x190] sm:$0xff] %v417
                  %v419 = vld [vmem:[%s315 + $0x660] sm:$0xff]
                  %420 = vst [vmem:[%s316 + $0x198] sm:$0xff] %v419
                  %v421 = vld [vmem:[%s315 + $0x680] sm:$0xff]
                  %422 = vst [vmem:[%s316 + $0x1a0] sm:$0xff] %v421
                  %v423 = vld [vmem:[%s315 + $0x6a0] sm:$0xff]
                  %424 = vst [vmem:[%s316 + $0x1a8] sm:$0xff] %v423
                  %v425 = vld [vmem:[%s315 + $0x6c0] sm:$0xff]
                  %426 = vst [vmem:[%s316 + $0x1b0] sm:$0xff] %v425
                  %v427 = vld [vmem:[%s315 + $0x6e0] sm:$0xff]
                  %428 = vst [vmem:[%s316 + $0x1b8] sm:$0xff] %v427
                  %v429 = vld [vmem:[%s315 + $0x700] sm:$0xff]
                  %430 = vst [vmem:[%s316 + $0x1c0] sm:$0xff] %v429
                  %v431 = vld [vmem:[%s315 + $0x720] sm:$0xff]
                  %432 = vst [vmem:[%s316 + $0x1c8] sm:$0xff] %v431
                  %v433 = vld [vmem:[%s315 + $0x740] sm:$0xff]
                  %434 = vst [vmem:[%s316 + $0x1d0] sm:$0xff] %v433
                  %v435 = vld [vmem:[%s315 + $0x760] sm:$0xff]
                  %436 = vst [vmem:[%s316 + $0x1d8] sm:$0xff] %v435
                  %v437 = vld [vmem:[%s315 + $0x780] sm:$0xff]
                  %438 = vst [vmem:[%s316 + $0x1e0] sm:$0xff] %v437
                  %v439 = vld [vmem:[%s315 + $0x7a0] sm:$0xff]
                  %440 = vst [vmem:[%s316 + $0x1e8] sm:$0xff] %v439
                  %v441 = vld [vmem:[%s315 + $0x7c0] sm:$0xff]
                  %442 = vst [vmem:[%s316 + $0x1f0] sm:$0xff] %v441
                  %v443 = vld [vmem:[%s315 + $0x7e0] sm:$0xff]
                  %444 = vst [vmem:[%s316 + $0x1f8] sm:$0xff] %v443
                $region52: #{resnet_forward.27} parent=46 // loop_footer
                  %s314 = sadd.s32 1, %s310
                $region53: #{resnet_forward.27} parent=46 // loop_footer_branch
                  %309 = sbr.rel target = $region49
                $region54: #{resnet_forward.27} parent=46 // loop_exit
                  _
              $region47: #{resnet_forward.27} parent=31 // pred_fallthru
                _
              // Predicated region
              $region55: #{resnet_forward.27} parent=31 // pred_check
                _
              $region56: #{resnet_forward.27} parent=31 // pred_check_branch
                %446 = sbr.rel target = $region58
              $region57: #{resnet_forward.27} parent=31 // pred_region
                _
              $region58: #{resnet_forward.27} parent=31 // pred_fallthru
                _
            $region32: #{resnet_forward.27} parent=27 // pred_fallthru
              _
            // Predicated region
            $region33: #{resnet_forward.27} parent=27 // pred_check
              _
            $region34: #{resnet_forward.27} parent=27 // pred_check_branch
              %169 = sbr.rel target = $region36
            $region35: #{resnet_forward.27} parent=27 // pred_region
              loop: start=0, step=1, limit=1
              $region37: #{resnet_forward.27} parent=35 // loop_pre_header
                _
              $region38: #{resnet_forward.27} parent=35 // loop_header
                %s172 = sphi 0, %s176
                %p173 = scmp.ge.s32.totalorder %s172, 1
                %s177 = sphi %s163, %s163
                %s178 = sphi %s160, %s160
              $region39: #{resnet_forward.27} parent=35 // loop_header_branch
                %175 = sbr.rel (%p173) target = $region43
              $region40: #{resnet_forward.27} parent=35 // loop_body
                %v179 = vld [vmem:[%s177] sm:$0xff]
                %180 = vst [vmem:[%s178] sm:$0xff] %v179
                %v181 = vld [vmem:[%s177 + $0x20] sm:$0xff]
                %182 = vst [vmem:[%s178 + $0x8] sm:$0xff] %v181
                %v183 = vld [vmem:[%s177 + $0x40] sm:$0xff]
                %184 = vst [vmem:[%s178 + $0x10] sm:$0xff] %v183
                %v185 = vld [vmem:[%s177 + $0x60] sm:$0xff]
                %186 = vst [vmem:[%s178 + $0x18] sm:$0xff] %v185
                %v187 = vld [vmem:[%s177 + $0x80] sm:$0xff]
                %188 = vst [vmem:[%s178 + $0x20] sm:$0xff] %v187
                %v189 = vld [vmem:[%s177 + $0xa0] sm:$0xff]
                %190 = vst [vmem:[%s178 + $0x28] sm:$0xff] %v189
                %v191 = vld [vmem:[%s177 + $0xc0] sm:$0xff]
                %192 = vst [vmem:[%s178 + $0x30] sm:$0xff] %v191
                %v193 = vld [vmem:[%s177 + $0xe0] sm:$0xff]
                %194 = vst [vmem:[%s178 + $0x38] sm:$0xff] %v193
                %v195 = vld [vmem:[%s177 + $0x100] sm:$0xff]
                %196 = vst [vmem:[%s178 + $0x40] sm:$0xff] %v195
                %v197 = vld [vmem:[%s177 + $0x120] sm:$0xff]
                %198 = vst [vmem:[%s178 + $0x48] sm:$0xff] %v197
                %v199 = vld [vmem:[%s177 + $0x140] sm:$0xff]
                %200 = vst [vmem:[%s178 + $0x50] sm:$0xff] %v199
                %v201 = vld [vmem:[%s177 + $0x160] sm:$0xff]
                %202 = vst [vmem:[%s178 + $0x58] sm:$0xff] %v201
                %v203 = vld [vmem:[%s177 + $0x180] sm:$0xff]
                %204 = vst [vmem:[%s178 + $0x60] sm:$0xff] %v203
                %v205 = vld [vmem:[%s177 + $0x1a0] sm:$0xff]
                %206 = vst [vmem:[%s178 + $0x68] sm:$0xff] %v205
                %v207 = vld [vmem:[%s177 + $0x1c0] sm:$0xff]
                %208 = vst [vmem:[%s178 + $0x70] sm:$0xff] %v207
                %v209 = vld [vmem:[%s177 + $0x1e0] sm:$0xff]
                %210 = vst [vmem:[%s178 + $0x78] sm:$0xff] %v209
                %v211 = vld [vmem:[%s177 + $0x200] sm:$0xff]
                %212 = vst [vmem:[%s178 + $0x80] sm:$0xff] %v211
                %v213 = vld [vmem:[%s177 + $0x220] sm:$0xff]
                %214 = vst [vmem:[%s178 + $0x88] sm:$0xff] %v213
                %v215 = vld [vmem:[%s177 + $0x240] sm:$0xff]
                %216 = vst [vmem:[%s178 + $0x90] sm:$0xff] %v215
                %v217 = vld [vmem:[%s177 + $0x260] sm:$0xff]
                %218 = vst [vmem:[%s178 + $0x98] sm:$0xff] %v217
                %v219 = vld [vmem:[%s177 + $0x280] sm:$0xff]
                %220 = vst [vmem:[%s178 + $0xa0] sm:$0xff] %v219
                %v221 = vld [vmem:[%s177 + $0x2a0] sm:$0xff]
                %222 = vst [vmem:[%s178 + $0xa8] sm:$0xff] %v221
                %v223 = vld [vmem:[%s177 + $0x2c0] sm:$0xff]
                %224 = vst [vmem:[%s178 + $0xb0] sm:$0xff] %v223
                %v225 = vld [vmem:[%s177 + $0x2e0] sm:$0xff]
                %226 = vst [vmem:[%s178 + $0xb8] sm:$0xff] %v225
                %v227 = vld [vmem:[%s177 + $0x300] sm:$0xff]
                %228 = vst [vmem:[%s178 + $0xc0] sm:$0xff] %v227
                %v229 = vld [vmem:[%s177 + $0x320] sm:$0xff]
                %230 = vst [vmem:[%s178 + $0xc8] sm:$0xff] %v229
                %v231 = vld [vmem:[%s177 + $0x340] sm:$0xff]
                %232 = vst [vmem:[%s178 + $0xd0] sm:$0xff] %v231
                %v233 = vld [vmem:[%s177 + $0x360] sm:$0xff]
                %234 = vst [vmem:[%s178 + $0xd8] sm:$0xff] %v233
                %v235 = vld [vmem:[%s177 + $0x380] sm:$0xff]
                %236 = vst [vmem:[%s178 + $0xe0] sm:$0xff] %v235
                %v237 = vld [vmem:[%s177 + $0x3a0] sm:$0xff]
                %238 = vst [vmem:[%s178 + $0xe8] sm:$0xff] %v237
                %v239 = vld [vmem:[%s177 + $0x3c0] sm:$0xff]
                %240 = vst [vmem:[%s178 + $0xf0] sm:$0xff] %v239
                %v241 = vld [vmem:[%s177 + $0x3e0] sm:$0xff]
                %242 = vst [vmem:[%s178 + $0xf8] sm:$0xff] %v241
                %v243 = vld [vmem:[%s177 + $0x400] sm:$0xff]
                %244 = vst [vmem:[%s178 + $0x100] sm:$0xff] %v243
                %v245 = vld [vmem:[%s177 + $0x420] sm:$0xff]
                %246 = vst [vmem:[%s178 + $0x108] sm:$0xff] %v245
                %v247 = vld [vmem:[%s177 + $0x440] sm:$0xff]
                %248 = vst [vmem:[%s178 + $0x110] sm:$0xff] %v247
                %v249 = vld [vmem:[%s177 + $0x460] sm:$0xff]
                %250 = vst [vmem:[%s178 + $0x118] sm:$0xff] %v249
                %v251 = vld [vmem:[%s177 + $0x480] sm:$0xff]
                %252 = vst [vmem:[%s178 + $0x120] sm:$0xff] %v251
                %v253 = vld [vmem:[%s177 + $0x4a0] sm:$0xff]
                %254 = vst [vmem:[%s178 + $0x128] sm:$0xff] %v253
                %v255 = vld [vmem:[%s177 + $0x4c0] sm:$0xff]
                %256 = vst [vmem:[%s178 + $0x130] sm:$0xff] %v255
                %v257 = vld [vmem:[%s177 + $0x4e0] sm:$0xff]
                %258 = vst [vmem:[%s178 + $0x138] sm:$0xff] %v257
                %v259 = vld [vmem:[%s177 + $0x500] sm:$0xff]
                %260 = vst [vmem:[%s178 + $0x140] sm:$0xff] %v259
                %v261 = vld [vmem:[%s177 + $0x520] sm:$0xff]
                %262 = vst [vmem:[%s178 + $0x148] sm:$0xff] %v261
                %v263 = vld [vmem:[%s177 + $0x540] sm:$0xff]
                %264 = vst [vmem:[%s178 + $0x150] sm:$0xff] %v263
                %v265 = vld [vmem:[%s177 + $0x560] sm:$0xff]
                %266 = vst [vmem:[%s178 + $0x158] sm:$0xff] %v265
                %v267 = vld [vmem:[%s177 + $0x580] sm:$0xff]
                %268 = vst [vmem:[%s178 + $0x160] sm:$0xff] %v267
                %v269 = vld [vmem:[%s177 + $0x5a0] sm:$0xff]
                %270 = vst [vmem:[%s178 + $0x168] sm:$0xff] %v269
                %v271 = vld [vmem:[%s177 + $0x5c0] sm:$0xff]
                %272 = vst [vmem:[%s178 + $0x170] sm:$0xff] %v271
                %v273 = vld [vmem:[%s177 + $0x5e0] sm:$0xff]
                %274 = vst [vmem:[%s178 + $0x178] sm:$0xff] %v273
                %v275 = vld [vmem:[%s177 + $0x600] sm:$0xff]
                %276 = vst [vmem:[%s178 + $0x180] sm:$0xff] %v275
                %v277 = vld [vmem:[%s177 + $0x620] sm:$0xff]
                %278 = vst [vmem:[%s178 + $0x188] sm:$0xff] %v277
                %v279 = vld [vmem:[%s177 + $0x640] sm:$0xff]
                %280 = vst [vmem:[%s178 + $0x190] sm:$0xff] %v279
                %v281 = vld [vmem:[%s177 + $0x660] sm:$0xff]
                %282 = vst [vmem:[%s178 + $0x198] sm:$0xff] %v281
                %v283 = vld [vmem:[%s177 + $0x680] sm:$0xff]
                %284 = vst [vmem:[%s178 + $0x1a0] sm:$0xff] %v283
                %v285 = vld [vmem:[%s177 + $0x6a0] sm:$0xff]
                %286 = vst [vmem:[%s178 + $0x1a8] sm:$0xff] %v285
                %v287 = vld [vmem:[%s177 + $0x6c0] sm:$0xff]
                %288 = vst [vmem:[%s178 + $0x1b0] sm:$0xff] %v287
                %v289 = vld [vmem:[%s177 + $0x6e0] sm:$0xff]
                %290 = vst [vmem:[%s178 + $0x1b8] sm:$0xff] %v289
                %v291 = vld [vmem:[%s177 + $0x700] sm:$0xff]
                %292 = vst [vmem:[%s178 + $0x1c0] sm:$0xff] %v291
                %v293 = vld [vmem:[%s177 + $0x720] sm:$0xff]
                %294 = vst [vmem:[%s178 + $0x1c8] sm:$0xff] %v293
                %v295 = vld [vmem:[%s177 + $0x740] sm:$0xff]
                %296 = vst [vmem:[%s178 + $0x1d0] sm:$0xff] %v295
                %v297 = vld [vmem:[%s177 + $0x760] sm:$0xff]
                %298 = vst [vmem:[%s178 + $0x1d8] sm:$0xff] %v297
                %v299 = vld [vmem:[%s177 + $0x780] sm:$0xff]
                %300 = vst [vmem:[%s178 + $0x1e0] sm:$0xff] %v299
                %v301 = vld [vmem:[%s177 + $0x7a0] sm:$0xff]
                %302 = vst [vmem:[%s178 + $0x1e8] sm:$0xff] %v301
                %v303 = vld [vmem:[%s177 + $0x7c0] sm:$0xff]
                %304 = vst [vmem:[%s178 + $0x1f0] sm:$0xff] %v303
                %v305 = vld [vmem:[%s177 + $0x7e0] sm:$0xff]
                %306 = vst [vmem:[%s178 + $0x1f8] sm:$0xff] %v305
              $region41: #{resnet_forward.27} parent=35 // loop_footer
                %s176 = sadd.s32 1, %s172
              $region42: #{resnet_forward.27} parent=35 // loop_footer_branch
                %171 = sbr.rel target = $region38
              $region43: #{resnet_forward.27} parent=35 // loop_exit
                _
            $region36: #{resnet_forward.27} parent=27 // pred_fallthru
              _
          $region28: #{resnet_forward.27} parent=23 // pred_fallthru
            _
          %447 = vnop
        $region24: #{resnet_forward.27} parent=19 // pred_fallthru
          _
        // Predicated region
        $region59: #{resnet_forward.27} parent=19 // pred_check
          %p448 = pneg %p93
        $region60: #{resnet_forward.27} parent=19 // pred_check_branch
          %450 = sbr.rel (%p448) target = $region62
        $region61: #{resnet_forward.27} parent=19 // pred_region
          %s451 = smul.u32 2, %s17
          %p452 = scmp.lt.s32.totalorder %s451, 7
          %s453 = scalar_select %p452, %s451, 7
          %s454 = scalar_lea.vmem %s2, %s453
          %s455 = smul.u32 2, %s17
        $region62: #{resnet_forward.27} parent=19 // pred_fallthru
          _
      $region20: #{resnet_forward.27} parent=5 // pred_fallthru
        _
      %p456 = scmp.le.s32.totalorder 1, %s9
      %p457 = scmp.lt.s32.totalorder %s9, 5
      %p458 = pnand %p456, %p457
      %p459 = pneg %p458
      // Predicated region
      $region63: #{resnet_forward.27} parent=5 // pred_check
        _
      $region64: #{resnet_forward.27} parent=5 // pred_check_branch
        %461 = sbr.rel (%p458) target = $region66
      $region65: #{resnet_forward.27} parent=5 // pred_region
        %s462 = ssub.s32 %s9, 1
        %s463 = sand.u32 %s60, 1
        %s464 = sand.u32 %s60, 1
        %s465 = smul.addr %s464, 512
        %s466 = scalar_lea.vmem [#allocation2], %s465
        // Predicated region
        $region67: #{resnet_forward.27} parent=65 // pred_check
          %p467 = pneg %p73
        $region68: #{resnet_forward.27} parent=65 // pred_check_branch
          %469 = sbr.rel (%p467) target = $region70
        $region69: #{resnet_forward.27} parent=65 // pred_region
          _
        $region70: #{resnet_forward.27} parent=65 // pred_fallthru
          _
        %p470 = scmp.lt.s32.totalorder %s18, 0
        %s471 = scalar_select %p470, %s18, 0
        %s472 = smul.addr %s471, 4
        %s473 = smul.addr %s472, 4
        %s474 = scalar_lea.vmem %s0, %s473
        %p475 = pneg %p47
        %p476 = pneg %p44
        %s477 = sand.u32 %s60, 1
        %s478 = sand.u32 %s60, 1
        %s479 = smul.addr %s478, 512
        %s480 = scalar_lea.vmem [#allocation2], %s479
        %p481 = pneg %p73
        %p482 = pneg %p70
        %s483 = smul.u32 2, %s19
        %p484 = scmp.lt.s32.totalorder %s483, 7
        %s485 = scalar_select %p484, %s483, 7
        %s486 = scalar_lea.vmem %s2, %s485
        %p487 = pneg %p99
        %p488 = pneg %p96
        %p489 = pneg %p127
        %p490 = pneg %p124
        %s491 = smul.u32 2, %s19
        %p492 = scmp.lt.s32.totalorder %s18, 0
        %s493 = scalar_select %p492, %s18, 0
        %p494 = scmp.lt.s32.totalorder %s491, 7
        %s495 = scalar_select %p494, %s491, 7
        %s496 = smul.addr %s493, 8
        %s497 = sadd.s32 %s495, %s496
        %s498 = smul.addr %s497, 4
        %s499 = scalar_lea.vmem %s3, %s498
        %p500 = scmp.lt.s32.totalorder %s18, 0
        %s501 = scalar_select %p500, %s18, 0
        %s502 = smul.addr %s501, 4
        %s503 = smul.addr %s502, 4
        %s504 = scalar_lea.vmem %s0, %s503
        %s505 = smul.u32 2, %s19
        %s506 = smul.u32 2, %s19
        %p507 = scmp.lt.s32.totalorder %s506, 7
        %s508 = scalar_select %p507, %s506, 7
        %s509 = scalar_lea.vmem %s2, %s508
        %s510 = smul.u32 2, %s19
        %s511 = smul.u32 2, %s19
        %p512 = scmp.lt.s32.totalorder %s18, 0
        %s513 = scalar_select %p512, %s18, 0
        %p514 = scmp.lt.s32.totalorder %s511, 7
        %s515 = scalar_select %p514, %s511, 7
        %s516 = smul.addr %s513, 8
        %s517 = sadd.s32 %s515, %s516
        %s518 = smul.addr %s517, 4
        %s519 = scalar_lea.vmem %s3, %s518
        %s520 = smul.u32 2, %s19
        %v521 = vld [vmem:[%s504] sm:$0xff]
        %v522 = vld [vmem:[%s504 + $0x8] sm:$0xff]
        %v523 = vld [vmem:[%s466] sm:$0xff]
        %v524 = vld [vmem:[%s466 + $0x8] sm:$0xff]
        %v525 = vld [vmem:[%s466 + $0x10] sm:$0xff]
        %v526 = vld [vmem:[%s466 + $0x18] sm:$0xff]
        %v527 = vld [vmem:[%s466 + $0x20] sm:$0xff]
        %v528 = vld [vmem:[%s466 + $0x28] sm:$0xff]
        %v529 = vld [vmem:[%s466 + $0x30] sm:$0xff]
        %v530 = vld [vmem:[%s466 + $0x38] sm:$0xff]
        %v531 = vld [vmem:[%s466 + $0x40] sm:$0xff]
        %v532 = vld [vmem:[%s466 + $0x48] sm:$0xff]
        %v533 = vld [vmem:[%s466 + $0x50] sm:$0xff]
        %v534 = vld [vmem:[%s466 + $0x58] sm:$0xff]
        %v535 = vld [vmem:[%s466 + $0x60] sm:$0xff]
        %v536 = vld [vmem:[%s466 + $0x68] sm:$0xff]
        %v537 = vld [vmem:[%s466 + $0x70] sm:$0xff]
        %v538 = vld [vmem:[%s466 + $0x78] sm:$0xff]
        %v539 = vld [vmem:[%s466 + $0x80] sm:$0xff]
        %v540 = vld [vmem:[%s466 + $0x88] sm:$0xff]
        %v541 = vld [vmem:[%s466 + $0x90] sm:$0xff]
        %v542 = vld [vmem:[%s466 + $0x98] sm:$0xff]
        %v543 = vld [vmem:[%s466 + $0xa0] sm:$0xff]
        %v544 = vld [vmem:[%s466 + $0xa8] sm:$0xff]
        %v545 = vld [vmem:[%s466 + $0xb0] sm:$0xff]
        %v546 = vld [vmem:[%s466 + $0xb8] sm:$0xff]
        %v547 = vld [vmem:[%s466 + $0xc0] sm:$0xff]
        %v548 = vld [vmem:[%s466 + $0xc8] sm:$0xff]
        %v549 = vld [vmem:[%s466 + $0xd0] sm:$0xff]
        %v550 = vld [vmem:[%s466 + $0xd8] sm:$0xff]
        %v551 = vld [vmem:[%s466 + $0xe0] sm:$0xff]
        %v552 = vld [vmem:[%s466 + $0xe8] sm:$0xff]
        %v553 = vld [vmem:[%s466 + $0xf0] sm:$0xff]
        %v554 = vld [vmem:[%s466 + $0xf8] sm:$0xff]
        %v555 = vld [vmem:[%s466 + $0x100] sm:$0xff]
        %v556 = vld [vmem:[%s466 + $0x108] sm:$0xff]
        %v557 = vld [vmem:[%s466 + $0x110] sm:$0xff]
        %v558 = vld [vmem:[%s466 + $0x118] sm:$0xff]
        %v559 = vld [vmem:[%s466 + $0x120] sm:$0xff]
        %v560 = vld [vmem:[%s466 + $0x128] sm:$0xff]
        %v561 = vld [vmem:[%s466 + $0x130] sm:$0xff]
        %v562 = vld [vmem:[%s466 + $0x138] sm:$0xff]
        %v563 = vld [vmem:[%s466 + $0x140] sm:$0xff]
        %v564 = vld [vmem:[%s466 + $0x148] sm:$0xff]
        %v565 = vld [vmem:[%s466 + $0x150] sm:$0xff]
        %v566 = vld [vmem:[%s466 + $0x158] sm:$0xff]
        %v567 = vld [vmem:[%s466 + $0x160] sm:$0xff]
        %v568 = vld [vmem:[%s466 + $0x168] sm:$0xff]
        %v569 = vld [vmem:[%s466 + $0x170] sm:$0xff]
        %v570 = vld [vmem:[%s466 + $0x178] sm:$0xff]
        %v571 = vld [vmem:[%s466 + $0x180] sm:$0xff]
        %v572 = vld [vmem:[%s466 + $0x188] sm:$0xff]
        %v573 = vld [vmem:[%s466 + $0x190] sm:$0xff]
        %v574 = vld [vmem:[%s466 + $0x198] sm:$0xff]
        %v575 = vld [vmem:[%s466 + $0x1a0] sm:$0xff]
        %v576 = vld [vmem:[%s466 + $0x1a8] sm:$0xff]
        %v577 = vld [vmem:[%s466 + $0x1b0] sm:$0xff]
        %v578 = vld [vmem:[%s466 + $0x1b8] sm:$0xff]
        %v579 = vld [vmem:[%s466 + $0x1c0] sm:$0xff]
        %v580 = vld [vmem:[%s466 + $0x1c8] sm:$0xff]
        %v581 = vld [vmem:[%s466 + $0x1d0] sm:$0xff]
        %v582 = vld [vmem:[%s466 + $0x1d8] sm:$0xff]
        %v583 = vld [vmem:[%s466 + $0x1e0] sm:$0xff]
        %v584 = vld [vmem:[%s466 + $0x1e8] sm:$0xff]
        %v585 = vld [vmem:[%s466 + $0x1f0] sm:$0xff]
        %v586 = vld [vmem:[%s466 + $0x1f8] sm:$0xff]
        %v587 = vld [vmem:[%s509] sm:$0x3]
        %v589 = vlaneseq
        %v590 = vshrl.u32 %v589, 7
        %v591 = vsub.s32 0, %v590
        %v592 = vrot.slane %v587, %v591
        %v593 = vlaneseq
        %v594 = vshrl.u32 %v593, 7
        %v595 = vsub.s32 1, %v594
        %v596 = vrot.slane %v587, %v595
        %v601 = vunpack.c.l.b16 %v521
        %v602 = vunpack.c.h.b16 %v521
        %v603 = vunpack.c.l.b16 %v522
        %v604 = vunpack.c.h.b16 %v522
        %v605 = vpack.c.b16 %v601, %v601
        %v606 = vpack.c.b16 %v602, %v602
        %v607 = vpack.c.b16 %v603, %v603
        %v608 = vpack.c.b16 %v604, %v604
        %v677 = vunpack.c.l.b16 %v523
        %v678 = vunpack.c.h.b16 %v523
        %v679 = vunpack.c.l.b16 %v524
        %v680 = vunpack.c.h.b16 %v524
        %v681 = vunpack.c.l.b16 %v525
        %v682 = vunpack.c.h.b16 %v525
        %v683 = vunpack.c.l.b16 %v526
        %v684 = vunpack.c.h.b16 %v526
        %v685 = vunpack.c.l.b16 %v527
        %v686 = vunpack.c.h.b16 %v527
        %v687 = vunpack.c.l.b16 %v528
        %v688 = vunpack.c.h.b16 %v528
        %v689 = vunpack.c.l.b16 %v529
        %v690 = vunpack.c.h.b16 %v529
        %v691 = vunpack.c.l.b16 %v530
        %v692 = vunpack.c.h.b16 %v530
        %v693 = vunpack.c.l.b16 %v531
        %v694 = vunpack.c.h.b16 %v531
        %v695 = vunpack.c.l.b16 %v532
        %v696 = vunpack.c.h.b16 %v532
        %v697 = vunpack.c.l.b16 %v533
        %v698 = vunpack.c.h.b16 %v533
        %v699 = vunpack.c.l.b16 %v534
        %v700 = vunpack.c.h.b16 %v534
        %v701 = vunpack.c.l.b16 %v535
        %v702 = vunpack.c.h.b16 %v535
        %v703 = vunpack.c.l.b16 %v536
        %v704 = vunpack.c.h.b16 %v536
        %v705 = vunpack.c.l.b16 %v537
        %v706 = vunpack.c.h.b16 %v537
        %v707 = vunpack.c.l.b16 %v538
        %v708 = vunpack.c.h.b16 %v538
        %v709 = vunpack.c.l.b16 %v539
        %v710 = vunpack.c.h.b16 %v539
        %v711 = vunpack.c.l.b16 %v540
        %v712 = vunpack.c.h.b16 %v540
        %v713 = vunpack.c.l.b16 %v541
        %v714 = vunpack.c.h.b16 %v541
        %v715 = vunpack.c.l.b16 %v542
        %v716 = vunpack.c.h.b16 %v542
        %v717 = vunpack.c.l.b16 %v543
        %v718 = vunpack.c.h.b16 %v543
        %v719 = vunpack.c.l.b16 %v544
        %v720 = vunpack.c.h.b16 %v544
        %v721 = vunpack.c.l.b16 %v545
        %v722 = vunpack.c.h.b16 %v545
        %v723 = vunpack.c.l.b16 %v546
        %v724 = vunpack.c.h.b16 %v546
        %v725 = vunpack.c.l.b16 %v547
        %v726 = vunpack.c.h.b16 %v547
        %v727 = vunpack.c.l.b16 %v548
        %v728 = vunpack.c.h.b16 %v548
        %v729 = vunpack.c.l.b16 %v549
        %v730 = vunpack.c.h.b16 %v549
        %v731 = vunpack.c.l.b16 %v550
        %v732 = vunpack.c.h.b16 %v550
        %v733 = vunpack.c.l.b16 %v551
        %v734 = vunpack.c.h.b16 %v551
        %v735 = vunpack.c.l.b16 %v552
        %v736 = vunpack.c.h.b16 %v552
        %v737 = vunpack.c.l.b16 %v553
        %v738 = vunpack.c.h.b16 %v553
        %v739 = vunpack.c.l.b16 %v554
        %v740 = vunpack.c.h.b16 %v554
        %v741 = vunpack.c.l.b16 %v555
        %v742 = vunpack.c.h.b16 %v555
        %v743 = vunpack.c.l.b16 %v556
        %v744 = vunpack.c.h.b16 %v556
        %v745 = vunpack.c.l.b16 %v557
        %v746 = vunpack.c.h.b16 %v557
        %v747 = vunpack.c.l.b16 %v558
        %v748 = vunpack.c.h.b16 %v558
        %v749 = vunpack.c.l.b16 %v559
        %v750 = vunpack.c.h.b16 %v559
        %v751 = vunpack.c.l.b16 %v560
        %v752 = vunpack.c.h.b16 %v560
        %v753 = vunpack.c.l.b16 %v561
        %v754 = vunpack.c.h.b16 %v561
        %v755 = vunpack.c.l.b16 %v562
        %v756 = vunpack.c.h.b16 %v562
        %v757 = vunpack.c.l.b16 %v563
        %v758 = vunpack.c.h.b16 %v563
        %v759 = vunpack.c.l.b16 %v564
        %v760 = vunpack.c.h.b16 %v564
        %v761 = vunpack.c.l.b16 %v565
        %v762 = vunpack.c.h.b16 %v565
        %v763 = vunpack.c.l.b16 %v566
        %v764 = vunpack.c.h.b16 %v566
        %v765 = vunpack.c.l.b16 %v567
        %v766 = vunpack.c.h.b16 %v567
        %v767 = vunpack.c.l.b16 %v568
        %v768 = vunpack.c.h.b16 %v568
        %v769 = vunpack.c.l.b16 %v569
        %v770 = vunpack.c.h.b16 %v569
        %v771 = vunpack.c.l.b16 %v570
        %v772 = vunpack.c.h.b16 %v570
        %v773 = vunpack.c.l.b16 %v571
        %v774 = vunpack.c.h.b16 %v571
        %v775 = vunpack.c.l.b16 %v572
        %v776 = vunpack.c.h.b16 %v572
        %v777 = vunpack.c.l.b16 %v573
        %v778 = vunpack.c.h.b16 %v573
        %v779 = vunpack.c.l.b16 %v574
        %v780 = vunpack.c.h.b16 %v574
        %v781 = vunpack.c.l.b16 %v575
        %v782 = vunpack.c.h.b16 %v575
        %v783 = vunpack.c.l.b16 %v576
        %v784 = vunpack.c.h.b16 %v576
        %v785 = vunpack.c.l.b16 %v577
        %v786 = vunpack.c.h.b16 %v577
        %v787 = vunpack.c.l.b16 %v578
        %v788 = vunpack.c.h.b16 %v578
        %v789 = vunpack.c.l.b16 %v579
        %v790 = vunpack.c.h.b16 %v579
        %v791 = vunpack.c.l.b16 %v580
        %v792 = vunpack.c.h.b16 %v580
        %v793 = vunpack.c.l.b16 %v581
        %v794 = vunpack.c.h.b16 %v581
        %v795 = vunpack.c.l.b16 %v582
        %v796 = vunpack.c.h.b16 %v582
        %v797 = vunpack.c.l.b16 %v583
        %v798 = vunpack.c.h.b16 %v583
        %v799 = vunpack.c.l.b16 %v584
        %v800 = vunpack.c.h.b16 %v584
        %v801 = vunpack.c.l.b16 %v585
        %v802 = vunpack.c.h.b16 %v585
        %v803 = vunpack.c.l.b16 %v586
        %v804 = vunpack.c.h.b16 %v586
        %v805 = vpack.c.b16 %v679, %v677
        %v806 = vpack.c.b16 %v680, %v678
        %v807 = vpack.c.b16 %v683, %v681
        %v808 = vpack.c.b16 %v684, %v682
        %v809 = vpack.c.b16 %v687, %v685
        %v810 = vpack.c.b16 %v688, %v686
        %v811 = vpack.c.b16 %v691, %v689
        %v812 = vpack.c.b16 %v692, %v690
        %v813 = vpack.c.b16 %v695, %v693
        %v814 = vpack.c.b16 %v696, %v694
        %v815 = vpack.c.b16 %v699, %v697
        %v816 = vpack.c.b16 %v700, %v698
        %v817 = vpack.c.b16 %v703, %v701
        %v818 = vpack.c.b16 %v704, %v702
        %v819 = vpack.c.b16 %v707, %v705
        %v820 = vpack.c.b16 %v708, %v706
        %v821 = vpack.c.b16 %v711, %v709
        %v822 = vpack.c.b16 %v712, %v710
        %v823 = vpack.c.b16 %v715, %v713
        %v824 = vpack.c.b16 %v716, %v714
        %v825 = vpack.c.b16 %v719, %v717
        %v826 = vpack.c.b16 %v720, %v718
        %v827 = vpack.c.b16 %v723, %v721
        %v828 = vpack.c.b16 %v724, %v722
        %v829 = vpack.c.b16 %v727, %v725
        %v830 = vpack.c.b16 %v728, %v726
        %v831 = vpack.c.b16 %v731, %v729
        %v832 = vpack.c.b16 %v732, %v730
        %v833 = vpack.c.b16 %v735, %v733
        %v834 = vpack.c.b16 %v736, %v734
        %v835 = vpack.c.b16 %v739, %v737
        %v836 = vpack.c.b16 %v740, %v738
        %v837 = vpack.c.b16 %v743, %v741
        %v838 = vpack.c.b16 %v744, %v742
        %v839 = vpack.c.b16 %v747, %v745
        %v840 = vpack.c.b16 %v748, %v746
        %v841 = vpack.c.b16 %v751, %v749
        %v842 = vpack.c.b16 %v752, %v750
        %v843 = vpack.c.b16 %v755, %v753
        %v844 = vpack.c.b16 %v756, %v754
        %v845 = vpack.c.b16 %v759, %v757
        %v846 = vpack.c.b16 %v760, %v758
        %v847 = vpack.c.b16 %v763, %v761
        %v848 = vpack.c.b16 %v764, %v762
        %v849 = vpack.c.b16 %v767, %v765
        %v850 = vpack.c.b16 %v768, %v766
        %v851 = vpack.c.b16 %v771, %v769
        %v852 = vpack.c.b16 %v772, %v770
        %v853 = vpack.c.b16 %v775, %v773
        %v854 = vpack.c.b16 %v776, %v774
        %v855 = vpack.c.b16 %v779, %v777
        %v856 = vpack.c.b16 %v780, %v778
        %v857 = vpack.c.b16 %v783, %v781
        %v858 = vpack.c.b16 %v784, %v782
        %v859 = vpack.c.b16 %v787, %v785
        %v860 = vpack.c.b16 %v788, %v786
        %v861 = vpack.c.b16 %v791, %v789
        %v862 = vpack.c.b16 %v792, %v790
        %v863 = vpack.c.b16 %v795, %v793
        %v864 = vpack.c.b16 %v796, %v794
        %v865 = vpack.c.b16 %v799, %v797
        %v866 = vpack.c.b16 %v800, %v798
        %v867 = vpack.c.b16 %v803, %v801
        %v868 = vpack.c.b16 %v804, %v802
        %933 = vmatprep.subr.bf16.mxu0 %v806
        %934 = vmatpush1.bf16.msra.mxu0 %v805
        %935 = vmatprep.subr.bf16.mxu0 %v808
        %936 = vmatpush1.bf16.msra.mxu0 %v807
        %937 = vmatprep.subr.bf16.mxu0 %v810
        %938 = vmatpush1.bf16.msra.mxu0 %v809
        %939 = vmatprep.subr.bf16.mxu0 %v812
        %940 = vmatpush1.bf16.msra.mxu0 %v811
        %941 = vmatprep.subr.bf16.mxu0 %v814
        %942 = vmatpush1.bf16.msra.mxu0 %v813
        %943 = vmatprep.subr.bf16.mxu0 %v816
        %944 = vmatpush1.bf16.msra.mxu0 %v815
        %945 = vmatprep.subr.bf16.mxu0 %v818
        %946 = vmatpush1.bf16.msra.mxu0 %v817
        %947 = vmatprep.subr.bf16.mxu0 %v820
        %948 = vmatpush1.bf16.msra.mxu0 %v819
        %949 = vmatprep.subr.bf16.mxu0 %v822
        %950 = vmatpush1.bf16.msra.mxu0 %v821
        %951 = vmatprep.subr.bf16.mxu0 %v824
        %952 = vmatpush1.bf16.msra.mxu0 %v823
        %953 = vmatprep.subr.bf16.mxu0 %v826
        %954 = vmatpush1.bf16.msra.mxu0 %v825
        %955 = vmatprep.subr.bf16.mxu0 %v828
        %956 = vmatpush1.bf16.msra.mxu0 %v827
        %957 = vmatprep.subr.bf16.mxu0 %v830
        %958 = vmatpush1.bf16.msra.mxu0 %v829
        %959 = vmatprep.subr.bf16.mxu0 %v832
        %960 = vmatpush1.bf16.msra.mxu0 %v831
        %961 = vmatprep.subr.bf16.mxu0 %v834
        %962 = vmatpush1.bf16.msra.mxu0 %v833
        %963 = vmatprep.subr.bf16.mxu0 %v836
        %964 = vmatpush1.bf16.msra.mxu0 %v835
        %965 = vmatprep.mubr.bf16.mxu0 %v606
        %966 = vmatmul.mubr.bf16.gmra.mrb[0].mxu0 %v605
        %v967 = vpop.f32.mrb[0].mxu0
        %v968 = vadd.f32 %v592, %v967
        %v969 = vpop.f32.mrb[0].mxu0
        %v970 = vadd.f32 %v596, %v969
        %v971 = vpop.f32.mrb[0].mxu0
        %v972 = vpop.f32.mrb[0].mxu0
        %973 = vdwg.mxu0
        %974 = vmatprep.subr.bf16.mxu0 %v838
        %975 = vmatpush1.bf16.msra.mxu0 %v837
        %976 = vmatprep.subr.bf16.mxu0 %v840
        %977 = vmatpush1.bf16.msra.mxu0 %v839
        %978 = vmatprep.subr.bf16.mxu0 %v842
        %979 = vmatpush1.bf16.msra.mxu0 %v841
        %980 = vmatprep.subr.bf16.mxu0 %v844
        %981 = vmatpush1.bf16.msra.mxu0 %v843
        %982 = vmatprep.subr.bf16.mxu0 %v846
        %983 = vmatpush1.bf16.msra.mxu0 %v845
        %984 = vmatprep.subr.bf16.mxu0 %v848
        %985 = vmatpush1.bf16.msra.mxu0 %v847
        %986 = vmatprep.subr.bf16.mxu0 %v850
        %987 = vmatpush1.bf16.msra.mxu0 %v849
        %988 = vmatprep.subr.bf16.mxu0 %v852
        %989 = vmatpush1.bf16.msra.mxu0 %v851
        %990 = vmatprep.subr.bf16.mxu0 %v854
        %991 = vmatpush1.bf16.msra.mxu0 %v853
        %992 = vmatprep.subr.bf16.mxu0 %v856
        %993 = vmatpush1.bf16.msra.mxu0 %v855
        %994 = vmatprep.subr.bf16.mxu0 %v858
        %995 = vmatpush1.bf16.msra.mxu0 %v857
        %996 = vmatprep.subr.bf16.mxu0 %v860
        %997 = vmatpush1.bf16.msra.mxu0 %v859
        %998 = vmatprep.subr.bf16.mxu0 %v862
        %999 = vmatpush1.bf16.msra.mxu0 %v861
        %1000 = vmatprep.subr.bf16.mxu0 %v864
        %1001 = vmatpush1.bf16.msra.mxu0 %v863
        %1002 = vmatprep.subr.bf16.mxu0 %v866
        %1003 = vmatpush1.bf16.msra.mxu0 %v865
        %1004 = vmatprep.subr.bf16.mxu0 %v868
        %1005 = vmatpush1.bf16.msra.mxu0 %v867
        %1006 = vmatprep.mubr.bf16.mxu0 %v608
        %1007 = vmatmul.mubr.bf16.gmra.mrb[0].mxu0 %v607
        %v1008 = vpop.f32.mrb[0].mxu0
        %v1009 = vadd.f32 %v968, %v1008
        %v1010 = vpop.f32.mrb[0].mxu0
        %v1011 = vadd.f32 %v970, %v1010
        %v1012 = vpop.f32.mrb[0].mxu0
        %v1013 = vpop.f32.mrb[0].mxu0
        %1014 = vdwg.mxu0
        %v1015 = vpack.c.bf16 %v1009, %v1009
        %v1016 = vpack.c.bf16 %v1011, %v1011
        %v1019 = vunpack.c.l.b16 %v1015
        %v1020 = vunpack.c.l.b16 %v1016
        %v1021 = vpack.c.b16 %v1020, %v1019
        %1023 = vst [vmem:[%s519] sm:$0xff] %v1021
        %s1024 = smul.u32 2, %s19
        %p1025 = scmp.lt.s32.totalorder %s18, 0
        %s1026 = scalar_select %p1025, %s18, 0
        %p1027 = scmp.lt.s32.totalorder %s1024, 7
        %s1028 = scalar_select %p1027, %s1024, 7
        %s1029 = smul.addr %s1026, 8
        %s1030 = sadd.s32 %s1028, %s1029
        %s1031 = smul.addr %s1030, 4
        %s1032 = scalar_lea.vmem %s3, %s1031
        // Predicated region
        $region71: #{resnet_forward.27} parent=65 // pred_check
          %p1033 = pneg %p124
        $region72: #{resnet_forward.27} parent=65 // pred_check_branch
          %1035 = sbr.rel (%p1033) target = $region74
        $region73: #{resnet_forward.27} parent=65 // pred_region
          %s1036 = smul.u32 2, %s19
        $region74: #{resnet_forward.27} parent=65 // pred_fallthru
          _
      $region66: #{resnet_forward.27} parent=5 // pred_fallthru
        _
      %p1037 = scmp.le.s32.totalorder 2, %s9
      // Predicated region
      $region75: #{resnet_forward.27} parent=5 // pred_check
        %p1038 = pneg %p1037
      $region76: #{resnet_forward.27} parent=5 // pred_check_branch
        %1040 = sbr.rel (%p1038) target = $region78
      $region77: #{resnet_forward.27} parent=5 // pred_region
        %s1041 = ssub.s32 %s9, 2
        // Predicated region
        $region79: #{resnet_forward.27} parent=77 // pred_check
          %p1042 = pneg %p130
        $region80: #{resnet_forward.27} parent=77 // pred_check_branch
          %1044 = sbr.rel (%p1042) target = $region82
        $region81: #{resnet_forward.27} parent=77 // pred_region
          %s1045 = smul.u32 2, %s21
          %p1046 = scmp.lt.s32.totalorder %s20, 0
          %s1047 = scalar_select %p1046, %s20, 0
          %p1048 = scmp.lt.s32.totalorder %s1045, 7
          %s1049 = scalar_select %p1048, %s1045, 7
          %s1050 = smul.addr %s1047, 8
          %s1051 = sadd.s32 %s1049, %s1050
          %s1052 = smul.addr %s1051, 4
          %s1053 = scalar_lea.vmem %s3, %s1052
        $region82: #{resnet_forward.27} parent=77 // pred_fallthru
          _
      $region78: #{resnet_forward.27} parent=5 // pred_fallthru
        _
    $region6: #{resnet_forward.27} parent=1 // loop_footer
      %s13 = sadd.s32 1, %s9
    $region7: #{resnet_forward.27} parent=1 // loop_footer_branch
      %8 = sbr.rel target = $region3
    $region8: #{resnet_forward.27} parent=1 // loop_exit
      _

// kernel: resnet_forward.28
$region0: #{resnet_forward.28}
  #allocation0 [shape = 'u32[]', space=smem, size = 0x4, offset = 0x4, fixed_abs, tag = 'smem constant byte address 0x4 - core index']
  #allocation1 [shape = 'u32[144,128]{1,0:T(1,128)}', space=vmem, size = 0x12000, scoped, tag = 'internal scratch']
  %s0 = inlined_call_operand.vmem [shape: bf16[8,256], index: 0, kind: input, shape index: {}]
  %s1 = inlined_call_operand.vmem [shape: bf16[256,1024], index: 1, kind: input, shape index: {}]
  %s2 = inlined_call_operand.vmem [shape: f32[1,1024], index: 2, kind: input, shape index: {}]
  %s3 = inlined_call_operand.vmem [shape: bf16[8,1024], index: 3, kind: input, shape index: {}]
  %s4 = inlined_call_operand.vmem [shape: bf16[8,1024], index: 4, kind: output, shape index: {}]
  %s5 = sld [smem:[#allocation0]]
  $region87: #{resnet_forward.28} parent=0
    _
  %s7 = ssub.s32 1, %s5
  %s8 = scalar_select 0, %s7, %s5
  $region1: #{resnet_forward.28} parent=0
    #allocation2 [shape = 'u8[262144]{0}', space=vmem, size = 0x40000, scoped, tag = 'input window, operand 1']
    loop: start=0, step=1, limit=6
    $region2: #{resnet_forward.28} parent=1 // loop_pre_header
      _
    $region3: #{resnet_forward.28} parent=1 // loop_header
      %s10 = sphi 0, %s14
      %p11 = scmp.ge.s32.totalorder %s10, 6
      %s17 = sphi 0, %s29
      %s18 = sphi 0, %s25
      %s19 = sphi 0, %s17
      %s20 = sphi 0, %s18
      %s21 = sphi 0, %s19
      %s22 = sphi 0, %s20
      %s32 = sphi 0, %s34
      %s35 = sphi 0, %s32
      %s36 = sphi 0, %s35
      %s52 = sphi 0, %s36
      %s58 = sphi 0, %s60
      %s61 = sphi 0, %s58
      %s62 = sphi 0, %s61
      %s78 = sphi 0, %s62
      %s84 = sphi 0, %s86
      %s87 = sphi 0, %s84
      %s88 = sphi 0, %s87
      %s104 = sphi 0, %s88
      %s112 = sphi 0, %s114
      %s115 = sphi 0, %s112
      %s116 = sphi 0, %s115
      %s132 = sphi 0, %s116
      %s140 = sphi 0, %s142
      %s143 = sphi 0, %s140
      %s144 = sphi 0, %s143
      %s160 = sphi 0, %s144
    $region4: #{resnet_forward.28} parent=1 // loop_header_branch
      %13 = sbr.rel (%p11) target = $region8
    $region5: #{resnet_forward.28} parent=1 // loop_body
      %s15 = ssub.s32 %s10, 1
      %s16 = ssub.s32 %s10, 2
      %s23 = sadd.s32 1, %s18
      %p24 = scmp.ge.s32.totalorder %s23, 4
      %s25 = scalar_select %p24, 0, %s23
      %s26 = sadd.s32 1, %s17
      %s27 = scalar_select %p24, %s26, %s17
      %p28 = scmp.ge.s32.totalorder %s27, 1
      %s29 = scalar_select %p28, 0, %s27
      %s30 = ssub.s32 %s17, %s29
      %p31 = scmp.eq.s32.totalorder %s30, 0
      %s33 = sadd.s32 %s32, 1
      %s34 = scalar_select %p31, %s32, %s33
      %p37 = pneg %p31
      %p38 = scmp.eq.s32.totalorder %s10, 3
      %p39 = por %p37, %p38
      %p40 = scmp.ne.s32.totalorder %s32, %s35
      %p41 = scmp.eq.s32.totalorder %s10, 0
      %p42 = por %p40, %p41
      %p43 = scmp.ne.s32.totalorder %s32, %s35
      %p44 = scmp.eq.s32.totalorder %s15, 3
      %p45 = por %p43, %p44
      %p46 = scmp.ne.s32.totalorder %s35, %s36
      %p47 = scmp.eq.s32.totalorder %s15, 0
      %p48 = por %p46, %p47
      %p49 = scmp.ne.s32.totalorder %s35, %s36
      %p50 = scmp.eq.s32.totalorder %s16, 3
      %p51 = por %p49, %p50
      %p53 = scmp.ne.s32.totalorder %s36, %s52
      %p54 = scmp.eq.s32.totalorder %s16, 0
      %p55 = por %p53, %p54
      %s56 = ssub.s32 %s18, %s25
      %p57 = scmp.eq.s32.totalorder %s56, 0
      %s59 = sadd.s32 %s58, 1
      %s60 = scalar_select %p57, %s58, %s59
      %p63 = pneg %p57
      %p64 = scmp.eq.s32.totalorder %s10, 3
      %p65 = por %p63, %p64
      %p66 = scmp.ne.s32.totalorder %s58, %s61
      %p67 = scmp.eq.s32.totalorder %s10, 0
      %p68 = por %p66, %p67
      %p69 = scmp.ne.s32.totalorder %s58, %s61
      %p70 = scmp.eq.s32.totalorder %s15, 3
      %p71 = por %p69, %p70
      %p72 = scmp.ne.s32.totalorder %s61, %s62
      %p73 = scmp.eq.s32.totalorder %s15, 0
      %p74 = por %p72, %p73
      %p75 = scmp.ne.s32.totalorder %s61, %s62
      %p76 = scmp.eq.s32.totalorder %s16, 3
      %p77 = por %p75, %p76
      %p79 = scmp.ne.s32.totalorder %s62, %s78
      %p80 = scmp.eq.s32.totalorder %s16, 0
      %p81 = por %p79, %p80
      %s82 = ssub.s32 %s18, %s25
      %p83 = scmp.eq.s32.totalorder %s82, 0
      %s85 = sadd.s32 %s84, 1
      %s86 = scalar_select %p83, %s84, %s85
      %p89 = pneg %p83
      %p90 = scmp.eq.s32.totalorder %s10, 3
      %p91 = por %p89, %p90
      %p92 = scmp.ne.s32.totalorder %s84, %s87
      %p93 = scmp.eq.s32.totalorder %s10, 0
      %p94 = por %p92, %p93
      %p95 = scmp.ne.s32.totalorder %s84, %s87
      %p96 = scmp.eq.s32.totalorder %s15, 3
      %p97 = por %p95, %p96
      %p98 = scmp.ne.s32.totalorder %s87, %s88
      %p99 = scmp.eq.s32.totalorder %s15, 0
      %p100 = por %p98, %p99
      %p101 = scmp.ne.s32.totalorder %s87, %s88
      %p102 = scmp.eq.s32.totalorder %s16, 3
      %p103 = por %p101, %p102
      %p105 = scmp.ne.s32.totalorder %s88, %s104
      %p106 = scmp.eq.s32.totalorder %s16, 0
      %p107 = por %p105, %p106
      %s108 = ssub.s32 %s17, %s29
      %s109 = ssub.s32 %s18, %s25
      %s110 = sor.u32 %s108, %s109
      %p111 = scmp.eq.s32.totalorder %s110, 0
      %s113 = sadd.s32 %s112, 1
      %s114 = scalar_select %p111, %s112, %s113
      %p117 = pneg %p111
      %p118 = scmp.eq.s32.totalorder %s10, 3
      %p119 = por %p117, %p118
      %p120 = scmp.ne.s32.totalorder %s112, %s115
      %p121 = scmp.eq.s32.totalorder %s10, 0
      %p122 = por %p120, %p121
      %p123 = scmp.ne.s32.totalorder %s112, %s115
      %p124 = scmp.eq.s32.totalorder %s15, 3
      %p125 = por %p123, %p124
      %p126 = scmp.ne.s32.totalorder %s115, %s116
      %p127 = scmp.eq.s32.totalorder %s15, 0
      %p128 = por %p126, %p127
      %p129 = scmp.ne.s32.totalorder %s115, %s116
      %p130 = scmp.eq.s32.totalorder %s16, 3
      %p131 = por %p129, %p130
      %p133 = scmp.ne.s32.totalorder %s116, %s132
      %p134 = scmp.eq.s32.totalorder %s16, 0
      %p135 = por %p133, %p134
      %s136 = ssub.s32 %s17, %s29
      %s137 = ssub.s32 %s18, %s25
      %s138 = sor.u32 %s136, %s137
      %p139 = scmp.eq.s32.totalorder %s138, 0
      %s141 = sadd.s32 %s140, 1
      %s142 = scalar_select %p139, %s140, %s141
      %p145 = pneg %p139
      %p146 = scmp.eq.s32.totalorder %s10, 3
      %p147 = por %p145, %p146
      %p148 = scmp.ne.s32.totalorder %s140, %s143
      %p149 = scmp.eq.s32.totalorder %s10, 0
      %p150 = por %p148, %p149
      %p151 = scmp.ne.s32.totalorder %s140, %s143
      %p152 = scmp.eq.s32.totalorder %s15, 3
      %p153 = por %p151, %p152
      %p154 = scmp.ne.s32.totalorder %s143, %s144
      %p155 = scmp.eq.s32.totalorder %s15, 0
      %p156 = por %p154, %p155
      %p157 = scmp.ne.s32.totalorder %s143, %s144
      %p158 = scmp.eq.s32.totalorder %s16, 3
      %p159 = por %p157, %p158
      %p161 = scmp.ne.s32.totalorder %s144, %s160
      %p162 = scmp.eq.s32.totalorder %s16, 0
      %p163 = por %p161, %p162
      %p164 = scmp.le.s32.totalorder 1, %s10
      %p165 = scmp.lt.s32.totalorder %s10, 5
      %p166 = pnand %p164, %p165
      %p167 = pneg %p166
      // Predicated region
      $region9: #{resnet_forward.28} parent=5 // pred_check
        _
      $region10: #{resnet_forward.28} parent=5 // pred_check_branch
        %169 = sbr.rel (%p166) target = $region12
      $region11: #{resnet_forward.28} parent=5 // pred_region
        %s170 = ssub.s32 %s10, 1
        // Predicated region
        $region13: #{resnet_forward.28} parent=11 // pred_check
          %p171 = pneg %p48
        $region14: #{resnet_forward.28} parent=11 // pred_check_branch
          %173 = sbr.rel (%p171) target = $region16
        $region15: #{resnet_forward.28} parent=11 // pred_region
          %p174 = scmp.lt.s32.totalorder %s19, 0
          %s175 = scalar_select %p174, %s19, 0
          %s176 = smul.addr %s175, 2
          %s177 = smul.addr %s176, 4
          %s178 = scalar_lea.vmem %s0, %s177
        $region16: #{resnet_forward.28} parent=11 // pred_fallthru
          _
      $region12: #{resnet_forward.28} parent=5 // pred_fallthru
        _
      %p179 = scmp.lt.s32.totalorder %s10, 4
      // Predicated region
      $region17: #{resnet_forward.28} parent=5 // pred_check
        %p180 = pneg %p179
      $region18: #{resnet_forward.28} parent=5 // pred_check_branch
        %182 = sbr.rel (%p180) target = $region20
      $region19: #{resnet_forward.28} parent=5 // pred_region
        // Predicated region
        $region21: #{resnet_forward.28} parent=19 // pred_check
          %p183 = pneg %p68
        $region22: #{resnet_forward.28} parent=19 // pred_check_branch
          %185 = sbr.rel (%p183) target = $region24
        $region23: #{resnet_forward.28} parent=19 // pred_region
          %s186 = sand.u32 %s58, 1
          %s187 = sand.u32 %s58, 1
          %s188 = smul.addr %s187, 256
          %s189 = scalar_lea.vmem [#allocation2], %s188
          %s190 = smul.u32 2, %s18
          %s191 = smul.addr %s190, 4
          %s192 = scalar_lea.vmem %s1, %s191
          // Predicated region
          $region25: #{resnet_forward.28} parent=23 // pred_check
            _
          $region26: #{resnet_forward.28} parent=23 // pred_check_branch
            %194 = sbr.rel (0) target = $region28
          $region27: #{resnet_forward.28} parent=23 // pred_region
            // Predicated region
            $region29: #{resnet_forward.28} parent=27 // pred_check
              _
            $region30: #{resnet_forward.28} parent=27 // pred_check_branch
              %196 = sbr.rel (0) target = $region32
            $region31: #{resnet_forward.28} parent=27 // pred_region
              // Predicated region
              $region44: #{resnet_forward.28} parent=31 // pred_check
                _
              $region45: #{resnet_forward.28} parent=31 // pred_check_branch
                %273 = sbr.rel (0) target = $region47
              $region46: #{resnet_forward.28} parent=31 // pred_region
                loop: start=0, step=1, limit=1
                $region48: #{resnet_forward.28} parent=46 // loop_pre_header
                  _
                $region49: #{resnet_forward.28} parent=46 // loop_header
                  %s275 = sphi 0, %s279
                  %p276 = scmp.ge.s32.totalorder %s275, 1
                  %s280 = sphi %s192, %s192
                  %s281 = sphi %s189, %s189
                $region50: #{resnet_forward.28} parent=46 // loop_header_branch
                  %278 = sbr.rel (%p276) target = $region54
                $region51: #{resnet_forward.28} parent=46 // loop_body
                  %v282 = vld [vmem:[%s280] sm:$0xff]
                  %283 = vst [vmem:[%s281] sm:$0xff] %v282
                  %v284 = vld [vmem:[%s280 + $0x20] sm:$0xff]
                  %285 = vst [vmem:[%s281 + $0x8] sm:$0xff] %v284
                  %v286 = vld [vmem:[%s280 + $0x40] sm:$0xff]
                  %287 = vst [vmem:[%s281 + $0x10] sm:$0xff] %v286
                  %v288 = vld [vmem:[%s280 + $0x60] sm:$0xff]
                  %289 = vst [vmem:[%s281 + $0x18] sm:$0xff] %v288
                  %v290 = vld [vmem:[%s280 + $0x80] sm:$0xff]
                  %291 = vst [vmem:[%s281 + $0x20] sm:$0xff] %v290
                  %v292 = vld [vmem:[%s280 + $0xa0] sm:$0xff]
                  %293 = vst [vmem:[%s281 + $0x28] sm:$0xff] %v292
                  %v294 = vld [vmem:[%s280 + $0xc0] sm:$0xff]
                  %295 = vst [vmem:[%s281 + $0x30] sm:$0xff] %v294
                  %v296 = vld [vmem:[%s280 + $0xe0] sm:$0xff]
                  %297 = vst [vmem:[%s281 + $0x38] sm:$0xff] %v296
                  %v298 = vld [vmem:[%s280 + $0x100] sm:$0xff]
                  %299 = vst [vmem:[%s281 + $0x40] sm:$0xff] %v298
                  %v300 = vld [vmem:[%s280 + $0x120] sm:$0xff]
                  %301 = vst [vmem:[%s281 + $0x48] sm:$0xff] %v300
                  %v302 = vld [vmem:[%s280 + $0x140] sm:$0xff]
                  %303 = vst [vmem:[%s281 + $0x50] sm:$0xff] %v302
                  %v304 = vld [vmem:[%s280 + $0x160] sm:$0xff]
                  %305 = vst [vmem:[%s281 + $0x58] sm:$0xff] %v304
                  %v306 = vld [vmem:[%s280 + $0x180] sm:$0xff]
                  %307 = vst [vmem:[%s281 + $0x60] sm:$0xff] %v306
                  %v308 = vld [vmem:[%s280 + $0x1a0] sm:$0xff]
                  %309 = vst [vmem:[%s281 + $0x68] sm:$0xff] %v308
                  %v310 = vld [vmem:[%s280 + $0x1c0] sm:$0xff]
                  %311 = vst [vmem:[%s281 + $0x70] sm:$0xff] %v310
                  %v312 = vld [vmem:[%s280 + $0x1e0] sm:$0xff]
                  %313 = vst [vmem:[%s281 + $0x78] sm:$0xff] %v312
                  %v314 = vld [vmem:[%s280 + $0x200] sm:$0xff]
                  %315 = vst [vmem:[%s281 + $0x80] sm:$0xff] %v314
                  %v316 = vld [vmem:[%s280 + $0x220] sm:$0xff]
                  %317 = vst [vmem:[%s281 + $0x88] sm:$0xff] %v316
                  %v318 = vld [vmem:[%s280 + $0x240] sm:$0xff]
                  %319 = vst [vmem:[%s281 + $0x90] sm:$0xff] %v318
                  %v320 = vld [vmem:[%s280 + $0x260] sm:$0xff]
                  %321 = vst [vmem:[%s281 + $0x98] sm:$0xff] %v320
                  %v322 = vld [vmem:[%s280 + $0x280] sm:$0xff]
                  %323 = vst [vmem:[%s281 + $0xa0] sm:$0xff] %v322
                  %v324 = vld [vmem:[%s280 + $0x2a0] sm:$0xff]
                  %325 = vst [vmem:[%s281 + $0xa8] sm:$0xff] %v324
                  %v326 = vld [vmem:[%s280 + $0x2c0] sm:$0xff]
                  %327 = vst [vmem:[%s281 + $0xb0] sm:$0xff] %v326
                  %v328 = vld [vmem:[%s280 + $0x2e0] sm:$0xff]
                  %329 = vst [vmem:[%s281 + $0xb8] sm:$0xff] %v328
                  %v330 = vld [vmem:[%s280 + $0x300] sm:$0xff]
                  %331 = vst [vmem:[%s281 + $0xc0] sm:$0xff] %v330
                  %v332 = vld [vmem:[%s280 + $0x320] sm:$0xff]
                  %333 = vst [vmem:[%s281 + $0xc8] sm:$0xff] %v332
                  %v334 = vld [vmem:[%s280 + $0x340] sm:$0xff]
                  %335 = vst [vmem:[%s281 + $0xd0] sm:$0xff] %v334
                  %v336 = vld [vmem:[%s280 + $0x360] sm:$0xff]
                  %337 = vst [vmem:[%s281 + $0xd8] sm:$0xff] %v336
                  %v338 = vld [vmem:[%s280 + $0x380] sm:$0xff]
                  %339 = vst [vmem:[%s281 + $0xe0] sm:$0xff] %v338
                  %v340 = vld [vmem:[%s280 + $0x3a0] sm:$0xff]
                  %341 = vst [vmem:[%s281 + $0xe8] sm:$0xff] %v340
                  %v342 = vld [vmem:[%s280 + $0x3c0] sm:$0xff]
                  %343 = vst [vmem:[%s281 + $0xf0] sm:$0xff] %v342
                  %v344 = vld [vmem:[%s280 + $0x3e0] sm:$0xff]
                  %345 = vst [vmem:[%s281 + $0xf8] sm:$0xff] %v344
                $region52: #{resnet_forward.28} parent=46 // loop_footer
                  %s279 = sadd.s32 1, %s275
                $region53: #{resnet_forward.28} parent=46 // loop_footer_branch
                  %274 = sbr.rel target = $region49
                $region54: #{resnet_forward.28} parent=46 // loop_exit
                  _
              $region47: #{resnet_forward.28} parent=31 // pred_fallthru
                _
              // Predicated region
              $region55: #{resnet_forward.28} parent=31 // pred_check
                _
              $region56: #{resnet_forward.28} parent=31 // pred_check_branch
                %347 = sbr.rel target = $region58
              $region57: #{resnet_forward.28} parent=31 // pred_region
                _
              $region58: #{resnet_forward.28} parent=31 // pred_fallthru
                _
            $region32: #{resnet_forward.28} parent=27 // pred_fallthru
              _
            // Predicated region
            $region33: #{resnet_forward.28} parent=27 // pred_check
              _
            $region34: #{resnet_forward.28} parent=27 // pred_check_branch
              %198 = sbr.rel target = $region36
            $region35: #{resnet_forward.28} parent=27 // pred_region
              loop: start=0, step=1, limit=1
              $region37: #{resnet_forward.28} parent=35 // loop_pre_header
                _
              $region38: #{resnet_forward.28} parent=35 // loop_header
                %s201 = sphi 0, %s205
                %p202 = scmp.ge.s32.totalorder %s201, 1
                %s206 = sphi %s192, %s192
                %s207 = sphi %s189, %s189
              $region39: #{resnet_forward.28} parent=35 // loop_header_branch
                %204 = sbr.rel (%p202) target = $region43
              $region40: #{resnet_forward.28} parent=35 // loop_body
                %v208 = vld [vmem:[%s206] sm:$0xff]
                %209 = vst [vmem:[%s207] sm:$0xff] %v208
                %v210 = vld [vmem:[%s206 + $0x20] sm:$0xff]
                %211 = vst [vmem:[%s207 + $0x8] sm:$0xff] %v210
                %v212 = vld [vmem:[%s206 + $0x40] sm:$0xff]
                %213 = vst [vmem:[%s207 + $0x10] sm:$0xff] %v212
                %v214 = vld [vmem:[%s206 + $0x60] sm:$0xff]
                %215 = vst [vmem:[%s207 + $0x18] sm:$0xff] %v214
                %v216 = vld [vmem:[%s206 + $0x80] sm:$0xff]
                %217 = vst [vmem:[%s207 + $0x20] sm:$0xff] %v216
                %v218 = vld [vmem:[%s206 + $0xa0] sm:$0xff]
                %219 = vst [vmem:[%s207 + $0x28] sm:$0xff] %v218
                %v220 = vld [vmem:[%s206 + $0xc0] sm:$0xff]
                %221 = vst [vmem:[%s207 + $0x30] sm:$0xff] %v220
                %v222 = vld [vmem:[%s206 + $0xe0] sm:$0xff]
                %223 = vst [vmem:[%s207 + $0x38] sm:$0xff] %v222
                %v224 = vld [vmem:[%s206 + $0x100] sm:$0xff]
                %225 = vst [vmem:[%s207 + $0x40] sm:$0xff] %v224
                %v226 = vld [vmem:[%s206 + $0x120] sm:$0xff]
                %227 = vst [vmem:[%s207 + $0x48] sm:$0xff] %v226
                %v228 = vld [vmem:[%s206 + $0x140] sm:$0xff]
                %229 = vst [vmem:[%s207 + $0x50] sm:$0xff] %v228
                %v230 = vld [vmem:[%s206 + $0x160] sm:$0xff]
                %231 = vst [vmem:[%s207 + $0x58] sm:$0xff] %v230
                %v232 = vld [vmem:[%s206 + $0x180] sm:$0xff]
                %233 = vst [vmem:[%s207 + $0x60] sm:$0xff] %v232
                %v234 = vld [vmem:[%s206 + $0x1a0] sm:$0xff]
                %235 = vst [vmem:[%s207 + $0x68] sm:$0xff] %v234
                %v236 = vld [vmem:[%s206 + $0x1c0] sm:$0xff]
                %237 = vst [vmem:[%s207 + $0x70] sm:$0xff] %v236
                %v238 = vld [vmem:[%s206 + $0x1e0] sm:$0xff]
                %239 = vst [vmem:[%s207 + $0x78] sm:$0xff] %v238
                %v240 = vld [vmem:[%s206 + $0x200] sm:$0xff]
                %241 = vst [vmem:[%s207 + $0x80] sm:$0xff] %v240
                %v242 = vld [vmem:[%s206 + $0x220] sm:$0xff]
                %243 = vst [vmem:[%s207 + $0x88] sm:$0xff] %v242
                %v244 = vld [vmem:[%s206 + $0x240] sm:$0xff]
                %245 = vst [vmem:[%s207 + $0x90] sm:$0xff] %v244
                %v246 = vld [vmem:[%s206 + $0x260] sm:$0xff]
                %247 = vst [vmem:[%s207 + $0x98] sm:$0xff] %v246
                %v248 = vld [vmem:[%s206 + $0x280] sm:$0xff]
                %249 = vst [vmem:[%s207 + $0xa0] sm:$0xff] %v248
                %v250 = vld [vmem:[%s206 + $0x2a0] sm:$0xff]
                %251 = vst [vmem:[%s207 + $0xa8] sm:$0xff] %v250
                %v252 = vld [vmem:[%s206 + $0x2c0] sm:$0xff]
                %253 = vst [vmem:[%s207 + $0xb0] sm:$0xff] %v252
                %v254 = vld [vmem:[%s206 + $0x2e0] sm:$0xff]
                %255 = vst [vmem:[%s207 + $0xb8] sm:$0xff] %v254
                %v256 = vld [vmem:[%s206 + $0x300] sm:$0xff]
                %257 = vst [vmem:[%s207 + $0xc0] sm:$0xff] %v256
                %v258 = vld [vmem:[%s206 + $0x320] sm:$0xff]
                %259 = vst [vmem:[%s207 + $0xc8] sm:$0xff] %v258
                %v260 = vld [vmem:[%s206 + $0x340] sm:$0xff]
                %261 = vst [vmem:[%s207 + $0xd0] sm:$0xff] %v260
                %v262 = vld [vmem:[%s206 + $0x360] sm:$0xff]
                %263 = vst [vmem:[%s207 + $0xd8] sm:$0xff] %v262
                %v264 = vld [vmem:[%s206 + $0x380] sm:$0xff]
                %265 = vst [vmem:[%s207 + $0xe0] sm:$0xff] %v264
                %v266 = vld [vmem:[%s206 + $0x3a0] sm:$0xff]
                %267 = vst [vmem:[%s207 + $0xe8] sm:$0xff] %v266
                %v268 = vld [vmem:[%s206 + $0x3c0] sm:$0xff]
                %269 = vst [vmem:[%s207 + $0xf0] sm:$0xff] %v268
                %v270 = vld [vmem:[%s206 + $0x3e0] sm:$0xff]
                %271 = vst [vmem:[%s207 + $0xf8] sm:$0xff] %v270
              $region41: #{resnet_forward.28} parent=35 // loop_footer
                %s205 = sadd.s32 1, %s201
              $region42: #{resnet_forward.28} parent=35 // loop_footer_branch
                %200 = sbr.rel target = $region38
              $region43: #{resnet_forward.28} parent=35 // loop_exit
                _
            $region36: #{resnet_forward.28} parent=27 // pred_fallthru
              _
          $region28: #{resnet_forward.28} parent=23 // pred_fallthru
            _
          %348 = vnop
        $region24: #{resnet_forward.28} parent=19 // pred_fallthru
          _
        // Predicated region
        $region59: #{resnet_forward.28} parent=19 // pred_check
          %p349 = pneg %p94
        $region60: #{resnet_forward.28} parent=19 // pred_check_branch
          %351 = sbr.rel (%p349) target = $region62
        $region61: #{resnet_forward.28} parent=19 // pred_region
          %s352 = smul.u32 2, %s18
          %p353 = scmp.lt.s32.totalorder %s352, 7
          %s354 = scalar_select %p353, %s352, 7
          %s355 = scalar_lea.vmem %s2, %s354
          %s356 = smul.u32 2, %s18
        $region62: #{resnet_forward.28} parent=19 // pred_fallthru
          _
        // Predicated region
        $region63: #{resnet_forward.28} parent=19 // pred_check
          %p357 = pneg %p122
        $region64: #{resnet_forward.28} parent=19 // pred_check_branch
          %359 = sbr.rel (%p357) target = $region66
        $region65: #{resnet_forward.28} parent=19 // pred_region
          %s360 = smul.u32 2, %s18
          %p361 = scmp.lt.s32.totalorder %s17, 0
          %s362 = scalar_select %p361, %s17, 0
          %p363 = scmp.lt.s32.totalorder %s360, 7
          %s364 = scalar_select %p363, %s360, 7
          %s365 = smul.addr %s362, 8
          %s366 = sadd.s32 %s364, %s365
          %s367 = smul.addr %s366, 4
          %s368 = scalar_lea.vmem %s3, %s367
          %s369 = smul.u32 2, %s18
        $region66: #{resnet_forward.28} parent=19 // pred_fallthru
          _
      $region20: #{resnet_forward.28} parent=5 // pred_fallthru
        _
      %p370 = scmp.le.s32.totalorder 1, %s10
      %p371 = scmp.lt.s32.totalorder %s10, 5
      %p372 = pnand %p370, %p371
      %p373 = pneg %p372
      // Predicated region
      $region67: #{resnet_forward.28} parent=5 // pred_check
        _
      $region68: #{resnet_forward.28} parent=5 // pred_check_branch
        %375 = sbr.rel (%p372) target = $region70
      $region69: #{resnet_forward.28} parent=5 // pred_region
        %s376 = ssub.s32 %s10, 1
        %s377 = sand.u32 %s61, 1
        %s378 = sand.u32 %s61, 1
        %s379 = smul.addr %s378, 256
        %s380 = scalar_lea.vmem [#allocation2], %s379
        // Predicated region
        $region71: #{resnet_forward.28} parent=69 // pred_check
          %p381 = pneg %p74
        $region72: #{resnet_forward.28} parent=69 // pred_check_branch
          %383 = sbr.rel (%p381) target = $region74
        $region73: #{resnet_forward.28} parent=69 // pred_region
          _
        $region74: #{resnet_forward.28} parent=69 // pred_fallthru
          _
        %p384 = scmp.lt.s32.totalorder %s19, 0
        %s385 = scalar_select %p384, %s19, 0
        %s386 = smul.addr %s385, 2
        %s387 = smul.addr %s386, 4
        %s388 = scalar_lea.vmem %s0, %s387
        %p389 = pneg %p48
        %p390 = pneg %p45
        %s391 = sand.u32 %s61, 1
        %s392 = sand.u32 %s61, 1
        %s393 = smul.addr %s392, 256
        %s394 = scalar_lea.vmem [#allocation2], %s393
        %p395 = pneg %p74
        %p396 = pneg %p71
        %s397 = smul.u32 2, %s20
        %p398 = scmp.lt.s32.totalorder %s397, 7
        %s399 = scalar_select %p398, %s397, 7
        %s400 = scalar_lea.vmem %s2, %s399
        %p401 = pneg %p100
        %p402 = pneg %p97
        %s403 = smul.u32 2, %s20
        %p404 = scmp.lt.s32.totalorder %s19, 0
        %s405 = scalar_select %p404, %s19, 0
        %p406 = scmp.lt.s32.totalorder %s403, 7
        %s407 = scalar_select %p406, %s403, 7
        %s408 = smul.addr %s405, 8
        %s409 = sadd.s32 %s407, %s408
        %s410 = smul.addr %s409, 4
        %s411 = scalar_lea.vmem %s3, %s410
        %p412 = pneg %p128
        %p413 = pneg %p125
        %p414 = pneg %p156
        %p415 = pneg %p153
        %s416 = smul.u32 2, %s20
        %p417 = scmp.lt.s32.totalorder %s19, 0
        %s418 = scalar_select %p417, %s19, 0
        %p419 = scmp.lt.s32.totalorder %s416, 7
        %s420 = scalar_select %p419, %s416, 7
        %s421 = smul.addr %s418, 8
        %s422 = sadd.s32 %s420, %s421
        %s423 = smul.addr %s422, 4
        %s424 = scalar_lea.vmem %s4, %s423
        %p425 = scmp.lt.s32.totalorder %s19, 0
        %s426 = scalar_select %p425, %s19, 0
        %s427 = smul.addr %s426, 2
        %s428 = smul.addr %s427, 4
        %s429 = scalar_lea.vmem %s0, %s428
        %s430 = smul.u32 2, %s20
        %s431 = smul.u32 2, %s20
        %p432 = scmp.lt.s32.totalorder %s431, 7
        %s433 = scalar_select %p432, %s431, 7
        %s434 = scalar_lea.vmem %s2, %s433
        %s435 = smul.u32 2, %s20
        %s436 = smul.u32 2, %s20
        %p437 = scmp.lt.s32.totalorder %s19, 0
        %s438 = scalar_select %p437, %s19, 0
        %p439 = scmp.lt.s32.totalorder %s436, 7
        %s440 = scalar_select %p439, %s436, 7
        %s441 = smul.addr %s438, 8
        %s442 = sadd.s32 %s440, %s441
        %s443 = smul.addr %s442, 4
        %s444 = scalar_lea.vmem %s3, %s443
        %s445 = smul.u32 2, %s20
        %s446 = smul.u32 2, %s20
        %p447 = scmp.lt.s32.totalorder %s19, 0
        %s448 = scalar_select %p447, %s19, 0
        %p449 = scmp.lt.s32.totalorder %s446, 7
        %s450 = scalar_select %p449, %s446, 7
        %s451 = smul.addr %s448, 8
        %s452 = sadd.s32 %s450, %s451
        %s453 = smul.addr %s452, 4
        %s454 = scalar_lea.vmem %s4, %s453
        %s455 = smul.u32 2, %s20
        %v456 = vld [vmem:[%s429] sm:$0xff]
        %v457 = vld [vmem:[%s380] sm:$0xff]
        %v458 = vld [vmem:[%s380 + $0x8] sm:$0xff]
        %v459 = vld [vmem:[%s380 + $0x10] sm:$0xff]
        %v460 = vld [vmem:[%s380 + $0x18] sm:$0xff]
        %v461 = vld [vmem:[%s380 + $0x20] sm:$0xff]
        %v462 = vld [vmem:[%s380 + $0x28] sm:$0xff]
        %v463 = vld [vmem:[%s380 + $0x30] sm:$0xff]
        %v464 = vld [vmem:[%s380 + $0x38] sm:$0xff]
        %v465 = vld [vmem:[%s380 + $0x40] sm:$0xff]
        %v466 = vld [vmem:[%s380 + $0x48] sm:$0xff]
        %v467 = vld [vmem:[%s380 + $0x50] sm:$0xff]
        %v468 = vld [vmem:[%s380 + $0x58] sm:$0xff]
        %v469 = vld [vmem:[%s380 + $0x60] sm:$0xff]
        %v470 = vld [vmem:[%s380 + $0x68] sm:$0xff]
        %v471 = vld [vmem:[%s380 + $0x70] sm:$0xff]
        %v472 = vld [vmem:[%s380 + $0x78] sm:$0xff]
        %v473 = vld [vmem:[%s380 + $0x80] sm:$0xff]
        %v474 = vld [vmem:[%s380 + $0x88] sm:$0xff]
        %v475 = vld [vmem:[%s380 + $0x90] sm:$0xff]
        %v476 = vld [vmem:[%s380 + $0x98] sm:$0xff]
        %v477 = vld [vmem:[%s380 + $0xa0] sm:$0xff]
        %v478 = vld [vmem:[%s380 + $0xa8] sm:$0xff]
        %v479 = vld [vmem:[%s380 + $0xb0] sm:$0xff]
        %v480 = vld [vmem:[%s380 + $0xb8] sm:$0xff]
        %v481 = vld [vmem:[%s380 + $0xc0] sm:$0xff]
        %v482 = vld [vmem:[%s380 + $0xc8] sm:$0xff]
        %v483 = vld [vmem:[%s380 + $0xd0] sm:$0xff]
        %v484 = vld [vmem:[%s380 + $0xd8] sm:$0xff]
        %v485 = vld [vmem:[%s380 + $0xe0] sm:$0xff]
        %v486 = vld [vmem:[%s380 + $0xe8] sm:$0xff]
        %v487 = vld [vmem:[%s380 + $0xf0] sm:$0xff]
        %v488 = vld [vmem:[%s380 + $0xf8] sm:$0xff]
        %v489 = vld [vmem:[%s434] sm:$0x3]
        %v491 = vlaneseq
        %v492 = vshrl.u32 %v491, 7
        %v493 = vsub.s32 0, %v492
        %v494 = vrot.slane %v489, %v493
        %v495 = vlaneseq
        %v496 = vshrl.u32 %v495, 7
        %v497 = vsub.s32 1, %v496
        %v498 = vrot.slane %v489, %v497
        %v502 = vunpack.c.l.b16 %v456
        %v503 = vunpack.c.h.b16 %v456
        %v504 = vpack.c.b16 %v502, %v502
        %v505 = vpack.c.b16 %v503, %v503
        %v540 = vunpack.c.l.b16 %v457
        %v541 = vunpack.c.h.b16 %v457
        %v542 = vunpack.c.l.b16 %v458
        %v543 = vunpack.c.h.b16 %v458
        %v544 = vunpack.c.l.b16 %v459
        %v545 = vunpack.c.h.b16 %v459
        %v546 = vunpack.c.l.b16 %v460
        %v547 = vunpack.c.h.b16 %v460
        %v548 = vunpack.c.l.b16 %v461
        %v549 = vunpack.c.h.b16 %v461
        %v550 = vunpack.c.l.b16 %v462
        %v551 = vunpack.c.h.b16 %v462
        %v552 = vunpack.c.l.b16 %v463
        %v553 = vunpack.c.h.b16 %v463
        %v554 = vunpack.c.l.b16 %v464
        %v555 = vunpack.c.h.b16 %v464
        %v556 = vunpack.c.l.b16 %v465
        %v557 = vunpack.c.h.b16 %v465
        %v558 = vunpack.c.l.b16 %v466
        %v559 = vunpack.c.h.b16 %v466
        %v560 = vunpack.c.l.b16 %v467
        %v561 = vunpack.c.h.b16 %v467
        %v562 = vunpack.c.l.b16 %v468
        %v563 = vunpack.c.h.b16 %v468
        %v564 = vunpack.c.l.b16 %v469
        %v565 = vunpack.c.h.b16 %v469
        %v566 = vunpack.c.l.b16 %v470
        %v567 = vunpack.c.h.b16 %v470
        %v568 = vunpack.c.l.b16 %v471
        %v569 = vunpack.c.h.b16 %v471
        %v570 = vunpack.c.l.b16 %v472
        %v571 = vunpack.c.h.b16 %v472
        %v572 = vunpack.c.l.b16 %v473
        %v573 = vunpack.c.h.b16 %v473
        %v574 = vunpack.c.l.b16 %v474
        %v575 = vunpack.c.h.b16 %v474
        %v576 = vunpack.c.l.b16 %v475
        %v577 = vunpack.c.h.b16 %v475
        %v578 = vunpack.c.l.b16 %v476
        %v579 = vunpack.c.h.b16 %v476
        %v580 = vunpack.c.l.b16 %v477
        %v581 = vunpack.c.h.b16 %v477
        %v582 = vunpack.c.l.b16 %v478
        %v583 = vunpack.c.h.b16 %v478
        %v584 = vunpack.c.l.b16 %v479
        %v585 = vunpack.c.h.b16 %v479
        %v586 = vunpack.c.l.b16 %v480
        %v587 = vunpack.c.h.b16 %v480
        %v588 = vunpack.c.l.b16 %v481
        %v589 = vunpack.c.h.b16 %v481
        %v590 = vunpack.c.l.b16 %v482
        %v591 = vunpack.c.h.b16 %v482
        %v592 = vunpack.c.l.b16 %v483
        %v593 = vunpack.c.h.b16 %v483
        %v594 = vunpack.c.l.b16 %v484
        %v595 = vunpack.c.h.b16 %v484
        %v596 = vunpack.c.l.b16 %v485
        %v597 = vunpack.c.h.b16 %v485
        %v598 = vunpack.c.l.b16 %v486
        %v599 = vunpack.c.h.b16 %v486
        %v600 = vunpack.c.l.b16 %v487
        %v601 = vunpack.c.h.b16 %v487
        %v602 = vunpack.c.l.b16 %v488
        %v603 = vunpack.c.h.b16 %v488
        %v604 = vpack.c.b16 %v542, %v540
        %v605 = vpack.c.b16 %v543, %v541
        %v606 = vpack.c.b16 %v546, %v544
        %v607 = vpack.c.b16 %v547, %v545
        %v608 = vpack.c.b16 %v550, %v548
        %v609 = vpack.c.b16 %v551, %v549
        %v610 = vpack.c.b16 %v554, %v552
        %v611 = vpack.c.b16 %v555, %v553
        %v612 = vpack.c.b16 %v558, %v556
        %v613 = vpack.c.b16 %v559, %v557
        %v614 = vpack.c.b16 %v562, %v560
        %v615 = vpack.c.b16 %v563, %v561
        %v616 = vpack.c.b16 %v566, %v564
        %v617 = vpack.c.b16 %v567, %v565
        %v618 = vpack.c.b16 %v570, %v568
        %v619 = vpack.c.b16 %v571, %v569
        %v620 = vpack.c.b16 %v574, %v572
        %v621 = vpack.c.b16 %v575, %v573
        %v622 = vpack.c.b16 %v578, %v576
        %v623 = vpack.c.b16 %v579, %v577
        %v624 = vpack.c.b16 %v582, %v580
        %v625 = vpack.c.b16 %v583, %v581
        %v626 = vpack.c.b16 %v586, %v584
        %v627 = vpack.c.b16 %v587, %v585
        %v628 = vpack.c.b16 %v590, %v588
        %v629 = vpack.c.b16 %v591, %v589
        %v630 = vpack.c.b16 %v594, %v592
        %v631 = vpack.c.b16 %v595, %v593
        %v632 = vpack.c.b16 %v598, %v596
        %v633 = vpack.c.b16 %v599, %v597
        %v634 = vpack.c.b16 %v602, %v600
        %v635 = vpack.c.b16 %v603, %v601
        %668 = vmatprep.subr.bf16.mxu0 %v605
        %669 = vmatpush1.bf16.msra.mxu0 %v604
        %670 = vmatprep.subr.bf16.mxu0 %v607
        %671 = vmatpush1.bf16.msra.mxu0 %v606
        %672 = vmatprep.subr.bf16.mxu0 %v609
        %673 = vmatpush1.bf16.msra.mxu0 %v608
        %674 = vmatprep.subr.bf16.mxu0 %v611
        %675 = vmatpush1.bf16.msra.mxu0 %v610
        %676 = vmatprep.subr.bf16.mxu0 %v613
        %677 = vmatpush1.bf16.msra.mxu0 %v612
        %678 = vmatprep.subr.bf16.mxu0 %v615
        %679 = vmatpush1.bf16.msra.mxu0 %v614
        %680 = vmatprep.subr.bf16.mxu0 %v617
        %681 = vmatpush1.bf16.msra.mxu0 %v616
        %682 = vmatprep.subr.bf16.mxu0 %v619
        %683 = vmatpush1.bf16.msra.mxu0 %v618
        %684 = vmatprep.subr.bf16.mxu0 %v621
        %685 = vmatpush1.bf16.msra.mxu0 %v620
        %686 = vmatprep.subr.bf16.mxu0 %v623
        %687 = vmatpush1.bf16.msra.mxu0 %v622
        %688 = vmatprep.subr.bf16.mxu0 %v625
        %689 = vmatpush1.bf16.msra.mxu0 %v624
        %690 = vmatprep.subr.bf16.mxu0 %v627
        %691 = vmatpush1.bf16.msra.mxu0 %v626
        %692 = vmatprep.subr.bf16.mxu0 %v629
        %693 = vmatpush1.bf16.msra.mxu0 %v628
        %694 = vmatprep.subr.bf16.mxu0 %v631
        %695 = vmatpush1.bf16.msra.mxu0 %v630
        %696 = vmatprep.subr.bf16.mxu0 %v633
        %697 = vmatpush1.bf16.msra.mxu0 %v632
        %698 = vmatprep.subr.bf16.mxu0 %v635
        %699 = vmatpush1.bf16.msra.mxu0 %v634
        %700 = vmatprep.mubr.bf16.mxu0 %v505
        %701 = vmatmul.mubr.bf16.gmra.mrb[0].mxu0 %v504
        %v702 = vpop.f32.mrb[0].mxu0
        %v703 = vadd.f32 %v494, %v702
        %v704 = vpop.f32.mrb[0].mxu0
        %v705 = vadd.f32 %v498, %v704
        %v706 = vpop.f32.mrb[0].mxu0
        %v707 = vpop.f32.mrb[0].mxu0
        %708 = vdwg.mxu0
        %v709 = vld [vmem:[%s444] sm:$0xff]
        %v710 = vunpack.c.l.bf16 %v709
        %v711 = vunpack.c.h.bf16 %v709
        %v712 = vadd.f32 %v703, %v710
        %v713 = vadd.f32 %v705, %v711
        %v714 = vmax.f32 %v712, 0.0
        %v715 = vmax.f32 %v713, 0.0
        %v716 = vpack.c.bf16 %v714, %v714
        %v717 = vpack.c.bf16 %v715, %v715
        %v720 = vunpack.c.l.b16 %v716
        %v721 = vunpack.c.l.b16 %v717
        %v722 = vpack.c.b16 %v721, %v720
        %724 = vst [vmem:[%s454] sm:$0xff] %v722
        %s725 = smul.u32 2, %s20
        %p726 = scmp.lt.s32.totalorder %s19, 0
        %s727 = scalar_select %p726, %s19, 0
        %p728 = scmp.lt.s32.totalorder %s725, 7
        %s729 = scalar_select %p728, %s725, 7
        %s730 = smul.addr %s727, 8
        %s731 = sadd.s32 %s729, %s730
        %s732 = smul.addr %s731, 4
        %s733 = scalar_lea.vmem %s4, %s732
        // Predicated region
        $region75: #{resnet_forward.28} parent=69 // pred_check
          %p734 = pneg %p153
        $region76: #{resnet_forward.28} parent=69 // pred_check_branch
          %736 = sbr.rel (%p734) target = $region78
        $region77: #{resnet_forward.28} parent=69 // pred_region
          %s737 = smul.u32 2, %s20
        $region78: #{resnet_forward.28} parent=69 // pred_fallthru
          _
      $region70: #{resnet_forward.28} parent=5 // pred_fallthru
        _
      %p738 = scmp.le.s32.totalorder 2, %s10
      // Predicated region
      $region79: #{resnet_forward.28} parent=5 // pred_check
        %p739 = pneg %p738
      $region80: #{resnet_forward.28} parent=5 // pred_check_branch
        %741 = sbr.rel (%p739) target = $region82
      $region81: #{resnet_forward.28} parent=5 // pred_region
        %s742 = ssub.s32 %s10, 2
        // Predicated region
        $region83: #{resnet_forward.28} parent=81 // pred_check
          %p743 = pneg %p159
        $region84: #{resnet_forward.28} parent=81 // pred_check_branch
          %745 = sbr.rel (%p743) target = $region86
        $region85: #{resnet_forward.28} parent=81 // pred_region
          %s746 = smul.u32 2, %s22
          %p747 = scmp.lt.s32.totalorder %s21, 0
          %s748 = scalar_select %p747, %s21, 0
          %p749 = scmp.lt.s32.totalorder %s746, 7
          %s750 = scalar_select %p749, %s746, 7
          %s751 = smul.addr %s748, 8
          %s752 = sadd.s32 %s750, %s751
          %s753 = smul.addr %s752, 4
          %s754 = scalar_lea.vmem %s4, %s753
        $region86: #{resnet_forward.28} parent=81 // pred_fallthru
          _
      $region82: #{resnet_forward.28} parent=5 // pred_fallthru
        _
    $region6: #{resnet_forward.28} parent=1 // loop_footer
      %s14 = sadd.s32 1, %s10
    $region7: #{resnet_forward.28} parent=1 // loop_footer_branch
      %9 = sbr.rel target = $region3
    $region8: #{resnet_forward.28} parent=1 // loop_exit
      _

// kernel: resnet_forward.29
$region0: #{resnet_forward.29}
  #allocation0 [shape = 'u32[]', space=smem, size = 0x4, offset = 0x4, fixed_abs, tag = 'smem constant byte address 0x4 - core index']
  #allocation1 [shape = 'u32[144,128]{1,0:T(1,128)}', space=vmem, size = 0x12000, scoped, tag = 'internal scratch']
  %s0 = inlined_call_operand.vmem [shape: bf16[2,4,1024], index: 0, kind: input, shape index: {}]
  %s1 = inlined_call_operand.hbm [shape: f32[2,1024], index: 1, kind: output, shape index: {}]
  %s2 = sld [smem:[#allocation0]]
  $region78: #{resnet_forward.29} parent=0
    _
  %s4 = ssub.s32 1, %s2
  %s5 = scalar_select 0, %s4, %s2
  $region1: #{resnet_forward.29} parent=0
    #allocation2 [shape = 'u8[8192]{0}', space=vmem, size = 0x2000, scoped, tag = 'input window, operand 0']
    #allocation3 [shape = 'u8[4096]{0}', space=vmem, size = 0x1000, scoped, tag = 'output window, operand 0']
    #allocation4 [shape = 's32[2]{0}', space=sflag, size = 0x8, scoped, tag = 'scoped memory for resnet_forward.29']
    %6 = vsyncpa [#allocation4], 0
    %s7 = scalar_lea.sflag [#allocation4], 1
    %8 = vsyncpa %s7, 0
    loop: start=0, step=1, limit=6
    $region2: #{resnet_forward.29} parent=1 // loop_pre_header
      _
    $region3: #{resnet_forward.29} parent=1 // loop_header
      %s10 = sphi 0, %s14
      %p11 = scmp.ge.s32.totalorder %s10, 6
      %s20 = sphi 0, %s22
      %s23 = sphi 0, %s20
      %s24 = sphi 0, %s23
      %s40 = sphi 0, %s24
      %s46 = sphi 0, %s48
      %s49 = sphi 0, %s46
      %s50 = sphi 0, %s49
      %s66 = sphi 0, %s50
    $region4: #{resnet_forward.29} parent=1 // loop_header_branch
      %13 = sbr.rel (%p11) target = $region8
    $region5: #{resnet_forward.29} parent=1 // loop_body
      %s15 = ssub.s32 %s10, 1
      %s16 = ssub.s32 %s10, 2
      %s17 = sadd.s32 %s10, 1
      %s18 = ssub.s32 %s10, %s17
      %p19 = scmp.eq.s32.totalorder %s18, 0
      %s21 = sadd.s32 %s20, 1
      %s22 = scalar_select %p19, %s20, %s21
      %p25 = pneg %p19
      %p26 = scmp.eq.s32.totalorder %s10, 3
      %p27 = por %p25, %p26
      %p28 = scmp.ne.s32.totalorder %s20, %s23
      %p29 = scmp.eq.s32.totalorder %s10, 0
      %p30 = por %p28, %p29
      %p31 = scmp.ne.s32.totalorder %s20, %s23
      %p32 = scmp.eq.s32.totalorder %s15, 3
      %p33 = por %p31, %p32
      %p34 = scmp.ne.s32.totalorder %s23, %s24
      %p35 = scmp.eq.s32.totalorder %s15, 0
      %p36 = por %p34, %p35
      %p37 = scmp.ne.s32.totalorder %s23, %s24
      %p38 = scmp.eq.s32.totalorder %s16, 3
      %p39 = por %p37, %p38
      %p41 = scmp.ne.s32.totalorder %s24, %s40
      %p42 = scmp.eq.s32.totalorder %s16, 0
      %p43 = por %p41, %p42
      %s44 = ssub.s32 %s10, %s17
      %p45 = scmp.eq.s32.totalorder %s44, 0
      %s47 = sadd.s32 %s46, 1
      %s48 = scalar_select %p45, %s46, %s47
      %p51 = pneg %p45
      %p52 = scmp.eq.s32.totalorder %s10, 3
      %p53 = por %p51, %p52
      %p54 = scmp.ne.s32.totalorder %s46, %s49
      %p55 = scmp.eq.s32.totalorder %s10, 0
      %p56 = por %p54, %p55
      %p57 = scmp.ne.s32.totalorder %s46, %s49
      %p58 = scmp.eq.s32.totalorder %s15, 3
      %p59 = por %p57, %p58
      %p60 = scmp.ne.s32.totalorder %s49, %s50
      %p61 = scmp.eq.s32.totalorder %s15, 0
      %p62 = por %p60, %p61
      %p63 = scmp.ne.s32.totalorder %s49, %s50
      %p64 = scmp.eq.s32.totalorder %s16, 3
      %p65 = por %p63, %p64
      %p67 = scmp.ne.s32.totalorder %s50, %s66
      %p68 = scmp.eq.s32.totalorder %s16, 0
      %p69 = por %p67, %p68
      %p70 = scmp.le.s32.totalorder 1, %s10
      %p71 = scmp.lt.s32.totalorder %s10, 5
      %p72 = pnand %p70, %p71
      %p73 = pneg %p72
      // Predicated region
      $region9: #{resnet_forward.29} parent=5 // pred_check
        _
      $region10: #{resnet_forward.29} parent=5 // pred_check_branch
        %75 = sbr.rel (%p72) target = $region12
      $region11: #{resnet_forward.29} parent=5 // pred_region
        %s76 = ssub.s32 %s10, 1
      $region12: #{resnet_forward.29} parent=5 // pred_fallthru
        _
      %p77 = scmp.lt.s32.totalorder %s10, 4
      // Predicated region
      $region13: #{resnet_forward.29} parent=5 // pred_check
        %p78 = pneg %p77
      $region14: #{resnet_forward.29} parent=5 // pred_check_branch
        %80 = sbr.rel (%p78) target = $region16
      $region15: #{resnet_forward.29} parent=5 // pred_region
        // Predicated region
        $region17: #{resnet_forward.29} parent=15 // pred_check
          %p81 = pneg %p30
        $region18: #{resnet_forward.29} parent=15 // pred_check_branch
          %83 = sbr.rel (%p81) target = $region20
        $region19: #{resnet_forward.29} parent=15 // pred_region
          %s84 = sand.u32 %s20, 1
          %s85 = sand.u32 %s20, 1
          %s86 = smul.addr %s85, 8
          %s87 = scalar_lea.vmem [#allocation2], %s86
          %s88 = smul.u32 2, %s10
          %s89 = smul.addr %s88, 2
          %s90 = scalar_lea.vmem %s0, %s89
          // Predicated region
          $region21: #{resnet_forward.29} parent=19 // pred_check
            _
          $region22: #{resnet_forward.29} parent=19 // pred_check_branch
            %92 = sbr.rel (0) target = $region24
          $region23: #{resnet_forward.29} parent=19 // pred_region
            // Predicated region
            $region25: #{resnet_forward.29} parent=23 // pred_check
              _
            $region26: #{resnet_forward.29} parent=23 // pred_check_branch
              %94 = sbr.rel target = $region28
            $region27: #{resnet_forward.29} parent=23 // pred_region
              // Predicated region
              $region40: #{resnet_forward.29} parent=27 // pred_check
                _
              $region41: #{resnet_forward.29} parent=27 // pred_check_branch
                %111 = sbr.rel (0) target = $region43
              $region42: #{resnet_forward.29} parent=27 // pred_region
                loop: start=0, step=1, limit=1
                $region44: #{resnet_forward.29} parent=42 // loop_pre_header
                  _
                $region45: #{resnet_forward.29} parent=42 // loop_header
                  %s113 = sphi 0, %s117
                  %p114 = scmp.ge.s32.totalorder %s113, 1
                  %s118 = sphi %s90, %s90
                  %s119 = sphi %s87, %s87
                $region46: #{resnet_forward.29} parent=42 // loop_header_branch
                  %116 = sbr.rel (%p114) target = $region50
                $region47: #{resnet_forward.29} parent=42 // loop_body
                  _
                $region48: #{resnet_forward.29} parent=42 // loop_footer
                  %s117 = sadd.s32 1, %s113
                $region49: #{resnet_forward.29} parent=42 // loop_footer_branch
                  %112 = sbr.rel target = $region45
                $region50: #{resnet_forward.29} parent=42 // loop_exit
                  _
                loop: start=0, step=1, limit=1
                $region51: #{resnet_forward.29} parent=42 // loop_pre_header
                  _
                $region52: #{resnet_forward.29} parent=42 // loop_header
                  %s122 = sphi 0, %s126
                  %p123 = scmp.ge.s32.totalorder %s122, 1
                  %s127 = sphi %s90, %s90
                  %s128 = sphi %s87, %s87
                $region53: #{resnet_forward.29} parent=42 // loop_header_branch
                  %125 = sbr.rel (%p123) target = $region57
                $region54: #{resnet_forward.29} parent=42 // loop_body
                  %v129 = vld [vmem:[%s127] sm:$0xf]
                  %130 = vst [vmem:[%s128] sm:$0xf] %v129
                  %v131 = vld [vmem:[%s127 + $0x10] sm:$0xf]
                  %132 = vst [vmem:[%s128 + $0x4] sm:$0xf] %v131
                $region55: #{resnet_forward.29} parent=42 // loop_footer
                  %s126 = sadd.s32 1, %s122
                $region56: #{resnet_forward.29} parent=42 // loop_footer_branch
                  %121 = sbr.rel target = $region52
                $region57: #{resnet_forward.29} parent=42 // loop_exit
                  _
              $region43: #{resnet_forward.29} parent=27 // pred_fallthru
                _
            $region28: #{resnet_forward.29} parent=23 // pred_fallthru
              _
            // Predicated region
            $region29: #{resnet_forward.29} parent=23 // pred_check
              _
            $region30: #{resnet_forward.29} parent=23 // pred_check_branch
              %96 = sbr.rel (0) target = $region32
            $region31: #{resnet_forward.29} parent=23 // pred_region
              loop: start=0, step=1, limit=1
              $region33: #{resnet_forward.29} parent=31 // loop_pre_header
                _
              $region34: #{resnet_forward.29} parent=31 // loop_header
                %s99 = sphi 0, %s103
                %p100 = scmp.ge.s32.totalorder %s99, 1
                %s104 = sphi %s90, %s90
                %s105 = sphi %s87, %s87
              $region35: #{resnet_forward.29} parent=31 // loop_header_branch
                %102 = sbr.rel (%p100) target = $region39
              $region36: #{resnet_forward.29} parent=31 // loop_body
                %v106 = vld [vmem:[%s104] sm:$0xf]
                %107 = vst [vmem:[%s105] sm:$0xf] %v106
                %v108 = vld [vmem:[%s104 + $0x10] sm:$0xf]
                %109 = vst [vmem:[%s105 + $0x4] sm:$0xf] %v108
              $region37: #{resnet_forward.29} parent=31 // loop_footer
                %s103 = sadd.s32 1, %s99
              $region38: #{resnet_forward.29} parent=31 // loop_footer_branch
                %98 = sbr.rel target = $region34
              $region39: #{resnet_forward.29} parent=31 // loop_exit
                _
            $region32: #{resnet_forward.29} parent=23 // pred_fallthru
              _
          $region24: #{resnet_forward.29} parent=19 // pred_fallthru
            _
          %133 = vnop
        $region20: #{resnet_forward.29} parent=15 // pred_fallthru
          _
      $region16: #{resnet_forward.29} parent=5 // pred_fallthru
        _
      %p134 = scmp.le.s32.totalorder 1, %s10
      %p135 = scmp.lt.s32.totalorder %s10, 5
      %p136 = pnand %p134, %p135
      %p137 = pneg %p136
      // Predicated region
      $region58: #{resnet_forward.29} parent=5 // pred_check
        _
      $region59: #{resnet_forward.29} parent=5 // pred_check_branch
        %139 = sbr.rel (%p136) target = $region61
      $region60: #{resnet_forward.29} parent=5 // pred_region
        %s140 = ssub.s32 %s10, 1
        %s141 = sand.u32 %s23, 1
        %s142 = sand.u32 %s23, 1
        %s143 = smul.addr %s142, 8
        %s144 = scalar_lea.vmem [#allocation2], %s143
        // Predicated region
        $region62: #{resnet_forward.29} parent=60 // pred_check
          %p145 = pneg %p36
        $region63: #{resnet_forward.29} parent=60 // pred_check_branch
          %147 = sbr.rel (%p145) target = $region65
        $region64: #{resnet_forward.29} parent=60 // pred_region
          _
        $region65: #{resnet_forward.29} parent=60 // pred_fallthru
          _
        %s148 = sand.u32 %s23, 1
        %s149 = sand.u32 %s23, 1
        %s150 = smul.addr %s149, 8
        %s151 = scalar_lea.vmem [#allocation2], %s150
        %p152 = pneg %p36
        %p153 = pneg %p33
        %p154 = pneg %p62
        %p155 = pneg %p59
        %s156 = sand.u32 %s49, 1
        %s157 = scalar_lea.sflag [#allocation4], %s156
        %s158 = sand.u32 %s49, 1
        %s159 = smul.addr %s158, 4
        %s160 = scalar_lea.vmem [#allocation3], %s159
        %s161 = smul.u32 2, %s15
        %s162 = smul.u32 2, %s15
        %v163 = vld [vmem:[%s144] sm:$0xf]
        %v164 = vld [vmem:[%s144 + $0x4] sm:$0xf]
        %v165 = vunpack.c.l.bf16 %v163
        %v166 = vunpack.c.l.bf16 %v164
        %v169 = vcombine.high %v165, %v165
        %v170 = vcombine.high %v166, %v166
        %vm173 = vcmask 1043456
        %v174 = vsel %vm173, %v165, 0.0
        %v175 = vrot.slane %v174, 4
        %v176 = vadd.f32 %v174, %v175
        %v177 = vrot.slane %v176, 2
        %v178 = vadd.f32 %v176, %v177
        %v179 = vrot.slane %v178, 1
        %v180 = vadd.f32 %v178, %v179
        %v181 = vsel %vm173, %v169, 0.0
        %v182 = vrot.slane %v181, 4
        %v183 = vadd.f32 %v181, %v182
        %v184 = vrot.slane %v183, 2
        %v185 = vadd.f32 %v183, %v184
        %v186 = vrot.slane %v185, 1
        %v187 = vadd.f32 %v185, %v186
        %v188 = vsel %vm173, %v166, 0.0
        %v189 = vrot.slane %v188, 4
        %v190 = vadd.f32 %v188, %v189
        %v191 = vrot.slane %v190, 2
        %v192 = vadd.f32 %v190, %v191
        %v193 = vrot.slane %v192, 1
        %v194 = vadd.f32 %v192, %v193
        %v195 = vsel %vm173, %v170, 0.0
        %v196 = vrot.slane %v195, 4
        %v197 = vadd.f32 %v195, %v196
        %v198 = vrot.slane %v197, 2
        %v199 = vadd.f32 %v197, %v198
        %v200 = vrot.slane %v199, 1
        %v201 = vadd.f32 %v199, %v200
        %v202 = vrcp.pop 4.0
        %v203 = vmul.f32 %v180, %v202
        %v204 = vmul.f32 %v187, %v202
        %v205 = vmul.f32 %v194, %v202
        %v206 = vmul.f32 %v201, %v202
        %v211 = vcombine.low %v203, %v204
        %v213 = vunpack.c.l.s4 1983009808
        %v214 = vunpack.c.0.s8 %v213
        %v215 = vlaneseq
        %v216 = vshrl.u32 %v215, 7
        %v217 = vsub.s32 %v214, %v216
        %v218 = vrot.slane %v211, %v217
        %v219 = vcombine.low %v205, %v206
        %v221 = vunpack.c.l.s4 1983009808
        %v222 = vunpack.c.0.s8 %v221
        %v223 = vlaneseq
        %v224 = vshrl.u32 %v223, 7
        %v225 = vsub.s32 %v222, %v224
        %v226 = vrot.slane %v219, %v225
        %vm227 = vcmask 1044484
        %v228 = vsel %vm227, %v218, %v218
        %vm229 = vcmask 1046534
        %v230 = vsel %vm229, %v218, %v228
        %v231 = vrot.slane %v226, 7
        %vm232 = vcmask 1041409
        %v233 = vsel %vm232, %v231, %v230
        %vm234 = vcmask 1043459
        %v235 = vsel %vm234, %v231, %v233
        %vm236 = vcmask 1045509
        %v237 = vsel %vm236, %v231, %v235
        %vm238 = vcmask 1047559
        %v239 = vsel %vm238, %v231, %v237
        %241 = vst [vmem:[%s160] sm:$0xf] %v239
        %s242 = sand.u32 %s49, 1
        %s243 = scalar_lea.sflag [#allocation4], %s242
        %s244 = sand.u32 %s49, 1
        %s245 = smul.addr %s244, 4
        %s246 = scalar_lea.vmem [#allocation3], %s245
        // Predicated region
        $region66: #{resnet_forward.29} parent=60 // pred_check
          %p247 = pneg %p59
        $region67: #{resnet_forward.29} parent=60 // pred_check_branch
          %249 = sbr.rel (%p247) target = $region69
        $region68: #{resnet_forward.29} parent=60 // pred_region
          %s250 = smul.u32 2, %s15
          %s252 = ssub.s32 64, 64
          %253 = vsyncadd %s243, %s252
          %s254 = smul.addr %s250, 32
          %s255 = scalar_lea.hbm %s1, %s254
          %s257 = sshll.u32 %s246, 4
          %s258 = int_to_ptr.vmem [resolvable:$true] %s257
          %260 = dma.vmem_to_hbm [thread:$0]  %s258, 64, %s255, %s243
        $region69: #{resnet_forward.29} parent=60 // pred_fallthru
          _
      $region61: #{resnet_forward.29} parent=5 // pred_fallthru
        _
      %p261 = scmp.le.s32.totalorder 2, %s10
      // Predicated region
      $region70: #{resnet_forward.29} parent=5 // pred_check
        %p262 = pneg %p261
      $region71: #{resnet_forward.29} parent=5 // pred_check_branch
        %264 = sbr.rel (%p262) target = $region73
      $region72: #{resnet_forward.29} parent=5 // pred_region
        %s265 = ssub.s32 %s10, 2
        // Predicated region
        $region74: #{resnet_forward.29} parent=72 // pred_check
          %p266 = pneg %p65
        $region75: #{resnet_forward.29} parent=72 // pred_check_branch
          %268 = sbr.rel (%p266) target = $region77
        $region76: #{resnet_forward.29} parent=72 // pred_region
          %s269 = sand.u32 %s50, 1
          %s270 = scalar_lea.sflag [#allocation4], %s269
          %s271 = sand.u32 %s50, 1
          %s272 = smul.addr %s271, 4
          %s273 = scalar_lea.vmem [#allocation3], %s272
          %274 = dma.done %s270, 64
        $region77: #{resnet_forward.29} parent=72 // pred_fallthru
          _
      $region73: #{resnet_forward.29} parent=5 // pred_fallthru
        _
    $region6: #{resnet_forward.29} parent=1 // loop_footer
      %s14 = sadd.s32 1, %s10
    $region7: #{resnet_forward.29} parent=1 // loop_footer_branch
      %9 = sbr.rel target = $region3
    $region8: #{resnet_forward.29} parent=1 // loop_exit
      _
    %275 = vsyncpa [#allocation4], 1
    %s276 = scalar_lea.sflag [#allocation4], 1
    %277 = vsyncpa %s276, 1

// kernel: resnet_forward.26
$region0: #{resnet_forward.26}
  #allocation0 [shape = 'u32[]', space=smem, size = 0x4, offset = 0x4, fixed_abs, tag = 'smem constant byte address 0x4 - core index']
  #allocation1 [shape = 'u32[144,128]{1,0:T(1,128)}', space=vmem, size = 0x12000, scoped, tag = 'internal scratch']
  %s0 = inlined_call_operand.vmem [shape: bf16[8,2304], index: 0, kind: input, shape index: {}]
  %s1 = inlined_call_operand.vmem [shape: bf16[2304,256], index: 1, kind: input, shape index: {}]
  %s2 = inlined_call_operand.vmem [shape: f32[1,256], index: 2, kind: input, shape index: {}]
  %s3 = inlined_call_operand.vmem [shape: bf16[8,256], index: 3, kind: output, shape index: {}]
  %s4 = sld [smem:[#allocation0]]
  $region22: #{resnet_forward.26} parent=0
    _
  %s6 = ssub.s32 1, %s4
  %s7 = scalar_select 0, %s6, %s4
  // Predicated region
  $region2: #{resnet_forward.26} parent=0 // pred_check
    _
  $region3: #{resnet_forward.26} parent=0 // pred_check_branch
    %9 = sbr.rel (0) target = $region5
  $region4: #{resnet_forward.26} parent=0 // pred_region
    _
  $region5: #{resnet_forward.26} parent=0 // pred_fallthru
    _
  // Predicated region
  $region6: #{resnet_forward.26} parent=0 // pred_check
    _
  $region7: #{resnet_forward.26} parent=0 // pred_check_branch
    %11 = sbr.rel (0) target = $region9
  $region8: #{resnet_forward.26} parent=0 // pred_region
    _
  $region9: #{resnet_forward.26} parent=0 // pred_fallthru
    _
  // Predicated region
  $region10: #{resnet_forward.26} parent=0 // pred_check
    _
  $region11: #{resnet_forward.26} parent=0 // pred_check_branch
    %13 = sbr.rel (0) target = $region13
  $region12: #{resnet_forward.26} parent=0 // pred_region
    _
  $region13: #{resnet_forward.26} parent=0 // pred_fallthru
    _
  %v14 = vld [vmem:[%s0] sm:$0xff]
  %v15 = vld [vmem:[%s0 + $0x8] sm:$0xff]
  %v16 = vld [vmem:[%s0 + $0x10] sm:$0xff]
  %v17 = vld [vmem:[%s0 + $0x18] sm:$0xff]
  %v18 = vld [vmem:[%s0 + $0x20] sm:$0xff]
  %v19 = vld [vmem:[%s0 + $0x28] sm:$0xff]
  %v20 = vld [vmem:[%s0 + $0x30] sm:$0xff]
  %v21 = vld [vmem:[%s0 + $0x38] sm:$0xff]
  %v22 = vld [vmem:[%s0 + $0x40] sm:$0xff]
  %v23 = vld [vmem:[%s1] sm:$0xff]
  %v24 = vld [vmem:[%s1 + $0x8] sm:$0xff]
  %v25 = vld [vmem:[%s1 + $0x10] sm:$0xff]
  %v26 = vld [vmem:[%s1 + $0x18] sm:$0xff]
  %v27 = vld [vmem:[%s1 + $0x20] sm:$0xff]
  %v28 = vld [vmem:[%s1 + $0x28] sm:$0xff]
  %v29 = vld [vmem:[%s1 + $0x30] sm:$0xff]
  %v30 = vld [vmem:[%s1 + $0x38] sm:$0xff]
  %v31 = vld [vmem:[%s1 + $0x40] sm:$0xff]
  %v32 = vld [vmem:[%s1 + $0x48] sm:$0xff]
  %v33 = vld [vmem:[%s1 + $0x50] sm:$0xff]
  %v34 = vld [vmem:[%s1 + $0x58] sm:$0xff]
  %v35 = vld [vmem:[%s1 + $0x60] sm:$0xff]
  %v36 = vld [vmem:[%s1 + $0x68] sm:$0xff]
  %v37 = vld [vmem:[%s1 + $0x70] sm:$0xff]
  %v38 = vld [vmem:[%s1 + $0x78] sm:$0xff]
  %v39 = vld [vmem:[%s1 + $0x80] sm:$0xff]
  %v40 = vld [vmem:[%s1 + $0x88] sm:$0xff]
  %v41 = vld [vmem:[%s1 + $0x90] sm:$0xff]
  %v42 = vld [vmem:[%s1 + $0x98] sm:$0xff]
  %v43 = vld [vmem:[%s1 + $0xa0] sm:$0xff]
  %v44 = vld [vmem:[%s1 + $0xa8] sm:$0xff]
  %v45 = vld [vmem:[%s1 + $0xb0] sm:$0xff]
  %v46 = vld [vmem:[%s1 + $0xb8] sm:$0xff]
  %v47 = vld [vmem:[%s1 + $0xc0] sm:$0xff]
  %v48 = vld [vmem:[%s1 + $0xc8] sm:$0xff]
  %v49 = vld [vmem:[%s1 + $0xd0] sm:$0xff]
  %v50 = vld [vmem:[%s1 + $0xd8] sm:$0xff]
  %v51 = vld [vmem:[%s1 + $0xe0] sm:$0xff]
  %v52 = vld [vmem:[%s1 + $0xe8] sm:$0xff]
  %v53 = vld [vmem:[%s1 + $0xf0] sm:$0xff]
  %v54 = vld [vmem:[%s1 + $0xf8] sm:$0xff]
  %v55 = vld [vmem:[%s1 + $0x100] sm:$0xff]
  %v56 = vld [vmem:[%s1 + $0x108] sm:$0xff]
  %v57 = vld [vmem:[%s1 + $0x110] sm:$0xff]
  %v58 = vld [vmem:[%s1 + $0x118] sm:$0xff]
  %v59 = vld [vmem:[%s1 + $0x120] sm:$0xff]
  %v60 = vld [vmem:[%s1 + $0x128] sm:$0xff]
  %v61 = vld [vmem:[%s1 + $0x130] sm:$0xff]
  %v62 = vld [vmem:[%s1 + $0x138] sm:$0xff]
  %v63 = vld [vmem:[%s1 + $0x140] sm:$0xff]
  %v64 = vld [vmem:[%s1 + $0x148] sm:$0xff]
  %v65 = vld [vmem:[%s1 + $0x150] sm:$0xff]
  %v66 = vld [vmem:[%s1 + $0x158] sm:$0xff]
  %v67 = vld [vmem:[%s1 + $0x160] sm:$0xff]
  %v68 = vld [vmem:[%s1 + $0x168] sm:$0xff]
  %v69 = vld [vmem:[%s1 + $0x170] sm:$0xff]
  %v70 = vld [vmem:[%s1 + $0x178] sm:$0xff]
  %v71 = vld [vmem:[%s1 + $0x180] sm:$0xff]
  %v72 = vld [vmem:[%s1 + $0x188] sm:$0xff]
  %v73 = vld [vmem:[%s1 + $0x190] sm:$0xff]
  %v74 = vld [vmem:[%s1 + $0x198] sm:$0xff]
  %v75 = vld [vmem:[%s1 + $0x1a0] sm:$0xff]
  %v76 = vld [vmem:[%s1 + $0x1a8] sm:$0xff]
  %v77 = vld [vmem:[%s1 + $0x1b0] sm:$0xff]
  %v78 = vld [vmem:[%s1 + $0x1b8] sm:$0xff]
  %v79 = vld [vmem:[%s1 + $0x1c0] sm:$0xff]
  %v80 = vld [vmem:[%s1 + $0x1c8] sm:$0xff]
  %v81 = vld [vmem:[%s1 + $0x1d0] sm:$0xff]
  %v82 = vld [vmem:[%s1 + $0x1d8] sm:$0xff]
  %v83 = vld [vmem:[%s1 + $0x1e0] sm:$0xff]
  %v84 = vld [vmem:[%s1 + $0x1e8] sm:$0xff]
  %v85 = vld [vmem:[%s1 + $0x1f0] sm:$0xff]
  %v86 = vld [vmem:[%s1 + $0x1f8] sm:$0xff]
  %v87 = vld [vmem:[%s1 + $0x200] sm:$0xff]
  %v88 = vld [vmem:[%s1 + $0x208] sm:$0xff]
  %v89 = vld [vmem:[%s1 + $0x210] sm:$0xff]
  %v90 = vld [vmem:[%s1 + $0x218] sm:$0xff]
  %v91 = vld [vmem:[%s1 + $0x220] sm:$0xff]
  %v92 = vld [vmem:[%s1 + $0x228] sm:$0xff]
  %v93 = vld [vmem:[%s1 + $0x230] sm:$0xff]
  %v94 = vld [vmem:[%s1 + $0x238] sm:$0xff]
  %v95 = vld [vmem:[%s1 + $0x240] sm:$0xff]
  %v96 = vld [vmem:[%s1 + $0x248] sm:$0xff]
  %v97 = vld [vmem:[%s1 + $0x250] sm:$0xff]
  %v98 = vld [vmem:[%s1 + $0x258] sm:$0xff]
  %v99 = vld [vmem:[%s1 + $0x260] sm:$0xff]
  %v100 = vld [vmem:[%s1 + $0x268] sm:$0xff]
  %v101 = vld [vmem:[%s1 + $0x270] sm:$0xff]
  %v102 = vld [vmem:[%s1 + $0x278] sm:$0xff]
  %v103 = vld [vmem:[%s1 + $0x280] sm:$0xff]
  %v104 = vld [vmem:[%s1 + $0x288] sm:$0xff]
  %v105 = vld [vmem:[%s1 + $0x290] sm:$0xff]
  %v106 = vld [vmem:[%s1 + $0x298] sm:$0xff]
  %v107 = vld [vmem:[%s1 + $0x2a0] sm:$0xff]
  %v108 = vld [vmem:[%s1 + $0x2a8] sm:$0xff]
  %v109 = vld [vmem:[%s1 + $0x2b0] sm:$0xff]
  %v110 = vld [vmem:[%s1 + $0x2b8] sm:$0xff]
  %v111 = vld [vmem:[%s1 + $0x2c0] sm:$0xff]
  %v112 = vld [vmem:[%s1 + $0x2c8] sm:$0xff]
  %v113 = vld [vmem:[%s1 + $0x2d0] sm:$0xff]
  %v114 = vld [vmem:[%s1 + $0x2d8] sm:$0xff]
  %v115 = vld [vmem:[%s1 + $0x2e0] sm:$0xff]
  %v116 = vld [vmem:[%s1 + $0x2e8] sm:$0xff]
  %v117 = vld [vmem:[%s1 + $0x2f0] sm:$0xff]
  %v118 = vld [vmem:[%s1 + $0x2f8] sm:$0xff]
  %v119 = vld [vmem:[%s1 + $0x300] sm:$0xff]
  %v120 = vld [vmem:[%s1 + $0x308] sm:$0xff]
  %v121 = vld [vmem:[%s1 + $0x310] sm:$0xff]
  %v122 = vld [vmem:[%s1 + $0x318] sm:$0xff]
  %v123 = vld [vmem:[%s1 + $0x320] sm:$0xff]
  %v124 = vld [vmem:[%s1 + $0x328] sm:$0xff]
  %v125 = vld [vmem:[%s1 + $0x330] sm:$0xff]
  %v126 = vld [vmem:[%s1 + $0x338] sm:$0xff]
  %v127 = vld [vmem:[%s1 + $0x340] sm:$0xff]
  %v128 = vld [vmem:[%s1 + $0x348] sm:$0xff]
  %v129 = vld [vmem:[%s1 + $0x350] sm:$0xff]
  %v130 = vld [vmem:[%s1 + $0x358] sm:$0xff]
  %v131 = vld [vmem:[%s1 + $0x360] sm:$0xff]
  %v132 = vld [vmem:[%s1 + $0x368] sm:$0xff]
  %v133 = vld [vmem:[%s1 + $0x370] sm:$0xff]
  %v134 = vld [vmem:[%s1 + $0x378] sm:$0xff]
  %v135 = vld [vmem:[%s1 + $0x380] sm:$0xff]
  %v136 = vld [vmem:[%s1 + $0x388] sm:$0xff]
  %v137 = vld [vmem:[%s1 + $0x390] sm:$0xff]
  %v138 = vld [vmem:[%s1 + $0x398] sm:$0xff]
  %v139 = vld [vmem:[%s1 + $0x3a0] sm:$0xff]
  %v140 = vld [vmem:[%s1 + $0x3a8] sm:$0xff]
  %v141 = vld [vmem:[%s1 + $0x3b0] sm:$0xff]
  %v142 = vld [vmem:[%s1 + $0x3b8] sm:$0xff]
  %v143 = vld [vmem:[%s1 + $0x3c0] sm:$0xff]
  %v144 = vld [vmem:[%s1 + $0x3c8] sm:$0xff]
  %v145 = vld [vmem:[%s1 + $0x3d0] sm:$0xff]
  %v146 = vld [vmem:[%s1 + $0x3d8] sm:$0xff]
  %v147 = vld [vmem:[%s1 + $0x3e0] sm:$0xff]
  %v148 = vld [vmem:[%s1 + $0x3e8] sm:$0xff]
  %v149 = vld [vmem:[%s1 + $0x3f0] sm:$0xff]
  %v150 = vld [vmem:[%s1 + $0x3f8] sm:$0xff]
  %v151 = vld [vmem:[%s1 + $0x400] sm:$0xff]
  %v152 = vld [vmem:[%s1 + $0x408] sm:$0xff]
  %v153 = vld [vmem:[%s1 + $0x410] sm:$0xff]
  %v154 = vld [vmem:[%s1 + $0x418] sm:$0xff]
  %v155 = vld [vmem:[%s1 + $0x420] sm:$0xff]
  %v156 = vld [vmem:[%s1 + $0x428] sm:$0xff]
  %v157 = vld [vmem:[%s1 + $0x430] sm:$0xff]
  %v158 = vld [vmem:[%s1 + $0x438] sm:$0xff]
  %v159 = vld [vmem:[%s1 + $0x440] sm:$0xff]
  %v160 = vld [vmem:[%s1 + $0x448] sm:$0xff]
  %v161 = vld [vmem:[%s1 + $0x450] sm:$0xff]
  %v162 = vld [vmem:[%s1 + $0x458] sm:$0xff]
  %v163 = vld [vmem:[%s1 + $0x460] sm:$0xff]
  %v164 = vld [vmem:[%s1 + $0x468] sm:$0xff]
  %v165 = vld [vmem:[%s1 + $0x470] sm:$0xff]
  %v166 = vld [vmem:[%s1 + $0x478] sm:$0xff]
  %v167 = vld [vmem:[%s1 + $0x480] sm:$0xff]
  %v168 = vld [vmem:[%s1 + $0x488] sm:$0xff]
  %v169 = vld [vmem:[%s1 + $0x490] sm:$0xff]
  %v170 = vld [vmem:[%s1 + $0x498] sm:$0xff]
  %v171 = vld [vmem:[%s1 + $0x4a0] sm:$0xff]
  %v172 = vld [vmem:[%s1 + $0x4a8] sm:$0xff]
  %v173 = vld [vmem:[%s1 + $0x4b0] sm:$0xff]
  %v174 = vld [vmem:[%s1 + $0x4b8] sm:$0xff]
  %v175 = vld [vmem:[%s1 + $0x4c0] sm:$0xff]
  %v176 = vld [vmem:[%s1 + $0x4c8] sm:$0xff]
  %v177 = vld [vmem:[%s1 + $0x4d0] sm:$0xff]
  %v178 = vld [vmem:[%s1 + $0x4d8] sm:$0xff]
  %v179 = vld [vmem:[%s1 + $0x4e0] sm:$0xff]
  %v180 = vld [vmem:[%s1 + $0x4e8] sm:$0xff]
  %v181 = vld [vmem:[%s1 + $0x4f0] sm:$0xff]
  %v182 = vld [vmem:[%s1 + $0x4f8] sm:$0xff]
  %v183 = vld [vmem:[%s1 + $0x500] sm:$0xff]
  %v184 = vld [vmem:[%s1 + $0x508] sm:$0xff]
  %v185 = vld [vmem:[%s1 + $0x510] sm:$0xff]
  %v186 = vld [vmem:[%s1 + $0x518] sm:$0xff]
  %v187 = vld [vmem:[%s1 + $0x520] sm:$0xff]
  %v188 = vld [vmem:[%s1 + $0x528] sm:$0xff]
  %v189 = vld [vmem:[%s1 + $0x530] sm:$0xff]
  %v190 = vld [vmem:[%s1 + $0x538] sm:$0xff]
  %v191 = vld [vmem:[%s1 + $0x540] sm:$0xff]
  %v192 = vld [vmem:[%s1 + $0x548] sm:$0xff]
  %v193 = vld [vmem:[%s1 + $0x550] sm:$0xff]
  %v194 = vld [vmem:[%s1 + $0x558] sm:$0xff]
  %v195 = vld [vmem:[%s1 + $0x560] sm:$0xff]
  %v196 = vld [vmem:[%s1 + $0x568] sm:$0xff]
  %v197 = vld [vmem:[%s1 + $0x570] sm:$0xff]
  %v198 = vld [vmem:[%s1 + $0x578] sm:$0xff]
  %v199 = vld [vmem:[%s1 + $0x580] sm:$0xff]
  %v200 = vld [vmem:[%s1 + $0x588] sm:$0xff]
  %v201 = vld [vmem:[%s1 + $0x590] sm:$0xff]
  %v202 = vld [vmem:[%s1 + $0x598] sm:$0xff]
  %v203 = vld [vmem:[%s1 + $0x5a0] sm:$0xff]
  %v204 = vld [vmem:[%s1 + $0x5a8] sm:$0xff]
  %v205 = vld [vmem:[%s1 + $0x5b0] sm:$0xff]
  %v206 = vld [vmem:[%s1 + $0x5b8] sm:$0xff]
  %v207 = vld [vmem:[%s1 + $0x5c0] sm:$0xff]
  %v208 = vld [vmem:[%s1 + $0x5c8] sm:$0xff]
  %v209 = vld [vmem:[%s1 + $0x5d0] sm:$0xff]
  %v210 = vld [vmem:[%s1 + $0x5d8] sm:$0xff]
  %v211 = vld [vmem:[%s1 + $0x5e0] sm:$0xff]
  %v212 = vld [vmem:[%s1 + $0x5e8] sm:$0xff]
  %v213 = vld [vmem:[%s1 + $0x5f0] sm:$0xff]
  %v214 = vld [vmem:[%s1 + $0x5f8] sm:$0xff]
  %v215 = vld [vmem:[%s1 + $0x600] sm:$0xff]
  %v216 = vld [vmem:[%s1 + $0x608] sm:$0xff]
  %v217 = vld [vmem:[%s1 + $0x610] sm:$0xff]
  %v218 = vld [vmem:[%s1 + $0x618] sm:$0xff]
  %v219 = vld [vmem:[%s1 + $0x620] sm:$0xff]
  %v220 = vld [vmem:[%s1 + $0x628] sm:$0xff]
  %v221 = vld [vmem:[%s1 + $0x630] sm:$0xff]
  %v222 = vld [vmem:[%s1 + $0x638] sm:$0xff]
  %v223 = vld [vmem:[%s1 + $0x640] sm:$0xff]
  %v224 = vld [vmem:[%s1 + $0x648] sm:$0xff]
  %v225 = vld [vmem:[%s1 + $0x650] sm:$0xff]
  %v226 = vld [vmem:[%s1 + $0x658] sm:$0xff]
  %v227 = vld [vmem:[%s1 + $0x660] sm:$0xff]
  %v228 = vld [vmem:[%s1 + $0x668] sm:$0xff]
  %v229 = vld [vmem:[%s1 + $0x670] sm:$0xff]
  %v230 = vld [vmem:[%s1 + $0x678] sm:$0xff]
  %v231 = vld [vmem:[%s1 + $0x680] sm:$0xff]
  %v232 = vld [vmem:[%s1 + $0x688] sm:$0xff]
  %v233 = vld [vmem:[%s1 + $0x690] sm:$0xff]
  %v234 = vld [vmem:[%s1 + $0x698] sm:$0xff]
  %v235 = vld [vmem:[%s1 + $0x6a0] sm:$0xff]
  %v236 = vld [vmem:[%s1 + $0x6a8] sm:$0xff]
  %v237 = vld [vmem:[%s1 + $0x6b0] sm:$0xff]
  %v238 = vld [vmem:[%s1 + $0x6b8] sm:$0xff]
  %v239 = vld [vmem:[%s1 + $0x6c0] sm:$0xff]
  %v240 = vld [vmem:[%s1 + $0x6c8] sm:$0xff]
  %v241 = vld [vmem:[%s1 + $0x6d0] sm:$0xff]
  %v242 = vld [vmem:[%s1 + $0x6d8] sm:$0xff]
  %v243 = vld [vmem:[%s1 + $0x6e0] sm:$0xff]
  %v244 = vld [vmem:[%s1 + $0x6e8] sm:$0xff]
  %v245 = vld [vmem:[%s1 + $0x6f0] sm:$0xff]
  %v246 = vld [vmem:[%s1 + $0x6f8] sm:$0xff]
  %v247 = vld [vmem:[%s1 + $0x700] sm:$0xff]
  %v248 = vld [vmem:[%s1 + $0x708] sm:$0xff]
  %v249 = vld [vmem:[%s1 + $0x710] sm:$0xff]
  %v250 = vld [vmem:[%s1 + $0x718] sm:$0xff]
  %v251 = vld [vmem:[%s1 + $0x720] sm:$0xff]
  %v252 = vld [vmem:[%s1 + $0x728] sm:$0xff]
  %v253 = vld [vmem:[%s1 + $0x730] sm:$0xff]
  %v254 = vld [vmem:[%s1 + $0x738] sm:$0xff]
  %v255 = vld [vmem:[%s1 + $0x740] sm:$0xff]
  %v256 = vld [vmem:[%s1 + $0x748] sm:$0xff]
  %v257 = vld [vmem:[%s1 + $0x750] sm:$0xff]
  %v258 = vld [vmem:[%s1 + $0x758] sm:$0xff]
  %v259 = vld [vmem:[%s1 + $0x760] sm:$0xff]
  %v260 = vld [vmem:[%s1 + $0x768] sm:$0xff]
  %v261 = vld [vmem:[%s1 + $0x770] sm:$0xff]
  %v262 = vld [vmem:[%s1 + $0x778] sm:$0xff]
  %v263 = vld [vmem:[%s1 + $0x780] sm:$0xff]
  %v264 = vld [vmem:[%s1 + $0x788] sm:$0xff]
  %v265 = vld [vmem:[%s1 + $0x790] sm:$0xff]
  %v266 = vld [vmem:[%s1 + $0x798] sm:$0xff]
  %v267 = vld [vmem:[%s1 + $0x7a0] sm:$0xff]
  %v268 = vld [vmem:[%s1 + $0x7a8] sm:$0xff]
  %v269 = vld [vmem:[%s1 + $0x7b0] sm:$0xff]
  %v270 = vld [vmem:[%s1 + $0x7b8] sm:$0xff]
  %v271 = vld [vmem:[%s1 + $0x7c0] sm:$0xff]
  %v272 = vld [vmem:[%s1 + $0x7c8] sm:$0xff]
  %v273 = vld [vmem:[%s1 + $0x7d0] sm:$0xff]
  %v274 = vld [vmem:[%s1 + $0x7d8] sm:$0xff]
  %v275 = vld [vmem:[%s1 + $0x7e0] sm:$0xff]
  %v276 = vld [vmem:[%s1 + $0x7e8] sm:$0xff]
  %v277 = vld [vmem:[%s1 + $0x7f0] sm:$0xff]
  %v278 = vld [vmem:[%s1 + $0x7f8] sm:$0xff]
  %v279 = vld [vmem:[%s1 + $0x800] sm:$0xff]
  %v280 = vld [vmem:[%s1 + $0x808] sm:$0xff]
  %v281 = vld [vmem:[%s1 + $0x810] sm:$0xff]
  %v282 = vld [vmem:[%s1 + $0x818] sm:$0xff]
  %v283 = vld [vmem:[%s1 + $0x820] sm:$0xff]
  %v284 = vld [vmem:[%s1 + $0x828] sm:$0xff]
  %v285 = vld [vmem:[%s1 + $0x830] sm:$0xff]
  %v286 = vld [vmem:[%s1 + $0x838] sm:$0xff]
  %v287 = vld [vmem:[%s1 + $0x840] sm:$0xff]
  %v288 = vld [vmem:[%s1 + $0x848] sm:$0xff]
  %v289 = vld [vmem:[%s1 + $0x850] sm:$0xff]
  %v290 = vld [vmem:[%s1 + $0x858] sm:$0xff]
  %v291 = vld [vmem:[%s1 + $0x860] sm:$0xff]
  %v292 = vld [vmem:[%s1 + $0x868] sm:$0xff]
  %v293 = vld [vmem:[%s1 + $0x870] sm:$0xff]
  %v294 = vld [vmem:[%s1 + $0x878] sm:$0xff]
  %v295 = vld [vmem:[%s1 + $0x880] sm:$0xff]
  %v296 = vld [vmem:[%s1 + $0x888] sm:$0xff]
  %v297 = vld [vmem:[%s1 + $0x890] sm:$0xff]
  %v298 = vld [vmem:[%s1 + $0x898] sm:$0xff]
  %v299 = vld [vmem:[%s1 + $0x8a0] sm:$0xff]
  %v300 = vld [vmem:[%s1 + $0x8a8] sm:$0xff]
  %v301 = vld [vmem:[%s1 + $0x8b0] sm:$0xff]
  %v302 = vld [vmem:[%s1 + $0x8b8] sm:$0xff]
  %v303 = vld [vmem:[%s1 + $0x8c0] sm:$0xff]
  %v304 = vld [vmem:[%s1 + $0x8c8] sm:$0xff]
  %v305 = vld [vmem:[%s1 + $0x8d0] sm:$0xff]
  %v306 = vld [vmem:[%s1 + $0x8d8] sm:$0xff]
  %v307 = vld [vmem:[%s1 + $0x8e0] sm:$0xff]
  %v308 = vld [vmem:[%s1 + $0x8e8] sm:$0xff]
  %v309 = vld [vmem:[%s1 + $0x8f0] sm:$0xff]
  %v310 = vld [vmem:[%s1 + $0x8f8] sm:$0xff]
  %v311 = vld [vmem:[%s2] sm:$0x3]
  %v313 = vlaneseq
  %v314 = vshrl.u32 %v313, 7
  %v315 = vsub.s32 0, %v314
  %v316 = vrot.slane %v311, %v315
  %v317 = vlaneseq
  %v318 = vshrl.u32 %v317, 7
  %v319 = vsub.s32 1, %v318
  %v320 = vrot.slane %v311, %v319
  %v332 = vunpack.c.l.b16 %v14
  %v333 = vunpack.c.h.b16 %v14
  %v334 = vunpack.c.l.b16 %v15
  %v335 = vunpack.c.h.b16 %v15
  %v336 = vunpack.c.l.b16 %v16
  %v337 = vunpack.c.h.b16 %v16
  %v338 = vunpack.c.l.b16 %v17
  %v339 = vunpack.c.h.b16 %v17
  %v340 = vunpack.c.l.b16 %v18
  %v341 = vunpack.c.h.b16 %v18
  %v342 = vunpack.c.l.b16 %v19
  %v343 = vunpack.c.h.b16 %v19
  %v344 = vunpack.c.l.b16 %v20
  %v345 = vunpack.c.h.b16 %v20
  %v346 = vunpack.c.l.b16 %v21
  %v347 = vunpack.c.h.b16 %v21
  %v348 = vunpack.c.l.b16 %v22
  %v349 = vunpack.c.h.b16 %v22
  %v350 = vpack.c.b16 %v332, %v332
  %v351 = vpack.c.b16 %v333, %v333
  %v352 = vpack.c.b16 %v334, %v334
  %v353 = vpack.c.b16 %v335, %v335
  %v354 = vpack.c.b16 %v336, %v336
  %v355 = vpack.c.b16 %v337, %v337
  %v356 = vpack.c.b16 %v338, %v338
  %v357 = vpack.c.b16 %v339, %v339
  %v358 = vpack.c.b16 %v340, %v340
  %v359 = vpack.c.b16 %v341, %v341
  %v360 = vpack.c.b16 %v342, %v342
  %v361 = vpack.c.b16 %v343, %v343
  %v362 = vpack.c.b16 %v344, %v344
  %v363 = vpack.c.b16 %v345, %v345
  %v364 = vpack.c.b16 %v346, %v346
  %v365 = vpack.c.b16 %v347, %v347
  %v366 = vpack.c.b16 %v348, %v348
  %v367 = vpack.c.b16 %v349, %v349
  %v674 = vunpack.c.l.b16 %v23
  %v675 = vunpack.c.h.b16 %v23
  %v676 = vunpack.c.l.b16 %v24
  %v677 = vunpack.c.h.b16 %v24
  %v678 = vunpack.c.l.b16 %v25
  %v679 = vunpack.c.h.b16 %v25
  %v680 = vunpack.c.l.b16 %v26
  %v681 = vunpack.c.h.b16 %v26
  %v682 = vunpack.c.l.b16 %v27
  %v683 = vunpack.c.h.b16 %v27
  %v684 = vunpack.c.l.b16 %v28
  %v685 = vunpack.c.h.b16 %v28
  %v686 = vunpack.c.l.b16 %v29
  %v687 = vunpack.c.h.b16 %v29
  %v688 = vunpack.c.l.b16 %v30
  %v689 = vunpack.c.h.b16 %v30
  %v690 = vunpack.c.l.b16 %v31
  %v691 = vunpack.c.h.b16 %v31
  %v692 = vunpack.c.l.b16 %v32
  %v693 = vunpack.c.h.b16 %v32
  %v694 = vunpack.c.l.b16 %v33
  %v695 = vunpack.c.h.b16 %v33
  %v696 = vunpack.c.l.b16 %v34
  %v697 = vunpack.c.h.b16 %v34
  %v698 = vunpack.c.l.b16 %v35
  %v699 = vunpack.c.h.b16 %v35
  %v700 = vunpack.c.l.b16 %v36
  %v701 = vunpack.c.h.b16 %v36
  %v702 = vunpack.c.l.b16 %v37
  %v703 = vunpack.c.h.b16 %v37
  %v704 = vunpack.c.l.b16 %v38
  %v705 = vunpack.c.h.b16 %v38
  %v706 = vunpack.c.l.b16 %v39
  %v707 = vunpack.c.h.b16 %v39
  %v708 = vunpack.c.l.b16 %v40
  %v709 = vunpack.c.h.b16 %v40
  %v710 = vunpack.c.l.b16 %v41
  %v711 = vunpack.c.h.b16 %v41
  %v712 = vunpack.c.l.b16 %v42
  %v713 = vunpack.c.h.b16 %v42
  %v714 = vunpack.c.l.b16 %v43
  %v715 = vunpack.c.h.b16 %v43
  %v716 = vunpack.c.l.b16 %v44
  %v717 = vunpack.c.h.b16 %v44
  %v718 = vunpack.c.l.b16 %v45
  %v719 = vunpack.c.h.b16 %v45
  %v720 = vunpack.c.l.b16 %v46
  %v721 = vunpack.c.h.b16 %v46
  %v722 = vunpack.c.l.b16 %v47
  %v723 = vunpack.c.h.b16 %v47
  %v724 = vunpack.c.l.b16 %v48
  %v725 = vunpack.c.h.b16 %v48
  %v726 = vunpack.c.l.b16 %v49
  %v727 = vunpack.c.h.b16 %v49
  %v728 = vunpack.c.l.b16 %v50
  %v729 = vunpack.c.h.b16 %v50
  %v730 = vunpack.c.l.b16 %v51
  %v731 = vunpack.c.h.b16 %v51
  %v732 = vunpack.c.l.b16 %v52
  %v733 = vunpack.c.h.b16 %v52
  %v734 = vunpack.c.l.b16 %v53
  %v735 = vunpack.c.h.b16 %v53
  %v736 = vunpack.c.l.b16 %v54
  %v737 = vunpack.c.h.b16 %v54
  %v738 = vunpack.c.l.b16 %v55
  %v739 = vunpack.c.h.b16 %v55
  %v740 = vunpack.c.l.b16 %v56
  %v741 = vunpack.c.h.b16 %v56
  %v742 = vunpack.c.l.b16 %v57
  %v743 = vunpack.c.h.b16 %v57
  %v744 = vunpack.c.l.b16 %v58
  %v745 = vunpack.c.h.b16 %v58
  %v746 = vunpack.c.l.b16 %v59
  %v747 = vunpack.c.h.b16 %v59
  %v748 = vunpack.c.l.b16 %v60
  %v749 = vunpack.c.h.b16 %v60
  %v750 = vunpack.c.l.b16 %v61
  %v751 = vunpack.c.h.b16 %v61
  %v752 = vunpack.c.l.b16 %v62
  %v753 = vunpack.c.h.b16 %v62
  %v754 = vunpack.c.l.b16 %v63
  %v755 = vunpack.c.h.b16 %v63
  %v756 = vunpack.c.l.b16 %v64
  %v757 = vunpack.c.h.b16 %v64
  %v758 = vunpack.c.l.b16 %v65
  %v759 = vunpack.c.h.b16 %v65
  %v760 = vunpack.c.l.b16 %v66
  %v761 = vunpack.c.h.b16 %v66
  %v762 = vunpack.c.l.b16 %v67
  %v763 = vunpack.c.h.b16 %v67
  %v764 = vunpack.c.l.b16 %v68
  %v765 = vunpack.c.h.b16 %v68
  %v766 = vunpack.c.l.b16 %v69
  %v767 = vunpack.c.h.b16 %v69
  %v768 = vunpack.c.l.b16 %v70
  %v769 = vunpack.c.h.b16 %v70
  %v770 = vunpack.c.l.b16 %v71
  %v771 = vunpack.c.h.b16 %v71
  %v772 = vunpack.c.l.b16 %v72
  %v773 = vunpack.c.h.b16 %v72
  %v774 = vunpack.c.l.b16 %v73
  %v775 = vunpack.c.h.b16 %v73
  %v776 = vunpack.c.l.b16 %v74
  %v777 = vunpack.c.h.b16 %v74
  %v778 = vunpack.c.l.b16 %v75
  %v779 = vunpack.c.h.b16 %v75
  %v780 = vunpack.c.l.b16 %v76
  %v781 = vunpack.c.h.b16 %v76
  %v782 = vunpack.c.l.b16 %v77
  %v783 = vunpack.c.h.b16 %v77
  %v784 = vunpack.c.l.b16 %v78
  %v785 = vunpack.c.h.b16 %v78
  %v786 = vunpack.c.l.b16 %v79
  %v787 = vunpack.c.h.b16 %v79
  %v788 = vunpack.c.l.b16 %v80
  %v789 = vunpack.c.h.b16 %v80
  %v790 = vunpack.c.l.b16 %v81
  %v791 = vunpack.c.h.b16 %v81
  %v792 = vunpack.c.l.b16 %v82
  %v793 = vunpack.c.h.b16 %v82
  %v794 = vunpack.c.l.b16 %v83
  %v795 = vunpack.c.h.b16 %v83
  %v796 = vunpack.c.l.b16 %v84
  %v797 = vunpack.c.h.b16 %v84
  %v798 = vunpack.c.l.b16 %v85
  %v799 = vunpack.c.h.b16 %v85
  %v800 = vunpack.c.l.b16 %v86
  %v801 = vunpack.c.h.b16 %v86
  %v802 = vunpack.c.l.b16 %v87
  %v803 = vunpack.c.h.b16 %v87
  %v804 = vunpack.c.l.b16 %v88
  %v805 = vunpack.c.h.b16 %v88
  %v806 = vunpack.c.l.b16 %v89
  %v807 = vunpack.c.h.b16 %v89
  %v808 = vunpack.c.l.b16 %v90
  %v809 = vunpack.c.h.b16 %v90
  %v810 = vunpack.c.l.b16 %v91
  %v811 = vunpack.c.h.b16 %v91
  %v812 = vunpack.c.l.b16 %v92
  %v813 = vunpack.c.h.b16 %v92
  %v814 = vunpack.c.l.b16 %v93
  %v815 = vunpack.c.h.b16 %v93
  %v816 = vunpack.c.l.b16 %v94
  %v817 = vunpack.c.h.b16 %v94
  %v818 = vunpack.c.l.b16 %v95
  %v819 = vunpack.c.h.b16 %v95
  %v820 = vunpack.c.l.b16 %v96
  %v821 = vunpack.c.h.b16 %v96
  %v822 = vunpack.c.l.b16 %v97
  %v823 = vunpack.c.h.b16 %v97
  %v824 = vunpack.c.l.b16 %v98
  %v825 = vunpack.c.h.b16 %v98
  %v826 = vunpack.c.l.b16 %v99
  %v827 = vunpack.c.h.b16 %v99
  %v828 = vunpack.c.l.b16 %v100
  %v829 = vunpack.c.h.b16 %v100
  %v830 = vunpack.c.l.b16 %v101
  %v831 = vunpack.c.h.b16 %v101
  %v832 = vunpack.c.l.b16 %v102
  %v833 = vunpack.c.h.b16 %v102
  %v834 = vunpack.c.l.b16 %v103
  %v835 = vunpack.c.h.b16 %v103
  %v836 = vunpack.c.l.b16 %v104
  %v837 = vunpack.c.h.b16 %v104
  %v838 = vunpack.c.l.b16 %v105
  %v839 = vunpack.c.h.b16 %v105
  %v840 = vunpack.c.l.b16 %v106
  %v841 = vunpack.c.h.b16 %v106
  %v842 = vunpack.c.l.b16 %v107
  %v843 = vunpack.c.h.b16 %v107
  %v844 = vunpack.c.l.b16 %v108
  %v845 = vunpack.c.h.b16 %v108
  %v846 = vunpack.c.l.b16 %v109
  %v847 = vunpack.c.h.b16 %v109
  %v848 = vunpack.c.l.b16 %v110
  %v849 = vunpack.c.h.b16 %v110
  %v850 = vunpack.c.l.b16 %v111
  %v851 = vunpack.c.h.b16 %v111
  %v852 = vunpack.c.l.b16 %v112
  %v853 = vunpack.c.h.b16 %v112
  %v854 = vunpack.c.l.b16 %v113
  %v855 = vunpack.c.h.b16 %v113
  %v856 = vunpack.c.l.b16 %v114
  %v857 = vunpack.c.h.b16 %v114
  %v858 = vunpack.c.l.b16 %v115
  %v859 = vunpack.c.h.b16 %v115
  %v860 = vunpack.c.l.b16 %v116
  %v861 = vunpack.c.h.b16 %v116
  %v862 = vunpack.c.l.b16 %v117
  %v863 = vunpack.c.h.b16 %v117
  %v864 = vunpack.c.l.b16 %v118
  %v865 = vunpack.c.h.b16 %v118
  %v866 = vunpack.c.l.b16 %v119
  %v867 = vunpack.c.h.b16 %v119
  %v868 = vunpack.c.l.b16 %v120
  %v869 = vunpack.c.h.b16 %v120
  %v870 = vunpack.c.l.b16 %v121
  %v871 = vunpack.c.h.b16 %v121
  %v872 = vunpack.c.l.b16 %v122
  %v873 = vunpack.c.h.b16 %v122
  %v874 = vunpack.c.l.b16 %v123
  %v875 = vunpack.c.h.b16 %v123
  %v876 = vunpack.c.l.b16 %v124
  %v877 = vunpack.c.h.b16 %v124
  %v878 = vunpack.c.l.b16 %v125
  %v879 = vunpack.c.h.b16 %v125
  %v880 = vunpack.c.l.b16 %v126
  %v881 = vunpack.c.h.b16 %v126
  %v882 = vunpack.c.l.b16 %v127
  %v883 = vunpack.c.h.b16 %v127
  %v884 = vunpack.c.l.b16 %v128
  %v885 = vunpack.c.h.b16 %v128
  %v886 = vunpack.c.l.b16 %v129
  %v887 = vunpack.c.h.b16 %v129
  %v888 = vunpack.c.l.b16 %v130
  %v889 = vunpack.c.h.b16 %v130
  %v890 = vunpack.c.l.b16 %v131
  %v891 = vunpack.c.h.b16 %v131
  %v892 = vunpack.c.l.b16 %v132
  %v893 = vunpack.c.h.b16 %v132
  %v894 = vunpack.c.l.b16 %v133
  %v895 = vunpack.c.h.b16 %v133
  %v896 = vunpack.c.l.b16 %v134
  %v897 = vunpack.c.h.b16 %v134
  %v898 = vunpack.c.l.b16 %v135
  %v899 = vunpack.c.h.b16 %v135
  %v900 = vunpack.c.l.b16 %v136
  %v901 = vunpack.c.h.b16 %v136
  %v902 = vunpack.c.l.b16 %v137
  %v903 = vunpack.c.h.b16 %v137
  %v904 = vunpack.c.l.b16 %v138
  %v905 = vunpack.c.h.b16 %v138
  %v906 = vunpack.c.l.b16 %v139
  %v907 = vunpack.c.h.b16 %v139
  %v908 = vunpack.c.l.b16 %v140
  %v909 = vunpack.c.h.b16 %v140
  %v910 = vunpack.c.l.b16 %v141
  %v911 = vunpack.c.h.b16 %v141
  %v912 = vunpack.c.l.b16 %v142
  %v913 = vunpack.c.h.b16 %v142
  %v914 = vunpack.c.l.b16 %v143
  %v915 = vunpack.c.h.b16 %v143
  %v916 = vunpack.c.l.b16 %v144
  %v917 = vunpack.c.h.b16 %v144
  %v918 = vunpack.c.l.b16 %v145
  %v919 = vunpack.c.h.b16 %v145
  %v920 = vunpack.c.l.b16 %v146
  %v921 = vunpack.c.h.b16 %v146
  %v922 = vunpack.c.l.b16 %v147
  %v923 = vunpack.c.h.b16 %v147
  %v924 = vunpack.c.l.b16 %v148
  %v925 = vunpack.c.h.b16 %v148
  %v926 = vunpack.c.l.b16 %v149
  %v927 = vunpack.c.h.b16 %v149
  %v928 = vunpack.c.l.b16 %v150
  %v929 = vunpack.c.h.b16 %v150
  %v930 = vunpack.c.l.b16 %v151
  %v931 = vunpack.c.h.b16 %v151
  %v932 = vunpack.c.l.b16 %v152
  %v933 = vunpack.c.h.b16 %v152
  %v934 = vunpack.c.l.b16 %v153
  %v935 = vunpack.c.h.b16 %v153
  %v936 = vunpack.c.l.b16 %v154
  %v937 = vunpack.c.h.b16 %v154
  %v938 = vunpack.c.l.b16 %v155
  %v939 = vunpack.c.h.b16 %v155
  %v940 = vunpack.c.l.b16 %v156
  %v941 = vunpack.c.h.b16 %v156
  %v942 = vunpack.c.l.b16 %v157
  %v943 = vunpack.c.h.b16 %v157
  %v944 = vunpack.c.l.b16 %v158
  %v945 = vunpack.c.h.b16 %v158
  %v946 = vunpack.c.l.b16 %v159
  %v947 = vunpack.c.h.b16 %v159
  %v948 = vunpack.c.l.b16 %v160
  %v949 = vunpack.c.h.b16 %v160
  %v950 = vunpack.c.l.b16 %v161
  %v951 = vunpack.c.h.b16 %v161
  %v952 = vunpack.c.l.b16 %v162
  %v953 = vunpack.c.h.b16 %v162
  %v954 = vunpack.c.l.b16 %v163
  %v955 = vunpack.c.h.b16 %v163
  %v956 = vunpack.c.l.b16 %v164
  %v957 = vunpack.c.h.b16 %v164
  %v958 = vunpack.c.l.b16 %v165
  %v959 = vunpack.c.h.b16 %v165
  %v960 = vunpack.c.l.b16 %v166
  %v961 = vunpack.c.h.b16 %v166
  %v962 = vunpack.c.l.b16 %v167
  %v963 = vunpack.c.h.b16 %v167
  %v964 = vunpack.c.l.b16 %v168
  %v965 = vunpack.c.h.b16 %v168
  %v966 = vunpack.c.l.b16 %v169
  %v967 = vunpack.c.h.b16 %v169
  %v968 = vunpack.c.l.b16 %v170
  %v969 = vunpack.c.h.b16 %v170
  %v970 = vunpack.c.l.b16 %v171
  %v971 = vunpack.c.h.b16 %v171
  %v972 = vunpack.c.l.b16 %v172
  %v973 = vunpack.c.h.b16 %v172
  %v974 = vunpack.c.l.b16 %v173
  %v975 = vunpack.c.h.b16 %v173
  %v976 = vunpack.c.l.b16 %v174
  %v977 = vunpack.c.h.b16 %v174
  %v978 = vunpack.c.l.b16 %v175
  %v979 = vunpack.c.h.b16 %v175
  %v980 = vunpack.c.l.b16 %v176
  %v981 = vunpack.c.h.b16 %v176
  %v982 = vunpack.c.l.b16 %v177
  %v983 = vunpack.c.h.b16 %v177
  %v984 = vunpack.c.l.b16 %v178
  %v985 = vunpack.c.h.b16 %v178
  %v986 = vunpack.c.l.b16 %v179
  %v987 = vunpack.c.h.b16 %v179
  %v988 = vunpack.c.l.b16 %v180
  %v989 = vunpack.c.h.b16 %v180
  %v990 = vunpack.c.l.b16 %v181
  %v991 = vunpack.c.h.b16 %v181
  %v992 = vunpack.c.l.b16 %v182
  %v993 = vunpack.c.h.b16 %v182
  %v994 = vunpack.c.l.b16 %v183
  %v995 = vunpack.c.h.b16 %v183
  %v996 = vunpack.c.l.b16 %v184
  %v997 = vunpack.c.h.b16 %v184
  %v998 = vunpack.c.l.b16 %v185
  %v999 = vunpack.c.h.b16 %v185
  %v1000 = vunpack.c.l.b16 %v186
  %v1001 = vunpack.c.h.b16 %v186
  %v1002 = vunpack.c.l.b16 %v187
  %v1003 = vunpack.c.h.b16 %v187
  %v1004 = vunpack.c.l.b16 %v188
  %v1005 = vunpack.c.h.b16 %v188
  %v1006 = vunpack.c.l.b16 %v189
  %v1007 = vunpack.c.h.b16 %v189
  %v1008 = vunpack.c.l.b16 %v190
  %v1009 = vunpack.c.h.b16 %v190
  %v1010 = vunpack.c.l.b16 %v191
  %v1011 = vunpack.c.h.b16 %v191
  %v1012 = vunpack.c.l.b16 %v192
  %v1013 = vunpack.c.h.b16 %v192
  %v1014 = vunpack.c.l.b16 %v193
  %v1015 = vunpack.c.h.b16 %v193
  %v1016 = vunpack.c.l.b16 %v194
  %v1017 = vunpack.c.h.b16 %v194
  %v1018 = vunpack.c.l.b16 %v195
  %v1019 = vunpack.c.h.b16 %v195
  %v1020 = vunpack.c.l.b16 %v196
  %v1021 = vunpack.c.h.b16 %v196
  %v1022 = vunpack.c.l.b16 %v197
  %v1023 = vunpack.c.h.b16 %v197
  %v1024 = vunpack.c.l.b16 %v198
  %v1025 = vunpack.c.h.b16 %v198
  %v1026 = vunpack.c.l.b16 %v199
  %v1027 = vunpack.c.h.b16 %v199
  %v1028 = vunpack.c.l.b16 %v200
  %v1029 = vunpack.c.h.b16 %v200
  %v1030 = vunpack.c.l.b16 %v201
  %v1031 = vunpack.c.h.b16 %v201
  %v1032 = vunpack.c.l.b16 %v202
  %v1033 = vunpack.c.h.b16 %v202
  %v1034 = vunpack.c.l.b16 %v203
  %v1035 = vunpack.c.h.b16 %v203
  %v1036 = vunpack.c.l.b16 %v204
  %v1037 = vunpack.c.h.b16 %v204
  %v1038 = vunpack.c.l.b16 %v205
  %v1039 = vunpack.c.h.b16 %v205
  %v1040 = vunpack.c.l.b16 %v206
  %v1041 = vunpack.c.h.b16 %v206
  %v1042 = vunpack.c.l.b16 %v207
  %v1043 = vunpack.c.h.b16 %v207
  %v1044 = vunpack.c.l.b16 %v208
  %v1045 = vunpack.c.h.b16 %v208
  %v1046 = vunpack.c.l.b16 %v209
  %v1047 = vunpack.c.h.b16 %v209
  %v1048 = vunpack.c.l.b16 %v210
  %v1049 = vunpack.c.h.b16 %v210
  %v1050 = vunpack.c.l.b16 %v211
  %v1051 = vunpack.c.h.b16 %v211
  %v1052 = vunpack.c.l.b16 %v212
  %v1053 = vunpack.c.h.b16 %v212
  %v1054 = vunpack.c.l.b16 %v213
  %v1055 = vunpack.c.h.b16 %v213
  %v1056 = vunpack.c.l.b16 %v214
  %v1057 = vunpack.c.h.b16 %v214
  %v1058 = vunpack.c.l.b16 %v215
  %v1059 = vunpack.c.h.b16 %v215
  %v1060 = vunpack.c.l.b16 %v216
  %v1061 = vunpack.c.h.b16 %v216
  %v1062 = vunpack.c.l.b16 %v217
  %v1063 = vunpack.c.h.b16 %v217
  %v1064 = vunpack.c.l.b16 %v218
  %v1065 = vunpack.c.h.b16 %v218
  %v1066 = vunpack.c.l.b16 %v219
  %v1067 = vunpack.c.h.b16 %v219
  %v1068 = vunpack.c.l.b16 %v220
  %v1069 = vunpack.c.h.b16 %v220
  %v1070 = vunpack.c.l.b16 %v221
  %v1071 = vunpack.c.h.b16 %v221
  %v1072 = vunpack.c.l.b16 %v222
  %v1073 = vunpack.c.h.b16 %v222
  %v1074 = vunpack.c.l.b16 %v223
  %v1075 = vunpack.c.h.b16 %v223
  %v1076 = vunpack.c.l.b16 %v224
  %v1077 = vunpack.c.h.b16 %v224
  %v1078 = vunpack.c.l.b16 %v225
  %v1079 = vunpack.c.h.b16 %v225
  %v1080 = vunpack.c.l.b16 %v226
  %v1081 = vunpack.c.h.b16 %v226
  %v1082 = vunpack.c.l.b16 %v227
  %v1083 = vunpack.c.h.b16 %v227
  %v1084 = vunpack.c.l.b16 %v228
  %v1085 = vunpack.c.h.b16 %v228
  %v1086 = vunpack.c.l.b16 %v229
  %v1087 = vunpack.c.h.b16 %v229
  %v1088 = vunpack.c.l.b16 %v230
  %v1089 = vunpack.c.h.b16 %v230
  %v1090 = vunpack.c.l.b16 %v231
  %v1091 = vunpack.c.h.b16 %v231
  %v1092 = vunpack.c.l.b16 %v232
  %v1093 = vunpack.c.h.b16 %v232
  %v1094 = vunpack.c.l.b16 %v233
  %v1095 = vunpack.c.h.b16 %v233
  %v1096 = vunpack.c.l.b16 %v234
  %v1097 = vunpack.c.h.b16 %v234
  %v1098 = vunpack.c.l.b16 %v235
  %v1099 = vunpack.c.h.b16 %v235
  %v1100 = vunpack.c.l.b16 %v236
  %v1101 = vunpack.c.h.b16 %v236
  %v1102 = vunpack.c.l.b16 %v237
  %v1103 = vunpack.c.h.b16 %v237
  %v1104 = vunpack.c.l.b16 %v238
  %v1105 = vunpack.c.h.b16 %v238
  %v1106 = vunpack.c.l.b16 %v239
  %v1107 = vunpack.c.h.b16 %v239
  %v1108 = vunpack.c.l.b16 %v240
  %v1109 = vunpack.c.h.b16 %v240
  %v1110 = vunpack.c.l.b16 %v241
  %v1111 = vunpack.c.h.b16 %v241
  %v1112 = vunpack.c.l.b16 %v242
  %v1113 = vunpack.c.h.b16 %v242
  %v1114 = vunpack.c.l.b16 %v243
  %v1115 = vunpack.c.h.b16 %v243
  %v1116 = vunpack.c.l.b16 %v244
  %v1117 = vunpack.c.h.b16 %v244
  %v1118 = vunpack.c.l.b16 %v245
  %v1119 = vunpack.c.h.b16 %v245
  %v1120 = vunpack.c.l.b16 %v246
  %v1121 = vunpack.c.h.b16 %v246
  %v1122 = vunpack.c.l.b16 %v247
  %v1123 = vunpack.c.h.b16 %v247
  %v1124 = vunpack.c.l.b16 %v248
  %v1125 = vunpack.c.h.b16 %v248
  %v1126 = vunpack.c.l.b16 %v249
  %v1127 = vunpack.c.h.b16 %v249
  %v1128 = vunpack.c.l.b16 %v250
  %v1129 = vunpack.c.h.b16 %v250
  %v1130 = vunpack.c.l.b16 %v251
  %v1131 = vunpack.c.h.b16 %v251
  %v1132 = vunpack.c.l.b16 %v252
  %v1133 = vunpack.c.h.b16 %v252
  %v1134 = vunpack.c.l.b16 %v253
  %v1135 = vunpack.c.h.b16 %v253
  %v1136 = vunpack.c.l.b16 %v254
  %v1137 = vunpack.c.h.b16 %v254
  %v1138 = vunpack.c.l.b16 %v255
  %v1139 = vunpack.c.h.b16 %v255
  %v1140 = vunpack.c.l.b16 %v256
  %v1141 = vunpack.c.h.b16 %v256
  %v1142 = vunpack.c.l.b16 %v257
  %v1143 = vunpack.c.h.b16 %v257
  %v1144 = vunpack.c.l.b16 %v258
  %v1145 = vunpack.c.h.b16 %v258
  %v1146 = vunpack.c.l.b16 %v259
  %v1147 = vunpack.c.h.b16 %v259
  %v1148 = vunpack.c.l.b16 %v260
  %v1149 = vunpack.c.h.b16 %v260
  %v1150 = vunpack.c.l.b16 %v261
  %v1151 = vunpack.c.h.b16 %v261
  %v1152 = vunpack.c.l.b16 %v262
  %v1153 = vunpack.c.h.b16 %v262
  %v1154 = vunpack.c.l.b16 %v263
  %v1155 = vunpack.c.h.b16 %v263
  %v1156 = vunpack.c.l.b16 %v264
  %v1157 = vunpack.c.h.b16 %v264
  %v1158 = vunpack.c.l.b16 %v265
  %v1159 = vunpack.c.h.b16 %v265
  %v1160 = vunpack.c.l.b16 %v266
  %v1161 = vunpack.c.h.b16 %v266
  %v1162 = vunpack.c.l.b16 %v267
  %v1163 = vunpack.c.h.b16 %v267
  %v1164 = vunpack.c.l.b16 %v268
  %v1165 = vunpack.c.h.b16 %v268
  %v1166 = vunpack.c.l.b16 %v269
  %v1167 = vunpack.c.h.b16 %v269
  %v1168 = vunpack.c.l.b16 %v270
  %v1169 = vunpack.c.h.b16 %v270
  %v1170 = vunpack.c.l.b16 %v271
  %v1171 = vunpack.c.h.b16 %v271
  %v1172 = vunpack.c.l.b16 %v272
  %v1173 = vunpack.c.h.b16 %v272
  %v1174 = vunpack.c.l.b16 %v273
  %v1175 = vunpack.c.h.b16 %v273
  %v1176 = vunpack.c.l.b16 %v274
  %v1177 = vunpack.c.h.b16 %v274
  %v1178 = vunpack.c.l.b16 %v275
  %v1179 = vunpack.c.h.b16 %v275
  %v1180 = vunpack.c.l.b16 %v276
  %v1181 = vunpack.c.h.b16 %v276
  %v1182 = vunpack.c.l.b16 %v277
  %v1183 = vunpack.c.h.b16 %v277
  %v1184 = vunpack.c.l.b16 %v278
  %v1185 = vunpack.c.h.b16 %v278
  %v1186 = vunpack.c.l.b16 %v279
  %v1187 = vunpack.c.h.b16 %v279
  %v1188 = vunpack.c.l.b16 %v280
  %v1189 = vunpack.c.h.b16 %v280
  %v1190 = vunpack.c.l.b16 %v281
  %v1191 = vunpack.c.h.b16 %v281
  %v1192 = vunpack.c.l.b16 %v282
  %v1193 = vunpack.c.h.b16 %v282
  %v1194 = vunpack.c.l.b16 %v283
  %v1195 = vunpack.c.h.b16 %v283
  %v1196 = vunpack.c.l.b16 %v284
  %v1197 = vunpack.c.h.b16 %v284
  %v1198 = vunpack.c.l.b16 %v285
  %v1199 = vunpack.c.h.b16 %v285
  %v1200 = vunpack.c.l.b16 %v286
  %v1201 = vunpack.c.h.b16 %v286
  %v1202 = vunpack.c.l.b16 %v287
  %v1203 = vunpack.c.h.b16 %v287
  %v1204 = vunpack.c.l.b16 %v288
  %v1205 = vunpack.c.h.b16 %v288
  %v1206 = vunpack.c.l.b16 %v289
  %v1207 = vunpack.c.h.b16 %v289
  %v1208 = vunpack.c.l.b16 %v290
  %v1209 = vunpack.c.h.b16 %v290
  %v1210 = vunpack.c.l.b16 %v291
  %v1211 = vunpack.c.h.b16 %v291
  %v1212 = vunpack.c.l.b16 %v292
  %v1213 = vunpack.c.h.b16 %v292
  %v1214 = vunpack.c.l.b16 %v293
  %v1215 = vunpack.c.h.b16 %v293
  %v1216 = vunpack.c.l.b16 %v294
  %v1217 = vunpack.c.h.b16 %v294
  %v1218 = vunpack.c.l.b16 %v295
  %v1219 = vunpack.c.h.b16 %v295
  %v1220 = vunpack.c.l.b16 %v296
  %v1221 = vunpack.c.h.b16 %v296
  %v1222 = vunpack.c.l.b16 %v297
  %v1223 = vunpack.c.h.b16 %v297
  %v1224 = vunpack.c.l.b16 %v298
  %v1225 = vunpack.c.h.b16 %v298
  %v1226 = vunpack.c.l.b16 %v299
  %v1227 = vunpack.c.h.b16 %v299
  %v1228 = vunpack.c.l.b16 %v300
  %v1229 = vunpack.c.h.b16 %v300
  %v1230 = vunpack.c.l.b16 %v301
  %v1231 = vunpack.c.h.b16 %v301
  %v1232 = vunpack.c.l.b16 %v302
  %v1233 = vunpack.c.h.b16 %v302
  %v1234 = vunpack.c.l.b16 %v303
  %v1235 = vunpack.c.h.b16 %v303
  %v1236 = vunpack.c.l.b16 %v304
  %v1237 = vunpack.c.h.b16 %v304
  %v1238 = vunpack.c.l.b16 %v305
  %v1239 = vunpack.c.h.b16 %v305
  %v1240 = vunpack.c.l.b16 %v306
  %v1241 = vunpack.c.h.b16 %v306
  %v1242 = vunpack.c.l.b16 %v307
  %v1243 = vunpack.c.h.b16 %v307
  %v1244 = vunpack.c.l.b16 %v308
  %v1245 = vunpack.c.h.b16 %v308
  %v1246 = vunpack.c.l.b16 %v309
  %v1247 = vunpack.c.h.b16 %v309
  %v1248 = vunpack.c.l.b16 %v310
  %v1249 = vunpack.c.h.b16 %v310
  %v1250 = vpack.c.b16 %v676, %v674
  %v1251 = vpack.c.b16 %v677, %v675
  %v1252 = vpack.c.b16 %v680, %v678
  %v1253 = vpack.c.b16 %v681, %v679
  %v1254 = vpack.c.b16 %v684, %v682
  %v1255 = vpack.c.b16 %v685, %v683
  %v1256 = vpack.c.b16 %v688, %v686
  %v1257 = vpack.c.b16 %v689, %v687
  %v1258 = vpack.c.b16 %v692, %v690
  %v1259 = vpack.c.b16 %v693, %v691
  %v1260 = vpack.c.b16 %v696, %v694
  %v1261 = vpack.c.b16 %v697, %v695
  %v1262 = vpack.c.b16 %v700, %v698
  %v1263 = vpack.c.b16 %v701, %v699
  %v1264 = vpack.c.b16 %v704, %v702
  %v1265 = vpack.c.b16 %v705, %v703
  %v1266 = vpack.c.b16 %v708, %v706
  %v1267 = vpack.c.b16 %v709, %v707
  %v1268 = vpack.c.b16 %v712, %v710
  %v1269 = vpack.c.b16 %v713, %v711
  %v1270 = vpack.c.b16 %v716, %v714
  %v1271 = vpack.c.b16 %v717, %v715
  %v1272 = vpack.c.b16 %v720, %v718
  %v1273 = vpack.c.b16 %v721, %v719
  %v1274 = vpack.c.b16 %v724, %v722
  %v1275 = vpack.c.b16 %v725, %v723
  %v1276 = vpack.c.b16 %v728, %v726
  %v1277 = vpack.c.b16 %v729, %v727
  %v1278 = vpack.c.b16 %v732, %v730
  %v1279 = vpack.c.b16 %v733, %v731
  %v1280 = vpack.c.b16 %v736, %v734
  %v1281 = vpack.c.b16 %v737, %v735
  %v1282 = vpack.c.b16 %v740, %v738
  %v1283 = vpack.c.b16 %v741, %v739
  %v1284 = vpack.c.b16 %v744, %v742
  %v1285 = vpack.c.b16 %v745, %v743
  %v1286 = vpack.c.b16 %v748, %v746
  %v1287 = vpack.c.b16 %v749, %v747
  %v1288 = vpack.c.b16 %v752, %v750
  %v1289 = vpack.c.b16 %v753, %v751
  %v1290 = vpack.c.b16 %v756, %v754
  %v1291 = vpack.c.b16 %v757, %v755
  %v1292 = vpack.c.b16 %v760, %v758
  %v1293 = vpack.c.b16 %v761, %v759
  %v1294 = vpack.c.b16 %v764, %v762
  %v1295 = vpack.c.b16 %v765, %v763
  %v1296 = vpack.c.b16 %v768, %v766
  %v1297 = vpack.c.b16 %v769, %v767
  %v1298 = vpack.c.b16 %v772, %v770
  %v1299 = vpack.c.b16 %v773, %v771
  %v1300 = vpack.c.b16 %v776, %v774
  %v1301 = vpack.c.b16 %v777, %v775
  %v1302 = vpack.c.b16 %v780, %v778
  %v1303 = vpack.c.b16 %v781, %v779
  %v1304 = vpack.c.b16 %v784, %v782
  %v1305 = vpack.c.b16 %v785, %v783
  %v1306 = vpack.c.b16 %v788, %v786
  %v1307 = vpack.c.b16 %v789, %v787
  %v1308 = vpack.c.b16 %v792, %v790
  %v1309 = vpack.c.b16 %v793, %v791
  %v1310 = vpack.c.b16 %v796, %v794
  %v1311 = vpack.c.b16 %v797, %v795
  %v1312 = vpack.c.b16 %v800, %v798
  %v1313 = vpack.c.b16 %v801, %v799
  %v1314 = vpack.c.b16 %v804, %v802
  %v1315 = vpack.c.b16 %v805, %v803
  %v1316 = vpack.c.b16 %v808, %v806
  %v1317 = vpack.c.b16 %v809, %v807
  %v1318 = vpack.c.b16 %v812, %v810
  %v1319 = vpack.c.b16 %v813, %v811
  %v1320 = vpack.c.b16 %v816, %v814
  %v1321 = vpack.c.b16 %v817, %v815
  %v1322 = vpack.c.b16 %v820, %v818
  %v1323 = vpack.c.b16 %v821, %v819
  %v1324 = vpack.c.b16 %v824, %v822
  %v1325 = vpack.c.b16 %v825, %v823
  %v1326 = vpack.c.b16 %v828, %v826
  %v1327 = vpack.c.b16 %v829, %v827
  %v1328 = vpack.c.b16 %v832, %v830
  %v1329 = vpack.c.b16 %v833, %v831
  %v1330 = vpack.c.b16 %v836, %v834
  %v1331 = vpack.c.b16 %v837, %v835
  %v1332 = vpack.c.b16 %v840, %v838
  %v1333 = vpack.c.b16 %v841, %v839
  %v1334 = vpack.c.b16 %v844, %v842
  %v1335 = vpack.c.b16 %v845, %v843
  %v1336 = vpack.c.b16 %v848, %v846
  %v1337 = vpack.c.b16 %v849, %v847
  %v1338 = vpack.c.b16 %v852, %v850
  %v1339 = vpack.c.b16 %v853, %v851
  %v1340 = vpack.c.b16 %v856, %v854
  %v1341 = vpack.c.b16 %v857, %v855
  %v1342 = vpack.c.b16 %v860, %v858
  %v1343 = vpack.c.b16 %v861, %v859
  %v1344 = vpack.c.b16 %v864, %v862
  %v1345 = vpack.c.b16 %v865, %v863
  %v1346 = vpack.c.b16 %v868, %v866
  %v1347 = vpack.c.b16 %v869, %v867
  %v1348 = vpack.c.b16 %v872, %v870
  %v1349 = vpack.c.b16 %v873, %v871
  %v1350 = vpack.c.b16 %v876, %v874
  %v1351 = vpack.c.b16 %v877, %v875
  %v1352 = vpack.c.b16 %v880, %v878
  %v1353 = vpack.c.b16 %v881, %v879
  %v1354 = vpack.c.b16 %v884, %v882
  %v1355 = vpack.c.b16 %v885, %v883
  %v1356 = vpack.c.b16 %v888, %v886
  %v1357 = vpack.c.b16 %v889, %v887
  %v1358 = vpack.c.b16 %v892, %v890
  %v1359 = vpack.c.b16 %v893, %v891
  %v1360 = vpack.c.b16 %v896, %v894
  %v1361 = vpack.c.b16 %v897, %v895
  %v1362 = vpack.c.b16 %v900, %v898
  %v1363 = vpack.c.b16 %v901, %v899
  %v1364 = vpack.c.b16 %v904, %v902
  %v1365 = vpack.c.b16 %v905, %v903
  %v1366 = vpack.c.b16 %v908, %v906
  %v1367 = vpack.c.b16 %v909, %v907
  %v1368 = vpack.c.b16 %v912, %v910
  %v1369 = vpack.c.b16 %v913, %v911
  %v1370 = vpack.c.b16 %v916, %v914
  %v1371 = vpack.c.b16 %v917, %v915
  %v1372 = vpack.c.b16 %v920, %v918
  %v1373 = vpack.c.b16 %v921, %v919
  %v1374 = vpack.c.b16 %v924, %v922
  %v1375 = vpack.c.b16 %v925, %v923
  %v1376 = vpack.c.b16 %v928, %v926
  %v1377 = vpack.c.b16 %v929, %v927
  %v1378 = vpack.c.b16 %v932, %v930
  %v1379 = vpack.c.b16 %v933, %v931
  %v1380 = vpack.c.b16 %v936, %v934
  %v1381 = vpack.c.b16 %v937, %v935
  %v1382 = vpack.c.b16 %v940, %v938
  %v1383 = vpack.c.b16 %v941, %v939
  %v1384 = vpack.c.b16 %v944, %v942
  %v1385 = vpack.c.b16 %v945, %v943
  %v1386 = vpack.c.b16 %v948, %v946
  %v1387 = vpack.c.b16 %v949, %v947
  %v1388 = vpack.c.b16 %v952, %v950
  %v1389 = vpack.c.b16 %v953, %v951
  %v1390 = vpack.c.b16 %v956, %v954
  %v1391 = vpack.c.b16 %v957, %v955
  %v1392 = vpack.c.b16 %v960, %v958
  %v1393 = vpack.c.b16 %v961, %v959
  %v1394 = vpack.c.b16 %v964, %v962
  %v1395 = vpack.c.b16 %v965, %v963
  %v1396 = vpack.c.b16 %v968, %v966
  %v1397 = vpack.c.b16 %v969, %v967
  %v1398 = vpack.c.b16 %v972, %v970
  %v1399 = vpack.c.b16 %v973, %v971
  %v1400 = vpack.c.b16 %v976, %v974
  %v1401 = vpack.c.b16 %v977, %v975
  %v1402 = vpack.c.b16 %v980, %v978
  %v1403 = vpack.c.b16 %v981, %v979
  %v1404 = vpack.c.b16 %v984, %v982
  %v1405 = vpack.c.b16 %v985, %v983
  %v1406 = vpack.c.b16 %v988, %v986
  %v1407 = vpack.c.b16 %v989, %v987
  %v1408 = vpack.c.b16 %v992, %v990
  %v1409 = vpack.c.b16 %v993, %v991
  %v1410 = vpack.c.b16 %v996, %v994
  %v1411 = vpack.c.b16 %v997, %v995
  %v1412 = vpack.c.b16 %v1000, %v998
  %v1413 = vpack.c.b16 %v1001, %v999
  %v1414 = vpack.c.b16 %v1004, %v1002
  %v1415 = vpack.c.b16 %v1005, %v1003
  %v1416 = vpack.c.b16 %v1008, %v1006
  %v1417 = vpack.c.b16 %v1009, %v1007
  %v1418 = vpack.c.b16 %v1012, %v1010
  %v1419 = vpack.c.b16 %v1013, %v1011
  %v1420 = vpack.c.b16 %v1016, %v1014
  %v1421 = vpack.c.b16 %v1017, %v1015
  %v1422 = vpack.c.b16 %v1020, %v1018
  %v1423 = vpack.c.b16 %v1021, %v1019
  %v1424 = vpack.c.b16 %v1024, %v1022
  %v1425 = vpack.c.b16 %v1025, %v1023
  %v1426 = vpack.c.b16 %v1028, %v1026
  %v1427 = vpack.c.b16 %v1029, %v1027
  %v1428 = vpack.c.b16 %v1032, %v1030
  %v1429 = vpack.c.b16 %v1033, %v1031
  %v1430 = vpack.c.b16 %v1036, %v1034
  %v1431 = vpack.c.b16 %v1037, %v1035
  %v1432 = vpack.c.b16 %v1040, %v1038
  %v1433 = vpack.c.b16 %v1041, %v1039
  %v1434 = vpack.c.b16 %v1044, %v1042
  %v1435 = vpack.c.b16 %v1045, %v1043
  %v1436 = vpack.c.b16 %v1048, %v1046
  %v1437 = vpack.c.b16 %v1049, %v1047
  %v1438 = vpack.c.b16 %v1052, %v1050
  %v1439 = vpack.c.b16 %v1053, %v1051
  %v1440 = vpack.c.b16 %v1056, %v1054
  %v1441 = vpack.c.b16 %v1057, %v1055
  %v1442 = vpack.c.b16 %v1060, %v1058
  %v1443 = vpack.c.b16 %v1061, %v1059
  %v1444 = vpack.c.b16 %v1064, %v1062
  %v1445 = vpack.c.b16 %v1065, %v1063
  %v1446 = vpack.c.b16 %v1068, %v1066
  %v1447 = vpack.c.b16 %v1069, %v1067
  %v1448 = vpack.c.b16 %v1072, %v1070
  %v1449 = vpack.c.b16 %v1073, %v1071
  %v1450 = vpack.c.b16 %v1076, %v1074
  %v1451 = vpack.c.b16 %v1077, %v1075
  %v1452 = vpack.c.b16 %v1080, %v1078
  %v1453 = vpack.c.b16 %v1081, %v1079
  %v1454 = vpack.c.b16 %v1084, %v1082
  %v1455 = vpack.c.b16 %v1085, %v1083
  %v1456 = vpack.c.b16 %v1088, %v1086
  %v1457 = vpack.c.b16 %v1089, %v1087
  %v1458 = vpack.c.b16 %v1092, %v1090
  %v1459 = vpack.c.b16 %v1093, %v1091
  %v1460 = vpack.c.b16 %v1096, %v1094
  %v1461 = vpack.c.b16 %v1097, %v1095
  %v1462 = vpack.c.b16 %v1100, %v1098
  %v1463 = vpack.c.b16 %v1101, %v1099
  %v1464 = vpack.c.b16 %v1104, %v1102
  %v1465 = vpack.c.b16 %v1105, %v1103
  %v1466 = vpack.c.b16 %v1108, %v1106
  %v1467 = vpack.c.b16 %v1109, %v1107
  %v1468 = vpack.c.b16 %v1112, %v1110
  %v1469 = vpack.c.b16 %v1113, %v1111
  %v1470 = vpack.c.b16 %v1116, %v1114
  %v1471 = vpack.c.b16 %v1117, %v1115
  %v1472 = vpack.c.b16 %v1120, %v1118
  %v1473 = vpack.c.b16 %v1121, %v1119
  %v1474 = vpack.c.b16 %v1124, %v1122
  %v1475 = vpack.c.b16 %v1125, %v1123
  %v1476 = vpack.c.b16 %v1128, %v1126
  %v1477 = vpack.c.b16 %v1129, %v1127
  %v1478 = vpack.c.b16 %v1132, %v1130
  %v1479 = vpack.c.b16 %v1133, %v1131
  %v1480 = vpack.c.b16 %v1136, %v1134
  %v1481 = vpack.c.b16 %v1137, %v1135
  %v1482 = vpack.c.b16 %v1140, %v1138
  %v1483 = vpack.c.b16 %v1141, %v1139
  %v1484 = vpack.c.b16 %v1144, %v1142
  %v1485 = vpack.c.b16 %v1145, %v1143
  %v1486 = vpack.c.b16 %v1148, %v1146
  %v1487 = vpack.c.b16 %v1149, %v1147
  %v1488 = vpack.c.b16 %v1152, %v1150
  %v1489 = vpack.c.b16 %v1153, %v1151
  %v1490 = vpack.c.b16 %v1156, %v1154
  %v1491 = vpack.c.b16 %v1157, %v1155
  %v1492 = vpack.c.b16 %v1160, %v1158
  %v1493 = vpack.c.b16 %v1161, %v1159
  %v1494 = vpack.c.b16 %v1164, %v1162
  %v1495 = vpack.c.b16 %v1165, %v1163
  %v1496 = vpack.c.b16 %v1168, %v1166
  %v1497 = vpack.c.b16 %v1169, %v1167
  %v1498 = vpack.c.b16 %v1172, %v1170
  %v1499 = vpack.c.b16 %v1173, %v1171
  %v1500 = vpack.c.b16 %v1176, %v1174
  %v1501 = vpack.c.b16 %v1177, %v1175
  %v1502 = vpack.c.b16 %v1180, %v1178
  %v1503 = vpack.c.b16 %v1181, %v1179
  %v1504 = vpack.c.b16 %v1184, %v1182
  %v1505 = vpack.c.b16 %v1185, %v1183
  %v1506 = vpack.c.b16 %v1188, %v1186
  %v1507 = vpack.c.b16 %v1189, %v1187
  %v1508 = vpack.c.b16 %v1192, %v1190
  %v1509 = vpack.c.b16 %v1193, %v1191
  %v1510 = vpack.c.b16 %v1196, %v1194
  %v1511 = vpack.c.b16 %v1197, %v1195
  %v1512 = vpack.c.b16 %v1200, %v1198
  %v1513 = vpack.c.b16 %v1201, %v1199
  %v1514 = vpack.c.b16 %v1204, %v1202
  %v1515 = vpack.c.b16 %v1205, %v1203
  %v1516 = vpack.c.b16 %v1208, %v1206
  %v1517 = vpack.c.b16 %v1209, %v1207
  %v1518 = vpack.c.b16 %v1212, %v1210
  %v1519 = vpack.c.b16 %v1213, %v1211
  %v1520 = vpack.c.b16 %v1216, %v1214
  %v1521 = vpack.c.b16 %v1217, %v1215
  %v1522 = vpack.c.b16 %v1220, %v1218
  %v1523 = vpack.c.b16 %v1221, %v1219
  %v1524 = vpack.c.b16 %v1224, %v1222
  %v1525 = vpack.c.b16 %v1225, %v1223
  %v1526 = vpack.c.b16 %v1228, %v1226
  %v1527 = vpack.c.b16 %v1229, %v1227
  %v1528 = vpack.c.b16 %v1232, %v1230
  %v1529 = vpack.c.b16 %v1233, %v1231
  %v1530 = vpack.c.b16 %v1236, %v1234
  %v1531 = vpack.c.b16 %v1237, %v1235
  %v1532 = vpack.c.b16 %v1240, %v1238
  %v1533 = vpack.c.b16 %v1241, %v1239
  %v1534 = vpack.c.b16 %v1244, %v1242
  %v1535 = vpack.c.b16 %v1245, %v1243
  %v1536 = vpack.c.b16 %v1248, %v1246
  %v1537 = vpack.c.b16 %v1249, %v1247
  %1826 = vmatprep.subr.bf16.mxu0 %v1251
  %1827 = vmatpush1.bf16.msra.mxu0 %v1250
  %1828 = vmatprep.subr.bf16.mxu0 %v1253
  %1829 = vmatpush1.bf16.msra.mxu0 %v1252
  %1830 = vmatprep.subr.bf16.mxu0 %v1255
  %1831 = vmatpush1.bf16.msra.mxu0 %v1254
  %1832 = vmatprep.subr.bf16.mxu0 %v1257
  %1833 = vmatpush1.bf16.msra.mxu0 %v1256
  %1834 = vmatprep.subr.bf16.mxu0 %v1259
  %1835 = vmatpush1.bf16.msra.mxu0 %v1258
  %1836 = vmatprep.subr.bf16.mxu0 %v1261
  %1837 = vmatpush1.bf16.msra.mxu0 %v1260
  %1838 = vmatprep.subr.bf16.mxu0 %v1263
  %1839 = vmatpush1.bf16.msra.mxu0 %v1262
  %1840 = vmatprep.subr.bf16.mxu0 %v1265
  %1841 = vmatpush1.bf16.msra.mxu0 %v1264
  %1842 = vmatprep.subr.bf16.mxu0 %v1267
  %1843 = vmatpush1.bf16.msra.mxu0 %v1266
  %1844 = vmatprep.subr.bf16.mxu0 %v1269
  %1845 = vmatpush1.bf16.msra.mxu0 %v1268
  %1846 = vmatprep.subr.bf16.mxu0 %v1271
  %1847 = vmatpush1.bf16.msra.mxu0 %v1270
  %1848 = vmatprep.subr.bf16.mxu0 %v1273
  %1849 = vmatpush1.bf16.msra.mxu0 %v1272
  %1850 = vmatprep.subr.bf16.mxu0 %v1275
  %1851 = vmatpush1.bf16.msra.mxu0 %v1274
  %1852 = vmatprep.subr.bf16.mxu0 %v1277
  %1853 = vmatpush1.bf16.msra.mxu0 %v1276
  %1854 = vmatprep.subr.bf16.mxu0 %v1279
  %1855 = vmatpush1.bf16.msra.mxu0 %v1278
  %1856 = vmatprep.subr.bf16.mxu0 %v1281
  %1857 = vmatpush1.bf16.msra.mxu0 %v1280
  %1858 = vmatprep.mubr.bf16.mxu0 %v351
  %1859 = vmatmul.mubr.bf16.gmra.mrb[0].mxu0 %v350
  %v1860 = vpop.f32.mrb[0].mxu0
  %v1861 = vadd.f32 %v316, %v1860
  %v1862 = vpop.f32.mrb[0].mxu0
  %v1863 = vadd.f32 %v320, %v1862
  %v1864 = vpop.f32.mrb[0].mxu0
  %v1865 = vpop.f32.mrb[0].mxu0
  %1866 = vdwg.mxu0
  %1867 = vmatprep.subr.bf16.mxu0 %v1283
  %1868 = vmatpush1.bf16.msra.mxu0 %v1282
  %1869 = vmatprep.subr.bf16.mxu0 %v1285
  %1870 = vmatpush1.bf16.msra.mxu0 %v1284
  %1871 = vmatprep.subr.bf16.mxu0 %v1287
  %1872 = vmatpush1.bf16.msra.mxu0 %v1286
  %1873 = vmatprep.subr.bf16.mxu0 %v1289
  %1874 = vmatpush1.bf16.msra.mxu0 %v1288
  %1875 = vmatprep.subr.bf16.mxu0 %v1291
  %1876 = vmatpush1.bf16.msra.mxu0 %v1290
  %1877 = vmatprep.subr.bf16.mxu0 %v1293
  %1878 = vmatpush1.bf16.msra.mxu0 %v1292
  %1879 = vmatprep.subr.bf16.mxu0 %v1295
  %1880 = vmatpush1.bf16.msra.mxu0 %v1294
  %1881 = vmatprep.subr.bf16.mxu0 %v1297
  %1882 = vmatpush1.bf16.msra.mxu0 %v1296
  %1883 = vmatprep.subr.bf16.mxu0 %v1299
  %1884 = vmatpush1.bf16.msra.mxu0 %v1298
  %1885 = vmatprep.subr.bf16.mxu0 %v1301
  %1886 = vmatpush1.bf16.msra.mxu0 %v1300
  %1887 = vmatprep.subr.bf16.mxu0 %v1303
  %1888 = vmatpush1.bf16.msra.mxu0 %v1302
  %1889 = vmatprep.subr.bf16.mxu0 %v1305
  %1890 = vmatpush1.bf16.msra.mxu0 %v1304
  %1891 = vmatprep.subr.bf16.mxu0 %v1307
  %1892 = vmatpush1.bf16.msra.mxu0 %v1306
  %1893 = vmatprep.subr.bf16.mxu0 %v1309
  %1894 = vmatpush1.bf16.msra.mxu0 %v1308
  %1895 = vmatprep.subr.bf16.mxu0 %v1311
  %1896 = vmatpush1.bf16.msra.mxu0 %v1310
  %1897 = vmatprep.subr.bf16.mxu0 %v1313
  %1898 = vmatpush1.bf16.msra.mxu0 %v1312
  %1899 = vmatprep.mubr.bf16.mxu0 %v353
  %1900 = vmatmul.mubr.bf16.gmra.mrb[0].mxu0 %v352
  %v1901 = vpop.f32.mrb[0].mxu0
  %v1902 = vadd.f32 %v1861, %v1901
  %v1903 = vpop.f32.mrb[0].mxu0
  %v1904 = vadd.f32 %v1863, %v1903
  %v1905 = vpop.f32.mrb[0].mxu0
  %v1906 = vpop.f32.mrb[0].mxu0
  %1907 = vdwg.mxu0
  %1908 = vmatprep.subr.bf16.mxu0 %v1315
  %1909 = vmatpush1.bf16.msra.mxu0 %v1314
  %1910 = vmatprep.subr.bf16.mxu0 %v1317
  %1911 = vmatpush1.bf16.msra.mxu0 %v1316
  %1912 = vmatprep.subr.bf16.mxu0 %v1319
  %1913 = vmatpush1.bf16.msra.mxu0 %v1318
  %1914 = vmatprep.subr.bf16.mxu0 %v1321
  %1915 = vmatpush1.bf16.msra.mxu0 %v1320
  %1916 = vmatprep.subr.bf16.mxu0 %v1323
  %1917 = vmatpush1.bf16.msra.mxu0 %v1322
  %1918 = vmatprep.subr.bf16.mxu0 %v1325
  %1919 = vmatpush1.bf16.msra.mxu0 %v1324
  %1920 = vmatprep.subr.bf16.mxu0 %v1327
  %1921 = vmatpush1.bf16.msra.mxu0 %v1326
  %1922 = vmatprep.subr.bf16.mxu0 %v1329
  %1923 = vmatpush1.bf16.msra.mxu0 %v1328
  %1924 = vmatprep.subr.bf16.mxu0 %v1331
  %1925 = vmatpush1.bf16.msra.mxu0 %v1330
  %1926 = vmatprep.subr.bf16.mxu0 %v1333
  %1927 = vmatpush1.bf16.msra.mxu0 %v1332
  %1928 = vmatprep.subr.bf16.mxu0 %v1335
  %1929 = vmatpush1.bf16.msra.mxu0 %v1334
  %1930 = vmatprep.subr.bf16.mxu0 %v1337
  %1931 = vmatpush1.bf16.msra.mxu0 %v1336
  %1932 = vmatprep.subr.bf16.mxu0 %v1339
  %1933 = vmatpush1.bf16.msra.mxu0 %v1338
  %1934 = vmatprep.subr.bf16.mxu0 %v1341
  %1935 = vmatpush1.bf16.msra.mxu0 %v1340
  %1936 = vmatprep.subr.bf16.mxu0 %v1343
  %1937 = vmatpush1.bf16.msra.mxu0 %v1342
  %1938 = vmatprep.subr.bf16.mxu0 %v1345
  %1939 = vmatpush1.bf16.msra.mxu0 %v1344
  %1940 = vmatprep.mubr.bf16.mxu0 %v355
  %1941 = vmatmul.mubr.bf16.gmra.mrb[0].mxu0 %v354
  %v1942 = vpop.f32.mrb[0].mxu0
  %v1943 = vadd.f32 %v1902, %v1942
  %v1944 = vpop.f32.mrb[0].mxu0
  %v1945 = vadd.f32 %v1904, %v1944
  %v1946 = vpop.f32.mrb[0].mxu0
  %v1947 = vpop.f32.mrb[0].mxu0
  %1948 = vdwg.mxu0
  %1949 = vmatprep.subr.bf16.mxu0 %v1347
  %1950 = vmatpush1.bf16.msra.mxu0 %v1346
  %1951 = vmatprep.subr.bf16.mxu0 %v1349
  %1952 = vmatpush1.bf16.msra.mxu0 %v1348
  %1953 = vmatprep.subr.bf16.mxu0 %v1351
  %1954 = vmatpush1.bf16.msra.mxu0 %v1350
  %1955 = vmatprep.subr.bf16.mxu0 %v1353
  %1956 = vmatpush1.bf16.msra.mxu0 %v1352
  %1957 = vmatprep.subr.bf16.mxu0 %v1355
  %1958 = vmatpush1.bf16.msra.mxu0 %v1354
  %1959 = vmatprep.subr.bf16.mxu0 %v1357
  %1960 = vmatpush1.bf16.msra.mxu0 %v1356
  %1961 = vmatprep.subr.bf16.mxu0 %v1359
  %1962 = vmatpush1.bf16.msra.mxu0 %v1358
  %1963 = vmatprep.subr.bf16.mxu0 %v1361
  %1964 = vmatpush1.bf16.msra.mxu0 %v1360
  %1965 = vmatprep.subr.bf16.mxu0 %v1363
  %1966 = vmatpush1.bf16.msra.mxu0 %v1362
  %1967 = vmatprep.subr.bf16.mxu0 %v1365
  %1968 = vmatpush1.bf16.msra.mxu0 %v1364
  %1969 = vmatprep.subr.bf16.mxu0 %v1367
  %1970 = vmatpush1.bf16.msra.mxu0 %v1366
  %1971 = vmatprep.subr.bf16.mxu0 %v1369
  %1972 = vmatpush1.bf16.msra.mxu0 %v1368
  %1973 = vmatprep.subr.bf16.mxu0 %v1371
  %1974 = vmatpush1.bf16.msra.mxu0 %v1370
  %1975 = vmatprep.subr.bf16.mxu0 %v1373
  %1976 = vmatpush1.bf16.msra.mxu0 %v1372
  %1977 = vmatprep.subr.bf16.mxu0 %v1375
  %1978 = vmatpush1.bf16.msra.mxu0 %v1374
  %1979 = vmatprep.subr.bf16.mxu0 %v1377
  %1980 = vmatpush1.bf16.msra.mxu0 %v1376
  %1981 = vmatprep.mubr.bf16.mxu0 %v357
  %1982 = vmatmul.mubr.bf16.gmra.mrb[0].mxu0 %v356
  %v1983 = vpop.f32.mrb[0].mxu0
  %v1984 = vadd.f32 %v1943, %v1983
  %v1985 = vpop.f32.mrb[0].mxu0
  %v1986 = vadd.f32 %v1945, %v1985
  %v1987 = vpop.f32.mrb[0].mxu0
  %v1988 = vpop.f32.mrb[0].mxu0
  %1989 = vdwg.mxu0
  %1990 = vmatprep.subr.bf16.mxu0 %v1379
  %1991 = vmatpush1.bf16.msra.mxu0 %v1378
  %1992 = vmatprep.subr.bf16.mxu0 %v1381
  %1993 = vmatpush1.bf16.msra.mxu0 %v1380
  %1994 = vmatprep.subr.bf16.mxu0 %v1383
  %1995 = vmatpush1.bf16.msra.mxu0 %v1382
  %1996 = vmatprep.subr.bf16.mxu0 %v1385
  %1997 = vmatpush1.bf16.msra.mxu0 %v1384
  %1998 = vmatprep.subr.bf16.mxu0 %v1387
  %1999 = vmatpush1.bf16.msra.mxu0 %v1386
  %2000 = vmatprep.subr.bf16.mxu0 %v1389
  %2001 = vmatpush1.bf16.msra.mxu0 %v1388
  %2002 = vmatprep.subr.bf16.mxu0 %v1391
  %2003 = vmatpush1.bf16.msra.mxu0 %v1390
  %2004 = vmatprep.subr.bf16.mxu0 %v1393
  %2005 = vmatpush1.bf16.msra.mxu0 %v1392
  %2006 = vmatprep.subr.bf16.mxu0 %v1395
  %2007 = vmatpush1.bf16.msra.mxu0 %v1394
  %2008 = vmatprep.subr.bf16.mxu0 %v1397
  %2009 = vmatpush1.bf16.msra.mxu0 %v1396
  %2010 = vmatprep.subr.bf16.mxu0 %v1399
  %2011 = vmatpush1.bf16.msra.mxu0 %v1398
  %2012 = vmatprep.subr.bf16.mxu0 %v1401
  %2013 = vmatpush1.bf16.msra.mxu0 %v1400
  %2014 = vmatprep.subr.bf16.mxu0 %v1403
  %2015 = vmatpush1.bf16.msra.mxu0 %v1402
  %2016 = vmatprep.subr.bf16.mxu0 %v1405
  %2017 = vmatpush1.bf16.msra.mxu0 %v1404
  %2018 = vmatprep.subr.bf16.mxu0 %v1407
  %2019 = vmatpush1.bf16.msra.mxu0 %v1406
  %2020 = vmatprep.subr.bf16.mxu0 %v1409
  %2021 = vmatpush1.bf16.msra.mxu0 %v1408
  %2022 = vmatprep.mubr.bf16.mxu0 %v359
  %2023 = vmatmul.mubr.bf16.gmra.mrb[0].mxu0 %v358
  %v2024 = vpop.f32.mrb[0].mxu0
  %v2025 = vadd.f32 %v1984, %v2024
  %v2026 = vpop.f32.mrb[0].mxu0
  %v2027 = vadd.f32 %v1986, %v2026
  %v2028 = vpop.f32.mrb[0].mxu0
  %v2029 = vpop.f32.mrb[0].mxu0
  %2030 = vdwg.mxu0
  %2031 = vmatprep.subr.bf16.mxu0 %v1411
  %2032 = vmatpush1.bf16.msra.mxu0 %v1410
  %2033 = vmatprep.subr.bf16.mxu0 %v1413
  %2034 = vmatpush1.bf16.msra.mxu0 %v1412
  %2035 = vmatprep.subr.bf16.mxu0 %v1415
  %2036 = vmatpush1.bf16.msra.mxu0 %v1414
  %2037 = vmatprep.subr.bf16.mxu0 %v1417
  %2038 = vmatpush1.bf16.msra.mxu0 %v1416
  %2039 = vmatprep.subr.bf16.mxu0 %v1419
  %2040 = vmatpush1.bf16.msra.mxu0 %v1418
  %2041 = vmatprep.subr.bf16.mxu0 %v1421
  %2042 = vmatpush1.bf16.msra.mxu0 %v1420
  %2043 = vmatprep.subr.bf16.mxu0 %v1423
  %2044 = vmatpush1.bf16.msra.mxu0 %v1422
  %2045 = vmatprep.subr.bf16.mxu0 %v1425
  %2046 = vmatpush1.bf16.msra.mxu0 %v1424
  %2047 = vmatprep.subr.bf16.mxu0 %v1427
  %2048 = vmatpush1.bf16.msra.mxu0 %v1426
  %2049 = vmatprep.subr.bf16.mxu0 %v1429
  %2050 = vmatpush1.bf16.msra.mxu0 %v1428
  %2051 = vmatprep.subr.bf16.mxu0 %v1431
  %2052 = vmatpush1.bf16.msra.mxu0 %v1430
  %2053 = vmatprep.subr.bf16.mxu0 %v1433
  %2054 = vmatpush1.bf16.msra.mxu0 %v1432
  %2055 = vmatprep.subr.bf16.mxu0 %v1435
  %2056 = vmatpush1.bf16.msra.mxu0 %v1434
  %2057 = vmatprep.subr.bf16.mxu0 %v1437
  %2058 = vmatpush1.bf16.msra.mxu0 %v1436
  %2059 = vmatprep.subr.bf16.mxu0 %v1439
  %2060 = vmatpush1.bf16.msra.mxu0 %v1438
  %2061 = vmatprep.subr.bf16.mxu0 %v1441
  %2062 = vmatpush1.bf16.msra.mxu0 %v1440
  %2063 = vmatprep.mubr.bf16.mxu0 %v361
  %2064 = vmatmul.mubr.bf16.gmra.mrb[0].mxu0 %v360
  %v2065 = vpop.f32.mrb[0].mxu0
  %v2066 = vadd.f32 %v2025, %v2065
  %v2067 = vpop.f32.mrb[0].mxu0
  %v2068 = vadd.f32 %v2027, %v2067
  %v2069 = vpop.f32.mrb[0].mxu0
  %v2070 = vpop.f32.mrb[0].mxu0
  %2071 = vdwg.mxu0
  %2072 = vmatprep.subr.bf16.mxu0 %v1443
  %2073 = vmatpush1.bf16.msra.mxu0 %v1442
  %2074 = vmatprep.subr.bf16.mxu0 %v1445
  %2075 = vmatpush1.bf16.msra.mxu0 %v1444
  %2076 = vmatprep.subr.bf16.mxu0 %v1447
  %2077 = vmatpush1.bf16.msra.mxu0 %v1446
  %2078 = vmatprep.subr.bf16.mxu0 %v1449
  %2079 = vmatpush1.bf16.msra.mxu0 %v1448
  %2080 = vmatprep.subr.bf16.mxu0 %v1451
  %2081 = vmatpush1.bf16.msra.mxu0 %v1450
  %2082 = vmatprep.subr.bf16.mxu0 %v1453
  %2083 = vmatpush1.bf16.msra.mxu0 %v1452
  %2084 = vmatprep.subr.bf16.mxu0 %v1455
  %2085 = vmatpush1.bf16.msra.mxu0 %v1454
  %2086 = vmatprep.subr.bf16.mxu0 %v1457
  %2087 = vmatpush1.bf16.msra.mxu0 %v1456
  %2088 = vmatprep.subr.bf16.mxu0 %v1459
  %2089 = vmatpush1.bf16.msra.mxu0 %v1458
  %2090 = vmatprep.subr.bf16.mxu0 %v1461
  %2091 = vmatpush1.bf16.msra.mxu0 %v1460
  %2092 = vmatprep.subr.bf16.mxu0 %v1463
  %2093 = vmatpush1.bf16.msra.mxu0 %v1462
  %2094 = vmatprep.subr.bf16.mxu0 %v1465
  %2095 = vmatpush1.bf16.msra.mxu0 %v1464
  %2096 = vmatprep.subr.bf16.mxu0 %v1467
  %2097 = vmatpush1.bf16.msra.mxu0 %v1466
  %2098 = vmatprep.subr.bf16.mxu0 %v1469
  %2099 = vmatpush1.bf16.msra.mxu0 %v1468
  %2100 = vmatprep.subr.bf16.mxu0 %v1471
  %2101 = vmatpush1.bf16.msra.mxu0 %v1470
  %2102 = vmatprep.subr.bf16.mxu0 %v1473
  %2103 = vmatpush1.bf16.msra.mxu0 %v1472
  %2104 = vmatprep.mubr.bf16.mxu0 %v363
  %2105 = vmatmul.mubr.bf16.gmra.mrb[0].mxu0 %v362
  %v2106 = vpop.f32.mrb[0].mxu0
  %v2107 = vadd.f32 %v2066, %v2106
  %v2108 = vpop.f32.mrb[0].mxu0
  %v2109 = vadd.f32 %v2068, %v2108
  %v2110 = vpop.f32.mrb[0].mxu0
  %v2111 = vpop.f32.mrb[0].mxu0
  %2112 = vdwg.mxu0
  %2113 = vmatprep.subr.bf16.mxu0 %v1475
  %2114 = vmatpush1.bf16.msra.mxu0 %v1474
  %2115 = vmatprep.subr.bf16.mxu0 %v1477
  %2116 = vmatpush1.bf16.msra.mxu0 %v1476
  %2117 = vmatprep.subr.bf16.mxu0 %v1479
  %2118 = vmatpush1.bf16.msra.mxu0 %v1478
  %2119 = vmatprep.subr.bf16.mxu0 %v1481
  %2120 = vmatpush1.bf16.msra.mxu0 %v1480
  %2121 = vmatprep.subr.bf16.mxu0 %v1483
  %2122 = vmatpush1.bf16.msra.mxu0 %v1482
  %2123 = vmatprep.subr.bf16.mxu0 %v1485
  %2124 = vmatpush1.bf16.msra.mxu0 %v1484
  %2125 = vmatprep.subr.bf16.mxu0 %v1487
  %2126 = vmatpush1.bf16.msra.mxu0 %v1486
  %2127 = vmatprep.subr.bf16.mxu0 %v1489
  %2128 = vmatpush1.bf16.msra.mxu0 %v1488
  %2129 = vmatprep.subr.bf16.mxu0 %v1491
  %2130 = vmatpush1.bf16.msra.mxu0 %v1490
  %2131 = vmatprep.subr.bf16.mxu0 %v1493
  %2132 = vmatpush1.bf16.msra.mxu0 %v1492
  %2133 = vmatprep.subr.bf16.mxu0 %v1495
  %2134 = vmatpush1.bf16.msra.mxu0 %v1494
  %2135 = vmatprep.subr.bf16.mxu0 %v1497
  %2136 = vmatpush1.bf16.msra.mxu0 %v1496
  %2137 = vmatprep.subr.bf16.mxu0 %v1499
  %2138 = vmatpush1.bf16.msra.mxu0 %v1498
  %2139 = vmatprep.subr.bf16.mxu0 %v1501
  %2140 = vmatpush1.bf16.msra.mxu0 %v1500
  %2141 = vmatprep.subr.bf16.mxu0 %v1503
  %2142 = vmatpush1.bf16.msra.mxu0 %v1502
  %2143 = vmatprep.subr.bf16.mxu0 %v1505
  %2144 = vmatpush1.bf16.msra.mxu0 %v1504
  %2145 = vmatprep.mubr.bf16.mxu0 %v365
  %2146 = vmatmul.mubr.bf16.gmra.mrb[0].mxu0 %v364
  %v2147 = vpop.f32.mrb[0].mxu0
  %v2148 = vadd.f32 %v2107, %v2147
  %v2149 = vpop.f32.mrb[0].mxu0
  %v2150 = vadd.f32 %v2109, %v2149
  %v2151 = vpop.f32.mrb[0].mxu0
  %v2152 = vpop.f32.mrb[0].mxu0
  %2153 = vdwg.mxu0
  %2154 = vmatprep.subr.bf16.mxu0 %v1507
  %2155 = vmatpush1.bf16.msra.mxu0 %v1506
  %2156 = vmatprep.subr.bf16.mxu0 %v1509
  %2157 = vmatpush1.bf16.msra.mxu0 %v1508
  %2158 = vmatprep.subr.bf16.mxu0 %v1511
  %2159 = vmatpush1.bf16.msra.mxu0 %v1510
  %2160 = vmatprep.subr.bf16.mxu0 %v1513
  %2161 = vmatpush1.bf16.msra.mxu0 %v1512
  %2162 = vmatprep.subr.bf16.mxu0 %v1515
  %2163 = vmatpush1.bf16.msra.mxu0 %v1514
  %2164 = vmatprep.subr.bf16.mxu0 %v1517
  %2165 = vmatpush1.bf16.msra.mxu0 %v1516
  %2166 = vmatprep.subr.bf16.mxu0 %v1519
  %2167 = vmatpush1.bf16.msra.mxu0 %v1518
  %2168 = vmatprep.subr.bf16.mxu0 %v1521
  %2169 = vmatpush1.bf16.msra.mxu0 %v1520
  %2170 = vmatprep.subr.bf16.mxu0 %v1523
  %2171 = vmatpush1.bf16.msra.mxu0 %v1522
  %2172 = vmatprep.subr.bf16.mxu0 %v1525
  %2173 = vmatpush1.bf16.msra.mxu0 %v1524
  %2174 = vmatprep.subr.bf16.mxu0 %v1527
  %2175 = vmatpush1.bf16.msra.mxu0 %v1526
  %2176 = vmatprep.subr.bf16.mxu0 %v1529
  %2177 = vmatpush1.bf16.msra.mxu0 %v1528
  %2178 = vmatprep.subr.bf16.mxu0 %v1531
  %2179 = vmatpush1.bf16.msra.mxu0 %v1530
  %2180 = vmatprep.subr.bf16.mxu0 %v1533
  %2181 = vmatpush1.bf16.msra.mxu0 %v1532
  %2182 = vmatprep.subr.bf16.mxu0 %v1535
  %2183 = vmatpush1.bf16.msra.mxu0 %v1534
  %2184 = vmatprep.subr.bf16.mxu0 %v1537
  %2185 = vmatpush1.bf16.msra.mxu0 %v1536
  %2186 = vmatprep.mubr.bf16.mxu0 %v367
  %2187 = vmatmul.mubr.bf16.gmra.mrb[0].mxu0 %v366
  %v2188 = vpop.f32.mrb[0].mxu0
  %v2189 = vadd.f32 %v2148, %v2188
  %v2190 = vpop.f32.mrb[0].mxu0
  %v2191 = vadd.f32 %v2150, %v2190
  %v2192 = vpop.f32.mrb[0].mxu0
  %v2193 = vpop.f32.mrb[0].mxu0
  %2194 = vdwg.mxu0
  %v2195 = vmax.f32 %v2189, 0.0
  %v2196 = vmax.f32 %v2191, 0.0
  %v2197 = vpack.c.bf16 %v2195, %v2195
  %v2198 = vpack.c.bf16 %v2196, %v2196
  %v2201 = vunpack.c.l.b16 %v2197
  %v2202 = vunpack.c.l.b16 %v2198
  %v2203 = vpack.c.b16 %v2202, %v2201
  %2205 = vst [vmem:[%s3] sm:$0xff] %v2203
  // Predicated region
  $region14: #{resnet_forward.26} parent=0 // pred_check
    _
  $region15: #{resnet_forward.26} parent=0 // pred_check_branch
    %2207 = sbr.rel (0) target = $region17
  $region16: #{resnet_forward.26} parent=0 // pred_region
    _
  $region17: #{resnet_forward.26} parent=0 // pred_fallthru
    _
  // Predicated region
  $region18: #{resnet_forward.26} parent=0 // pred_check
    _
  $region19: #{resnet_forward.26} parent=0 // pred_check_branch
    %2209 = sbr.rel (0) target = $region21
  $region20: #{resnet_forward.26} parent=0 // pred_region
    _
  $region21: #{resnet_forward.26} parent=0 // pred_fallthru
    _

</llo_original>
